<compile_context>
chip_gen: v7x
topology: tpu7x:2x2x1
jax: 0.10.0
libtpu: 0.0.40
codegen_flags: <defaults>
</compile_context>

<pallas_src>
import functools
from collections import defaultdict

import numpy as np
import jax
import jax.numpy as jnp
from jax import lax
from jax.experimental import pallas as pl
from jax.experimental.pallas import tpu as pltpu

_EPS = 1e-8
_LANE_OUT = 128          # lane-dense output row per mask (values in lanes 0..3)
_MIN_N_PAD = 128         # keep the 128-lane axis full
_MB_MAX = 8              # max masks per grid step
_POINTS_PER_STEP = 16384  # cap mb * n_pad -> bounds VMEM and unrolled live ranges


def _next_pow2(n):
    return 1 << int(np.ceil(np.log2(max(int(n), 1))))


# ----------------------------------------------------------------------------
# Pallas kernel: discriminative loss (intra / inter / reg) for a block of masks
# ----------------------------------------------------------------------------
def _dloss_kernel(nvalid_ref, x_ref, lbl_ref, o_ref, *, mb, c_max,
                  intra_margin, inter_margin, intra_w, inter_w, reg_w):
    """x_ref:   (mb, D, N) f32  points on the 128-lane axis (zero-padded)
       lbl_ref: (mb, 1, N) i32  cluster slot id per point, -1 = padding
       o_ref:   (mb, 1, 128) f32 [loss, w*intra, w*inter, w*reg, 0, ...] per mask
    """
    C = c_max

    # Skip grid steps whose masks are all padding (real mask count in SMEM).
    @pl.when(pl.program_id(0) * mb < nvalid_ref[0])
    def _():
        # hoisted broadcasts (JAX does not CSE broadcast_in_dim inside loops)
        lane = lax.broadcasted_iota(jnp.int32, (1, _LANE_OUT), 1)
        rr = lax.broadcasted_iota(jnp.int32, (C, C), 0)
        cc = lax.broadcasted_iota(jnp.int32, (C, C), 1)
        eye = (rr == cc).astype(jnp.float32)
        not_self = 1.0 - eye

        for i in range(mb):                      # static unroll, mb <= 8
            X = x_ref[i]                         # (D, N) f32
            lbl = lbl_ref[i]                     # (1, N) i32
            N = X.shape[1]

            # one-hot membership (C, N); padded points (label -1) hit no row
            cid = lax.broadcasted_iota(jnp.int32, (C, N), 0)
            M = (lbl == cid).astype(jnp.float32)                       # (C, N)
            counts = jnp.sum(M, axis=1, keepdims=True)                 # (C, 1)
            valid = (counts > 0.5).astype(jnp.float32)                 # (C, 1)
            n_c = jnp.sum(valid, axis=0, keepdims=True)                # (1, 1)
            n_c_safe = jnp.maximum(n_c, 1.0)

            # per-cluster sums: single MXU pass, K = N streams through the MXU
            # TODO(synk): add precision=lax.Precision.HIGHEST if bit-tighter
            # parity with the f32 reference is ever required.
            sums = lax.dot_general(M, X, (((1,), (1,)), ((), ())),
                                   preferred_element_type=jnp.float32)  # (C, D)
            means = sums / jnp.maximum(counts, 1.0)                     # (C, D)

            # ---- intra-cluster (variance) loss: N stays lane-dense ----------
            point_means = lax.dot_general(
                means, M, (((0,), (0,)), ((), ())),
                preferred_element_type=jnp.float32)                     # (D, N)
            diff = X - point_means + _EPS
            dists = jnp.sqrt(jnp.sum(diff * diff, axis=0, keepdims=True))  # (1, N)
            hinge = jnp.maximum(dists - intra_margin, 0.0)
            hsq = hinge * hinge                                          # (1, N)
            per_cluster = jnp.sum(M * hsq, axis=1, keepdims=True)        # (C, 1)
            intra = jnp.sum(per_cluster / jnp.maximum(counts, 1.0) * valid,
                            axis=0, keepdims=True) / n_c_safe            # (1, 1)

            # ---- inter-cluster (distance) loss: tiny (C, C, D) pairwise -----
            valid_1c = jnp.sum(eye * valid, axis=0, keepdims=True)       # (1, C)
            pair_valid = valid * valid_1c                                # (C, C)
            dvec = means[:, None, :] - means[None, :, :] + _EPS          # (C, C, D)
            dist_cc = jnp.sqrt(jnp.sum(dvec * dvec, axis=2))             # (C, C)
            h = jnp.maximum(2.0 * inter_margin - dist_cc, 0.0)
            inter_sum = jnp.sum(jnp.sum(h * h * not_self * pair_valid,
                                        axis=1, keepdims=True),
                                axis=0, keepdims=True)                   # (1, 1)
            denom = jnp.maximum((n_c - 1.0) * n_c, 1.0)
            inter = jnp.where(n_c >= 2.0, inter_sum / denom, 0.0)        # (1, 1)

            # ---- regularization loss ----------------------------------------
            mm = means + _EPS
            regs = jnp.sqrt(jnp.sum(mm * mm, axis=1, keepdims=True))     # (C, 1)
            reg = jnp.sum(regs * valid, axis=0, keepdims=True) / n_c_safe

            wi = intra_w * intra
            wd = inter_w * inter
            wr = reg_w * reg
            loss = wi + wd + wr

            # lane-dense (1, 128) row: [loss, w*intra, w*inter, w*reg, 0, ...]
            row = (jnp.where(lane == 0, loss, 0.0)
                   + jnp.where(lane == 1, wi, 0.0)
                   + jnp.where(lane == 2, wd, 0.0)
                   + jnp.where(lane == 3, wr, 0.0))
            o_ref[i, :, :] = row


@functools.lru_cache(maxsize=None)
def _build_dloss_call(m_pad, n_pad, d, mb, c_max, intra_margin, inter_margin,
                      intra_w, inter_w, reg_w):
    # TODO(synk): masks beyond ~250K points per mask need an extra N-tile grid
    # axis ("arbitrary") with VMEM accumulators to stay under v7x's 64 MiB VMEM.
    # TODO(synk): sweep pipeline_mode=pl.Buffered(3) on the input specs.
    # TODO(synk): on v7x, split the mask axis across the two TensorCores with
    # CORE_PARALLEL / pl.core_map once verified on hardware.
    kernel = functools.partial(
        _dloss_kernel, mb=mb, c_max=c_max, intra_margin=intra_margin,
        inter_margin=inter_margin, intra_w=intra_w, inter_w=inter_w,
        reg_w=reg_w)
    # explicit scoped-VMEM budget: double-buffered inputs + unrolled scratch;
    # v5e's default scoped limit is only 16 MiB, v7x physical VMEM is 64 MiB.
    in_bytes = (d * 4 + 4) * mb * n_pad
    vmem_limit = int(min(48 << 20, max(16 << 20, 8 * in_bytes + (2 << 20))))
    call = pl.pallas_call(
        kernel,
        out_shape=jax.ShapeDtypeStruct((m_pad, 1, _LANE_OUT), jnp.float32),
        grid_spec=pltpu.PrefetchScalarGridSpec(
            num_scalar_prefetch=1,            # real mask count -> skip pad steps
            grid=(m_pad // mb,),
            in_specs=[pl.BlockSpec((mb, d, n_pad), lambda g, nv: (g, 0, 0)),
                      pl.BlockSpec((mb, 1, n_pad), lambda g, nv: (g, 0, 0))],
            out_specs=pl.BlockSpec((mb, 1, _LANE_OUT), lambda g, nv: (g, 0, 0))),
        compiler_params=pltpu.CompilerParams(
            dimension_semantics=("parallel",),
            vmem_limit_bytes=vmem_limit),
    )
    return jax.jit(call)


# ----------------------------------------------------------------------------
# Host-side glue (label unique / masking, metric), mirroring the torch module
# ----------------------------------------------------------------------------
def _adjusted_rand_score(labels_pred, labels_true):
    # TODO(synk): ARI is a combinatorial host-side metric (sklearn in the
    # original); it has no Pallas hot path, so it is computed here in numpy.
    labels_pred = np.asarray(labels_pred)
    labels_true = np.asarray(labels_true)
    n = labels_true.shape[0]
    _, ti = np.unique(labels_true, return_inverse=True)
    _, pi = np.unique(labels_pred, return_inverse=True)
    cont = np.zeros((ti.max() + 1, pi.max() + 1), dtype=np.int64)
    np.add.at(cont, (ti, pi), 1)
    comb = lambda x: x * (x - 1) / 2.0
    sum_comb = comb(cont.astype(np.float64)).sum()
    sum_a = comb(cont.sum(axis=1).astype(np.float64)).sum()
    sum_b = comb(cont.sum(axis=0).astype(np.float64)).sum()
    total = comb(float(n))
    if total <= 0:
        return 1.0
    expected = sum_a * sum_b / total
    max_index = (sum_a + sum_b) / 2.0
    if max_index == expected:
        return 1.0
    return float((sum_comb - expected) / (max_index - expected))


def _heuristic_accuracy(feats, labels):
    feats = np.asarray(feats)
    labels = np.asarray(labels)
    uniq = np.unique(labels)
    means = np.stack([feats[labels == c].mean(0) for c in uniq])
    d2 = ((feats[:, None, :] - means[None, :, :]) ** 2).sum(-1)
    pred = np.argmin(d2, axis=1)
    return _adjusted_rand_score(pred, labels)


class DiscriminativeLossPallas:
    def __init__(self, cfg=None, use_pallas=True):
        # deterministic defaults; same as the PyTorch module's config defaults
        self.loss_params = {
            'intra_weight': 1.0, 'inter_weight': 1.0, 'reg_weight': 0.001,
            'intra_margin': 0.5, 'inter_margin': 1.5, 'norm': 2}
        self.use_segmentation = True
        self.use_pallas = use_pallas

    # --- batched kernel driver ------------------------------------------------
    def _run_batched_kernel(self, mask_feats, mask_clabels):
        """Run the discriminative-loss kernel for a list of masks, bucketed by
        padded point count.  Returns (num_masks, 4) [loss, intra, inter, reg]."""
        p = self.loss_params
        m = len(mask_feats)
        if m == 0:
            return np.zeros((0, 4), np.float32)
        d = int(np.asarray(mask_feats[0]).shape[1])
        # TODO(synk): cluster-id remapping uses host-side np.unique; a fully
        # on-device sort/unique is out of scope.
        slot_list, ncl_list, sizes = [], [], []
        for f, c in zip(mask_feats, mask_clabels):
            sizes.append(int(np.asarray(f).shape[0]))
            uniq, inv = np.unique(np.asarray(c), return_inverse=True)
            slot_list.append(inv.reshape(-1).astype(np.int32))
            ncl_list.append(len(uniq))

        # bucket masks by power-of-two padded size (small masks don't pay for
        # the largest mask; distinct events reuse the same compiled kernels)
        buckets = defaultdict(list)
        for j, n in enumerate(sizes):
            buckets[max(_MIN_N_PAD, _next_pow2(n))].append(j)

        out = np.zeros((m, 4), np.float32)
        for n_pad, idxs in sorted(buckets.items()):
            mb = int(max(1, min(_MB_MAX, _POINTS_PER_STEP // n_pad)))
            nblk = _next_pow2(int(np.ceil(len(idxs) / mb)))   # bound recompiles
            m_pad = nblk * mb
            # cluster-slot capacity per bucket: multiple of 8 sublanes, >= max
            # observed cluster count (no hard C_MAX cap anymore)
            c_max = int(max(8, int(np.ceil(max(ncl_list[j] for j in idxs) / 8.0)) * 8))
            feats = np.zeros((m_pad, d, n_pad), np.float32)
            slots = np.full((m_pad, 1, n_pad), -1, np.int32)
            for k, j in enumerate(idxs):
                f = np.asarray(mask_feats[j], np.float32)
                n = f.shape[0]
                feats[k, :, :n] = f.T              # lane-dense: points on lanes
                slots[k, 0, :n] = slot_list[j]
            fn = _build_dloss_call(m_pad, n_pad, d, mb, c_max,
                                   float(p['intra_margin']), float(p['inter_margin']),
                                   float(p['intra_weight']), float(p['inter_weight']),
                                   float(p['reg_weight']))
            nvalid = jnp.asarray([len(idxs)], dtype=jnp.int32)
            o = np.asarray(fn(nvalid, jnp.asarray(feats), jnp.asarray(slots)))
            for k, j in enumerate(idxs):
                out[j] = o[k, 0, :4]
        return out

    # --- per-mask combined loss ----------------------------------------------
    def combine(self, feats, labels):
        if self.use_pallas:
            comp = self._run_batched_kernel(
                [np.asarray(feats, np.float32)], [np.asarray(labels)])[0]
            return {'loss': float(comp[0]), 'intra_loss': float(comp[1]),
                    'inter_loss': float(comp[2]), 'reg_loss': float(comp[3])}
        return self._combine_numpy(np.asarray(feats, np.float32),
                                   np.asarray(labels))

    def _combine_numpy(self, feats, labels):
        # pure-numpy reference of the torch `combine` (used for validation)
        p = self.loss_params
        uniq = np.unique(labels)
        means = np.stack([feats[labels == c].mean(0) for c in uniq])
        nc = len(uniq)
        intra = 0.0
        for i, c in enumerate(uniq):
            d = np.linalg.norm(feats[labels == c] - means[i] + _EPS, axis=1)
            intra += np.mean(np.maximum(d - p['intra_margin'], 0.0) ** 2)
        intra /= nc
        inter = 0.0
        if nc >= 2:
            for i in range(nc):
                for j in range(nc):
                    if i != j:
                        dd = np.linalg.norm(means[i] - means[j] + _EPS)
                        inter += np.maximum(2.0 * p['inter_margin'] - dd, 0.0) ** 2
            inter /= float((nc - 1) * nc)
        reg = float(np.mean(np.linalg.norm(means + _EPS, axis=1)))
        loss = (p['intra_weight'] * intra + p['inter_weight'] * inter
                + p['reg_weight'] * reg)
        return {'loss': loss, 'intra_loss': p['intra_weight'] * intra,
                'inter_loss': p['inter_weight'] * inter,
                'reg_loss': p['reg_weight'] * reg}

    # --- per-semantic-class wrapper (reference / non-batched path) ------------
    def combine_multiclass(self, feats, slabels, clabels):
        loss, acc_segs = defaultdict(list), {}
        for sc in np.unique(slabels):
            idx = slabels == sc
            blob = self.combine(feats[idx], clabels[idx])
            for k, v in blob.items():
                loss[k].append(v)
            acc_segs['accuracy_{}'.format(int(sc))] = _heuristic_accuracy(
                feats[idx], clabels[idx])
        return loss, acc_segs

    # --- forward: batched Pallas path -----------------------------------------
    def _forward_batched(self, out, semantic_labels, group_labels):
        num_gpus = len(semantic_labels)
        mask_feats, mask_clabels, mask_group = [], [], []
        groups = []                                 # one entry per (gpu, batch)
        for i in range(num_gpus):
            sl = np.asarray(semantic_labels[i])
            gl = np.asarray(group_labels[i])
            emb = np.asarray(out['cluster_feature'][i], dtype=np.float32)
            slabels = sl[:, -1].astype(np.int32)
            clabels = gl[:, -1]
            batch_idx = sl[:, 3]
            for bidx in np.unique(batch_idx):
                msk = batch_idx == bidx
                eb, sb, cb = emb[msk], slabels[msk], clabels[msk]
                gkey = len(groups)
                groups.append((i, bidx))
                if self.use_segmentation:
                    for sc in np.unique(sb):
                        idx = sb == sc
                        mask_feats.append(eb[idx])
                        mask_clabels.append(cb[idx])
                        mask_group.append((gkey, int(sc)))
                else:
                    mask_feats.append(eb)
                    mask_clabels.append(cb)
                    mask_group.append((gkey, None))

        # one device program per size bucket for all masks of the event
        per_mask = self._run_batched_kernel(mask_feats, mask_clabels)  # (M, 4)

        loss, accuracy = defaultdict(list), defaultdict(list)
        keys4 = ('loss', 'intra_loss', 'inter_loss', 'reg_loss')
        for gkey in range(len(groups)):
            idxs = [j for j, (g, _) in enumerate(mask_group) if g == gkey]
            comp = per_mask[idxs]                                     # (nc, 4)
            for ki, k in enumerate(keys4):
                loss[k].append(float(comp[:, ki].mean()))
            if self.use_segmentation:
                accs = {}
                for j in idxs:
                    _, sc = mask_group[j]
                    accs['accuracy_{}'.format(sc)] = _heuristic_accuracy(
                        mask_feats[j], mask_clabels[j])
                for s, a in accs.items():
                    accuracy[s].append(a)
                accuracy['accuracy'].append(sum(accs.values()) / len(accs))
            else:
                accuracy['accuracy'].append(_heuristic_accuracy(
                    mask_feats[idxs[0]], mask_clabels[idxs[0]]))

        res = {}
        for k, v in loss.items():
            res[k] = jnp.asarray(sum(v) / len(v), dtype=jnp.float32)
        for k, v in accuracy.items():
            res[k] = sum(v) / len(v)
        return res

    # --- forward: reference (numpy) path ---------------------------------------
    def _forward_reference(self, out, semantic_labels, group_labels):
        num_gpus = len(semantic_labels)
        loss, accuracy = defaultdict(list), defaultdict(list)
        for i in range(num_gpus):
            sl = np.asarray(semantic_labels[i])
            gl = np.asarray(group_labels[i])
            emb = np.asarray(out['cluster_feature'][i], dtype=np.float32)
            slabels = sl[:, -1].astype(np.int32)
            clabels = gl[:, -1]
            batch_idx = sl[:, 3]
            for bidx in np.unique(batch_idx):
                msk = batch_idx == bidx
                eb, sb, cb = emb[msk], slabels[msk], clabels[msk]
                if self.use_segmentation:
                    loss_dict, acc_segs = self.combine_multiclass(eb, sb, cb)
                    for k, v in loss_dict.items():
                        loss[k].append(sum(v) / len(v))
                    for s, a in acc_segs.items():
                        accuracy[s].append(a)
                    accuracy['accuracy'].append(
                        sum(acc_segs.values()) / len(acc_segs.values()))
                else:
                    blob = self.combine(eb, cb)
                    for k, v in blob.items():
                        loss[k].append(v)
                    accuracy['accuracy'].append(_heuristic_accuracy(eb, cb))
        loss_avg = {k: sum(v) / len(v) for k, v in loss.items()}
        acc_avg = {k: sum(v) / len(v) for k, v in accuracy.items()}
        res = {}
        res.update(loss_avg)
        res.update(acc_avg)
        return res

    def forward(self, out, semantic_labels, group_labels):
        if self.use_pallas:
            return self._forward_batched(out, semantic_labels, group_labels)
        return self._forward_reference(out, semantic_labels, group_labels)


# ----------------------------------------------------------------------------
if __name__ == "__main__":
    key = jax.random.PRNGKey(0)
    N, D = 256, 8
    kf, kb, ks, kc, kx = jax.random.split(key, 5)

    features = jax.random.normal(kf, (N, D), dtype=jnp.float32)
    batch_idx = jax.random.randint(kb, (N,), 0, 2)          # 2 batches
    slab = jax.random.randint(ks, (N,), 0, 3)                # 3 semantic classes
    clab = jax.random.randint(kc, (N,), 0, 4)                # up to 4 clusters
    coords = jax.random.uniform(kx, (N, 3), dtype=jnp.float32) * 16.0

    semantic_labels = [jnp.concatenate(
        [coords, batch_idx[:, None].astype(jnp.float32),
         slab[:, None].astype(jnp.float32)], axis=1)]
    group_labels = [jnp.concatenate(
        [coords, batch_idx[:, None].astype(jnp.float32),
         clab[:, None].astype(jnp.float32)], axis=1)]
    out = {'cluster_feature': [features]}

    loss_fn = DiscriminativeLossPallas(use_pallas=True)
    res = loss_fn.forward(out, semantic_labels, group_labels)
    jax.block_until_ready(res['loss'])

    # validate against the pure-numpy reference of the same forward
    ref_fn = DiscriminativeLossPallas(use_pallas=False)
    res_ref = ref_fn.forward(out, semantic_labels, group_labels)
    for k in ('loss', 'intra_loss', 'inter_loss', 'reg_loss'):
        np.testing.assert_allclose(float(res[k]), float(res_ref[k]),
                                   rtol=2e-3, atol=1e-5)

    print("KERNEL_OK")
</pallas_src>

<mosaic_0001>
module attributes {stable_mosaic.version = 11 : i64} {
  func.func @_dloss_kernel(%arg0: i32, %arg1: memref<1xi32, #tpu.memory_space<smem>>, %arg2: memref<8x8x128xf32, #tpu.memory_space<vmem>>, %arg3: memref<8x1x128xi32, #tpu.memory_space<vmem>>, %arg4: memref<8x1x128xf32, #tpu.memory_space<vmem>>) attributes {dimension_semantics = [#tpu.dimension_semantics<parallel>], iteration_bounds = array<i64: 1>, scalar_prefetch = 1 : i64, scratch_operands = 0 : i64, tpu.core_type = #tpu.core_type<tc>, window_params = [{transform_indices = @transform_0, window_bounds = array<i64: 8, 8, 128>}, {transform_indices = @transform_1, window_bounds = array<i64: 8, 1, 128>}, {transform_indices = @transform_2, window_bounds = array<i64: 8, 1, 128>}]} {
    %c8_i32 = arith.constant 8 : i32
    %0 = arith.muli %arg0, %c8_i32 : i32
    %c0 = arith.constant 0 : index
    %1 = memref.load %arg1[%c0] : memref<1xi32, #tpu.memory_space<smem>>
    %2 = arith.cmpi slt, %0, %1 : i32
    %3 = arith.extui %2 : i1 to i32
    %c0_i32 = arith.constant 0 : i32
    %4 = arith.cmpi ne, %3, %c0_i32 : i32
    scf.if %4 {
      %5 = tpu.iota {dimensions = array<i32: 1>} : vector<1x128xi32>
      %6 = tpu.iota {dimensions = array<i32: 0>} : vector<8x8xi32>
      %7 = tpu.iota {dimensions = array<i32: 1>} : vector<8x8xi32>
      %8 = arith.cmpi eq, %6, %7 : vector<8x8xi32>
      %9 = arith.extui %8 : vector<8x8xi1> to vector<8x8xi32>
      %10 = arith.sitofp %9 : vector<8x8xi32> to vector<8x8xf32>
      %cst = arith.constant 1.000000e+00 : f32
      %11 = vector.broadcast %cst : f32 to vector<8x8xf32>
      %12 = arith.subf %11, %10 : vector<8x8xf32>
      %c0_0 = arith.constant 0 : index
      %c0_1 = arith.constant 0 : index
      %c0_2 = arith.constant 0 : index
      %13 = vector.load %arg2[%c0_0, %c0_1, %c0_2] : memref<8x8x128xf32, #tpu.memory_space<vmem>>, vector<1x8x128xf32>
      %14 = vector.shape_cast %13 : vector<1x8x128xf32> to vector<8x128xf32>
      %c0_3 = arith.constant 0 : index
      %c0_4 = arith.constant 0 : index
      %c0_5 = arith.constant 0 : index
      %15 = vector.load %arg3[%c0_3, %c0_4, %c0_5] : memref<8x1x128xi32, #tpu.memory_space<vmem>>, vector<1x1x128xi32>
      %16 = vector.shape_cast %15 : vector<1x1x128xi32> to vector<1x128xi32>
      %17 = tpu.iota {dimensions = array<i32: 0>} : vector<8x128xi32>
      %18 = vector.broadcast %16 : vector<1x128xi32> to vector<8x128xi32>
      %19 = arith.cmpi eq, %18, %17 : vector<8x128xi32>
      %20 = arith.extui %19 : vector<8x128xi1> to vector<8x128xi32>
      %21 = arith.sitofp %20 : vector<8x128xi32> to vector<8x128xf32>
      %cst_6 = arith.constant dense<0.000000e+00> : vector<8xf32>
      %22 = vector.multi_reduction <add>, %21, %cst_6 [1] : vector<8x128xf32> to vector<8xf32>
      %23 = vector.shape_cast %22 : vector<8xf32> to vector<8x1xf32>
      %cst_7 = arith.constant 5.000000e-01 : f32
      %24 = vector.broadcast %cst_7 : f32 to vector<8x1xf32>
      %25 = arith.cmpf ogt, %23, %24 : vector<8x1xf32>
      %26 = arith.extui %25 : vector<8x1xi1> to vector<8x1xi32>
      %27 = arith.sitofp %26 : vector<8x1xi32> to vector<8x1xf32>
      %cst_8 = arith.constant dense<0.000000e+00> : vector<1xf32>
      %28 = vector.multi_reduction <add>, %27, %cst_8 [0] : vector<8x1xf32> to vector<1xf32>
      %29 = vector.shape_cast %28 : vector<1xf32> to vector<1x1xf32>
      %cst_9 = arith.constant 1.000000e+00 : f32
      %30 = vector.broadcast %cst_9 : f32 to vector<1x1xf32>
      %31 = arith.maximumf %29, %30 : vector<1x1xf32>
      %cst_10 = arith.constant dense<0.000000e+00> : vector<8x8xf32>
      %32 = tpu.matmul %21, %14, %cst_10 {dimension_numbers = #tpu.dot_dimension_numbers<[1], [1], [0], [0], [0, 0, 1, 0], [], []>} : vector<8x128xf32>, vector<8x128xf32>, vector<8x8xf32> -> vector<8x8xf32>
      %cst_11 = arith.constant 1.000000e+00 : f32
      %33 = vector.broadcast %cst_11 : f32 to vector<8x1xf32>
      %34 = arith.maximumf %23, %33 : vector<8x1xf32>
      %35 = vector.broadcast %34 : vector<8x1xf32> to vector<8x8xf32>
      %36 = arith.divf %32, %35 : vector<8x8xf32>
      %cst_12 = arith.constant dense<0.000000e+00> : vector<8x128xf32>
      %37 = tpu.matmul %36, %21, %cst_12 {dimension_numbers = #tpu.dot_dimension_numbers<[0], [0], [1], [1], [0, 1, 1, 1], [], []>} : vector<8x8xf32>, vector<8x128xf32>, vector<8x128xf32> -> vector<8x128xf32>
      %38 = arith.subf %14, %37 : vector<8x128xf32>
      %cst_13 = arith.constant 9.99999993E-9 : f32
      %39 = vector.broadcast %cst_13 : f32 to vector<8x128xf32>
      %40 = arith.addf %38, %39 : vector<8x128xf32>
      %41 = arith.mulf %40, %40 : vector<8x128xf32>
      %cst_14 = arith.constant dense<0.000000e+00> : vector<128xf32>
      %42 = vector.multi_reduction <add>, %41, %cst_14 [0] : vector<8x128xf32> to vector<128xf32>
      %43 = vector.shape_cast %42 : vector<128xf32> to vector<1x128xf32>
      %44 = math.sqrt %43 : vector<1x128xf32>
      %cst_15 = arith.constant 5.000000e-01 : f32
      %45 = vector.broadcast %cst_15 : f32 to vector<1x128xf32>
      %46 = arith.subf %44, %45 : vector<1x128xf32>
      %cst_16 = arith.constant 0.000000e+00 : f32
      %47 = vector.broadcast %cst_16 : f32 to vector<1x128xf32>
      %48 = arith.maximumf %46, %47 : vector<1x128xf32>
      %49 = arith.mulf %48, %48 : vector<1x128xf32>
      %50 = vector.broadcast %49 : vector<1x128xf32> to vector<8x128xf32>
      %51 = arith.mulf %21, %50 : vector<8x128xf32>
      %cst_17 = arith.constant dense<0.000000e+00> : vector<8xf32>
      %52 = vector.multi_reduction <add>, %51, %cst_17 [1] : vector<8x128xf32> to vector<8xf32>
      %53 = vector.shape_cast %52 : vector<8xf32> to vector<8x1xf32>
      %cst_18 = arith.constant 1.000000e+00 : f32
      %54 = vector.broadcast %cst_18 : f32 to vector<8x1xf32>
      %55 = arith.maximumf %23, %54 : vector<8x1xf32>
      %56 = arith.divf %53, %55 : vector<8x1xf32>
      %57 = arith.mulf %56, %27 : vector<8x1xf32>
      %cst_19 = arith.constant dense<0.000000e+00> : vector<1xf32>
      %58 = vector.multi_reduction <add>, %57, %cst_19 [0] : vector<8x1xf32> to vector<1xf32>
      %59 = vector.shape_cast %58 : vector<1xf32> to vector<1x1xf32>
      %60 = arith.divf %59, %31 : vector<1x1xf32>
      %61 = vector.broadcast %27 : vector<8x1xf32> to vector<8x8xf32>
      %62 = arith.mulf %10, %61 : vector<8x8xf32>
      %cst_20 = arith.constant dense<0.000000e+00> : vector<8xf32>
      %63 = vector.multi_reduction <add>, %62, %cst_20 [0] : vector<8x8xf32> to vector<8xf32>
      %64 = vector.shape_cast %63 : vector<8xf32> to vector<1x8xf32>
      %65 = vector.broadcast %27 : vector<8x1xf32> to vector<8x8xf32>
      %66 = vector.broadcast %64 : vector<1x8xf32> to vector<8x8xf32>
      %67 = arith.mulf %65, %66 : vector<8x8xf32>
      %68 = vector.shape_cast %36 : vector<8x8xf32> to vector<8x1x8xf32>
      %69 = vector.shape_cast %36 : vector<8x8xf32> to vector<1x8x8xf32>
      %70 = vector.broadcast %68 : vector<8x1x8xf32> to vector<8x8x8xf32>
      %71 = vector.broadcast %69 : vector<1x8x8xf32> to vector<8x8x8xf32>
      %72 = arith.subf %70, %71 : vector<8x8x8xf32>
      %cst_21 = arith.constant 9.99999993E-9 : f32
      %73 = vector.broadcast %cst_21 : f32 to vector<8x8x8xf32>
      %74 = arith.addf %72, %73 : vector<8x8x8xf32>
      %75 = arith.mulf %74, %74 : vector<8x8x8xf32>
      %cst_22 = arith.constant dense<0.000000e+00> : vector<8x8xf32>
      %76 = vector.multi_reduction <add>, %75, %cst_22 [2] : vector<8x8x8xf32> to vector<8x8xf32>
      %77 = math.sqrt %76 : vector<8x8xf32>
      %cst_23 = arith.constant 3.000000e+00 : f32
      %78 = vector.broadcast %cst_23 : f32 to vector<8x8xf32>
      %79 = arith.subf %78, %77 : vector<8x8xf32>
      %cst_24 = arith.constant 0.000000e+00 : f32
      %80 = vector.broadcast %cst_24 : f32 to vector<8x8xf32>
      %81 = arith.maximumf %79, %80 : vector<8x8xf32>
      %82 = arith.mulf %81, %81 : vector<8x8xf32>
      %83 = arith.mulf %82, %12 : vector<8x8xf32>
      %84 = arith.mulf %83, %67 : vector<8x8xf32>
      %cst_25 = arith.constant dense<0.000000e+00> : vector<8xf32>
      %85 = vector.multi_reduction <add>, %84, %cst_25 [1] : vector<8x8xf32> to vector<8xf32>
      %86 = vector.shape_cast %85 : vector<8xf32> to vector<8x1xf32>
      %cst_26 = arith.constant dense<0.000000e+00> : vector<1xf32>
      %87 = vector.multi_reduction <add>, %86, %cst_26 [0] : vector<8x1xf32> to vector<1xf32>
      %88 = vector.shape_cast %87 : vector<1xf32> to vector<1x1xf32>
      %cst_27 = arith.constant 1.000000e+00 : f32
      %89 = vector.broadcast %cst_27 : f32 to vector<1x1xf32>
      %90 = arith.subf %29, %89 : vector<1x1xf32>
      %91 = arith.mulf %90, %29 : vector<1x1xf32>
      %cst_28 = arith.constant 1.000000e+00 : f32
      %92 = vector.broadcast %cst_28 : f32 to vector<1x1xf32>
      %93 = arith.maximumf %91, %92 : vector<1x1xf32>
      %cst_29 = arith.constant 2.000000e+00 : f32
      %94 = vector.broadcast %cst_29 : f32 to vector<1x1xf32>
      %95 = arith.cmpf oge, %29, %94 : vector<1x1xf32>
      %96 = arith.divf %88, %93 : vector<1x1xf32>
      %cst_30 = arith.constant 0.000000e+00 : f32
      %97 = vector.broadcast %cst_30 : f32 to vector<1x1xf32>
      %98 = arith.select %95, %96, %97 : vector<1x1xi1>, vector<1x1xf32>
      %cst_31 = arith.constant 9.99999993E-9 : f32
      %99 = vector.broadcast %cst_31 : f32 to vector<8x8xf32>
      %100 = arith.addf %36, %99 : vector<8x8xf32>
      %101 = arith.mulf %100, %100 : vector<8x8xf32>
      %cst_32 = arith.constant dense<0.000000e+00> : vector<8xf32>
      %102 = vector.multi_reduction <add>, %101, %cst_32 [1] : vector<8x8xf32> to vector<8xf32>
      %103 = vector.shape_cast %102 : vector<8xf32> to vector<8x1xf32>
      %104 = math.sqrt %103 : vector<8x1xf32>
      %105 = arith.mulf %104, %27 : vector<8x1xf32>
      %cst_33 = arith.constant dense<0.000000e+00> : vector<1xf32>
      %106 = vector.multi_reduction <add>, %105, %cst_33 [0] : vector<8x1xf32> to vector<1xf32>
      %107 = vector.shape_cast %106 : vector<1xf32> to vector<1x1xf32>
      %108 = arith.divf %107, %31 : vector<1x1xf32>
      %cst_34 = arith.constant 1.000000e+00 : f32
      %109 = vector.broadcast %cst_34 : f32 to vector<1x1xf32>
      %110 = arith.mulf %109, %60 : vector<1x1xf32>
      %cst_35 = arith.constant 1.000000e+00 : f32
      %111 = vector.broadcast %cst_35 : f32 to vector<1x1xf32>
      %112 = arith.mulf %111, %98 : vector<1x1xf32>
      %cst_36 = arith.constant 1.000000e-03 : f32
      %113 = vector.broadcast %cst_36 : f32 to vector<1x1xf32>
      %114 = arith.mulf %113, %108 : vector<1x1xf32>
      %115 = arith.addf %110, %112 : vector<1x1xf32>
      %116 = arith.addf %115, %114 : vector<1x1xf32>
      %c0_i32_37 = arith.constant 0 : i32
      %117 = vector.broadcast %c0_i32_37 : i32 to vector<1x128xi32>
      %118 = arith.cmpi eq, %5, %117 : vector<1x128xi32>
      %cst_38 = arith.constant 0.000000e+00 : f32
      %119 = vector.shape_cast %116 : vector<1x1xf32> to vector<1x1xf32>
      %120 = vector.broadcast %119 : vector<1x1xf32> to vector<1x128xf32>
      %121 = vector.broadcast %cst_38 : f32 to vector<1x128xf32>
      %122 = arith.select %118, %120, %121 : vector<1x128xi1>, vector<1x128xf32>
      %c1_i32 = arith.constant 1 : i32
      %123 = vector.broadcast %c1_i32 : i32 to vector<1x128xi32>
      %124 = arith.cmpi eq, %5, %123 : vector<1x128xi32>
      %cst_39 = arith.constant 0.000000e+00 : f32
      %125 = vector.shape_cast %110 : vector<1x1xf32> to vector<1x1xf32>
      %126 = vector.broadcast %125 : vector<1x1xf32> to vector<1x128xf32>
      %127 = vector.broadcast %cst_39 : f32 to vector<1x128xf32>
      %128 = arith.select %124, %126, %127 : vector<1x128xi1>, vector<1x128xf32>
      %129 = arith.addf %122, %128 : vector<1x128xf32>
      %c2_i32 = arith.constant 2 : i32
      %130 = vector.broadcast %c2_i32 : i32 to vector<1x128xi32>
      %131 = arith.cmpi eq, %5, %130 : vector<1x128xi32>
      %cst_40 = arith.constant 0.000000e+00 : f32
      %132 = vector.shape_cast %112 : vector<1x1xf32> to vector<1x1xf32>
      %133 = vector.broadcast %132 : vector<1x1xf32> to vector<1x128xf32>
      %134 = vector.broadcast %cst_40 : f32 to vector<1x128xf32>
      %135 = arith.select %131, %133, %134 : vector<1x128xi1>, vector<1x128xf32>
      %136 = arith.addf %129, %135 : vector<1x128xf32>
      %c3_i32 = arith.constant 3 : i32
      %137 = vector.broadcast %c3_i32 : i32 to vector<1x128xi32>
      %138 = arith.cmpi eq, %5, %137 : vector<1x128xi32>
      %cst_41 = arith.constant 0.000000e+00 : f32
      %139 = vector.shape_cast %114 : vector<1x1xf32> to vector<1x1xf32>
      %140 = vector.broadcast %139 : vector<1x1xf32> to vector<1x128xf32>
      %141 = vector.broadcast %cst_41 : f32 to vector<1x128xf32>
      %142 = arith.select %138, %140, %141 : vector<1x128xi1>, vector<1x128xf32>
      %143 = arith.addf %136, %142 : vector<1x128xf32>
      %c0_42 = arith.constant 0 : index
      %c0_43 = arith.constant 0 : index
      %c0_44 = arith.constant 0 : index
      %144 = vector.load %arg4[%c0_42, %c0_43, %c0_44] : memref<8x1x128xf32, #tpu.memory_space<vmem>>, vector<1x1x128xf32>
      %145 = vector.shape_cast %144 : vector<1x1x128xf32> to vector<1x128xf32>
      %146 = vector.shape_cast %143 : vector<1x128xf32> to vector<1x1x128xf32>
      tpu.vector_store %arg4[%c0_42, %c0_43, %c0_44], %146 {strides = array<i32>} : memref<8x1x128xf32, #tpu.memory_space<vmem>>, vector<1x1x128xf32>,
      %c1 = arith.constant 1 : index
      %c0_45 = arith.constant 0 : index
      %c0_46 = arith.constant 0 : index
      %147 = vector.load %arg2[%c1, %c0_45, %c0_46] : memref<8x8x128xf32, #tpu.memory_space<vmem>>, vector<1x8x128xf32>
      %148 = vector.shape_cast %147 : vector<1x8x128xf32> to vector<8x128xf32>
      %c1_47 = arith.constant 1 : index
      %c0_48 = arith.constant 0 : index
      %c0_49 = arith.constant 0 : index
      %149 = vector.load %arg3[%c1_47, %c0_48, %c0_49] : memref<8x1x128xi32, #tpu.memory_space<vmem>>, vector<1x1x128xi32>
      %150 = vector.shape_cast %149 : vector<1x1x128xi32> to vector<1x128xi32>
      %151 = tpu.iota {dimensions = array<i32: 0>} : vector<8x128xi32>
      %152 = vector.broadcast %150 : vector<1x128xi32> to vector<8x128xi32>
      %153 = arith.cmpi eq, %152, %151 : vector<8x128xi32>
      %154 = arith.extui %153 : vector<8x128xi1> to vector<8x128xi32>
      %155 = arith.sitofp %154 : vector<8x128xi32> to vector<8x128xf32>
      %cst_50 = arith.constant dense<0.000000e+00> : vector<8xf32>
      %156 = vector.multi_reduction <add>, %155, %cst_50 [1] : vector<8x128xf32> to vector<8xf32>
      %157 = vector.shape_cast %156 : vector<8xf32> to vector<8x1xf32>
      %cst_51 = arith.constant 5.000000e-01 : f32
      %158 = vector.broadcast %cst_51 : f32 to vector<8x1xf32>
      %159 = arith.cmpf ogt, %157, %158 : vector<8x1xf32>
      %160 = arith.extui %159 : vector<8x1xi1> to vector<8x1xi32>
      %161 = arith.sitofp %160 : vector<8x1xi32> to vector<8x1xf32>
      %cst_52 = arith.constant dense<0.000000e+00> : vector<1xf32>
      %162 = vector.multi_reduction <add>, %161, %cst_52 [0] : vector<8x1xf32> to vector<1xf32>
      %163 = vector.shape_cast %162 : vector<1xf32> to vector<1x1xf32>
      %cst_53 = arith.constant 1.000000e+00 : f32
      %164 = vector.broadcast %cst_53 : f32 to vector<1x1xf32>
      %165 = arith.maximumf %163, %164 : vector<1x1xf32>
      %cst_54 = arith.constant dense<0.000000e+00> : vector<8x8xf32>
      %166 = tpu.matmul %155, %148, %cst_54 {dimension_numbers = #tpu.dot_dimension_numbers<[1], [1], [0], [0], [0, 0, 1, 0], [], []>} : vector<8x128xf32>, vector<8x128xf32>, vector<8x8xf32> -> vector<8x8xf32>
      %cst_55 = arith.constant 1.000000e+00 : f32
      %167 = vector.broadcast %cst_55 : f32 to vector<8x1xf32>
      %168 = arith.maximumf %157, %167 : vector<8x1xf32>
      %169 = vector.broadcast %168 : vector<8x1xf32> to vector<8x8xf32>
      %170 = arith.divf %166, %169 : vector<8x8xf32>
      %cst_56 = arith.constant dense<0.000000e+00> : vector<8x128xf32>
      %171 = tpu.matmul %170, %155, %cst_56 {dimension_numbers = #tpu.dot_dimension_numbers<[0], [0], [1], [1], [0, 1, 1, 1], [], []>} : vector<8x8xf32>, vector<8x128xf32>, vector<8x128xf32> -> vector<8x128xf32>
      %172 = arith.subf %148, %171 : vector<8x128xf32>
      %cst_57 = arith.constant 9.99999993E-9 : f32
      %173 = vector.broadcast %cst_57 : f32 to vector<8x128xf32>
      %174 = arith.addf %172, %173 : vector<8x128xf32>
      %175 = arith.mulf %174, %174 : vector<8x128xf32>
      %cst_58 = arith.constant dense<0.000000e+00> : vector<128xf32>
      %176 = vector.multi_reduction <add>, %175, %cst_58 [0] : vector<8x128xf32> to vector<128xf32>
      %177 = vector.shape_cast %176 : vector<128xf32> to vector<1x128xf32>
      %178 = math.sqrt %177 : vector<1x128xf32>
      %cst_59 = arith.constant 5.000000e-01 : f32
      %179 = vector.broadcast %cst_59 : f32 to vector<1x128xf32>
      %180 = arith.subf %178, %179 : vector<1x128xf32>
      %cst_60 = arith.constant 0.000000e+00 : f32
      %181 = vector.broadcast %cst_60 : f32 to vector<1x128xf32>
      %182 = arith.maximumf %180, %181 : vector<1x128xf32>
      %183 = arith.mulf %182, %182 : vector<1x128xf32>
      %184 = vector.broadcast %183 : vector<1x128xf32> to vector<8x128xf32>
      %185 = arith.mulf %155, %184 : vector<8x128xf32>
      %cst_61 = arith.constant dense<0.000000e+00> : vector<8xf32>
      %186 = vector.multi_reduction <add>, %185, %cst_61 [1] : vector<8x128xf32> to vector<8xf32>
      %187 = vector.shape_cast %186 : vector<8xf32> to vector<8x1xf32>
      %cst_62 = arith.constant 1.000000e+00 : f32
      %188 = vector.broadcast %cst_62 : f32 to vector<8x1xf32>
      %189 = arith.maximumf %157, %188 : vector<8x1xf32>
      %190 = arith.divf %187, %189 : vector<8x1xf32>
      %191 = arith.mulf %190, %161 : vector<8x1xf32>
      %cst_63 = arith.constant dense<0.000000e+00> : vector<1xf32>
      %192 = vector.multi_reduction <add>, %191, %cst_63 [0] : vector<8x1xf32> to vector<1xf32>
      %193 = vector.shape_cast %192 : vector<1xf32> to vector<1x1xf32>
      %194 = arith.divf %193, %165 : vector<1x1xf32>
      %195 = vector.broadcast %161 : vector<8x1xf32> to vector<8x8xf32>
      %196 = arith.mulf %10, %195 : vector<8x8xf32>
      %cst_64 = arith.constant dense<0.000000e+00> : vector<8xf32>
      %197 = vector.multi_reduction <add>, %196, %cst_64 [0] : vector<8x8xf32> to vector<8xf32>
      %198 = vector.shape_cast %197 : vector<8xf32> to vector<1x8xf32>
      %199 = vector.broadcast %161 : vector<8x1xf32> to vector<8x8xf32>
      %200 = vector.broadcast %198 : vector<1x8xf32> to vector<8x8xf32>
      %201 = arith.mulf %199, %200 : vector<8x8xf32>
      %202 = vector.shape_cast %170 : vector<8x8xf32> to vector<8x1x8xf32>
      %203 = vector.shape_cast %170 : vector<8x8xf32> to vector<1x8x8xf32>
      %204 = vector.broadcast %202 : vector<8x1x8xf32> to vector<8x8x8xf32>
      %205 = vector.broadcast %203 : vector<1x8x8xf32> to vector<8x8x8xf32>
      %206 = arith.subf %204, %205 : vector<8x8x8xf32>
      %cst_65 = arith.constant 9.99999993E-9 : f32
      %207 = vector.broadcast %cst_65 : f32 to vector<8x8x8xf32>
      %208 = arith.addf %206, %207 : vector<8x8x8xf32>
      %209 = arith.mulf %208, %208 : vector<8x8x8xf32>
      %cst_66 = arith.constant dense<0.000000e+00> : vector<8x8xf32>
      %210 = vector.multi_reduction <add>, %209, %cst_66 [2] : vector<8x8x8xf32> to vector<8x8xf32>
      %211 = math.sqrt %210 : vector<8x8xf32>
      %cst_67 = arith.constant 3.000000e+00 : f32
      %212 = vector.broadcast %cst_67 : f32 to vector<8x8xf32>
      %213 = arith.subf %212, %211 : vector<8x8xf32>
      %cst_68 = arith.constant 0.000000e+00 : f32
      %214 = vector.broadcast %cst_68 : f32 to vector<8x8xf32>
      %215 = arith.maximumf %213, %214 : vector<8x8xf32>
      %216 = arith.mulf %215, %215 : vector<8x8xf32>
      %217 = arith.mulf %216, %12 : vector<8x8xf32>
      %218 = arith.mulf %217, %201 : vector<8x8xf32>
      %cst_69 = arith.constant dense<0.000000e+00> : vector<8xf32>
      %219 = vector.multi_reduction <add>, %218, %cst_69 [1] : vector<8x8xf32> to vector<8xf32>
      %220 = vector.shape_cast %219 : vector<8xf32> to vector<8x1xf32>
      %cst_70 = arith.constant dense<0.000000e+00> : vector<1xf32>
      %221 = vector.multi_reduction <add>, %220, %cst_70 [0] : vector<8x1xf32> to vector<1xf32>
      %222 = vector.shape_cast %221 : vector<1xf32> to vector<1x1xf32>
      %cst_71 = arith.constant 1.000000e+00 : f32
      %223 = vector.broadcast %cst_71 : f32 to vector<1x1xf32>
      %224 = arith.subf %163, %223 : vector<1x1xf32>
      %225 = arith.mulf %224, %163 : vector<1x1xf32>
      %cst_72 = arith.constant 1.000000e+00 : f32
      %226 = vector.broadcast %cst_72 : f32 to vector<1x1xf32>
      %227 = arith.maximumf %225, %226 : vector<1x1xf32>
      %cst_73 = arith.constant 2.000000e+00 : f32
      %228 = vector.broadcast %cst_73 : f32 to vector<1x1xf32>
      %229 = arith.cmpf oge, %163, %228 : vector<1x1xf32>
      %230 = arith.divf %222, %227 : vector<1x1xf32>
      %cst_74 = arith.constant 0.000000e+00 : f32
      %231 = vector.broadcast %cst_74 : f32 to vector<1x1xf32>
      %232 = arith.select %229, %230, %231 : vector<1x1xi1>, vector<1x1xf32>
      %cst_75 = arith.constant 9.99999993E-9 : f32
      %233 = vector.broadcast %cst_75 : f32 to vector<8x8xf32>
      %234 = arith.addf %170, %233 : vector<8x8xf32>
      %235 = arith.mulf %234, %234 : vector<8x8xf32>
      %cst_76 = arith.constant dense<0.000000e+00> : vector<8xf32>
      %236 = vector.multi_reduction <add>, %235, %cst_76 [1] : vector<8x8xf32> to vector<8xf32>
      %237 = vector.shape_cast %236 : vector<8xf32> to vector<8x1xf32>
      %238 = math.sqrt %237 : vector<8x1xf32>
      %239 = arith.mulf %238, %161 : vector<8x1xf32>
      %cst_77 = arith.constant dense<0.000000e+00> : vector<1xf32>
      %240 = vector.multi_reduction <add>, %239, %cst_77 [0] : vector<8x1xf32> to vector<1xf32>
      %241 = vector.shape_cast %240 : vector<1xf32> to vector<1x1xf32>
      %242 = arith.divf %241, %165 : vector<1x1xf32>
      %cst_78 = arith.constant 1.000000e+00 : f32
      %243 = vector.broadcast %cst_78 : f32 to vector<1x1xf32>
      %244 = arith.mulf %243, %194 : vector<1x1xf32>
      %cst_79 = arith.constant 1.000000e+00 : f32
      %245 = vector.broadcast %cst_79 : f32 to vector<1x1xf32>
      %246 = arith.mulf %245, %232 : vector<1x1xf32>
      %cst_80 = arith.constant 1.000000e-03 : f32
      %247 = vector.broadcast %cst_80 : f32 to vector<1x1xf32>
      %248 = arith.mulf %247, %242 : vector<1x1xf32>
      %249 = arith.addf %244, %246 : vector<1x1xf32>
      %250 = arith.addf %249, %248 : vector<1x1xf32>
      %c0_i32_81 = arith.constant 0 : i32
      %251 = vector.broadcast %c0_i32_81 : i32 to vector<1x128xi32>
      %252 = arith.cmpi eq, %5, %251 : vector<1x128xi32>
      %cst_82 = arith.constant 0.000000e+00 : f32
      %253 = vector.shape_cast %250 : vector<1x1xf32> to vector<1x1xf32>
      %254 = vector.broadcast %253 : vector<1x1xf32> to vector<1x128xf32>
      %255 = vector.broadcast %cst_82 : f32 to vector<1x128xf32>
      %256 = arith.select %252, %254, %255 : vector<1x128xi1>, vector<1x128xf32>
      %c1_i32_83 = arith.constant 1 : i32
      %257 = vector.broadcast %c1_i32_83 : i32 to vector<1x128xi32>
      %258 = arith.cmpi eq, %5, %257 : vector<1x128xi32>
      %cst_84 = arith.constant 0.000000e+00 : f32
      %259 = vector.shape_cast %244 : vector<1x1xf32> to vector<1x1xf32>
      %260 = vector.broadcast %259 : vector<1x1xf32> to vector<1x128xf32>
      %261 = vector.broadcast %cst_84 : f32 to vector<1x128xf32>
      %262 = arith.select %258, %260, %261 : vector<1x128xi1>, vector<1x128xf32>
      %263 = arith.addf %256, %262 : vector<1x128xf32>
      %c2_i32_85 = arith.constant 2 : i32
      %264 = vector.broadcast %c2_i32_85 : i32 to vector<1x128xi32>
      %265 = arith.cmpi eq, %5, %264 : vector<1x128xi32>
      %cst_86 = arith.constant 0.000000e+00 : f32
      %266 = vector.shape_cast %246 : vector<1x1xf32> to vector<1x1xf32>
      %267 = vector.broadcast %266 : vector<1x1xf32> to vector<1x128xf32>
      %268 = vector.broadcast %cst_86 : f32 to vector<1x128xf32>
      %269 = arith.select %265, %267, %268 : vector<1x128xi1>, vector<1x128xf32>
      %270 = arith.addf %263, %269 : vector<1x128xf32>
      %c3_i32_87 = arith.constant 3 : i32
      %271 = vector.broadcast %c3_i32_87 : i32 to vector<1x128xi32>
      %272 = arith.cmpi eq, %5, %271 : vector<1x128xi32>
      %cst_88 = arith.constant 0.000000e+00 : f32
      %273 = vector.shape_cast %248 : vector<1x1xf32> to vector<1x1xf32>
      %274 = vector.broadcast %273 : vector<1x1xf32> to vector<1x128xf32>
      %275 = vector.broadcast %cst_88 : f32 to vector<1x128xf32>
      %276 = arith.select %272, %274, %275 : vector<1x128xi1>, vector<1x128xf32>
      %277 = arith.addf %270, %276 : vector<1x128xf32>
      %c1_89 = arith.constant 1 : index
      %c0_90 = arith.constant 0 : index
      %c0_91 = arith.constant 0 : index
      %278 = vector.load %arg4[%c1_89, %c0_90, %c0_91] : memref<8x1x128xf32, #tpu.memory_space<vmem>>, vector<1x1x128xf32>
      %279 = vector.shape_cast %278 : vector<1x1x128xf32> to vector<1x128xf32>
      %280 = vector.shape_cast %277 : vector<1x128xf32> to vector<1x1x128xf32>
      tpu.vector_store %arg4[%c1_89, %c0_90, %c0_91], %280 {strides = array<i32>} : memref<8x1x128xf32, #tpu.memory_space<vmem>>, vector<1x1x128xf32>,
      %c2 = arith.constant 2 : index
      %c0_92 = arith.constant 0 : index
      %c0_93 = arith.constant 0 : index
      %281 = vector.load %arg2[%c2, %c0_92, %c0_93] : memref<8x8x128xf32, #tpu.memory_space<vmem>>, vector<1x8x128xf32>
      %282 = vector.shape_cast %281 : vector<1x8x128xf32> to vector<8x128xf32>
      %c2_94 = arith.constant 2 : index
      %c0_95 = arith.constant 0 : index
      %c0_96 = arith.constant 0 : index
      %283 = vector.load %arg3[%c2_94, %c0_95, %c0_96] : memref<8x1x128xi32, #tpu.memory_space<vmem>>, vector<1x1x128xi32>
      %284 = vector.shape_cast %283 : vector<1x1x128xi32> to vector<1x128xi32>
      %285 = tpu.iota {dimensions = array<i32: 0>} : vector<8x128xi32>
      %286 = vector.broadcast %284 : vector<1x128xi32> to vector<8x128xi32>
      %287 = arith.cmpi eq, %286, %285 : vector<8x128xi32>
      %288 = arith.extui %287 : vector<8x128xi1> to vector<8x128xi32>
      %289 = arith.sitofp %288 : vector<8x128xi32> to vector<8x128xf32>
      %cst_97 = arith.constant dense<0.000000e+00> : vector<8xf32>
      %290 = vector.multi_reduction <add>, %289, %cst_97 [1] : vector<8x128xf32> to vector<8xf32>
      %291 = vector.shape_cast %290 : vector<8xf32> to vector<8x1xf32>
      %cst_98 = arith.constant 5.000000e-01 : f32
      %292 = vector.broadcast %cst_98 : f32 to vector<8x1xf32>
      %293 = arith.cmpf ogt, %291, %292 : vector<8x1xf32>
      %294 = arith.extui %293 : vector<8x1xi1> to vector<8x1xi32>
      %295 = arith.sitofp %294 : vector<8x1xi32> to vector<8x1xf32>
      %cst_99 = arith.constant dense<0.000000e+00> : vector<1xf32>
      %296 = vector.multi_reduction <add>, %295, %cst_99 [0] : vector<8x1xf32> to vector<1xf32>
      %297 = vector.shape_cast %296 : vector<1xf32> to vector<1x1xf32>
      %cst_100 = arith.constant 1.000000e+00 : f32
      %298 = vector.broadcast %cst_100 : f32 to vector<1x1xf32>
      %299 = arith.maximumf %297, %298 : vector<1x1xf32>
      %cst_101 = arith.constant dense<0.000000e+00> : vector<8x8xf32>
      %300 = tpu.matmul %289, %282, %cst_101 {dimension_numbers = #tpu.dot_dimension_numbers<[1], [1], [0], [0], [0, 0, 1, 0], [], []>} : vector<8x128xf32>, vector<8x128xf32>, vector<8x8xf32> -> vector<8x8xf32>
      %cst_102 = arith.constant 1.000000e+00 : f32
      %301 = vector.broadcast %cst_102 : f32 to vector<8x1xf32>
      %302 = arith.maximumf %291, %301 : vector<8x1xf32>
      %303 = vector.broadcast %302 : vector<8x1xf32> to vector<8x8xf32>
      %304 = arith.divf %300, %303 : vector<8x8xf32>
      %cst_103 = arith.constant dense<0.000000e+00> : vector<8x128xf32>
      %305 = tpu.matmul %304, %289, %cst_103 {dimension_numbers = #tpu.dot_dimension_numbers<[0], [0], [1], [1], [0, 1, 1, 1], [], []>} : vector<8x8xf32>, vector<8x128xf32>, vector<8x128xf32> -> vector<8x128xf32>
      %306 = arith.subf %282, %305 : vector<8x128xf32>
      %cst_104 = arith.constant 9.99999993E-9 : f32
      %307 = vector.broadcast %cst_104 : f32 to vector<8x128xf32>
      %308 = arith.addf %306, %307 : vector<8x128xf32>
      %309 = arith.mulf %308, %308 : vector<8x128xf32>
      %cst_105 = arith.constant dense<0.000000e+00> : vector<128xf32>
      %310 = vector.multi_reduction <add>, %309, %cst_105 [0] : vector<8x128xf32> to vector<128xf32>
      %311 = vector.shape_cast %310 : vector<128xf32> to vector<1x128xf32>
      %312 = math.sqrt %311 : vector<1x128xf32>
      %cst_106 = arith.constant 5.000000e-01 : f32
      %313 = vector.broadcast %cst_106 : f32 to vector<1x128xf32>
      %314 = arith.subf %312, %313 : vector<1x128xf32>
      %cst_107 = arith.constant 0.000000e+00 : f32
      %315 = vector.broadcast %cst_107 : f32 to vector<1x128xf32>
      %316 = arith.maximumf %314, %315 : vector<1x128xf32>
      %317 = arith.mulf %316, %316 : vector<1x128xf32>
      %318 = vector.broadcast %317 : vector<1x128xf32> to vector<8x128xf32>
      %319 = arith.mulf %289, %318 : vector<8x128xf32>
      %cst_108 = arith.constant dense<0.000000e+00> : vector<8xf32>
      %320 = vector.multi_reduction <add>, %319, %cst_108 [1] : vector<8x128xf32> to vector<8xf32>
      %321 = vector.shape_cast %320 : vector<8xf32> to vector<8x1xf32>
      %cst_109 = arith.constant 1.000000e+00 : f32
      %322 = vector.broadcast %cst_109 : f32 to vector<8x1xf32>
      %323 = arith.maximumf %291, %322 : vector<8x1xf32>
      %324 = arith.divf %321, %323 : vector<8x1xf32>
      %325 = arith.mulf %324, %295 : vector<8x1xf32>
      %cst_110 = arith.constant dense<0.000000e+00> : vector<1xf32>
      %326 = vector.multi_reduction <add>, %325, %cst_110 [0] : vector<8x1xf32> to vector<1xf32>
      %327 = vector.shape_cast %326 : vector<1xf32> to vector<1x1xf32>
      %328 = arith.divf %327, %299 : vector<1x1xf32>
      %329 = vector.broadcast %295 : vector<8x1xf32> to vector<8x8xf32>
      %330 = arith.mulf %10, %329 : vector<8x8xf32>
      %cst_111 = arith.constant dense<0.000000e+00> : vector<8xf32>
      %331 = vector.multi_reduction <add>, %330, %cst_111 [0] : vector<8x8xf32> to vector<8xf32>
      %332 = vector.shape_cast %331 : vector<8xf32> to vector<1x8xf32>
      %333 = vector.broadcast %295 : vector<8x1xf32> to vector<8x8xf32>
      %334 = vector.broadcast %332 : vector<1x8xf32> to vector<8x8xf32>
      %335 = arith.mulf %333, %334 : vector<8x8xf32>
      %336 = vector.shape_cast %304 : vector<8x8xf32> to vector<8x1x8xf32>
      %337 = vector.shape_cast %304 : vector<8x8xf32> to vector<1x8x8xf32>
      %338 = vector.broadcast %336 : vector<8x1x8xf32> to vector<8x8x8xf32>
      %339 = vector.broadcast %337 : vector<1x8x8xf32> to vector<8x8x8xf32>
      %340 = arith.subf %338, %339 : vector<8x8x8xf32>
      %cst_112 = arith.constant 9.99999993E-9 : f32
      %341 = vector.broadcast %cst_112 : f32 to vector<8x8x8xf32>
      %342 = arith.addf %340, %341 : vector<8x8x8xf32>
      %343 = arith.mulf %342, %342 : vector<8x8x8xf32>
      %cst_113 = arith.constant dense<0.000000e+00> : vector<8x8xf32>
      %344 = vector.multi_reduction <add>, %343, %cst_113 [2] : vector<8x8x8xf32> to vector<8x8xf32>
      %345 = math.sqrt %344 : vector<8x8xf32>
      %cst_114 = arith.constant 3.000000e+00 : f32
      %346 = vector.broadcast %cst_114 : f32 to vector<8x8xf32>
      %347 = arith.subf %346, %345 : vector<8x8xf32>
      %cst_115 = arith.constant 0.000000e+00 : f32
      %348 = vector.broadcast %cst_115 : f32 to vector<8x8xf32>
      %349 = arith.maximumf %347, %348 : vector<8x8xf32>
      %350 = arith.mulf %349, %349 : vector<8x8xf32>
      %351 = arith.mulf %350, %12 : vector<8x8xf32>
      %352 = arith.mulf %351, %335 : vector<8x8xf32>
      %cst_116 = arith.constant dense<0.000000e+00> : vector<8xf32>
      %353 = vector.multi_reduction <add>, %352, %cst_116 [1] : vector<8x8xf32> to vector<8xf32>
      %354 = vector.shape_cast %353 : vector<8xf32> to vector<8x1xf32>
      %cst_117 = arith.constant dense<0.000000e+00> : vector<1xf32>
      %355 = vector.multi_reduction <add>, %354, %cst_117 [0] : vector<8x1xf32> to vector<1xf32>
      %356 = vector.shape_cast %355 : vector<1xf32> to vector<1x1xf32>
      %cst_118 = arith.constant 1.000000e+00 : f32
      %357 = vector.broadcast %cst_118 : f32 to vector<1x1xf32>
      %358 = arith.subf %297, %357 : vector<1x1xf32>
      %359 = arith.mulf %358, %297 : vector<1x1xf32>
      %cst_119 = arith.constant 1.000000e+00 : f32
      %360 = vector.broadcast %cst_119 : f32 to vector<1x1xf32>
      %361 = arith.maximumf %359, %360 : vector<1x1xf32>
      %cst_120 = arith.constant 2.000000e+00 : f32
      %362 = vector.broadcast %cst_120 : f32 to vector<1x1xf32>
      %363 = arith.cmpf oge, %297, %362 : vector<1x1xf32>
      %364 = arith.divf %356, %361 : vector<1x1xf32>
      %cst_121 = arith.constant 0.000000e+00 : f32
      %365 = vector.broadcast %cst_121 : f32 to vector<1x1xf32>
      %366 = arith.select %363, %364, %365 : vector<1x1xi1>, vector<1x1xf32>
      %cst_122 = arith.constant 9.99999993E-9 : f32
      %367 = vector.broadcast %cst_122 : f32 to vector<8x8xf32>
      %368 = arith.addf %304, %367 : vector<8x8xf32>
      %369 = arith.mulf %368, %368 : vector<8x8xf32>
      %cst_123 = arith.constant dense<0.000000e+00> : vector<8xf32>
      %370 = vector.multi_reduction <add>, %369, %cst_123 [1] : vector<8x8xf32> to vector<8xf32>
      %371 = vector.shape_cast %370 : vector<8xf32> to vector<8x1xf32>
      %372 = math.sqrt %371 : vector<8x1xf32>
      %373 = arith.mulf %372, %295 : vector<8x1xf32>
      %cst_124 = arith.constant dense<0.000000e+00> : vector<1xf32>
      %374 = vector.multi_reduction <add>, %373, %cst_124 [0] : vector<8x1xf32> to vector<1xf32>
      %375 = vector.shape_cast %374 : vector<1xf32> to vector<1x1xf32>
      %376 = arith.divf %375, %299 : vector<1x1xf32>
      %cst_125 = arith.constant 1.000000e+00 : f32
      %377 = vector.broadcast %cst_125 : f32 to vector<1x1xf32>
      %378 = arith.mulf %377, %328 : vector<1x1xf32>
      %cst_126 = arith.constant 1.000000e+00 : f32
      %379 = vector.broadcast %cst_126 : f32 to vector<1x1xf32>
      %380 = arith.mulf %379, %366 : vector<1x1xf32>
      %cst_127 = arith.constant 1.000000e-03 : f32
      %381 = vector.broadcast %cst_127 : f32 to vector<1x1xf32>
      %382 = arith.mulf %381, %376 : vector<1x1xf32>
      %383 = arith.addf %378, %380 : vector<1x1xf32>
      %384 = arith.addf %383, %382 : vector<1x1xf32>
      %c0_i32_128 = arith.constant 0 : i32
      %385 = vector.broadcast %c0_i32_128 : i32 to vector<1x128xi32>
      %386 = arith.cmpi eq, %5, %385 : vector<1x128xi32>
      %cst_129 = arith.constant 0.000000e+00 : f32
      %387 = vector.shape_cast %384 : vector<1x1xf32> to vector<1x1xf32>
      %388 = vector.broadcast %387 : vector<1x1xf32> to vector<1x128xf32>
      %389 = vector.broadcast %cst_129 : f32 to vector<1x128xf32>
      %390 = arith.select %386, %388, %389 : vector<1x128xi1>, vector<1x128xf32>
      %c1_i32_130 = arith.constant 1 : i32
      %391 = vector.broadcast %c1_i32_130 : i32 to vector<1x128xi32>
      %392 = arith.cmpi eq, %5, %391 : vector<1x128xi32>
      %cst_131 = arith.constant 0.000000e+00 : f32
      %393 = vector.shape_cast %378 : vector<1x1xf32> to vector<1x1xf32>
      %394 = vector.broadcast %393 : vector<1x1xf32> to vector<1x128xf32>
      %395 = vector.broadcast %cst_131 : f32 to vector<1x128xf32>
      %396 = arith.select %392, %394, %395 : vector<1x128xi1>, vector<1x128xf32>
      %397 = arith.addf %390, %396 : vector<1x128xf32>
      %c2_i32_132 = arith.constant 2 : i32
      %398 = vector.broadcast %c2_i32_132 : i32 to vector<1x128xi32>
      %399 = arith.cmpi eq, %5, %398 : vector<1x128xi32>
      %cst_133 = arith.constant 0.000000e+00 : f32
      %400 = vector.shape_cast %380 : vector<1x1xf32> to vector<1x1xf32>
      %401 = vector.broadcast %400 : vector<1x1xf32> to vector<1x128xf32>
      %402 = vector.broadcast %cst_133 : f32 to vector<1x128xf32>
      %403 = arith.select %399, %401, %402 : vector<1x128xi1>, vector<1x128xf32>
      %404 = arith.addf %397, %403 : vector<1x128xf32>
      %c3_i32_134 = arith.constant 3 : i32
      %405 = vector.broadcast %c3_i32_134 : i32 to vector<1x128xi32>
      %406 = arith.cmpi eq, %5, %405 : vector<1x128xi32>
      %cst_135 = arith.constant 0.000000e+00 : f32
      %407 = vector.shape_cast %382 : vector<1x1xf32> to vector<1x1xf32>
      %408 = vector.broadcast %407 : vector<1x1xf32> to vector<1x128xf32>
      %409 = vector.broadcast %cst_135 : f32 to vector<1x128xf32>
      %410 = arith.select %406, %408, %409 : vector<1x128xi1>, vector<1x128xf32>
      %411 = arith.addf %404, %410 : vector<1x128xf32>
      %c2_136 = arith.constant 2 : index
      %c0_137 = arith.constant 0 : index
      %c0_138 = arith.constant 0 : index
      %412 = vector.load %arg4[%c2_136, %c0_137, %c0_138] : memref<8x1x128xf32, #tpu.memory_space<vmem>>, vector<1x1x128xf32>
      %413 = vector.shape_cast %412 : vector<1x1x128xf32> to vector<1x128xf32>
      %414 = vector.shape_cast %411 : vector<1x128xf32> to vector<1x1x128xf32>
      tpu.vector_store %arg4[%c2_136, %c0_137, %c0_138], %414 {strides = array<i32>} : memref<8x1x128xf32, #tpu.memory_space<vmem>>, vector<1x1x128xf32>,
      %c3 = arith.constant 3 : index
      %c0_139 = arith.constant 0 : index
      %c0_140 = arith.constant 0 : index
      %415 = vector.load %arg2[%c3, %c0_139, %c0_140] : memref<8x8x128xf32, #tpu.memory_space<vmem>>, vector<1x8x128xf32>
      %416 = vector.shape_cast %415 : vector<1x8x128xf32> to vector<8x128xf32>
      %c3_141 = arith.constant 3 : index
      %c0_142 = arith.constant 0 : index
      %c0_143 = arith.constant 0 : index
      %417 = vector.load %arg3[%c3_141, %c0_142, %c0_143] : memref<8x1x128xi32, #tpu.memory_space<vmem>>, vector<1x1x128xi32>
      %418 = vector.shape_cast %417 : vector<1x1x128xi32> to vector<1x128xi32>
      %419 = tpu.iota {dimensions = array<i32: 0>} : vector<8x128xi32>
      %420 = vector.broadcast %418 : vector<1x128xi32> to vector<8x128xi32>
      %421 = arith.cmpi eq, %420, %419 : vector<8x128xi32>
      %422 = arith.extui %421 : vector<8x128xi1> to vector<8x128xi32>
      %423 = arith.sitofp %422 : vector<8x128xi32> to vector<8x128xf32>
      %cst_144 = arith.constant dense<0.000000e+00> : vector<8xf32>
      %424 = vector.multi_reduction <add>, %423, %cst_144 [1] : vector<8x128xf32> to vector<8xf32>
      %425 = vector.shape_cast %424 : vector<8xf32> to vector<8x1xf32>
      %cst_145 = arith.constant 5.000000e-01 : f32
      %426 = vector.broadcast %cst_145 : f32 to vector<8x1xf32>
      %427 = arith.cmpf ogt, %425, %426 : vector<8x1xf32>
      %428 = arith.extui %427 : vector<8x1xi1> to vector<8x1xi32>
      %429 = arith.sitofp %428 : vector<8x1xi32> to vector<8x1xf32>
      %cst_146 = arith.constant dense<0.000000e+00> : vector<1xf32>
      %430 = vector.multi_reduction <add>, %429, %cst_146 [0] : vector<8x1xf32> to vector<1xf32>
      %431 = vector.shape_cast %430 : vector<1xf32> to vector<1x1xf32>
      %cst_147 = arith.constant 1.000000e+00 : f32
      %432 = vector.broadcast %cst_147 : f32 to vector<1x1xf32>
      %433 = arith.maximumf %431, %432 : vector<1x1xf32>
      %cst_148 = arith.constant dense<0.000000e+00> : vector<8x8xf32>
      %434 = tpu.matmul %423, %416, %cst_148 {dimension_numbers = #tpu.dot_dimension_numbers<[1], [1], [0], [0], [0, 0, 1, 0], [], []>} : vector<8x128xf32>, vector<8x128xf32>, vector<8x8xf32> -> vector<8x8xf32>
      %cst_149 = arith.constant 1.000000e+00 : f32
      %435 = vector.broadcast %cst_149 : f32 to vector<8x1xf32>
      %436 = arith.maximumf %425, %435 : vector<8x1xf32>
      %437 = vector.broadcast %436 : vector<8x1xf32> to vector<8x8xf32>
      %438 = arith.divf %434, %437 : vector<8x8xf32>
      %cst_150 = arith.constant dense<0.000000e+00> : vector<8x128xf32>
      %439 = tpu.matmul %438, %423, %cst_150 {dimension_numbers = #tpu.dot_dimension_numbers<[0], [0], [1], [1], [0, 1, 1, 1], [], []>} : vector<8x8xf32>, vector<8x128xf32>, vector<8x128xf32> -> vector<8x128xf32>
      %440 = arith.subf %416, %439 : vector<8x128xf32>
      %cst_151 = arith.constant 9.99999993E-9 : f32
      %441 = vector.broadcast %cst_151 : f32 to vector<8x128xf32>
      %442 = arith.addf %440, %441 : vector<8x128xf32>
      %443 = arith.mulf %442, %442 : vector<8x128xf32>
      %cst_152 = arith.constant dense<0.000000e+00> : vector<128xf32>
      %444 = vector.multi_reduction <add>, %443, %cst_152 [0] : vector<8x128xf32> to vector<128xf32>
      %445 = vector.shape_cast %444 : vector<128xf32> to vector<1x128xf32>
      %446 = math.sqrt %445 : vector<1x128xf32>
      %cst_153 = arith.constant 5.000000e-01 : f32
      %447 = vector.broadcast %cst_153 : f32 to vector<1x128xf32>
      %448 = arith.subf %446, %447 : vector<1x128xf32>
      %cst_154 = arith.constant 0.000000e+00 : f32
      %449 = vector.broadcast %cst_154 : f32 to vector<1x128xf32>
      %450 = arith.maximumf %448, %449 : vector<1x128xf32>
      %451 = arith.mulf %450, %450 : vector<1x128xf32>
      %452 = vector.broadcast %451 : vector<1x128xf32> to vector<8x128xf32>
      %453 = arith.mulf %423, %452 : vector<8x128xf32>
      %cst_155 = arith.constant dense<0.000000e+00> : vector<8xf32>
      %454 = vector.multi_reduction <add>, %453, %cst_155 [1] : vector<8x128xf32> to vector<8xf32>
      %455 = vector.shape_cast %454 : vector<8xf32> to vector<8x1xf32>
      %cst_156 = arith.constant 1.000000e+00 : f32
      %456 = vector.broadcast %cst_156 : f32 to vector<8x1xf32>
      %457 = arith.maximumf %425, %456 : vector<8x1xf32>
      %458 = arith.divf %455, %457 : vector<8x1xf32>
      %459 = arith.mulf %458, %429 : vector<8x1xf32>
      %cst_157 = arith.constant dense<0.000000e+00> : vector<1xf32>
      %460 = vector.multi_reduction <add>, %459, %cst_157 [0] : vector<8x1xf32> to vector<1xf32>
      %461 = vector.shape_cast %460 : vector<1xf32> to vector<1x1xf32>
      %462 = arith.divf %461, %433 : vector<1x1xf32>
      %463 = vector.broadcast %429 : vector<8x1xf32> to vector<8x8xf32>
      %464 = arith.mulf %10, %463 : vector<8x8xf32>
      %cst_158 = arith.constant dense<0.000000e+00> : vector<8xf32>
      %465 = vector.multi_reduction <add>, %464, %cst_158 [0] : vector<8x8xf32> to vector<8xf32>
      %466 = vector.shape_cast %465 : vector<8xf32> to vector<1x8xf32>
      %467 = vector.broadcast %429 : vector<8x1xf32> to vector<8x8xf32>
      %468 = vector.broadcast %466 : vector<1x8xf32> to vector<8x8xf32>
      %469 = arith.mulf %467, %468 : vector<8x8xf32>
      %470 = vector.shape_cast %438 : vector<8x8xf32> to vector<8x1x8xf32>
      %471 = vector.shape_cast %438 : vector<8x8xf32> to vector<1x8x8xf32>
      %472 = vector.broadcast %470 : vector<8x1x8xf32> to vector<8x8x8xf32>
      %473 = vector.broadcast %471 : vector<1x8x8xf32> to vector<8x8x8xf32>
      %474 = arith.subf %472, %473 : vector<8x8x8xf32>
      %cst_159 = arith.constant 9.99999993E-9 : f32
      %475 = vector.broadcast %cst_159 : f32 to vector<8x8x8xf32>
      %476 = arith.addf %474, %475 : vector<8x8x8xf32>
      %477 = arith.mulf %476, %476 : vector<8x8x8xf32>
      %cst_160 = arith.constant dense<0.000000e+00> : vector<8x8xf32>
      %478 = vector.multi_reduction <add>, %477, %cst_160 [2] : vector<8x8x8xf32> to vector<8x8xf32>
      %479 = math.sqrt %478 : vector<8x8xf32>
      %cst_161 = arith.constant 3.000000e+00 : f32
      %480 = vector.broadcast %cst_161 : f32 to vector<8x8xf32>
      %481 = arith.subf %480, %479 : vector<8x8xf32>
      %cst_162 = arith.constant 0.000000e+00 : f32
      %482 = vector.broadcast %cst_162 : f32 to vector<8x8xf32>
      %483 = arith.maximumf %481, %482 : vector<8x8xf32>
      %484 = arith.mulf %483, %483 : vector<8x8xf32>
      %485 = arith.mulf %484, %12 : vector<8x8xf32>
      %486 = arith.mulf %485, %469 : vector<8x8xf32>
      %cst_163 = arith.constant dense<0.000000e+00> : vector<8xf32>
      %487 = vector.multi_reduction <add>, %486, %cst_163 [1] : vector<8x8xf32> to vector<8xf32>
      %488 = vector.shape_cast %487 : vector<8xf32> to vector<8x1xf32>
      %cst_164 = arith.constant dense<0.000000e+00> : vector<1xf32>
      %489 = vector.multi_reduction <add>, %488, %cst_164 [0] : vector<8x1xf32> to vector<1xf32>
      %490 = vector.shape_cast %489 : vector<1xf32> to vector<1x1xf32>
      %cst_165 = arith.constant 1.000000e+00 : f32
      %491 = vector.broadcast %cst_165 : f32 to vector<1x1xf32>
      %492 = arith.subf %431, %491 : vector<1x1xf32>
      %493 = arith.mulf %492, %431 : vector<1x1xf32>
      %cst_166 = arith.constant 1.000000e+00 : f32
      %494 = vector.broadcast %cst_166 : f32 to vector<1x1xf32>
      %495 = arith.maximumf %493, %494 : vector<1x1xf32>
      %cst_167 = arith.constant 2.000000e+00 : f32
      %496 = vector.broadcast %cst_167 : f32 to vector<1x1xf32>
      %497 = arith.cmpf oge, %431, %496 : vector<1x1xf32>
      %498 = arith.divf %490, %495 : vector<1x1xf32>
      %cst_168 = arith.constant 0.000000e+00 : f32
      %499 = vector.broadcast %cst_168 : f32 to vector<1x1xf32>
      %500 = arith.select %497, %498, %499 : vector<1x1xi1>, vector<1x1xf32>
      %cst_169 = arith.constant 9.99999993E-9 : f32
      %501 = vector.broadcast %cst_169 : f32 to vector<8x8xf32>
      %502 = arith.addf %438, %501 : vector<8x8xf32>
      %503 = arith.mulf %502, %502 : vector<8x8xf32>
      %cst_170 = arith.constant dense<0.000000e+00> : vector<8xf32>
      %504 = vector.multi_reduction <add>, %503, %cst_170 [1] : vector<8x8xf32> to vector<8xf32>
      %505 = vector.shape_cast %504 : vector<8xf32> to vector<8x1xf32>
      %506 = math.sqrt %505 : vector<8x1xf32>
      %507 = arith.mulf %506, %429 : vector<8x1xf32>
      %cst_171 = arith.constant dense<0.000000e+00> : vector<1xf32>
      %508 = vector.multi_reduction <add>, %507, %cst_171 [0] : vector<8x1xf32> to vector<1xf32>
      %509 = vector.shape_cast %508 : vector<1xf32> to vector<1x1xf32>
      %510 = arith.divf %509, %433 : vector<1x1xf32>
      %cst_172 = arith.constant 1.000000e+00 : f32
      %511 = vector.broadcast %cst_172 : f32 to vector<1x1xf32>
      %512 = arith.mulf %511, %462 : vector<1x1xf32>
      %cst_173 = arith.constant 1.000000e+00 : f32
      %513 = vector.broadcast %cst_173 : f32 to vector<1x1xf32>
      %514 = arith.mulf %513, %500 : vector<1x1xf32>
      %cst_174 = arith.constant 1.000000e-03 : f32
      %515 = vector.broadcast %cst_174 : f32 to vector<1x1xf32>
      %516 = arith.mulf %515, %510 : vector<1x1xf32>
      %517 = arith.addf %512, %514 : vector<1x1xf32>
      %518 = arith.addf %517, %516 : vector<1x1xf32>
      %c0_i32_175 = arith.constant 0 : i32
      %519 = vector.broadcast %c0_i32_175 : i32 to vector<1x128xi32>
      %520 = arith.cmpi eq, %5, %519 : vector<1x128xi32>
      %cst_176 = arith.constant 0.000000e+00 : f32
      %521 = vector.shape_cast %518 : vector<1x1xf32> to vector<1x1xf32>
      %522 = vector.broadcast %521 : vector<1x1xf32> to vector<1x128xf32>
      %523 = vector.broadcast %cst_176 : f32 to vector<1x128xf32>
      %524 = arith.select %520, %522, %523 : vector<1x128xi1>, vector<1x128xf32>
      %c1_i32_177 = arith.constant 1 : i32
      %525 = vector.broadcast %c1_i32_177 : i32 to vector<1x128xi32>
      %526 = arith.cmpi eq, %5, %525 : vector<1x128xi32>
      %cst_178 = arith.constant 0.000000e+00 : f32
      %527 = vector.shape_cast %512 : vector<1x1xf32> to vector<1x1xf32>
      %528 = vector.broadcast %527 : vector<1x1xf32> to vector<1x128xf32>
      %529 = vector.broadcast %cst_178 : f32 to vector<1x128xf32>
      %530 = arith.select %526, %528, %529 : vector<1x128xi1>, vector<1x128xf32>
      %531 = arith.addf %524, %530 : vector<1x128xf32>
      %c2_i32_179 = arith.constant 2 : i32
      %532 = vector.broadcast %c2_i32_179 : i32 to vector<1x128xi32>
      %533 = arith.cmpi eq, %5, %532 : vector<1x128xi32>
      %cst_180 = arith.constant 0.000000e+00 : f32
      %534 = vector.shape_cast %514 : vector<1x1xf32> to vector<1x1xf32>
      %535 = vector.broadcast %534 : vector<1x1xf32> to vector<1x128xf32>
      %536 = vector.broadcast %cst_180 : f32 to vector<1x128xf32>
      %537 = arith.select %533, %535, %536 : vector<1x128xi1>, vector<1x128xf32>
      %538 = arith.addf %531, %537 : vector<1x128xf32>
      %c3_i32_181 = arith.constant 3 : i32
      %539 = vector.broadcast %c3_i32_181 : i32 to vector<1x128xi32>
      %540 = arith.cmpi eq, %5, %539 : vector<1x128xi32>
      %cst_182 = arith.constant 0.000000e+00 : f32
      %541 = vector.shape_cast %516 : vector<1x1xf32> to vector<1x1xf32>
      %542 = vector.broadcast %541 : vector<1x1xf32> to vector<1x128xf32>
      %543 = vector.broadcast %cst_182 : f32 to vector<1x128xf32>
      %544 = arith.select %540, %542, %543 : vector<1x128xi1>, vector<1x128xf32>
      %545 = arith.addf %538, %544 : vector<1x128xf32>
      %c3_183 = arith.constant 3 : index
      %c0_184 = arith.constant 0 : index
      %c0_185 = arith.constant 0 : index
      %546 = vector.load %arg4[%c3_183, %c0_184, %c0_185] : memref<8x1x128xf32, #tpu.memory_space<vmem>>, vector<1x1x128xf32>
      %547 = vector.shape_cast %546 : vector<1x1x128xf32> to vector<1x128xf32>
      %548 = vector.shape_cast %545 : vector<1x128xf32> to vector<1x1x128xf32>
      tpu.vector_store %arg4[%c3_183, %c0_184, %c0_185], %548 {strides = array<i32>} : memref<8x1x128xf32, #tpu.memory_space<vmem>>, vector<1x1x128xf32>,
      %c4 = arith.constant 4 : index
      %c0_186 = arith.constant 0 : index
      %c0_187 = arith.constant 0 : index
      %549 = vector.load %arg2[%c4, %c0_186, %c0_187] : memref<8x8x128xf32, #tpu.memory_space<vmem>>, vector<1x8x128xf32>
      %550 = vector.shape_cast %549 : vector<1x8x128xf32> to vector<8x128xf32>
      %c4_188 = arith.constant 4 : index
      %c0_189 = arith.constant 0 : index
      %c0_190 = arith.constant 0 : index
      %551 = vector.load %arg3[%c4_188, %c0_189, %c0_190] : memref<8x1x128xi32, #tpu.memory_space<vmem>>, vector<1x1x128xi32>
      %552 = vector.shape_cast %551 : vector<1x1x128xi32> to vector<1x128xi32>
      %553 = tpu.iota {dimensions = array<i32: 0>} : vector<8x128xi32>
      %554 = vector.broadcast %552 : vector<1x128xi32> to vector<8x128xi32>
      %555 = arith.cmpi eq, %554, %553 : vector<8x128xi32>
      %556 = arith.extui %555 : vector<8x128xi1> to vector<8x128xi32>
      %557 = arith.sitofp %556 : vector<8x128xi32> to vector<8x128xf32>
      %cst_191 = arith.constant dense<0.000000e+00> : vector<8xf32>
      %558 = vector.multi_reduction <add>, %557, %cst_191 [1] : vector<8x128xf32> to vector<8xf32>
      %559 = vector.shape_cast %558 : vector<8xf32> to vector<8x1xf32>
      %cst_192 = arith.constant 5.000000e-01 : f32
      %560 = vector.broadcast %cst_192 : f32 to vector<8x1xf32>
      %561 = arith.cmpf ogt, %559, %560 : vector<8x1xf32>
      %562 = arith.extui %561 : vector<8x1xi1> to vector<8x1xi32>
      %563 = arith.sitofp %562 : vector<8x1xi32> to vector<8x1xf32>
      %cst_193 = arith.constant dense<0.000000e+00> : vector<1xf32>
      %564 = vector.multi_reduction <add>, %563, %cst_193 [0] : vector<8x1xf32> to vector<1xf32>
      %565 = vector.shape_cast %564 : vector<1xf32> to vector<1x1xf32>
      %cst_194 = arith.constant 1.000000e+00 : f32
      %566 = vector.broadcast %cst_194 : f32 to vector<1x1xf32>
      %567 = arith.maximumf %565, %566 : vector<1x1xf32>
      %cst_195 = arith.constant dense<0.000000e+00> : vector<8x8xf32>
      %568 = tpu.matmul %557, %550, %cst_195 {dimension_numbers = #tpu.dot_dimension_numbers<[1], [1], [0], [0], [0, 0, 1, 0], [], []>} : vector<8x128xf32>, vector<8x128xf32>, vector<8x8xf32> -> vector<8x8xf32>
      %cst_196 = arith.constant 1.000000e+00 : f32
      %569 = vector.broadcast %cst_196 : f32 to vector<8x1xf32>
      %570 = arith.maximumf %559, %569 : vector<8x1xf32>
      %571 = vector.broadcast %570 : vector<8x1xf32> to vector<8x8xf32>
      %572 = arith.divf %568, %571 : vector<8x8xf32>
      %cst_197 = arith.constant dense<0.000000e+00> : vector<8x128xf32>
      %573 = tpu.matmul %572, %557, %cst_197 {dimension_numbers = #tpu.dot_dimension_numbers<[0], [0], [1], [1], [0, 1, 1, 1], [], []>} : vector<8x8xf32>, vector<8x128xf32>, vector<8x128xf32> -> vector<8x128xf32>
      %574 = arith.subf %550, %573 : vector<8x128xf32>
      %cst_198 = arith.constant 9.99999993E-9 : f32
      %575 = vector.broadcast %cst_198 : f32 to vector<8x128xf32>
      %576 = arith.addf %574, %575 : vector<8x128xf32>
      %577 = arith.mulf %576, %576 : vector<8x128xf32>
      %cst_199 = arith.constant dense<0.000000e+00> : vector<128xf32>
      %578 = vector.multi_reduction <add>, %577, %cst_199 [0] : vector<8x128xf32> to vector<128xf32>
      %579 = vector.shape_cast %578 : vector<128xf32> to vector<1x128xf32>
      %580 = math.sqrt %579 : vector<1x128xf32>
      %cst_200 = arith.constant 5.000000e-01 : f32
      %581 = vector.broadcast %cst_200 : f32 to vector<1x128xf32>
      %582 = arith.subf %580, %581 : vector<1x128xf32>
      %cst_201 = arith.constant 0.000000e+00 : f32
      %583 = vector.broadcast %cst_201 : f32 to vector<1x128xf32>
      %584 = arith.maximumf %582, %583 : vector<1x128xf32>
      %585 = arith.mulf %584, %584 : vector<1x128xf32>
      %586 = vector.broadcast %585 : vector<1x128xf32> to vector<8x128xf32>
      %587 = arith.mulf %557, %586 : vector<8x128xf32>
      %cst_202 = arith.constant dense<0.000000e+00> : vector<8xf32>
      %588 = vector.multi_reduction <add>, %587, %cst_202 [1] : vector<8x128xf32> to vector<8xf32>
      %589 = vector.shape_cast %588 : vector<8xf32> to vector<8x1xf32>
      %cst_203 = arith.constant 1.000000e+00 : f32
      %590 = vector.broadcast %cst_203 : f32 to vector<8x1xf32>
      %591 = arith.maximumf %559, %590 : vector<8x1xf32>
      %592 = arith.divf %589, %591 : vector<8x1xf32>
      %593 = arith.mulf %592, %563 : vector<8x1xf32>
      %cst_204 = arith.constant dense<0.000000e+00> : vector<1xf32>
      %594 = vector.multi_reduction <add>, %593, %cst_204 [0] : vector<8x1xf32> to vector<1xf32>
      %595 = vector.shape_cast %594 : vector<1xf32> to vector<1x1xf32>
      %596 = arith.divf %595, %567 : vector<1x1xf32>
      %597 = vector.broadcast %563 : vector<8x1xf32> to vector<8x8xf32>
      %598 = arith.mulf %10, %597 : vector<8x8xf32>
      %cst_205 = arith.constant dense<0.000000e+00> : vector<8xf32>
      %599 = vector.multi_reduction <add>, %598, %cst_205 [0] : vector<8x8xf32> to vector<8xf32>
      %600 = vector.shape_cast %599 : vector<8xf32> to vector<1x8xf32>
      %601 = vector.broadcast %563 : vector<8x1xf32> to vector<8x8xf32>
      %602 = vector.broadcast %600 : vector<1x8xf32> to vector<8x8xf32>
      %603 = arith.mulf %601, %602 : vector<8x8xf32>
      %604 = vector.shape_cast %572 : vector<8x8xf32> to vector<8x1x8xf32>
      %605 = vector.shape_cast %572 : vector<8x8xf32> to vector<1x8x8xf32>
      %606 = vector.broadcast %604 : vector<8x1x8xf32> to vector<8x8x8xf32>
      %607 = vector.broadcast %605 : vector<1x8x8xf32> to vector<8x8x8xf32>
      %608 = arith.subf %606, %607 : vector<8x8x8xf32>
      %cst_206 = arith.constant 9.99999993E-9 : f32
      %609 = vector.broadcast %cst_206 : f32 to vector<8x8x8xf32>
      %610 = arith.addf %608, %609 : vector<8x8x8xf32>
      %611 = arith.mulf %610, %610 : vector<8x8x8xf32>
      %cst_207 = arith.constant dense<0.000000e+00> : vector<8x8xf32>
      %612 = vector.multi_reduction <add>, %611, %cst_207 [2] : vector<8x8x8xf32> to vector<8x8xf32>
      %613 = math.sqrt %612 : vector<8x8xf32>
      %cst_208 = arith.constant 3.000000e+00 : f32
      %614 = vector.broadcast %cst_208 : f32 to vector<8x8xf32>
      %615 = arith.subf %614, %613 : vector<8x8xf32>
      %cst_209 = arith.constant 0.000000e+00 : f32
      %616 = vector.broadcast %cst_209 : f32 to vector<8x8xf32>
      %617 = arith.maximumf %615, %616 : vector<8x8xf32>
      %618 = arith.mulf %617, %617 : vector<8x8xf32>
      %619 = arith.mulf %618, %12 : vector<8x8xf32>
      %620 = arith.mulf %619, %603 : vector<8x8xf32>
      %cst_210 = arith.constant dense<0.000000e+00> : vector<8xf32>
      %621 = vector.multi_reduction <add>, %620, %cst_210 [1] : vector<8x8xf32> to vector<8xf32>
      %622 = vector.shape_cast %621 : vector<8xf32> to vector<8x1xf32>
      %cst_211 = arith.constant dense<0.000000e+00> : vector<1xf32>
      %623 = vector.multi_reduction <add>, %622, %cst_211 [0] : vector<8x1xf32> to vector<1xf32>
      %624 = vector.shape_cast %623 : vector<1xf32> to vector<1x1xf32>
      %cst_212 = arith.constant 1.000000e+00 : f32
      %625 = vector.broadcast %cst_212 : f32 to vector<1x1xf32>
      %626 = arith.subf %565, %625 : vector<1x1xf32>
      %627 = arith.mulf %626, %565 : vector<1x1xf32>
      %cst_213 = arith.constant 1.000000e+00 : f32
      %628 = vector.broadcast %cst_213 : f32 to vector<1x1xf32>
      %629 = arith.maximumf %627, %628 : vector<1x1xf32>
      %cst_214 = arith.constant 2.000000e+00 : f32
      %630 = vector.broadcast %cst_214 : f32 to vector<1x1xf32>
      %631 = arith.cmpf oge, %565, %630 : vector<1x1xf32>
      %632 = arith.divf %624, %629 : vector<1x1xf32>
      %cst_215 = arith.constant 0.000000e+00 : f32
      %633 = vector.broadcast %cst_215 : f32 to vector<1x1xf32>
      %634 = arith.select %631, %632, %633 : vector<1x1xi1>, vector<1x1xf32>
      %cst_216 = arith.constant 9.99999993E-9 : f32
      %635 = vector.broadcast %cst_216 : f32 to vector<8x8xf32>
      %636 = arith.addf %572, %635 : vector<8x8xf32>
      %637 = arith.mulf %636, %636 : vector<8x8xf32>
      %cst_217 = arith.constant dense<0.000000e+00> : vector<8xf32>
      %638 = vector.multi_reduction <add>, %637, %cst_217 [1] : vector<8x8xf32> to vector<8xf32>
      %639 = vector.shape_cast %638 : vector<8xf32> to vector<8x1xf32>
      %640 = math.sqrt %639 : vector<8x1xf32>
      %641 = arith.mulf %640, %563 : vector<8x1xf32>
      %cst_218 = arith.constant dense<0.000000e+00> : vector<1xf32>
      %642 = vector.multi_reduction <add>, %641, %cst_218 [0] : vector<8x1xf32> to vector<1xf32>
      %643 = vector.shape_cast %642 : vector<1xf32> to vector<1x1xf32>
      %644 = arith.divf %643, %567 : vector<1x1xf32>
      %cst_219 = arith.constant 1.000000e+00 : f32
      %645 = vector.broadcast %cst_219 : f32 to vector<1x1xf32>
      %646 = arith.mulf %645, %596 : vector<1x1xf32>
      %cst_220 = arith.constant 1.000000e+00 : f32
      %647 = vector.broadcast %cst_220 : f32 to vector<1x1xf32>
      %648 = arith.mulf %647, %634 : vector<1x1xf32>
      %cst_221 = arith.constant 1.000000e-03 : f32
      %649 = vector.broadcast %cst_221 : f32 to vector<1x1xf32>
      %650 = arith.mulf %649, %644 : vector<1x1xf32>
      %651 = arith.addf %646, %648 : vector<1x1xf32>
      %652 = arith.addf %651, %650 : vector<1x1xf32>
      %c0_i32_222 = arith.constant 0 : i32
      %653 = vector.broadcast %c0_i32_222 : i32 to vector<1x128xi32>
      %654 = arith.cmpi eq, %5, %653 : vector<1x128xi32>
      %cst_223 = arith.constant 0.000000e+00 : f32
      %655 = vector.shape_cast %652 : vector<1x1xf32> to vector<1x1xf32>
      %656 = vector.broadcast %655 : vector<1x1xf32> to vector<1x128xf32>
      %657 = vector.broadcast %cst_223 : f32 to vector<1x128xf32>
      %658 = arith.select %654, %656, %657 : vector<1x128xi1>, vector<1x128xf32>
      %c1_i32_224 = arith.constant 1 : i32
      %659 = vector.broadcast %c1_i32_224 : i32 to vector<1x128xi32>
      %660 = arith.cmpi eq, %5, %659 : vector<1x128xi32>
      %cst_225 = arith.constant 0.000000e+00 : f32
      %661 = vector.shape_cast %646 : vector<1x1xf32> to vector<1x1xf32>
      %662 = vector.broadcast %661 : vector<1x1xf32> to vector<1x128xf32>
      %663 = vector.broadcast %cst_225 : f32 to vector<1x128xf32>
      %664 = arith.select %660, %662, %663 : vector<1x128xi1>, vector<1x128xf32>
      %665 = arith.addf %658, %664 : vector<1x128xf32>
      %c2_i32_226 = arith.constant 2 : i32
      %666 = vector.broadcast %c2_i32_226 : i32 to vector<1x128xi32>
      %667 = arith.cmpi eq, %5, %666 : vector<1x128xi32>
      %cst_227 = arith.constant 0.000000e+00 : f32
      %668 = vector.shape_cast %648 : vector<1x1xf32> to vector<1x1xf32>
      %669 = vector.broadcast %668 : vector<1x1xf32> to vector<1x128xf32>
      %670 = vector.broadcast %cst_227 : f32 to vector<1x128xf32>
      %671 = arith.select %667, %669, %670 : vector<1x128xi1>, vector<1x128xf32>
      %672 = arith.addf %665, %671 : vector<1x128xf32>
      %c3_i32_228 = arith.constant 3 : i32
      %673 = vector.broadcast %c3_i32_228 : i32 to vector<1x128xi32>
      %674 = arith.cmpi eq, %5, %673 : vector<1x128xi32>
      %cst_229 = arith.constant 0.000000e+00 : f32
      %675 = vector.shape_cast %650 : vector<1x1xf32> to vector<1x1xf32>
      %676 = vector.broadcast %675 : vector<1x1xf32> to vector<1x128xf32>
      %677 = vector.broadcast %cst_229 : f32 to vector<1x128xf32>
      %678 = arith.select %674, %676, %677 : vector<1x128xi1>, vector<1x128xf32>
      %679 = arith.addf %672, %678 : vector<1x128xf32>
      %c4_230 = arith.constant 4 : index
      %c0_231 = arith.constant 0 : index
      %c0_232 = arith.constant 0 : index
      %680 = vector.load %arg4[%c4_230, %c0_231, %c0_232] : memref<8x1x128xf32, #tpu.memory_space<vmem>>, vector<1x1x128xf32>
      %681 = vector.shape_cast %680 : vector<1x1x128xf32> to vector<1x128xf32>
      %682 = vector.shape_cast %679 : vector<1x128xf32> to vector<1x1x128xf32>
      tpu.vector_store %arg4[%c4_230, %c0_231, %c0_232], %682 {strides = array<i32>} : memref<8x1x128xf32, #tpu.memory_space<vmem>>, vector<1x1x128xf32>,
      %c5 = arith.constant 5 : index
      %c0_233 = arith.constant 0 : index
      %c0_234 = arith.constant 0 : index
      %683 = vector.load %arg2[%c5, %c0_233, %c0_234] : memref<8x8x128xf32, #tpu.memory_space<vmem>>, vector<1x8x128xf32>
      %684 = vector.shape_cast %683 : vector<1x8x128xf32> to vector<8x128xf32>
      %c5_235 = arith.constant 5 : index
      %c0_236 = arith.constant 0 : index
      %c0_237 = arith.constant 0 : index
      %685 = vector.load %arg3[%c5_235, %c0_236, %c0_237] : memref<8x1x128xi32, #tpu.memory_space<vmem>>, vector<1x1x128xi32>
      %686 = vector.shape_cast %685 : vector<1x1x128xi32> to vector<1x128xi32>
      %687 = tpu.iota {dimensions = array<i32: 0>} : vector<8x128xi32>
      %688 = vector.broadcast %686 : vector<1x128xi32> to vector<8x128xi32>
      %689 = arith.cmpi eq, %688, %687 : vector<8x128xi32>
      %690 = arith.extui %689 : vector<8x128xi1> to vector<8x128xi32>
      %691 = arith.sitofp %690 : vector<8x128xi32> to vector<8x128xf32>
      %cst_238 = arith.constant dense<0.000000e+00> : vector<8xf32>
      %692 = vector.multi_reduction <add>, %691, %cst_238 [1] : vector<8x128xf32> to vector<8xf32>
      %693 = vector.shape_cast %692 : vector<8xf32> to vector<8x1xf32>
      %cst_239 = arith.constant 5.000000e-01 : f32
      %694 = vector.broadcast %cst_239 : f32 to vector<8x1xf32>
      %695 = arith.cmpf ogt, %693, %694 : vector<8x1xf32>
      %696 = arith.extui %695 : vector<8x1xi1> to vector<8x1xi32>
      %697 = arith.sitofp %696 : vector<8x1xi32> to vector<8x1xf32>
      %cst_240 = arith.constant dense<0.000000e+00> : vector<1xf32>
      %698 = vector.multi_reduction <add>, %697, %cst_240 [0] : vector<8x1xf32> to vector<1xf32>
      %699 = vector.shape_cast %698 : vector<1xf32> to vector<1x1xf32>
      %cst_241 = arith.constant 1.000000e+00 : f32
      %700 = vector.broadcast %cst_241 : f32 to vector<1x1xf32>
      %701 = arith.maximumf %699, %700 : vector<1x1xf32>
      %cst_242 = arith.constant dense<0.000000e+00> : vector<8x8xf32>
      %702 = tpu.matmul %691, %684, %cst_242 {dimension_numbers = #tpu.dot_dimension_numbers<[1], [1], [0], [0], [0, 0, 1, 0], [], []>} : vector<8x128xf32>, vector<8x128xf32>, vector<8x8xf32> -> vector<8x8xf32>
      %cst_243 = arith.constant 1.000000e+00 : f32
      %703 = vector.broadcast %cst_243 : f32 to vector<8x1xf32>
      %704 = arith.maximumf %693, %703 : vector<8x1xf32>
      %705 = vector.broadcast %704 : vector<8x1xf32> to vector<8x8xf32>
      %706 = arith.divf %702, %705 : vector<8x8xf32>
      %cst_244 = arith.constant dense<0.000000e+00> : vector<8x128xf32>
      %707 = tpu.matmul %706, %691, %cst_244 {dimension_numbers = #tpu.dot_dimension_numbers<[0], [0], [1], [1], [0, 1, 1, 1], [], []>} : vector<8x8xf32>, vector<8x128xf32>, vector<8x128xf32> -> vector<8x128xf32>
      %708 = arith.subf %684, %707 : vector<8x128xf32>
      %cst_245 = arith.constant 9.99999993E-9 : f32
      %709 = vector.broadcast %cst_245 : f32 to vector<8x128xf32>
      %710 = arith.addf %708, %709 : vector<8x128xf32>
      %711 = arith.mulf %710, %710 : vector<8x128xf32>
      %cst_246 = arith.constant dense<0.000000e+00> : vector<128xf32>
      %712 = vector.multi_reduction <add>, %711, %cst_246 [0] : vector<8x128xf32> to vector<128xf32>
      %713 = vector.shape_cast %712 : vector<128xf32> to vector<1x128xf32>
      %714 = math.sqrt %713 : vector<1x128xf32>
      %cst_247 = arith.constant 5.000000e-01 : f32
      %715 = vector.broadcast %cst_247 : f32 to vector<1x128xf32>
      %716 = arith.subf %714, %715 : vector<1x128xf32>
      %cst_248 = arith.constant 0.000000e+00 : f32
      %717 = vector.broadcast %cst_248 : f32 to vector<1x128xf32>
      %718 = arith.maximumf %716, %717 : vector<1x128xf32>
      %719 = arith.mulf %718, %718 : vector<1x128xf32>
      %720 = vector.broadcast %719 : vector<1x128xf32> to vector<8x128xf32>
      %721 = arith.mulf %691, %720 : vector<8x128xf32>
      %cst_249 = arith.constant dense<0.000000e+00> : vector<8xf32>
      %722 = vector.multi_reduction <add>, %721, %cst_249 [1] : vector<8x128xf32> to vector<8xf32>
      %723 = vector.shape_cast %722 : vector<8xf32> to vector<8x1xf32>
      %cst_250 = arith.constant 1.000000e+00 : f32
      %724 = vector.broadcast %cst_250 : f32 to vector<8x1xf32>
      %725 = arith.maximumf %693, %724 : vector<8x1xf32>
      %726 = arith.divf %723, %725 : vector<8x1xf32>
      %727 = arith.mulf %726, %697 : vector<8x1xf32>
      %cst_251 = arith.constant dense<0.000000e+00> : vector<1xf32>
      %728 = vector.multi_reduction <add>, %727, %cst_251 [0] : vector<8x1xf32> to vector<1xf32>
      %729 = vector.shape_cast %728 : vector<1xf32> to vector<1x1xf32>
      %730 = arith.divf %729, %701 : vector<1x1xf32>
      %731 = vector.broadcast %697 : vector<8x1xf32> to vector<8x8xf32>
      %732 = arith.mulf %10, %731 : vector<8x8xf32>
      %cst_252 = arith.constant dense<0.000000e+00> : vector<8xf32>
      %733 = vector.multi_reduction <add>, %732, %cst_252 [0] : vector<8x8xf32> to vector<8xf32>
      %734 = vector.shape_cast %733 : vector<8xf32> to vector<1x8xf32>
      %735 = vector.broadcast %697 : vector<8x1xf32> to vector<8x8xf32>
      %736 = vector.broadcast %734 : vector<1x8xf32> to vector<8x8xf32>
      %737 = arith.mulf %735, %736 : vector<8x8xf32>
      %738 = vector.shape_cast %706 : vector<8x8xf32> to vector<8x1x8xf32>
      %739 = vector.shape_cast %706 : vector<8x8xf32> to vector<1x8x8xf32>
      %740 = vector.broadcast %738 : vector<8x1x8xf32> to vector<8x8x8xf32>
      %741 = vector.broadcast %739 : vector<1x8x8xf32> to vector<8x8x8xf32>
      %742 = arith.subf %740, %741 : vector<8x8x8xf32>
      %cst_253 = arith.constant 9.99999993E-9 : f32
      %743 = vector.broadcast %cst_253 : f32 to vector<8x8x8xf32>
      %744 = arith.addf %742, %743 : vector<8x8x8xf32>
      %745 = arith.mulf %744, %744 : vector<8x8x8xf32>
      %cst_254 = arith.constant dense<0.000000e+00> : vector<8x8xf32>
      %746 = vector.multi_reduction <add>, %745, %cst_254 [2] : vector<8x8x8xf32> to vector<8x8xf32>
      %747 = math.sqrt %746 : vector<8x8xf32>
      %cst_255 = arith.constant 3.000000e+00 : f32
      %748 = vector.broadcast %cst_255 : f32 to vector<8x8xf32>
      %749 = arith.subf %748, %747 : vector<8x8xf32>
      %cst_256 = arith.constant 0.000000e+00 : f32
      %750 = vector.broadcast %cst_256 : f32 to vector<8x8xf32>
      %751 = arith.maximumf %749, %750 : vector<8x8xf32>
      %752 = arith.mulf %751, %751 : vector<8x8xf32>
      %753 = arith.mulf %752, %12 : vector<8x8xf32>
      %754 = arith.mulf %753, %737 : vector<8x8xf32>
      %cst_257 = arith.constant dense<0.000000e+00> : vector<8xf32>
      %755 = vector.multi_reduction <add>, %754, %cst_257 [1] : vector<8x8xf32> to vector<8xf32>
      %756 = vector.shape_cast %755 : vector<8xf32> to vector<8x1xf32>
      %cst_258 = arith.constant dense<0.000000e+00> : vector<1xf32>
      %757 = vector.multi_reduction <add>, %756, %cst_258 [0] : vector<8x1xf32> to vector<1xf32>
      %758 = vector.shape_cast %757 : vector<1xf32> to vector<1x1xf32>
      %cst_259 = arith.constant 1.000000e+00 : f32
      %759 = vector.broadcast %cst_259 : f32 to vector<1x1xf32>
      %760 = arith.subf %699, %759 : vector<1x1xf32>
      %761 = arith.mulf %760, %699 : vector<1x1xf32>
      %cst_260 = arith.constant 1.000000e+00 : f32
      %762 = vector.broadcast %cst_260 : f32 to vector<1x1xf32>
      %763 = arith.maximumf %761, %762 : vector<1x1xf32>
      %cst_261 = arith.constant 2.000000e+00 : f32
      %764 = vector.broadcast %cst_261 : f32 to vector<1x1xf32>
      %765 = arith.cmpf oge, %699, %764 : vector<1x1xf32>
      %766 = arith.divf %758, %763 : vector<1x1xf32>
      %cst_262 = arith.constant 0.000000e+00 : f32
      %767 = vector.broadcast %cst_262 : f32 to vector<1x1xf32>
      %768 = arith.select %765, %766, %767 : vector<1x1xi1>, vector<1x1xf32>
      %cst_263 = arith.constant 9.99999993E-9 : f32
      %769 = vector.broadcast %cst_263 : f32 to vector<8x8xf32>
      %770 = arith.addf %706, %769 : vector<8x8xf32>
      %771 = arith.mulf %770, %770 : vector<8x8xf32>
      %cst_264 = arith.constant dense<0.000000e+00> : vector<8xf32>
      %772 = vector.multi_reduction <add>, %771, %cst_264 [1] : vector<8x8xf32> to vector<8xf32>
      %773 = vector.shape_cast %772 : vector<8xf32> to vector<8x1xf32>
      %774 = math.sqrt %773 : vector<8x1xf32>
      %775 = arith.mulf %774, %697 : vector<8x1xf32>
      %cst_265 = arith.constant dense<0.000000e+00> : vector<1xf32>
      %776 = vector.multi_reduction <add>, %775, %cst_265 [0] : vector<8x1xf32> to vector<1xf32>
      %777 = vector.shape_cast %776 : vector<1xf32> to vector<1x1xf32>
      %778 = arith.divf %777, %701 : vector<1x1xf32>
      %cst_266 = arith.constant 1.000000e+00 : f32
      %779 = vector.broadcast %cst_266 : f32 to vector<1x1xf32>
      %780 = arith.mulf %779, %730 : vector<1x1xf32>
      %cst_267 = arith.constant 1.000000e+00 : f32
      %781 = vector.broadcast %cst_267 : f32 to vector<1x1xf32>
      %782 = arith.mulf %781, %768 : vector<1x1xf32>
      %cst_268 = arith.constant 1.000000e-03 : f32
      %783 = vector.broadcast %cst_268 : f32 to vector<1x1xf32>
      %784 = arith.mulf %783, %778 : vector<1x1xf32>
      %785 = arith.addf %780, %782 : vector<1x1xf32>
      %786 = arith.addf %785, %784 : vector<1x1xf32>
      %c0_i32_269 = arith.constant 0 : i32
      %787 = vector.broadcast %c0_i32_269 : i32 to vector<1x128xi32>
      %788 = arith.cmpi eq, %5, %787 : vector<1x128xi32>
      %cst_270 = arith.constant 0.000000e+00 : f32
      %789 = vector.shape_cast %786 : vector<1x1xf32> to vector<1x1xf32>
      %790 = vector.broadcast %789 : vector<1x1xf32> to vector<1x128xf32>
      %791 = vector.broadcast %cst_270 : f32 to vector<1x128xf32>
      %792 = arith.select %788, %790, %791 : vector<1x128xi1>, vector<1x128xf32>
      %c1_i32_271 = arith.constant 1 : i32
      %793 = vector.broadcast %c1_i32_271 : i32 to vector<1x128xi32>
      %794 = arith.cmpi eq, %5, %793 : vector<1x128xi32>
      %cst_272 = arith.constant 0.000000e+00 : f32
      %795 = vector.shape_cast %780 : vector<1x1xf32> to vector<1x1xf32>
      %796 = vector.broadcast %795 : vector<1x1xf32> to vector<1x128xf32>
      %797 = vector.broadcast %cst_272 : f32 to vector<1x128xf32>
      %798 = arith.select %794, %796, %797 : vector<1x128xi1>, vector<1x128xf32>
      %799 = arith.addf %792, %798 : vector<1x128xf32>
      %c2_i32_273 = arith.constant 2 : i32
      %800 = vector.broadcast %c2_i32_273 : i32 to vector<1x128xi32>
      %801 = arith.cmpi eq, %5, %800 : vector<1x128xi32>
      %cst_274 = arith.constant 0.000000e+00 : f32
      %802 = vector.shape_cast %782 : vector<1x1xf32> to vector<1x1xf32>
      %803 = vector.broadcast %802 : vector<1x1xf32> to vector<1x128xf32>
      %804 = vector.broadcast %cst_274 : f32 to vector<1x128xf32>
      %805 = arith.select %801, %803, %804 : vector<1x128xi1>, vector<1x128xf32>
      %806 = arith.addf %799, %805 : vector<1x128xf32>
      %c3_i32_275 = arith.constant 3 : i32
      %807 = vector.broadcast %c3_i32_275 : i32 to vector<1x128xi32>
      %808 = arith.cmpi eq, %5, %807 : vector<1x128xi32>
      %cst_276 = arith.constant 0.000000e+00 : f32
      %809 = vector.shape_cast %784 : vector<1x1xf32> to vector<1x1xf32>
      %810 = vector.broadcast %809 : vector<1x1xf32> to vector<1x128xf32>
      %811 = vector.broadcast %cst_276 : f32 to vector<1x128xf32>
      %812 = arith.select %808, %810, %811 : vector<1x128xi1>, vector<1x128xf32>
      %813 = arith.addf %806, %812 : vector<1x128xf32>
      %c5_277 = arith.constant 5 : index
      %c0_278 = arith.constant 0 : index
      %c0_279 = arith.constant 0 : index
      %814 = vector.load %arg4[%c5_277, %c0_278, %c0_279] : memref<8x1x128xf32, #tpu.memory_space<vmem>>, vector<1x1x128xf32>
      %815 = vector.shape_cast %814 : vector<1x1x128xf32> to vector<1x128xf32>
      %816 = vector.shape_cast %813 : vector<1x128xf32> to vector<1x1x128xf32>
      tpu.vector_store %arg4[%c5_277, %c0_278, %c0_279], %816 {strides = array<i32>} : memref<8x1x128xf32, #tpu.memory_space<vmem>>, vector<1x1x128xf32>,
      %c6 = arith.constant 6 : index
      %c0_280 = arith.constant 0 : index
      %c0_281 = arith.constant 0 : index
      %817 = vector.load %arg2[%c6, %c0_280, %c0_281] : memref<8x8x128xf32, #tpu.memory_space<vmem>>, vector<1x8x128xf32>
      %818 = vector.shape_cast %817 : vector<1x8x128xf32> to vector<8x128xf32>
      %c6_282 = arith.constant 6 : index
      %c0_283 = arith.constant 0 : index
      %c0_284 = arith.constant 0 : index
      %819 = vector.load %arg3[%c6_282, %c0_283, %c0_284] : memref<8x1x128xi32, #tpu.memory_space<vmem>>, vector<1x1x128xi32>
      %820 = vector.shape_cast %819 : vector<1x1x128xi32> to vector<1x128xi32>
      %821 = tpu.iota {dimensions = array<i32: 0>} : vector<8x128xi32>
      %822 = vector.broadcast %820 : vector<1x128xi32> to vector<8x128xi32>
      %823 = arith.cmpi eq, %822, %821 : vector<8x128xi32>
      %824 = arith.extui %823 : vector<8x128xi1> to vector<8x128xi32>
      %825 = arith.sitofp %824 : vector<8x128xi32> to vector<8x128xf32>
      %cst_285 = arith.constant dense<0.000000e+00> : vector<8xf32>
      %826 = vector.multi_reduction <add>, %825, %cst_285 [1] : vector<8x128xf32> to vector<8xf32>
      %827 = vector.shape_cast %826 : vector<8xf32> to vector<8x1xf32>
      %cst_286 = arith.constant 5.000000e-01 : f32
      %828 = vector.broadcast %cst_286 : f32 to vector<8x1xf32>
      %829 = arith.cmpf ogt, %827, %828 : vector<8x1xf32>
      %830 = arith.extui %829 : vector<8x1xi1> to vector<8x1xi32>
      %831 = arith.sitofp %830 : vector<8x1xi32> to vector<8x1xf32>
      %cst_287 = arith.constant dense<0.000000e+00> : vector<1xf32>
      %832 = vector.multi_reduction <add>, %831, %cst_287 [0] : vector<8x1xf32> to vector<1xf32>
      %833 = vector.shape_cast %832 : vector<1xf32> to vector<1x1xf32>
      %cst_288 = arith.constant 1.000000e+00 : f32
      %834 = vector.broadcast %cst_288 : f32 to vector<1x1xf32>
      %835 = arith.maximumf %833, %834 : vector<1x1xf32>
      %cst_289 = arith.constant dense<0.000000e+00> : vector<8x8xf32>
      %836 = tpu.matmul %825, %818, %cst_289 {dimension_numbers = #tpu.dot_dimension_numbers<[1], [1], [0], [0], [0, 0, 1, 0], [], []>} : vector<8x128xf32>, vector<8x128xf32>, vector<8x8xf32> -> vector<8x8xf32>
      %cst_290 = arith.constant 1.000000e+00 : f32
      %837 = vector.broadcast %cst_290 : f32 to vector<8x1xf32>
      %838 = arith.maximumf %827, %837 : vector<8x1xf32>
      %839 = vector.broadcast %838 : vector<8x1xf32> to vector<8x8xf32>
      %840 = arith.divf %836, %839 : vector<8x8xf32>
      %cst_291 = arith.constant dense<0.000000e+00> : vector<8x128xf32>
      %841 = tpu.matmul %840, %825, %cst_291 {dimension_numbers = #tpu.dot_dimension_numbers<[0], [0], [1], [1], [0, 1, 1, 1], [], []>} : vector<8x8xf32>, vector<8x128xf32>, vector<8x128xf32> -> vector<8x128xf32>
      %842 = arith.subf %818, %841 : vector<8x128xf32>
      %cst_292 = arith.constant 9.99999993E-9 : f32
      %843 = vector.broadcast %cst_292 : f32 to vector<8x128xf32>
      %844 = arith.addf %842, %843 : vector<8x128xf32>
      %845 = arith.mulf %844, %844 : vector<8x128xf32>
      %cst_293 = arith.constant dense<0.000000e+00> : vector<128xf32>
      %846 = vector.multi_reduction <add>, %845, %cst_293 [0] : vector<8x128xf32> to vector<128xf32>
      %847 = vector.shape_cast %846 : vector<128xf32> to vector<1x128xf32>
      %848 = math.sqrt %847 : vector<1x128xf32>
      %cst_294 = arith.constant 5.000000e-01 : f32
      %849 = vector.broadcast %cst_294 : f32 to vector<1x128xf32>
      %850 = arith.subf %848, %849 : vector<1x128xf32>
      %cst_295 = arith.constant 0.000000e+00 : f32
      %851 = vector.broadcast %cst_295 : f32 to vector<1x128xf32>
      %852 = arith.maximumf %850, %851 : vector<1x128xf32>
      %853 = arith.mulf %852, %852 : vector<1x128xf32>
      %854 = vector.broadcast %853 : vector<1x128xf32> to vector<8x128xf32>
      %855 = arith.mulf %825, %854 : vector<8x128xf32>
      %cst_296 = arith.constant dense<0.000000e+00> : vector<8xf32>
      %856 = vector.multi_reduction <add>, %855, %cst_296 [1] : vector<8x128xf32> to vector<8xf32>
      %857 = vector.shape_cast %856 : vector<8xf32> to vector<8x1xf32>
      %cst_297 = arith.constant 1.000000e+00 : f32
      %858 = vector.broadcast %cst_297 : f32 to vector<8x1xf32>
      %859 = arith.maximumf %827, %858 : vector<8x1xf32>
      %860 = arith.divf %857, %859 : vector<8x1xf32>
      %861 = arith.mulf %860, %831 : vector<8x1xf32>
      %cst_298 = arith.constant dense<0.000000e+00> : vector<1xf32>
      %862 = vector.multi_reduction <add>, %861, %cst_298 [0] : vector<8x1xf32> to vector<1xf32>
      %863 = vector.shape_cast %862 : vector<1xf32> to vector<1x1xf32>
      %864 = arith.divf %863, %835 : vector<1x1xf32>
      %865 = vector.broadcast %831 : vector<8x1xf32> to vector<8x8xf32>
      %866 = arith.mulf %10, %865 : vector<8x8xf32>
      %cst_299 = arith.constant dense<0.000000e+00> : vector<8xf32>
      %867 = vector.multi_reduction <add>, %866, %cst_299 [0] : vector<8x8xf32> to vector<8xf32>
      %868 = vector.shape_cast %867 : vector<8xf32> to vector<1x8xf32>
      %869 = vector.broadcast %831 : vector<8x1xf32> to vector<8x8xf32>
      %870 = vector.broadcast %868 : vector<1x8xf32> to vector<8x8xf32>
      %871 = arith.mulf %869, %870 : vector<8x8xf32>
      %872 = vector.shape_cast %840 : vector<8x8xf32> to vector<8x1x8xf32>
      %873 = vector.shape_cast %840 : vector<8x8xf32> to vector<1x8x8xf32>
      %874 = vector.broadcast %872 : vector<8x1x8xf32> to vector<8x8x8xf32>
      %875 = vector.broadcast %873 : vector<1x8x8xf32> to vector<8x8x8xf32>
      %876 = arith.subf %874, %875 : vector<8x8x8xf32>
      %cst_300 = arith.constant 9.99999993E-9 : f32
      %877 = vector.broadcast %cst_300 : f32 to vector<8x8x8xf32>
      %878 = arith.addf %876, %877 : vector<8x8x8xf32>
      %879 = arith.mulf %878, %878 : vector<8x8x8xf32>
      %cst_301 = arith.constant dense<0.000000e+00> : vector<8x8xf32>
      %880 = vector.multi_reduction <add>, %879, %cst_301 [2] : vector<8x8x8xf32> to vector<8x8xf32>
      %881 = math.sqrt %880 : vector<8x8xf32>
      %cst_302 = arith.constant 3.000000e+00 : f32
      %882 = vector.broadcast %cst_302 : f32 to vector<8x8xf32>
      %883 = arith.subf %882, %881 : vector<8x8xf32>
      %cst_303 = arith.constant 0.000000e+00 : f32
      %884 = vector.broadcast %cst_303 : f32 to vector<8x8xf32>
      %885 = arith.maximumf %883, %884 : vector<8x8xf32>
      %886 = arith.mulf %885, %885 : vector<8x8xf32>
      %887 = arith.mulf %886, %12 : vector<8x8xf32>
      %888 = arith.mulf %887, %871 : vector<8x8xf32>
      %cst_304 = arith.constant dense<0.000000e+00> : vector<8xf32>
      %889 = vector.multi_reduction <add>, %888, %cst_304 [1] : vector<8x8xf32> to vector<8xf32>
      %890 = vector.shape_cast %889 : vector<8xf32> to vector<8x1xf32>
      %cst_305 = arith.constant dense<0.000000e+00> : vector<1xf32>
      %891 = vector.multi_reduction <add>, %890, %cst_305 [0] : vector<8x1xf32> to vector<1xf32>
      %892 = vector.shape_cast %891 : vector<1xf32> to vector<1x1xf32>
      %cst_306 = arith.constant 1.000000e+00 : f32
      %893 = vector.broadcast %cst_306 : f32 to vector<1x1xf32>
      %894 = arith.subf %833, %893 : vector<1x1xf32>
      %895 = arith.mulf %894, %833 : vector<1x1xf32>
      %cst_307 = arith.constant 1.000000e+00 : f32
      %896 = vector.broadcast %cst_307 : f32 to vector<1x1xf32>
      %897 = arith.maximumf %895, %896 : vector<1x1xf32>
      %cst_308 = arith.constant 2.000000e+00 : f32
      %898 = vector.broadcast %cst_308 : f32 to vector<1x1xf32>
      %899 = arith.cmpf oge, %833, %898 : vector<1x1xf32>
      %900 = arith.divf %892, %897 : vector<1x1xf32>
      %cst_309 = arith.constant 0.000000e+00 : f32
      %901 = vector.broadcast %cst_309 : f32 to vector<1x1xf32>
      %902 = arith.select %899, %900, %901 : vector<1x1xi1>, vector<1x1xf32>
      %cst_310 = arith.constant 9.99999993E-9 : f32
      %903 = vector.broadcast %cst_310 : f32 to vector<8x8xf32>
      %904 = arith.addf %840, %903 : vector<8x8xf32>
      %905 = arith.mulf %904, %904 : vector<8x8xf32>
      %cst_311 = arith.constant dense<0.000000e+00> : vector<8xf32>
      %906 = vector.multi_reduction <add>, %905, %cst_311 [1] : vector<8x8xf32> to vector<8xf32>
      %907 = vector.shape_cast %906 : vector<8xf32> to vector<8x1xf32>
      %908 = math.sqrt %907 : vector<8x1xf32>
      %909 = arith.mulf %908, %831 : vector<8x1xf32>
      %cst_312 = arith.constant dense<0.000000e+00> : vector<1xf32>
      %910 = vector.multi_reduction <add>, %909, %cst_312 [0] : vector<8x1xf32> to vector<1xf32>
      %911 = vector.shape_cast %910 : vector<1xf32> to vector<1x1xf32>
      %912 = arith.divf %911, %835 : vector<1x1xf32>
      %cst_313 = arith.constant 1.000000e+00 : f32
      %913 = vector.broadcast %cst_313 : f32 to vector<1x1xf32>
      %914 = arith.mulf %913, %864 : vector<1x1xf32>
      %cst_314 = arith.constant 1.000000e+00 : f32
      %915 = vector.broadcast %cst_314 : f32 to vector<1x1xf32>
      %916 = arith.mulf %915, %902 : vector<1x1xf32>
      %cst_315 = arith.constant 1.000000e-03 : f32
      %917 = vector.broadcast %cst_315 : f32 to vector<1x1xf32>
      %918 = arith.mulf %917, %912 : vector<1x1xf32>
      %919 = arith.addf %914, %916 : vector<1x1xf32>
      %920 = arith.addf %919, %918 : vector<1x1xf32>
      %c0_i32_316 = arith.constant 0 : i32
      %921 = vector.broadcast %c0_i32_316 : i32 to vector<1x128xi32>
      %922 = arith.cmpi eq, %5, %921 : vector<1x128xi32>
      %cst_317 = arith.constant 0.000000e+00 : f32
      %923 = vector.shape_cast %920 : vector<1x1xf32> to vector<1x1xf32>
      %924 = vector.broadcast %923 : vector<1x1xf32> to vector<1x128xf32>
      %925 = vector.broadcast %cst_317 : f32 to vector<1x128xf32>
      %926 = arith.select %922, %924, %925 : vector<1x128xi1>, vector<1x128xf32>
      %c1_i32_318 = arith.constant 1 : i32
      %927 = vector.broadcast %c1_i32_318 : i32 to vector<1x128xi32>
      %928 = arith.cmpi eq, %5, %927 : vector<1x128xi32>
      %cst_319 = arith.constant 0.000000e+00 : f32
      %929 = vector.shape_cast %914 : vector<1x1xf32> to vector<1x1xf32>
      %930 = vector.broadcast %929 : vector<1x1xf32> to vector<1x128xf32>
      %931 = vector.broadcast %cst_319 : f32 to vector<1x128xf32>
      %932 = arith.select %928, %930, %931 : vector<1x128xi1>, vector<1x128xf32>
      %933 = arith.addf %926, %932 : vector<1x128xf32>
      %c2_i32_320 = arith.constant 2 : i32
      %934 = vector.broadcast %c2_i32_320 : i32 to vector<1x128xi32>
      %935 = arith.cmpi eq, %5, %934 : vector<1x128xi32>
      %cst_321 = arith.constant 0.000000e+00 : f32
      %936 = vector.shape_cast %916 : vector<1x1xf32> to vector<1x1xf32>
      %937 = vector.broadcast %936 : vector<1x1xf32> to vector<1x128xf32>
      %938 = vector.broadcast %cst_321 : f32 to vector<1x128xf32>
      %939 = arith.select %935, %937, %938 : vector<1x128xi1>, vector<1x128xf32>
      %940 = arith.addf %933, %939 : vector<1x128xf32>
      %c3_i32_322 = arith.constant 3 : i32
      %941 = vector.broadcast %c3_i32_322 : i32 to vector<1x128xi32>
      %942 = arith.cmpi eq, %5, %941 : vector<1x128xi32>
      %cst_323 = arith.constant 0.000000e+00 : f32
      %943 = vector.shape_cast %918 : vector<1x1xf32> to vector<1x1xf32>
      %944 = vector.broadcast %943 : vector<1x1xf32> to vector<1x128xf32>
      %945 = vector.broadcast %cst_323 : f32 to vector<1x128xf32>
      %946 = arith.select %942, %944, %945 : vector<1x128xi1>, vector<1x128xf32>
      %947 = arith.addf %940, %946 : vector<1x128xf32>
      %c6_324 = arith.constant 6 : index
      %c0_325 = arith.constant 0 : index
      %c0_326 = arith.constant 0 : index
      %948 = vector.load %arg4[%c6_324, %c0_325, %c0_326] : memref<8x1x128xf32, #tpu.memory_space<vmem>>, vector<1x1x128xf32>
      %949 = vector.shape_cast %948 : vector<1x1x128xf32> to vector<1x128xf32>
      %950 = vector.shape_cast %947 : vector<1x128xf32> to vector<1x1x128xf32>
      tpu.vector_store %arg4[%c6_324, %c0_325, %c0_326], %950 {strides = array<i32>} : memref<8x1x128xf32, #tpu.memory_space<vmem>>, vector<1x1x128xf32>,
      %c7 = arith.constant 7 : index
      %c0_327 = arith.constant 0 : index
      %c0_328 = arith.constant 0 : index
      %951 = vector.load %arg2[%c7, %c0_327, %c0_328] : memref<8x8x128xf32, #tpu.memory_space<vmem>>, vector<1x8x128xf32>
      %952 = vector.shape_cast %951 : vector<1x8x128xf32> to vector<8x128xf32>
      %c7_329 = arith.constant 7 : index
      %c0_330 = arith.constant 0 : index
      %c0_331 = arith.constant 0 : index
      %953 = vector.load %arg3[%c7_329, %c0_330, %c0_331] : memref<8x1x128xi32, #tpu.memory_space<vmem>>, vector<1x1x128xi32>
      %954 = vector.shape_cast %953 : vector<1x1x128xi32> to vector<1x128xi32>
      %955 = tpu.iota {dimensions = array<i32: 0>} : vector<8x128xi32>
      %956 = vector.broadcast %954 : vector<1x128xi32> to vector<8x128xi32>
      %957 = arith.cmpi eq, %956, %955 : vector<8x128xi32>
      %958 = arith.extui %957 : vector<8x128xi1> to vector<8x128xi32>
      %959 = arith.sitofp %958 : vector<8x128xi32> to vector<8x128xf32>
      %cst_332 = arith.constant dense<0.000000e+00> : vector<8xf32>
      %960 = vector.multi_reduction <add>, %959, %cst_332 [1] : vector<8x128xf32> to vector<8xf32>
      %961 = vector.shape_cast %960 : vector<8xf32> to vector<8x1xf32>
      %cst_333 = arith.constant 5.000000e-01 : f32
      %962 = vector.broadcast %cst_333 : f32 to vector<8x1xf32>
      %963 = arith.cmpf ogt, %961, %962 : vector<8x1xf32>
      %964 = arith.extui %963 : vector<8x1xi1> to vector<8x1xi32>
      %965 = arith.sitofp %964 : vector<8x1xi32> to vector<8x1xf32>
      %cst_334 = arith.constant dense<0.000000e+00> : vector<1xf32>
      %966 = vector.multi_reduction <add>, %965, %cst_334 [0] : vector<8x1xf32> to vector<1xf32>
      %967 = vector.shape_cast %966 : vector<1xf32> to vector<1x1xf32>
      %cst_335 = arith.constant 1.000000e+00 : f32
      %968 = vector.broadcast %cst_335 : f32 to vector<1x1xf32>
      %969 = arith.maximumf %967, %968 : vector<1x1xf32>
      %cst_336 = arith.constant dense<0.000000e+00> : vector<8x8xf32>
      %970 = tpu.matmul %959, %952, %cst_336 {dimension_numbers = #tpu.dot_dimension_numbers<[1], [1], [0], [0], [0, 0, 1, 0], [], []>} : vector<8x128xf32>, vector<8x128xf32>, vector<8x8xf32> -> vector<8x8xf32>
      %cst_337 = arith.constant 1.000000e+00 : f32
      %971 = vector.broadcast %cst_337 : f32 to vector<8x1xf32>
      %972 = arith.maximumf %961, %971 : vector<8x1xf32>
      %973 = vector.broadcast %972 : vector<8x1xf32> to vector<8x8xf32>
      %974 = arith.divf %970, %973 : vector<8x8xf32>
      %cst_338 = arith.constant dense<0.000000e+00> : vector<8x128xf32>
      %975 = tpu.matmul %974, %959, %cst_338 {dimension_numbers = #tpu.dot_dimension_numbers<[0], [0], [1], [1], [0, 1, 1, 1], [], []>} : vector<8x8xf32>, vector<8x128xf32>, vector<8x128xf32> -> vector<8x128xf32>
      %976 = arith.subf %952, %975 : vector<8x128xf32>
      %cst_339 = arith.constant 9.99999993E-9 : f32
      %977 = vector.broadcast %cst_339 : f32 to vector<8x128xf32>
      %978 = arith.addf %976, %977 : vector<8x128xf32>
      %979 = arith.mulf %978, %978 : vector<8x128xf32>
      %cst_340 = arith.constant dense<0.000000e+00> : vector<128xf32>
      %980 = vector.multi_reduction <add>, %979, %cst_340 [0] : vector<8x128xf32> to vector<128xf32>
      %981 = vector.shape_cast %980 : vector<128xf32> to vector<1x128xf32>
      %982 = math.sqrt %981 : vector<1x128xf32>
      %cst_341 = arith.constant 5.000000e-01 : f32
      %983 = vector.broadcast %cst_341 : f32 to vector<1x128xf32>
      %984 = arith.subf %982, %983 : vector<1x128xf32>
      %cst_342 = arith.constant 0.000000e+00 : f32
      %985 = vector.broadcast %cst_342 : f32 to vector<1x128xf32>
      %986 = arith.maximumf %984, %985 : vector<1x128xf32>
      %987 = arith.mulf %986, %986 : vector<1x128xf32>
      %988 = vector.broadcast %987 : vector<1x128xf32> to vector<8x128xf32>
      %989 = arith.mulf %959, %988 : vector<8x128xf32>
      %cst_343 = arith.constant dense<0.000000e+00> : vector<8xf32>
      %990 = vector.multi_reduction <add>, %989, %cst_343 [1] : vector<8x128xf32> to vector<8xf32>
      %991 = vector.shape_cast %990 : vector<8xf32> to vector<8x1xf32>
      %cst_344 = arith.constant 1.000000e+00 : f32
      %992 = vector.broadcast %cst_344 : f32 to vector<8x1xf32>
      %993 = arith.maximumf %961, %992 : vector<8x1xf32>
      %994 = arith.divf %991, %993 : vector<8x1xf32>
      %995 = arith.mulf %994, %965 : vector<8x1xf32>
      %cst_345 = arith.constant dense<0.000000e+00> : vector<1xf32>
      %996 = vector.multi_reduction <add>, %995, %cst_345 [0] : vector<8x1xf32> to vector<1xf32>
      %997 = vector.shape_cast %996 : vector<1xf32> to vector<1x1xf32>
      %998 = arith.divf %997, %969 : vector<1x1xf32>
      %999 = vector.broadcast %965 : vector<8x1xf32> to vector<8x8xf32>
      %1000 = arith.mulf %10, %999 : vector<8x8xf32>
      %cst_346 = arith.constant dense<0.000000e+00> : vector<8xf32>
      %1001 = vector.multi_reduction <add>, %1000, %cst_346 [0] : vector<8x8xf32> to vector<8xf32>
      %1002 = vector.shape_cast %1001 : vector<8xf32> to vector<1x8xf32>
      %1003 = vector.broadcast %965 : vector<8x1xf32> to vector<8x8xf32>
      %1004 = vector.broadcast %1002 : vector<1x8xf32> to vector<8x8xf32>
      %1005 = arith.mulf %1003, %1004 : vector<8x8xf32>
      %1006 = vector.shape_cast %974 : vector<8x8xf32> to vector<8x1x8xf32>
      %1007 = vector.shape_cast %974 : vector<8x8xf32> to vector<1x8x8xf32>
      %1008 = vector.broadcast %1006 : vector<8x1x8xf32> to vector<8x8x8xf32>
      %1009 = vector.broadcast %1007 : vector<1x8x8xf32> to vector<8x8x8xf32>
      %1010 = arith.subf %1008, %1009 : vector<8x8x8xf32>
      %cst_347 = arith.constant 9.99999993E-9 : f32
      %1011 = vector.broadcast %cst_347 : f32 to vector<8x8x8xf32>
      %1012 = arith.addf %1010, %1011 : vector<8x8x8xf32>
      %1013 = arith.mulf %1012, %1012 : vector<8x8x8xf32>
      %cst_348 = arith.constant dense<0.000000e+00> : vector<8x8xf32>
      %1014 = vector.multi_reduction <add>, %1013, %cst_348 [2] : vector<8x8x8xf32> to vector<8x8xf32>
      %1015 = math.sqrt %1014 : vector<8x8xf32>
      %cst_349 = arith.constant 3.000000e+00 : f32
      %1016 = vector.broadcast %cst_349 : f32 to vector<8x8xf32>
      %1017 = arith.subf %1016, %1015 : vector<8x8xf32>
      %cst_350 = arith.constant 0.000000e+00 : f32
      %1018 = vector.broadcast %cst_350 : f32 to vector<8x8xf32>
      %1019 = arith.maximumf %1017, %1018 : vector<8x8xf32>
      %1020 = arith.mulf %1019, %1019 : vector<8x8xf32>
      %1021 = arith.mulf %1020, %12 : vector<8x8xf32>
      %1022 = arith.mulf %1021, %1005 : vector<8x8xf32>
      %cst_351 = arith.constant dense<0.000000e+00> : vector<8xf32>
      %1023 = vector.multi_reduction <add>, %1022, %cst_351 [1] : vector<8x8xf32> to vector<8xf32>
      %1024 = vector.shape_cast %1023 : vector<8xf32> to vector<8x1xf32>
      %cst_352 = arith.constant dense<0.000000e+00> : vector<1xf32>
      %1025 = vector.multi_reduction <add>, %1024, %cst_352 [0] : vector<8x1xf32> to vector<1xf32>
      %1026 = vector.shape_cast %1025 : vector<1xf32> to vector<1x1xf32>
      %cst_353 = arith.constant 1.000000e+00 : f32
      %1027 = vector.broadcast %cst_353 : f32 to vector<1x1xf32>
      %1028 = arith.subf %967, %1027 : vector<1x1xf32>
      %1029 = arith.mulf %1028, %967 : vector<1x1xf32>
      %cst_354 = arith.constant 1.000000e+00 : f32
      %1030 = vector.broadcast %cst_354 : f32 to vector<1x1xf32>
      %1031 = arith.maximumf %1029, %1030 : vector<1x1xf32>
      %cst_355 = arith.constant 2.000000e+00 : f32
      %1032 = vector.broadcast %cst_355 : f32 to vector<1x1xf32>
      %1033 = arith.cmpf oge, %967, %1032 : vector<1x1xf32>
      %1034 = arith.divf %1026, %1031 : vector<1x1xf32>
      %cst_356 = arith.constant 0.000000e+00 : f32
      %1035 = vector.broadcast %cst_356 : f32 to vector<1x1xf32>
      %1036 = arith.select %1033, %1034, %1035 : vector<1x1xi1>, vector<1x1xf32>
      %cst_357 = arith.constant 9.99999993E-9 : f32
      %1037 = vector.broadcast %cst_357 : f32 to vector<8x8xf32>
      %1038 = arith.addf %974, %1037 : vector<8x8xf32>
      %1039 = arith.mulf %1038, %1038 : vector<8x8xf32>
      %cst_358 = arith.constant dense<0.000000e+00> : vector<8xf32>
      %1040 = vector.multi_reduction <add>, %1039, %cst_358 [1] : vector<8x8xf32> to vector<8xf32>
      %1041 = vector.shape_cast %1040 : vector<8xf32> to vector<8x1xf32>
      %1042 = math.sqrt %1041 : vector<8x1xf32>
      %1043 = arith.mulf %1042, %965 : vector<8x1xf32>
      %cst_359 = arith.constant dense<0.000000e+00> : vector<1xf32>
      %1044 = vector.multi_reduction <add>, %1043, %cst_359 [0] : vector<8x1xf32> to vector<1xf32>
      %1045 = vector.shape_cast %1044 : vector<1xf32> to vector<1x1xf32>
      %1046 = arith.divf %1045, %969 : vector<1x1xf32>
      %cst_360 = arith.constant 1.000000e+00 : f32
      %1047 = vector.broadcast %cst_360 : f32 to vector<1x1xf32>
      %1048 = arith.mulf %1047, %998 : vector<1x1xf32>
      %cst_361 = arith.constant 1.000000e+00 : f32
      %1049 = vector.broadcast %cst_361 : f32 to vector<1x1xf32>
      %1050 = arith.mulf %1049, %1036 : vector<1x1xf32>
      %cst_362 = arith.constant 1.000000e-03 : f32
      %1051 = vector.broadcast %cst_362 : f32 to vector<1x1xf32>
      %1052 = arith.mulf %1051, %1046 : vector<1x1xf32>
      %1053 = arith.addf %1048, %1050 : vector<1x1xf32>
      %1054 = arith.addf %1053, %1052 : vector<1x1xf32>
      %c0_i32_363 = arith.constant 0 : i32
      %1055 = vector.broadcast %c0_i32_363 : i32 to vector<1x128xi32>
      %1056 = arith.cmpi eq, %5, %1055 : vector<1x128xi32>
      %cst_364 = arith.constant 0.000000e+00 : f32
      %1057 = vector.shape_cast %1054 : vector<1x1xf32> to vector<1x1xf32>
      %1058 = vector.broadcast %1057 : vector<1x1xf32> to vector<1x128xf32>
      %1059 = vector.broadcast %cst_364 : f32 to vector<1x128xf32>
      %1060 = arith.select %1056, %1058, %1059 : vector<1x128xi1>, vector<1x128xf32>
      %c1_i32_365 = arith.constant 1 : i32
      %1061 = vector.broadcast %c1_i32_365 : i32 to vector<1x128xi32>
      %1062 = arith.cmpi eq, %5, %1061 : vector<1x128xi32>
      %cst_366 = arith.constant 0.000000e+00 : f32
      %1063 = vector.shape_cast %1048 : vector<1x1xf32> to vector<1x1xf32>
      %1064 = vector.broadcast %1063 : vector<1x1xf32> to vector<1x128xf32>
      %1065 = vector.broadcast %cst_366 : f32 to vector<1x128xf32>
      %1066 = arith.select %1062, %1064, %1065 : vector<1x128xi1>, vector<1x128xf32>
      %1067 = arith.addf %1060, %1066 : vector<1x128xf32>
      %c2_i32_367 = arith.constant 2 : i32
      %1068 = vector.broadcast %c2_i32_367 : i32 to vector<1x128xi32>
      %1069 = arith.cmpi eq, %5, %1068 : vector<1x128xi32>
      %cst_368 = arith.constant 0.000000e+00 : f32
      %1070 = vector.shape_cast %1050 : vector<1x1xf32> to vector<1x1xf32>
      %1071 = vector.broadcast %1070 : vector<1x1xf32> to vector<1x128xf32>
      %1072 = vector.broadcast %cst_368 : f32 to vector<1x128xf32>
      %1073 = arith.select %1069, %1071, %1072 : vector<1x128xi1>, vector<1x128xf32>
      %1074 = arith.addf %1067, %1073 : vector<1x128xf32>
      %c3_i32_369 = arith.constant 3 : i32
      %1075 = vector.broadcast %c3_i32_369 : i32 to vector<1x128xi32>
      %1076 = arith.cmpi eq, %5, %1075 : vector<1x128xi32>
      %cst_370 = arith.constant 0.000000e+00 : f32
      %1077 = vector.shape_cast %1052 : vector<1x1xf32> to vector<1x1xf32>
      %1078 = vector.broadcast %1077 : vector<1x1xf32> to vector<1x128xf32>
      %1079 = vector.broadcast %cst_370 : f32 to vector<1x128xf32>
      %1080 = arith.select %1076, %1078, %1079 : vector<1x128xi1>, vector<1x128xf32>
      %1081 = arith.addf %1074, %1080 : vector<1x128xf32>
      %c7_371 = arith.constant 7 : index
      %c0_372 = arith.constant 0 : index
      %c0_373 = arith.constant 0 : index
      %1082 = vector.load %arg4[%c7_371, %c0_372, %c0_373] : memref<8x1x128xf32, #tpu.memory_space<vmem>>, vector<1x1x128xf32>
      %1083 = vector.shape_cast %1082 : vector<1x1x128xf32> to vector<1x128xf32>
      %1084 = vector.shape_cast %1081 : vector<1x128xf32> to vector<1x1x128xf32>
      tpu.vector_store %arg4[%c7_371, %c0_372, %c0_373], %1084 {strides = array<i32>} : memref<8x1x128xf32, #tpu.memory_space<vmem>>, vector<1x1x128xf32>,
    } else {
    }
    return
  }
  func.func @transform_0(%arg0: i32, %arg1: memref<1xi32, #tpu.memory_space<smem>>) -> (i32, i32, i32) {
    %c0_i32 = arith.constant 0 : i32
    %c0_i32_0 = arith.constant 0 : i32
    %c0_i32_1 = arith.constant 0 : i32
    return %arg0, %c0_i32, %c0_i32_0 : i32, i32, i32
  }
  func.func @transform_1(%arg0: i32, %arg1: memref<1xi32, #tpu.memory_space<smem>>) -> (i32, i32, i32) {
    %c0_i32 = arith.constant 0 : i32
    %c0_i32_0 = arith.constant 0 : i32
    %c0_i32_1 = arith.constant 0 : i32
    return %arg0, %c0_i32, %c0_i32_0 : i32, i32, i32
  }
  func.func @transform_2(%arg0: i32, %arg1: memref<1xi32, #tpu.memory_space<smem>>) -> (i32, i32, i32) {
    %c0_i32 = arith.constant 0 : i32
    %c0_i32_0 = arith.constant 0 : i32
    %c0_i32_1 = arith.constant 0 : i32
    return %arg0, %c0_i32, %c0_i32_0 : i32, i32, i32
  }
}

</mosaic_0001>

<llo_original>
// kernel: tpu_custom_call.1
$region0: #{tpu_custom_call.1}
  #allocation0 [shape = 'u32[]', space=smem, size = 0x4, offset = 0x4, fixed_abs, tag = 'smem constant byte address 0x4 - core index']
  #allocation1 [shape = 'u32[144,128]{1,0:T(1,128)}', space=vmem, size = 0x12000, scoped, tag = 'internal scratch']
  #allocation2 [shape = 's32[1]{0}', space=sflag, size = 0x4, scoped, tag = 'scoped memory for tpu_custom_call.1']
  #allocation3 [shape = 's32[1]{0:T(128)S(6)}', space=smem, size = 0x200, scoped, tag = 'prefetched SMEM operand 0']
  %s0 = inlined_call_operand.<no memory space> [shape: s32[1], index: 0, kind: input, shape index: {}]
  %s1 = inlined_call_operand.hbm [shape: f32[8,8,128], index: 1, kind: input, shape index: {}]
  %s2 = inlined_call_operand.hbm [shape: s32[8,1,128], index: 2, kind: input, shape index: {}]
  %s3 = inlined_call_operand.hbm [shape: f32[8,1,128], index: 3, kind: output, shape index: {}]
  %s4 = sld [smem:[#allocation0]]
  $region30: #{tpu_custom_call.1} parent=0
    _
  %s6 = ssub.s32 1, %s4
  %s7 = scalar_select 0, %s6, %s4
  %8 = sst [smem:[#allocation3]] %s0
  $region1: #{tpu_custom_call.1} parent=0
    #allocation4 [shape = 'u8[32768]{0}', space=vmem, size = 0x8000, scoped, tag = 'input window, operand 1, single buffered']
    #allocation5 [shape = 's32[1]{0}', space=sflag, size = 0x4, scoped, tag = 'scoped memory for tpu_custom_call.1']
    #allocation6 [shape = 's32[1]{0}', space=sflag, size = 0x4, scoped, tag = 'scoped memory for tpu_custom_call.1']
    #allocation7 [shape = 'u8[4096]{0}', space=vmem, size = 0x1000, scoped, tag = 'input window, operand 2, single buffered']
    #allocation8 [shape = 's32[1]{0}', space=sflag, size = 0x4, scoped, tag = 'scoped memory for tpu_custom_call.1']
    #allocation9 [shape = 'u8[4096]{0}', space=vmem, size = 0x1000, scoped, tag = 'output window, operand 0, single buffered']
    %9 = vsyncpa [#allocation5], 0
    %10 = vsyncpa [#allocation8], 0
    %11 = vsyncpa [#allocation6], 0
    // Predicated region
    $region2: #{tpu_custom_call.1} parent=1 // pred_check
      _
    $region3: #{tpu_custom_call.1} parent=1 // pred_check_branch
      %13 = sbr.rel (0) target = $region5
    $region4: #{tpu_custom_call.1} parent=1 // pred_region
      %s15 = ssub.s32 1024, 1024
      %16 = vsyncadd [#allocation5], %s15
      %s17 = sshll.u32 [#allocation4], 4
      %s18 = int_to_ptr.vmem [resolvable:$true] %s17
      %23 = dma.hbm_to_vmem [thread:$0]  %s1, 1024, %s18, [#allocation5], 128, 128, 8
    $region5: #{tpu_custom_call.1} parent=1 // pred_fallthru
      _
    // Predicated region
    $region6: #{tpu_custom_call.1} parent=1 // pred_check
      _
    $region7: #{tpu_custom_call.1} parent=1 // pred_check_branch
      %25 = sbr.rel (0) target = $region9
    $region8: #{tpu_custom_call.1} parent=1 // pred_region
      %s27 = ssub.s32 128, 128
      %28 = vsyncadd [#allocation8], %s27
      %s29 = sshll.u32 [#allocation7], 4
      %s30 = int_to_ptr.vmem [resolvable:$true] %s29
      %35 = dma.hbm_to_vmem [thread:$0]  %s2, 128, %s30, [#allocation8], 16, 16, 1
    $region9: #{tpu_custom_call.1} parent=1 // pred_fallthru
      _
    // Predicated region
    $region10: #{tpu_custom_call.1} parent=1 // pred_check
      _
    $region11: #{tpu_custom_call.1} parent=1 // pred_check_branch
      %37 = sbr.rel (0) target = $region13
    $region12: #{tpu_custom_call.1} parent=1 // pred_region
      %38 = dma.done [#allocation5], 1024
    $region13: #{tpu_custom_call.1} parent=1 // pred_fallthru
      _
    // Predicated region
    $region14: #{tpu_custom_call.1} parent=1 // pred_check
      _
    $region15: #{tpu_custom_call.1} parent=1 // pred_check_branch
      %40 = sbr.rel (0) target = $region17
    $region16: #{tpu_custom_call.1} parent=1 // pred_region
      %41 = dma.done [#allocation8], 128
    $region17: #{tpu_custom_call.1} parent=1 // pred_fallthru
      _
    %s42 = smul.u32 0, 8
    %s43 = sld [smem:[#allocation3]]
    %p44 = scmp.lt.s32.totalorder %s42, %s43
    // Predicated region
    $region18: #{tpu_custom_call.1} parent=1 // pred_check
      %p45 = pneg %p44
    $region19: #{tpu_custom_call.1} parent=1 // pred_check_branch
      %47 = sbr.rel (%p45) target = $region21
    $region20: #{tpu_custom_call.1} parent=1 // pred_region
      %v48 = vlaneseq
      %v49 = vand.u32 %v48, 127
      %v50 = vlaneseq
      %v51 = vshrl.u32 %v50, 7
      %vm52 = vcmp.eq.s32.totalorder %v51, %v49
      %v53 = vsel %vm52, 1, 0
      %v54 = vcvt.s32.f32 %v53
      %v55 = vsub.f32 1.0, %v54
      %v56 = vld [vmem:[#allocation4] sm:$0xff]
      %v57 = vld [vmem:[#allocation7] sm:$0x1]
      %v58 = vlaneseq
      %v59 = vshrl.u32 %v58, 7
      %v60 = vsub.s32 0, %v59
      %v61 = vrot.slane %v57, %v60
      %vm62 = vcmp.eq.s32.totalorder %v61, %v51
      %v63 = vsel %vm62, 1, 0
      %v64 = vcvt.s32.f32 %v63
      %65 = vadd.xlane.f32.xlu0 %v64
      %v66 = vpop.xlane.xlu0 %65
      %vm67 = vcmp.gt.f32.partialorder %v66, 0.5
      %v68 = vsel %vm67, 1, 0
      %v69 = vcvt.s32.f32 %v68
      %v70 = vrot.slane %v69, 4
      %v71 = vadd.f32 %v69, %v70
      %v72 = vrot.slane %v71, 2
      %v73 = vadd.f32 %v71, %v72
      %v74 = vrot.slane %v73, 1
      %v75 = vadd.f32 %v73, %v74
      %v76 = vmax.f32 %v75, 1.0
      %77 = vmatprep.subr.mxu0 0.0
      %78 = vmatpush1.xpose.msra.mxu0 %v56
      %79 = vmatprep.subr.mxu0 0.0
      %80 = vmatpush1.xpose.msra.mxu0 0.0
      %81 = vmatprep.subr.mxu0 0.0
      %82 = vmatpush1.xpose.msra.mxu0 0.0
      %83 = vmatprep.subr.mxu0 0.0
      %84 = vmatpush1.xpose.msra.mxu0 0.0
      %85 = vmatprep.subr.mxu0 0.0
      %86 = vmatpush1.xpose.msra.mxu0 0.0
      %87 = vmatprep.subr.mxu0 0.0
      %88 = vmatpush1.xpose.msra.mxu0 0.0
      %89 = vmatprep.subr.mxu0 0.0
      %90 = vmatpush1.xpose.msra.mxu0 0.0
      %91 = vmatprep.subr.mxu0 0.0
      %92 = vmatpush1.xpose.msra.mxu0 0.0
      %93 = vmatprep.subr.mxu0 0.0
      %94 = vmatpush1.xpose.msra.mxu0 0.0
      %95 = vmatprep.subr.mxu0 0.0
      %96 = vmatpush1.xpose.msra.mxu0 0.0
      %97 = vmatprep.subr.mxu0 0.0
      %98 = vmatpush1.xpose.msra.mxu0 0.0
      %99 = vmatprep.subr.mxu0 0.0
      %100 = vmatpush1.xpose.msra.mxu0 0.0
      %101 = vmatprep.subr.mxu0 0.0
      %102 = vmatpush1.xpose.msra.mxu0 0.0
      %103 = vmatprep.subr.mxu0 0.0
      %104 = vmatpush1.xpose.msra.mxu0 0.0
      %105 = vmatprep.subr.mxu0 0.0
      %106 = vmatpush1.xpose.msra.mxu0 0.0
      %107 = vmatprep.subr.mxu0 0.0
      %108 = vmatpush1.xpose.msra.mxu0 0.0
      %109 = vmatprep.subr.mxu0 0.0
      %110 = vmatpush1.xpose.msra.mxu0 0.0
      %111 = vmatprep.subr.mxu0 0.0
      %112 = vmatpush1.xpose.msra.mxu0 0.0
      %113 = vmatprep.subr.mxu0 0.0
      %114 = vmatpush1.xpose.msra.mxu0 0.0
      %115 = vmatprep.subr.mxu0 0.0
      %116 = vmatpush1.xpose.msra.mxu0 0.0
      %117 = vmatprep.subr.mxu0 0.0
      %118 = vmatpush1.xpose.msra.mxu0 0.0
      %119 = vmatprep.subr.mxu0 0.0
      %120 = vmatpush1.xpose.msra.mxu0 0.0
      %121 = vmatprep.subr.mxu0 0.0
      %122 = vmatpush1.xpose.msra.mxu0 0.0
      %123 = vmatprep.subr.mxu0 0.0
      %124 = vmatpush1.xpose.msra.mxu0 0.0
      %125 = vmatprep.subr.mxu0 0.0
      %126 = vmatpush1.xpose.msra.mxu0 0.0
      %127 = vmatprep.subr.mxu0 0.0
      %128 = vmatpush1.xpose.msra.mxu0 0.0
      %129 = vmatprep.subr.mxu0 0.0
      %130 = vmatpush1.xpose.msra.mxu0 0.0
      %131 = vmatprep.subr.mxu0 0.0
      %132 = vmatpush1.xpose.msra.mxu0 0.0
      %133 = vmatprep.subr.mxu0 0.0
      %134 = vmatpush1.xpose.msra.mxu0 0.0
      %135 = vmatprep.subr.mxu0 0.0
      %136 = vmatpush1.xpose.msra.mxu0 0.0
      %137 = vmatprep.subr.mxu0 0.0
      %138 = vmatpush1.xpose.msra.mxu0 0.0
      %139 = vmatprep.subr.mxu0 0.0
      %140 = vmatpush1.xpose.msra.mxu0 0.0
      %141 = vmatprep.mubr.f32.mxu0 0.0
      %142 = vmatmul.mubr.f32.gmra.mrb[0].mxu0 %v64
      %v143 = vpop.f32.mrb[0].mxu0
      %v144 = vadd.f32 0.0, %v143
      %v145 = vpop.f32.mrb[0].mxu0
      %146 = vdwg.mxu0
      %v147 = vmax.f32 %v66, 1.0
      %v148 = vrcp.pop %v147
      %v149 = vmul.f32 %v144, %v148
      %150 = vxpose.xlu0.b32.start [1/16] %v149, 128
      %151 = vxpose.xlu0.b32.cont [2/16] 0.0, 128
      %152 = vxpose.xlu0.b32.cont [3/16] 0.0, 128
      %153 = vxpose.xlu0.b32.cont [4/16] 0.0, 128
      %154 = vxpose.xlu0.b32.cont [5/16] 0.0, 128
      %155 = vxpose.xlu0.b32.cont [6/16] 0.0, 128
      %156 = vxpose.xlu0.b32.cont [7/16] 0.0, 128
      %157 = vxpose.xlu0.b32.cont [8/16] 0.0, 128
      %158 = vxpose.xlu0.b32.cont [9/16] 0.0, 128
      %159 = vxpose.xlu0.b32.cont [10/16] 0.0, 128
      %160 = vxpose.xlu0.b32.cont [11/16] 0.0, 128
      %161 = vxpose.xlu0.b32.cont [12/16] 0.0, 128
      %162 = vxpose.xlu0.b32.cont [13/16] 0.0, 128
      %163 = vxpose.xlu0.b32.cont [14/16] 0.0, 128
      %164 = vxpose.xlu0.b32.cont [15/16] 0.0, 128
      %165 = vxpose.xlu0.b32.end [16/16] 0.0, 128
      %v166 = vpop.trf.xlu0
      %v167 = vpop.trf.xlu0
      %v168 = vpop.trf.xlu0
      %v169 = vpop.trf.xlu0
      %v170 = vpop.trf.xlu0
      %v171 = vpop.trf.xlu0
      %v172 = vpop.trf.xlu0
      %v173 = vpop.trf.xlu0
      %v174 = vpop.trf.xlu0
      %v175 = vpop.trf.xlu0
      %v176 = vpop.trf.xlu0
      %v177 = vpop.trf.xlu0
      %v178 = vpop.trf.xlu0
      %v179 = vpop.trf.xlu0
      %v180 = vpop.trf.xlu0
      %v181 = vpop.trf.xlu0
      %vm182 = vcmask 64512
      %v184 = vsel %vm182, %v166, 0
      %186 = vmatprep.subr.mxu0 0.0
      %187 = vmatpush1.msra.mxu0 %v64
      %188 = vmatprep.subr.mxu0 0.0
      %189 = vmatpush1.msra.mxu0 0.0
      %190 = vmatprep.subr.mxu0 0.0
      %191 = vmatpush1.msra.mxu0 0.0
      %192 = vmatprep.subr.mxu0 0.0
      %193 = vmatpush1.msra.mxu0 0.0
      %194 = vmatprep.subr.mxu0 0.0
      %195 = vmatpush1.msra.mxu0 0.0
      %196 = vmatprep.subr.mxu0 0.0
      %197 = vmatpush1.msra.mxu0 0.0
      %198 = vmatprep.subr.mxu0 0.0
      %199 = vmatpush1.msra.mxu0 0.0
      %200 = vmatprep.subr.mxu0 0.0
      %201 = vmatpush1.msra.mxu0 0.0
      %202 = vmatprep.subr.mxu0 0.0
      %203 = vmatpush1.msra.mxu0 0.0
      %204 = vmatprep.subr.mxu0 0.0
      %205 = vmatpush1.msra.mxu0 0.0
      %206 = vmatprep.subr.mxu0 0.0
      %207 = vmatpush1.msra.mxu0 0.0
      %208 = vmatprep.subr.mxu0 0.0
      %209 = vmatpush1.msra.mxu0 0.0
      %210 = vmatprep.subr.mxu0 0.0
      %211 = vmatpush1.msra.mxu0 0.0
      %212 = vmatprep.subr.mxu0 0.0
      %213 = vmatpush1.msra.mxu0 0.0
      %214 = vmatprep.subr.mxu0 0.0
      %215 = vmatpush1.msra.mxu0 0.0
      %216 = vmatprep.subr.mxu0 0.0
      %217 = vmatpush1.msra.mxu0 0.0
      %218 = vmatprep.subr.mxu0 0.0
      %219 = vmatpush1.msra.mxu0 0.0
      %220 = vmatprep.subr.mxu0 0.0
      %221 = vmatpush1.msra.mxu0 0.0
      %222 = vmatprep.subr.mxu0 0.0
      %223 = vmatpush1.msra.mxu0 0.0
      %224 = vmatprep.subr.mxu0 0.0
      %225 = vmatpush1.msra.mxu0 0.0
      %226 = vmatprep.subr.mxu0 0.0
      %227 = vmatpush1.msra.mxu0 0.0
      %228 = vmatprep.subr.mxu0 0.0
      %229 = vmatpush1.msra.mxu0 0.0
      %230 = vmatprep.subr.mxu0 0.0
      %231 = vmatpush1.msra.mxu0 0.0
      %232 = vmatprep.subr.mxu0 0.0
      %233 = vmatpush1.msra.mxu0 0.0
      %234 = vmatprep.subr.mxu0 0.0
      %235 = vmatpush1.msra.mxu0 0.0
      %236 = vmatprep.subr.mxu0 0.0
      %237 = vmatpush1.msra.mxu0 0.0
      %238 = vmatprep.subr.mxu0 0.0
      %239 = vmatpush1.msra.mxu0 0.0
      %240 = vmatprep.subr.mxu0 0.0
      %241 = vmatpush1.msra.mxu0 0.0
      %242 = vmatprep.subr.mxu0 0.0
      %243 = vmatpush1.msra.mxu0 0.0
      %244 = vmatprep.subr.mxu0 0.0
      %245 = vmatpush1.msra.mxu0 0.0
      %246 = vmatprep.subr.mxu0 0.0
      %247 = vmatpush1.msra.mxu0 0.0
      %248 = vmatprep.subr.mxu0 0.0
      %249 = vmatpush1.msra.mxu0 0.0
      %250 = vmatprep.mubr.f32.mxu0 0.0
      %251 = vmatmul.mubr.f32.gmra.mrb[0].mxu0 %v184
      %v252 = vpop.f32.mrb[0].mxu0
      %v253 = vadd.f32 0.0, %v252
      %v254 = vpop.f32.mrb[0].mxu0
      %255 = vdwg.mxu0
      %v256 = vsub.f32 %v56, %v253
      %v257 = vadd.f32 %v256, 1e-08
      %v258 = vmul.f32 %v257, %v257
      %v259 = vrot.slane %v258, 4
      %v260 = vadd.f32 %v258, %v259
      %v261 = vrot.slane %v260, 2
      %v262 = vadd.f32 %v260, %v261
      %v263 = vrot.slane %v262, 1
      %v264 = vadd.f32 %v262, %v263
      %v265 = vrsqrt.pop %v264
      %v266 = vmul.f32 %v264, %v265
      %vm267 = vcmp.eq.f32.partialorder %v264, inf
      %v268 = vsel %vm267, %v264, %v266
      %vm269 = vcmp.eq.f32.partialorder %v264, 0.0
      %v270 = vand.u32 %v264, 2147483648
      %v271 = vsel %vm269, %v270, %v268
      %v272 = vsub.f32 %v271, 0.5
      %v273 = vmax.f32 %v272, 0.0
      %v274 = vmul.f32 %v273, %v273
      %v275 = vmul.f32 %v64, %v274
      %276 = vadd.xlane.f32.xlu0 %v275
      %v277 = vpop.xlane.xlu0 %276
      %v278 = vmul.f32 %v277, %v148
      %v279 = vmul.f32 %v278, %v69
      %v280 = vrot.slane %v279, 4
      %v281 = vadd.f32 %v279, %v280
      %v282 = vrot.slane %v281, 2
      %v283 = vadd.f32 %v281, %v282
      %v284 = vrot.slane %v283, 1
      %v285 = vadd.f32 %v283, %v284
      %v286 = vrcp.pop %v76
      %v287 = vmul.f32 %v285, %v286
      %v288 = vmul.f32 %v54, %v69
      %v289 = vsel %vm182, %v288, 0.0
      %v290 = vrot.slane %v289, 4
      %v291 = vadd.f32 %v289, %v290
      %v292 = vrot.slane %v291, 2
      %v293 = vadd.f32 %v291, %v292
      %v294 = vrot.slane %v293, 1
      %v295 = vadd.f32 %v293, %v294
      %v296 = vmul.f32 %v69, %v295
      %v298 = vcombine.high %v149, %v149
      %v300 = vunpack.c.l.s4 1966171168
      %v301 = vunpack.c.0.s8 %v300
      %v302 = vlaneseq
      %v303 = vshrl.u32 %v302, 7
      %v304 = vsub.s32 %v301, %v303
      %v305 = vrot.slane %v149, %v304
      %v307 = vunpack.c.l.s4 1966171168
      %v308 = vunpack.c.0.s8 %v307
      %v309 = vlaneseq
      %v310 = vshrl.u32 %v309, 7
      %v311 = vsub.s32 %v308, %v310
      %v312 = vrot.slane %v298, %v311
      %v313 = vcombine.high %v305, %v305
      %v314 = vcombine.high %v312, %v312
      %v316 = vunpack.c.l.s4 1966171168
      %v317 = vunpack.c.0.s8 %v316
      %v318 = vlaneseq
      %v319 = vshrl.u32 %v318, 7
      %v320 = vsub.s32 %v317, %v319
      %v321 = vrot.slane %v305, %v320
      %v323 = vunpack.c.l.s4 1966171168
      %v324 = vunpack.c.0.s8 %v323
      %v325 = vlaneseq
      %v326 = vshrl.u32 %v325, 7
      %v327 = vsub.s32 %v324, %v326
      %v328 = vrot.slane %v312, %v327
      %v330 = vunpack.c.l.s4 1966171168
      %v331 = vunpack.c.0.s8 %v330
      %v332 = vlaneseq
      %v333 = vshrl.u32 %v332, 7
      %v334 = vsub.s32 %v331, %v333
      %v335 = vrot.slane %v313, %v334
      %v337 = vunpack.c.l.s4 1966171168
      %v338 = vunpack.c.0.s8 %v337
      %v339 = vlaneseq
      %v340 = vshrl.u32 %v339, 7
      %v341 = vsub.s32 %v338, %v340
      %v342 = vrot.slane %v314, %v341
      %v343 = vcombine.high %v321, %v321
      %v344 = vcombine.high %v328, %v328
      %v345 = vcombine.high %v335, %v335
      %v346 = vcombine.high %v342, %v342
      %v347 = vlaneseq
      %v348 = vshrl.u32 %v347, 7
      %v349 = vsub.s32 0, %v348
      %v350 = vrot.slane %v321, %v349
      %v351 = vlaneseq
      %v352 = vshrl.u32 %v351, 7
      %v353 = vsub.s32 0, %v352
      %v354 = vrot.slane %v335, %v353
      %v355 = vlaneseq
      %v356 = vshrl.u32 %v355, 7
      %v357 = vsub.s32 0, %v356
      %v358 = vrot.slane %v343, %v357
      %v359 = vlaneseq
      %v360 = vshrl.u32 %v359, 7
      %v361 = vsub.s32 0, %v360
      %v362 = vrot.slane %v345, %v361
      %v363 = vlaneseq
      %v364 = vshrl.u32 %v363, 7
      %v365 = vsub.s32 0, %v364
      %v366 = vrot.slane %v328, %v365
      %v367 = vlaneseq
      %v368 = vshrl.u32 %v367, 7
      %v369 = vsub.s32 0, %v368
      %v370 = vrot.slane %v342, %v369
      %v371 = vlaneseq
      %v372 = vshrl.u32 %v371, 7
      %v373 = vsub.s32 0, %v372
      %v374 = vrot.slane %v344, %v373
      %v375 = vlaneseq
      %v376 = vshrl.u32 %v375, 7
      %v377 = vsub.s32 0, %v376
      %v378 = vrot.slane %v346, %v377
      %v387 = vsub.f32 %v350, %v149
      %v388 = vsub.f32 %v354, %v149
      %v389 = vsub.f32 %v358, %v149
      %v390 = vsub.f32 %v362, %v149
      %v391 = vsub.f32 %v366, %v149
      %v392 = vsub.f32 %v370, %v149
      %v393 = vsub.f32 %v374, %v149
      %v394 = vsub.f32 %v378, %v149
      %v395 = vadd.f32 %v387, 1e-08
      %v396 = vadd.f32 %v388, 1e-08
      %v397 = vadd.f32 %v389, 1e-08
      %v398 = vadd.f32 %v390, 1e-08
      %v399 = vadd.f32 %v391, 1e-08
      %v400 = vadd.f32 %v392, 1e-08
      %v401 = vadd.f32 %v393, 1e-08
      %v402 = vadd.f32 %v394, 1e-08
      %v403 = vmul.f32 %v395, %v395
      %v404 = vmul.f32 %v396, %v396
      %v405 = vmul.f32 %v397, %v397
      %v406 = vmul.f32 %v398, %v398
      %v407 = vmul.f32 %v399, %v399
      %v408 = vmul.f32 %v400, %v400
      %v409 = vmul.f32 %v401, %v401
      %v410 = vmul.f32 %v402, %v402
      %v411 = vsel %vm182, %v403, 0.0
      %412 = vadd.xlane.f32.xlu0 %v411
      %v413 = vpop.xlane.xlu0 %412
      %v414 = vsel %vm182, %v404, 0.0
      %415 = vadd.xlane.f32.xlu0 %v414
      %v416 = vpop.xlane.xlu0 %415
      %v417 = vsel %vm182, %v405, 0.0
      %418 = vadd.xlane.f32.xlu0 %v417
      %v419 = vpop.xlane.xlu0 %418
      %v420 = vsel %vm182, %v406, 0.0
      %421 = vadd.xlane.f32.xlu0 %v420
      %v422 = vpop.xlane.xlu0 %421
      %v423 = vsel %vm182, %v407, 0.0
      %424 = vadd.xlane.f32.xlu0 %v423
      %v425 = vpop.xlane.xlu0 %424
      %v426 = vsel %vm182, %v408, 0.0
      %427 = vadd.xlane.f32.xlu0 %v426
      %v428 = vpop.xlane.xlu0 %427
      %v429 = vsel %vm182, %v409, 0.0
      %430 = vadd.xlane.f32.xlu0 %v429
      %v431 = vpop.xlane.xlu0 %430
      %v432 = vsel %vm182, %v410, 0.0
      %433 = vadd.xlane.f32.xlu0 %v432
      %v434 = vpop.xlane.xlu0 %433
      %v435 = vrsqrt.pop %v413
      %v436 = vmul.f32 %v413, %v435
      %vm437 = vcmp.eq.f32.partialorder %v413, inf
      %v438 = vsel %vm437, %v413, %v436
      %vm439 = vcmp.eq.f32.partialorder %v413, 0.0
      %v440 = vand.u32 %v413, 2147483648
      %v441 = vsel %vm439, %v440, %v438
      %v442 = vrsqrt.pop %v416
      %v443 = vmul.f32 %v416, %v442
      %vm444 = vcmp.eq.f32.partialorder %v416, inf
      %v445 = vsel %vm444, %v416, %v443
      %vm446 = vcmp.eq.f32.partialorder %v416, 0.0
      %v447 = vand.u32 %v416, 2147483648
      %v448 = vsel %vm446, %v447, %v445
      %v449 = vrsqrt.pop %v419
      %v450 = vmul.f32 %v419, %v449
      %vm451 = vcmp.eq.f32.partialorder %v419, inf
      %v452 = vsel %vm451, %v419, %v450
      %vm453 = vcmp.eq.f32.partialorder %v419, 0.0
      %v454 = vand.u32 %v419, 2147483648
      %v455 = vsel %vm453, %v454, %v452
      %v456 = vrsqrt.pop %v422
      %v457 = vmul.f32 %v422, %v456
      %vm458 = vcmp.eq.f32.partialorder %v422, inf
      %v459 = vsel %vm458, %v422, %v457
      %vm460 = vcmp.eq.f32.partialorder %v422, 0.0
      %v461 = vand.u32 %v422, 2147483648
      %v462 = vsel %vm460, %v461, %v459
      %v463 = vrsqrt.pop %v425
      %v464 = vmul.f32 %v425, %v463
      %vm465 = vcmp.eq.f32.partialorder %v425, inf
      %v466 = vsel %vm465, %v425, %v464
      %vm467 = vcmp.eq.f32.partialorder %v425, 0.0
      %v468 = vand.u32 %v425, 2147483648
      %v469 = vsel %vm467, %v468, %v466
      %v470 = vrsqrt.pop %v428
      %v471 = vmul.f32 %v428, %v470
      %vm472 = vcmp.eq.f32.partialorder %v428, inf
      %v473 = vsel %vm472, %v428, %v471
      %vm474 = vcmp.eq.f32.partialorder %v428, 0.0
      %v475 = vand.u32 %v428, 2147483648
      %v476 = vsel %vm474, %v475, %v473
      %v477 = vrsqrt.pop %v431
      %v478 = vmul.f32 %v431, %v477
      %vm479 = vcmp.eq.f32.partialorder %v431, inf
      %v480 = vsel %vm479, %v431, %v478
      %vm481 = vcmp.eq.f32.partialorder %v431, 0.0
      %v482 = vand.u32 %v431, 2147483648
      %v483 = vsel %vm481, %v482, %v480
      %v484 = vrsqrt.pop %v434
      %v485 = vmul.f32 %v434, %v484
      %vm486 = vcmp.eq.f32.partialorder %v434, inf
      %v487 = vsel %vm486, %v434, %v485
      %vm488 = vcmp.eq.f32.partialorder %v434, 0.0
      %v489 = vand.u32 %v434, 2147483648
      %v490 = vsel %vm488, %v489, %v487
      %v491 = vsub.f32 3.0, %v441
      %v492 = vsub.f32 3.0, %v448
      %v493 = vsub.f32 3.0, %v455
      %v494 = vsub.f32 3.0, %v462
      %v495 = vsub.f32 3.0, %v469
      %v496 = vsub.f32 3.0, %v476
      %v497 = vsub.f32 3.0, %v483
      %v498 = vsub.f32 3.0, %v490
      %v499 = vmax.f32 %v491, 0.0
      %v500 = vmax.f32 %v492, 0.0
      %v501 = vmax.f32 %v493, 0.0
      %v502 = vmax.f32 %v494, 0.0
      %v503 = vmax.f32 %v495, 0.0
      %v504 = vmax.f32 %v496, 0.0
      %v505 = vmax.f32 %v497, 0.0
      %v506 = vmax.f32 %v498, 0.0
      %v507 = vmul.f32 %v499, %v499
      %v508 = vmul.f32 %v500, %v500
      %v509 = vmul.f32 %v501, %v501
      %v510 = vmul.f32 %v502, %v502
      %v511 = vmul.f32 %v503, %v503
      %v512 = vmul.f32 %v504, %v504
      %v513 = vmul.f32 %v505, %v505
      %v514 = vmul.f32 %v506, %v506
      %v516 = vlaneseq
      %v517 = vshrl.u32 %v516, 7
      %v518 = vsub.s32 0, %v517
      %v519 = vrot.slane %v55, %v518
      %521 = vbcast.lane.b32.xlu0 %v519, 256
      %v522 = vpop.permute.xlu0 %521
      %v523 = vlaneseq
      %v524 = vshrl.u32 %v523, 7
      %v525 = vsub.s32 1, %v524
      %v526 = vrot.slane %v55, %v525
      %528 = vbcast.lane.b32.xlu0 %v526, 256
      %v529 = vpop.permute.xlu0 %528
      %v530 = vlaneseq
      %v531 = vshrl.u32 %v530, 7
      %v532 = vsub.s32 2, %v531
      %v533 = vrot.slane %v55, %v532
      %535 = vbcast.lane.b32.xlu0 %v533, 256
      %v536 = vpop.permute.xlu0 %535
      %v537 = vlaneseq
      %v538 = vshrl.u32 %v537, 7
      %v539 = vsub.s32 3, %v538
      %v540 = vrot.slane %v55, %v539
      %542 = vbcast.lane.b32.xlu0 %v540, 256
      %v543 = vpop.permute.xlu0 %542
      %v544 = vlaneseq
      %v545 = vshrl.u32 %v544, 7
      %v546 = vsub.s32 4, %v545
      %v547 = vrot.slane %v55, %v546
      %549 = vbcast.lane.b32.xlu0 %v547, 256
      %v550 = vpop.permute.xlu0 %549
      %v551 = vlaneseq
      %v552 = vshrl.u32 %v551, 7
      %v553 = vsub.s32 5, %v552
      %v554 = vrot.slane %v55, %v553
      %556 = vbcast.lane.b32.xlu0 %v554, 256
      %v557 = vpop.permute.xlu0 %556
      %v558 = vlaneseq
      %v559 = vshrl.u32 %v558, 7
      %v560 = vsub.s32 6, %v559
      %v561 = vrot.slane %v55, %v560
      %563 = vbcast.lane.b32.xlu0 %v561, 256
      %v564 = vpop.permute.xlu0 %563
      %v565 = vlaneseq
      %v566 = vshrl.u32 %v565, 7
      %v567 = vsub.s32 7, %v566
      %v568 = vrot.slane %v55, %v567
      %570 = vbcast.lane.b32.xlu0 %v568, 256
      %v571 = vpop.permute.xlu0 %570
      %v580 = vmul.f32 %v507, %v522
      %v581 = vmul.f32 %v508, %v529
      %v582 = vmul.f32 %v509, %v536
      %v583 = vmul.f32 %v510, %v543
      %v584 = vmul.f32 %v511, %v550
      %v585 = vmul.f32 %v512, %v557
      %v586 = vmul.f32 %v513, %v564
      %v587 = vmul.f32 %v514, %v571
      %v589 = vlaneseq
      %v590 = vshrl.u32 %v589, 7
      %v591 = vsub.s32 0, %v590
      %v592 = vrot.slane %v296, %v591
      %594 = vbcast.lane.b32.xlu0 %v592, 256
      %v595 = vpop.permute.xlu0 %594
      %v596 = vlaneseq
      %v597 = vshrl.u32 %v596, 7
      %v598 = vsub.s32 1, %v597
      %v599 = vrot.slane %v296, %v598
      %601 = vbcast.lane.b32.xlu0 %v599, 256
      %v602 = vpop.permute.xlu0 %601
      %v603 = vlaneseq
      %v604 = vshrl.u32 %v603, 7
      %v605 = vsub.s32 2, %v604
      %v606 = vrot.slane %v296, %v605
      %608 = vbcast.lane.b32.xlu0 %v606, 256
      %v609 = vpop.permute.xlu0 %608
      %v610 = vlaneseq
      %v611 = vshrl.u32 %v610, 7
      %v612 = vsub.s32 3, %v611
      %v613 = vrot.slane %v296, %v612
      %615 = vbcast.lane.b32.xlu0 %v613, 256
      %v616 = vpop.permute.xlu0 %615
      %v617 = vlaneseq
      %v618 = vshrl.u32 %v617, 7
      %v619 = vsub.s32 4, %v618
      %v620 = vrot.slane %v296, %v619
      %622 = vbcast.lane.b32.xlu0 %v620, 256
      %v623 = vpop.permute.xlu0 %622
      %v624 = vlaneseq
      %v625 = vshrl.u32 %v624, 7
      %v626 = vsub.s32 5, %v625
      %v627 = vrot.slane %v296, %v626
      %629 = vbcast.lane.b32.xlu0 %v627, 256
      %v630 = vpop.permute.xlu0 %629
      %v631 = vlaneseq
      %v632 = vshrl.u32 %v631, 7
      %v633 = vsub.s32 6, %v632
      %v634 = vrot.slane %v296, %v633
      %636 = vbcast.lane.b32.xlu0 %v634, 256
      %v637 = vpop.permute.xlu0 %636
      %v638 = vlaneseq
      %v639 = vshrl.u32 %v638, 7
      %v640 = vsub.s32 7, %v639
      %v641 = vrot.slane %v296, %v640
      %643 = vbcast.lane.b32.xlu0 %v641, 256
      %v644 = vpop.permute.xlu0 %643
      %v653 = vmul.f32 %v580, %v595
      %v654 = vmul.f32 %v581, %v602
      %v655 = vmul.f32 %v582, %v609
      %v656 = vmul.f32 %v583, %v616
      %v657 = vmul.f32 %v584, %v623
      %v658 = vmul.f32 %v585, %v630
      %v659 = vmul.f32 %v586, %v637
      %v660 = vmul.f32 %v587, %v644
      %669 = vset.pattern.permute.xlu0 0
      %670 = vperm.xlu0 %669, %v653
      %v671 = vpop.permute.xlu0 %670
      %672 = vset.pattern.permute.xlu0 0
      %673 = vperm.xlu0 %672, %v654
      %v674 = vpop.permute.xlu0 %673
      %675 = vset.pattern.permute.xlu0 0
      %676 = vperm.xlu0 %675, %v655
      %v677 = vpop.permute.xlu0 %676
      %678 = vset.pattern.permute.xlu0 0
      %679 = vperm.xlu0 %678, %v656
      %v680 = vpop.permute.xlu0 %679
      %681 = vset.pattern.permute.xlu0 0
      %682 = vperm.xlu0 %681, %v657
      %v683 = vpop.permute.xlu0 %682
      %684 = vset.pattern.permute.xlu0 0
      %685 = vperm.xlu0 %684, %v658
      %v686 = vpop.permute.xlu0 %685
      %687 = vset.pattern.permute.xlu0 0
      %688 = vperm.xlu0 %687, %v659
      %v689 = vpop.permute.xlu0 %688
      %690 = vset.pattern.permute.xlu0 0
      %691 = vperm.xlu0 %690, %v660
      %v692 = vpop.permute.xlu0 %691
      %v693 = vlaneseq
      %v694 = vshrl.u32 %v693, 7
      %v695 = vsub.s32 %v49, %v694
      %v696 = vrot.slane %v671, %v695
      %v697 = vlaneseq
      %v698 = vshrl.u32 %v697, 7
      %v699 = vsub.s32 %v49, %v698
      %v700 = vrot.slane %v674, %v699
      %v701 = vlaneseq
      %v702 = vshrl.u32 %v701, 7
      %v703 = vsub.s32 %v49, %v702
      %v704 = vrot.slane %v677, %v703
      %v705 = vlaneseq
      %v706 = vshrl.u32 %v705, 7
      %v707 = vsub.s32 %v49, %v706
      %v708 = vrot.slane %v680, %v707
      %v709 = vlaneseq
      %v710 = vshrl.u32 %v709, 7
      %v711 = vsub.s32 %v49, %v710
      %v712 = vrot.slane %v683, %v711
      %v713 = vlaneseq
      %v714 = vshrl.u32 %v713, 7
      %v715 = vsub.s32 %v49, %v714
      %v716 = vrot.slane %v686, %v715
      %v717 = vlaneseq
      %v718 = vshrl.u32 %v717, 7
      %v719 = vsub.s32 %v49, %v718
      %v720 = vrot.slane %v689, %v719
      %v721 = vlaneseq
      %v722 = vshrl.u32 %v721, 7
      %v723 = vsub.s32 %v49, %v722
      %v724 = vrot.slane %v692, %v723
      %vm725 = vcmask 1041409
      %v726 = vsel %vm725, %v700, %v696
      %vm727 = vcmask 1042434
      %v728 = vsel %vm727, %v704, %v726
      %vm729 = vcmask 1043459
      %v730 = vsel %vm729, %v708, %v728
      %vm731 = vcmask 1044484
      %v732 = vsel %vm731, %v712, %v730
      %vm733 = vcmask 1045509
      %v734 = vsel %vm733, %v716, %v732
      %vm735 = vcmask 1046534
      %v736 = vsel %vm735, %v720, %v734
      %vm737 = vcmask 1047559
      %v738 = vsel %vm737, %v724, %v736
      %v740 = vsel %vm182, %v738, 0.0
      %741 = vadd.xlane.f32.xlu0 %v740
      %v742 = vpop.xlane.xlu0 %741
      %v743 = vrot.slane %v742, 4
      %v744 = vadd.f32 %v742, %v743
      %v745 = vrot.slane %v744, 2
      %v746 = vadd.f32 %v744, %v745
      %v747 = vrot.slane %v746, 1
      %v748 = vadd.f32 %v746, %v747
      %v749 = vsub.f32 %v75, 1.0
      %v750 = vmul.f32 %v749, %v75
      %v751 = vmax.f32 %v750, 1.0
      %vm752 = vcmp.ge.f32.partialorder %v75, 2.0
      %v753 = vrcp.pop %v751
      %v754 = vmul.f32 %v748, %v753
      %v755 = vsel %vm752, %v754, 0.0
      %v756 = vadd.f32 %v149, 1e-08
      %v757 = vmul.f32 %v756, %v756
      %v758 = vsel %vm182, %v757, 0.0
      %759 = vadd.xlane.f32.xlu0 %v758
      %v760 = vpop.xlane.xlu0 %759
      %v761 = vrsqrt.pop %v760
      %v762 = vmul.f32 %v760, %v761
      %vm763 = vcmp.eq.f32.partialorder %v760, inf
      %v764 = vsel %vm763, %v760, %v762
      %vm765 = vcmp.eq.f32.partialorder %v760, 0.0
      %v766 = vand.u32 %v760, 2147483648
      %v767 = vsel %vm765, %v766, %v764
      %v768 = vmul.f32 %v767, %v69
      %v769 = vrot.slane %v768, 4
      %v770 = vadd.f32 %v768, %v769
      %v771 = vrot.slane %v770, 2
      %v772 = vadd.f32 %v770, %v771
      %v773 = vrot.slane %v772, 1
      %v774 = vadd.f32 %v772, %v773
      %v775 = vmul.f32 %v774, %v286
      %v776 = vmul.f32 %v775, 0.001
      %v777 = vadd.f32 %v287, %v755
      %v778 = vadd.f32 %v777, %v776
      %vm779 = vcmp.eq.s32.totalorder %v49, 0
      %v780 = vsel %vm779, %v778, 0.0
      %vm781 = vcmp.eq.s32.totalorder %v49, 1
      %v782 = vsel %vm781, %v287, 0.0
      %v783 = vadd.f32 %v780, %v782
      %vm784 = vcmp.eq.s32.totalorder %v49, 2
      %v785 = vsel %vm784, %v755, 0.0
      %v786 = vadd.f32 %v783, %v785
      %vm787 = vcmp.eq.s32.totalorder %v49, 3
      %v788 = vsel %vm787, %v776, 0.0
      %v789 = vadd.f32 %v786, %v788
      %790 = vst [vmem:[#allocation9] sm:$0x1] %v789
      %s791 = scalar_lea.vmem [#allocation4], 8
      %v792 = vld [vmem:[%s791] sm:$0xff]
      %s793 = scalar_lea.vmem [#allocation7], 1
      %v794 = vld [vmem:[%s793] sm:$0x1]
      %v795 = vlaneseq
      %v796 = vshrl.u32 %v795, 7
      %v797 = vsub.s32 0, %v796
      %v798 = vrot.slane %v794, %v797
      %vm799 = vcmp.eq.s32.totalorder %v798, %v51
      %v800 = vsel %vm799, 1, 0
      %v801 = vcvt.s32.f32 %v800
      %802 = vadd.xlane.f32.xlu0 %v801
      %v803 = vpop.xlane.xlu0 %802
      %vm804 = vcmp.gt.f32.partialorder %v803, 0.5
      %v805 = vsel %vm804, 1, 0
      %v806 = vcvt.s32.f32 %v805
      %v807 = vrot.slane %v806, 4
      %v808 = vadd.f32 %v806, %v807
      %v809 = vrot.slane %v808, 2
      %v810 = vadd.f32 %v808, %v809
      %v811 = vrot.slane %v810, 1
      %v812 = vadd.f32 %v810, %v811
      %v813 = vmax.f32 %v812, 1.0
      %814 = vmatprep.subr.mxu0 0.0
      %815 = vmatpush1.xpose.msra.mxu0 %v792
      %816 = vmatprep.subr.mxu0 0.0
      %817 = vmatpush1.xpose.msra.mxu0 0.0
      %818 = vmatprep.subr.mxu0 0.0
      %819 = vmatpush1.xpose.msra.mxu0 0.0
      %820 = vmatprep.subr.mxu0 0.0
      %821 = vmatpush1.xpose.msra.mxu0 0.0
      %822 = vmatprep.subr.mxu0 0.0
      %823 = vmatpush1.xpose.msra.mxu0 0.0
      %824 = vmatprep.subr.mxu0 0.0
      %825 = vmatpush1.xpose.msra.mxu0 0.0
      %826 = vmatprep.subr.mxu0 0.0
      %827 = vmatpush1.xpose.msra.mxu0 0.0
      %828 = vmatprep.subr.mxu0 0.0
      %829 = vmatpush1.xpose.msra.mxu0 0.0
      %830 = vmatprep.subr.mxu0 0.0
      %831 = vmatpush1.xpose.msra.mxu0 0.0
      %832 = vmatprep.subr.mxu0 0.0
      %833 = vmatpush1.xpose.msra.mxu0 0.0
      %834 = vmatprep.subr.mxu0 0.0
      %835 = vmatpush1.xpose.msra.mxu0 0.0
      %836 = vmatprep.subr.mxu0 0.0
      %837 = vmatpush1.xpose.msra.mxu0 0.0
      %838 = vmatprep.subr.mxu0 0.0
      %839 = vmatpush1.xpose.msra.mxu0 0.0
      %840 = vmatprep.subr.mxu0 0.0
      %841 = vmatpush1.xpose.msra.mxu0 0.0
      %842 = vmatprep.subr.mxu0 0.0
      %843 = vmatpush1.xpose.msra.mxu0 0.0
      %844 = vmatprep.subr.mxu0 0.0
      %845 = vmatpush1.xpose.msra.mxu0 0.0
      %846 = vmatprep.subr.mxu0 0.0
      %847 = vmatpush1.xpose.msra.mxu0 0.0
      %848 = vmatprep.subr.mxu0 0.0
      %849 = vmatpush1.xpose.msra.mxu0 0.0
      %850 = vmatprep.subr.mxu0 0.0
      %851 = vmatpush1.xpose.msra.mxu0 0.0
      %852 = vmatprep.subr.mxu0 0.0
      %853 = vmatpush1.xpose.msra.mxu0 0.0
      %854 = vmatprep.subr.mxu0 0.0
      %855 = vmatpush1.xpose.msra.mxu0 0.0
      %856 = vmatprep.subr.mxu0 0.0
      %857 = vmatpush1.xpose.msra.mxu0 0.0
      %858 = vmatprep.subr.mxu0 0.0
      %859 = vmatpush1.xpose.msra.mxu0 0.0
      %860 = vmatprep.subr.mxu0 0.0
      %861 = vmatpush1.xpose.msra.mxu0 0.0
      %862 = vmatprep.subr.mxu0 0.0
      %863 = vmatpush1.xpose.msra.mxu0 0.0
      %864 = vmatprep.subr.mxu0 0.0
      %865 = vmatpush1.xpose.msra.mxu0 0.0
      %866 = vmatprep.subr.mxu0 0.0
      %867 = vmatpush1.xpose.msra.mxu0 0.0
      %868 = vmatprep.subr.mxu0 0.0
      %869 = vmatpush1.xpose.msra.mxu0 0.0
      %870 = vmatprep.subr.mxu0 0.0
      %871 = vmatpush1.xpose.msra.mxu0 0.0
      %872 = vmatprep.subr.mxu0 0.0
      %873 = vmatpush1.xpose.msra.mxu0 0.0
      %874 = vmatprep.subr.mxu0 0.0
      %875 = vmatpush1.xpose.msra.mxu0 0.0
      %876 = vmatprep.subr.mxu0 0.0
      %877 = vmatpush1.xpose.msra.mxu0 0.0
      %878 = vmatprep.mubr.f32.mxu0 0.0
      %879 = vmatmul.mubr.f32.gmra.mrb[0].mxu0 %v801
      %v880 = vpop.f32.mrb[0].mxu0
      %v881 = vadd.f32 0.0, %v880
      %v882 = vpop.f32.mrb[0].mxu0
      %883 = vdwg.mxu0
      %v884 = vmax.f32 %v803, 1.0
      %v885 = vrcp.pop %v884
      %v886 = vmul.f32 %v881, %v885
      %887 = vxpose.xlu0.b32.start [1/16] %v886, 128
      %888 = vxpose.xlu0.b32.cont [2/16] 0.0, 128
      %889 = vxpose.xlu0.b32.cont [3/16] 0.0, 128
      %890 = vxpose.xlu0.b32.cont [4/16] 0.0, 128
      %891 = vxpose.xlu0.b32.cont [5/16] 0.0, 128
      %892 = vxpose.xlu0.b32.cont [6/16] 0.0, 128
      %893 = vxpose.xlu0.b32.cont [7/16] 0.0, 128
      %894 = vxpose.xlu0.b32.cont [8/16] 0.0, 128
      %895 = vxpose.xlu0.b32.cont [9/16] 0.0, 128
      %896 = vxpose.xlu0.b32.cont [10/16] 0.0, 128
      %897 = vxpose.xlu0.b32.cont [11/16] 0.0, 128
      %898 = vxpose.xlu0.b32.cont [12/16] 0.0, 128
      %899 = vxpose.xlu0.b32.cont [13/16] 0.0, 128
      %900 = vxpose.xlu0.b32.cont [14/16] 0.0, 128
      %901 = vxpose.xlu0.b32.cont [15/16] 0.0, 128
      %902 = vxpose.xlu0.b32.end [16/16] 0.0, 128
      %v903 = vpop.trf.xlu0
      %v904 = vpop.trf.xlu0
      %v905 = vpop.trf.xlu0
      %v906 = vpop.trf.xlu0
      %v907 = vpop.trf.xlu0
      %v908 = vpop.trf.xlu0
      %v909 = vpop.trf.xlu0
      %v910 = vpop.trf.xlu0
      %v911 = vpop.trf.xlu0
      %v912 = vpop.trf.xlu0
      %v913 = vpop.trf.xlu0
      %v914 = vpop.trf.xlu0
      %v915 = vpop.trf.xlu0
      %v916 = vpop.trf.xlu0
      %v917 = vpop.trf.xlu0
      %v918 = vpop.trf.xlu0
      %v920 = vsel %vm182, %v903, 0
      %922 = vmatprep.subr.mxu0 0.0
      %923 = vmatpush1.msra.mxu0 %v801
      %924 = vmatprep.subr.mxu0 0.0
      %925 = vmatpush1.msra.mxu0 0.0
      %926 = vmatprep.subr.mxu0 0.0
      %927 = vmatpush1.msra.mxu0 0.0
      %928 = vmatprep.subr.mxu0 0.0
      %929 = vmatpush1.msra.mxu0 0.0
      %930 = vmatprep.subr.mxu0 0.0
      %931 = vmatpush1.msra.mxu0 0.0
      %932 = vmatprep.subr.mxu0 0.0
      %933 = vmatpush1.msra.mxu0 0.0
      %934 = vmatprep.subr.mxu0 0.0
      %935 = vmatpush1.msra.mxu0 0.0
      %936 = vmatprep.subr.mxu0 0.0
      %937 = vmatpush1.msra.mxu0 0.0
      %938 = vmatprep.subr.mxu0 0.0
      %939 = vmatpush1.msra.mxu0 0.0
      %940 = vmatprep.subr.mxu0 0.0
      %941 = vmatpush1.msra.mxu0 0.0
      %942 = vmatprep.subr.mxu0 0.0
      %943 = vmatpush1.msra.mxu0 0.0
      %944 = vmatprep.subr.mxu0 0.0
      %945 = vmatpush1.msra.mxu0 0.0
      %946 = vmatprep.subr.mxu0 0.0
      %947 = vmatpush1.msra.mxu0 0.0
      %948 = vmatprep.subr.mxu0 0.0
      %949 = vmatpush1.msra.mxu0 0.0
      %950 = vmatprep.subr.mxu0 0.0
      %951 = vmatpush1.msra.mxu0 0.0
      %952 = vmatprep.subr.mxu0 0.0
      %953 = vmatpush1.msra.mxu0 0.0
      %954 = vmatprep.subr.mxu0 0.0
      %955 = vmatpush1.msra.mxu0 0.0
      %956 = vmatprep.subr.mxu0 0.0
      %957 = vmatpush1.msra.mxu0 0.0
      %958 = vmatprep.subr.mxu0 0.0
      %959 = vmatpush1.msra.mxu0 0.0
      %960 = vmatprep.subr.mxu0 0.0
      %961 = vmatpush1.msra.mxu0 0.0
      %962 = vmatprep.subr.mxu0 0.0
      %963 = vmatpush1.msra.mxu0 0.0
      %964 = vmatprep.subr.mxu0 0.0
      %965 = vmatpush1.msra.mxu0 0.0
      %966 = vmatprep.subr.mxu0 0.0
      %967 = vmatpush1.msra.mxu0 0.0
      %968 = vmatprep.subr.mxu0 0.0
      %969 = vmatpush1.msra.mxu0 0.0
      %970 = vmatprep.subr.mxu0 0.0
      %971 = vmatpush1.msra.mxu0 0.0
      %972 = vmatprep.subr.mxu0 0.0
      %973 = vmatpush1.msra.mxu0 0.0
      %974 = vmatprep.subr.mxu0 0.0
      %975 = vmatpush1.msra.mxu0 0.0
      %976 = vmatprep.subr.mxu0 0.0
      %977 = vmatpush1.msra.mxu0 0.0
      %978 = vmatprep.subr.mxu0 0.0
      %979 = vmatpush1.msra.mxu0 0.0
      %980 = vmatprep.subr.mxu0 0.0
      %981 = vmatpush1.msra.mxu0 0.0
      %982 = vmatprep.subr.mxu0 0.0
      %983 = vmatpush1.msra.mxu0 0.0
      %984 = vmatprep.subr.mxu0 0.0
      %985 = vmatpush1.msra.mxu0 0.0
      %986 = vmatprep.mubr.f32.mxu0 0.0
      %987 = vmatmul.mubr.f32.gmra.mrb[0].mxu0 %v920
      %v988 = vpop.f32.mrb[0].mxu0
      %v989 = vadd.f32 0.0, %v988
      %v990 = vpop.f32.mrb[0].mxu0
      %991 = vdwg.mxu0
      %v992 = vsub.f32 %v792, %v989
      %v993 = vadd.f32 %v992, 1e-08
      %v994 = vmul.f32 %v993, %v993
      %v995 = vrot.slane %v994, 4
      %v996 = vadd.f32 %v994, %v995
      %v997 = vrot.slane %v996, 2
      %v998 = vadd.f32 %v996, %v997
      %v999 = vrot.slane %v998, 1
      %v1000 = vadd.f32 %v998, %v999
      %v1001 = vrsqrt.pop %v1000
      %v1002 = vmul.f32 %v1000, %v1001
      %vm1003 = vcmp.eq.f32.partialorder %v1000, inf
      %v1004 = vsel %vm1003, %v1000, %v1002
      %vm1005 = vcmp.eq.f32.partialorder %v1000, 0.0
      %v1006 = vand.u32 %v1000, 2147483648
      %v1007 = vsel %vm1005, %v1006, %v1004
      %v1008 = vsub.f32 %v1007, 0.5
      %v1009 = vmax.f32 %v1008, 0.0
      %v1010 = vmul.f32 %v1009, %v1009
      %v1011 = vmul.f32 %v801, %v1010
      %1012 = vadd.xlane.f32.xlu0 %v1011
      %v1013 = vpop.xlane.xlu0 %1012
      %v1014 = vmul.f32 %v1013, %v885
      %v1015 = vmul.f32 %v1014, %v806
      %v1016 = vrot.slane %v1015, 4
      %v1017 = vadd.f32 %v1015, %v1016
      %v1018 = vrot.slane %v1017, 2
      %v1019 = vadd.f32 %v1017, %v1018
      %v1020 = vrot.slane %v1019, 1
      %v1021 = vadd.f32 %v1019, %v1020
      %v1022 = vrcp.pop %v813
      %v1023 = vmul.f32 %v1021, %v1022
      %v1024 = vmul.f32 %v54, %v806
      %v1025 = vsel %vm182, %v1024, 0.0
      %v1026 = vrot.slane %v1025, 4
      %v1027 = vadd.f32 %v1025, %v1026
      %v1028 = vrot.slane %v1027, 2
      %v1029 = vadd.f32 %v1027, %v1028
      %v1030 = vrot.slane %v1029, 1
      %v1031 = vadd.f32 %v1029, %v1030
      %v1032 = vmul.f32 %v806, %v1031
      %v1034 = vcombine.high %v886, %v886
      %v1036 = vunpack.c.l.s4 1966171168
      %v1037 = vunpack.c.0.s8 %v1036
      %v1038 = vlaneseq
      %v1039 = vshrl.u32 %v1038, 7
      %v1040 = vsub.s32 %v1037, %v1039
      %v1041 = vrot.slane %v886, %v1040
      %v1043 = vunpack.c.l.s4 1966171168
      %v1044 = vunpack.c.0.s8 %v1043
      %v1045 = vlaneseq
      %v1046 = vshrl.u32 %v1045, 7
      %v1047 = vsub.s32 %v1044, %v1046
      %v1048 = vrot.slane %v1034, %v1047
      %v1049 = vcombine.high %v1041, %v1041
      %v1050 = vcombine.high %v1048, %v1048
      %v1052 = vunpack.c.l.s4 1966171168
      %v1053 = vunpack.c.0.s8 %v1052
      %v1054 = vlaneseq
      %v1055 = vshrl.u32 %v1054, 7
      %v1056 = vsub.s32 %v1053, %v1055
      %v1057 = vrot.slane %v1041, %v1056
      %v1059 = vunpack.c.l.s4 1966171168
      %v1060 = vunpack.c.0.s8 %v1059
      %v1061 = vlaneseq
      %v1062 = vshrl.u32 %v1061, 7
      %v1063 = vsub.s32 %v1060, %v1062
      %v1064 = vrot.slane %v1048, %v1063
      %v1066 = vunpack.c.l.s4 1966171168
      %v1067 = vunpack.c.0.s8 %v1066
      %v1068 = vlaneseq
      %v1069 = vshrl.u32 %v1068, 7
      %v1070 = vsub.s32 %v1067, %v1069
      %v1071 = vrot.slane %v1049, %v1070
      %v1073 = vunpack.c.l.s4 1966171168
      %v1074 = vunpack.c.0.s8 %v1073
      %v1075 = vlaneseq
      %v1076 = vshrl.u32 %v1075, 7
      %v1077 = vsub.s32 %v1074, %v1076
      %v1078 = vrot.slane %v1050, %v1077
      %v1079 = vcombine.high %v1057, %v1057
      %v1080 = vcombine.high %v1064, %v1064
      %v1081 = vcombine.high %v1071, %v1071
      %v1082 = vcombine.high %v1078, %v1078
      %v1083 = vlaneseq
      %v1084 = vshrl.u32 %v1083, 7
      %v1085 = vsub.s32 0, %v1084
      %v1086 = vrot.slane %v1057, %v1085
      %v1087 = vlaneseq
      %v1088 = vshrl.u32 %v1087, 7
      %v1089 = vsub.s32 0, %v1088
      %v1090 = vrot.slane %v1071, %v1089
      %v1091 = vlaneseq
      %v1092 = vshrl.u32 %v1091, 7
      %v1093 = vsub.s32 0, %v1092
      %v1094 = vrot.slane %v1079, %v1093
      %v1095 = vlaneseq
      %v1096 = vshrl.u32 %v1095, 7
      %v1097 = vsub.s32 0, %v1096
      %v1098 = vrot.slane %v1081, %v1097
      %v1099 = vlaneseq
      %v1100 = vshrl.u32 %v1099, 7
      %v1101 = vsub.s32 0, %v1100
      %v1102 = vrot.slane %v1064, %v1101
      %v1103 = vlaneseq
      %v1104 = vshrl.u32 %v1103, 7
      %v1105 = vsub.s32 0, %v1104
      %v1106 = vrot.slane %v1078, %v1105
      %v1107 = vlaneseq
      %v1108 = vshrl.u32 %v1107, 7
      %v1109 = vsub.s32 0, %v1108
      %v1110 = vrot.slane %v1080, %v1109
      %v1111 = vlaneseq
      %v1112 = vshrl.u32 %v1111, 7
      %v1113 = vsub.s32 0, %v1112
      %v1114 = vrot.slane %v1082, %v1113
      %v1123 = vsub.f32 %v1086, %v886
      %v1124 = vsub.f32 %v1090, %v886
      %v1125 = vsub.f32 %v1094, %v886
      %v1126 = vsub.f32 %v1098, %v886
      %v1127 = vsub.f32 %v1102, %v886
      %v1128 = vsub.f32 %v1106, %v886
      %v1129 = vsub.f32 %v1110, %v886
      %v1130 = vsub.f32 %v1114, %v886
      %v1131 = vadd.f32 %v1123, 1e-08
      %v1132 = vadd.f32 %v1124, 1e-08
      %v1133 = vadd.f32 %v1125, 1e-08
      %v1134 = vadd.f32 %v1126, 1e-08
      %v1135 = vadd.f32 %v1127, 1e-08
      %v1136 = vadd.f32 %v1128, 1e-08
      %v1137 = vadd.f32 %v1129, 1e-08
      %v1138 = vadd.f32 %v1130, 1e-08
      %v1139 = vmul.f32 %v1131, %v1131
      %v1140 = vmul.f32 %v1132, %v1132
      %v1141 = vmul.f32 %v1133, %v1133
      %v1142 = vmul.f32 %v1134, %v1134
      %v1143 = vmul.f32 %v1135, %v1135
      %v1144 = vmul.f32 %v1136, %v1136
      %v1145 = vmul.f32 %v1137, %v1137
      %v1146 = vmul.f32 %v1138, %v1138
      %v1147 = vsel %vm182, %v1139, 0.0
      %1148 = vadd.xlane.f32.xlu0 %v1147
      %v1149 = vpop.xlane.xlu0 %1148
      %v1150 = vsel %vm182, %v1140, 0.0
      %1151 = vadd.xlane.f32.xlu0 %v1150
      %v1152 = vpop.xlane.xlu0 %1151
      %v1153 = vsel %vm182, %v1141, 0.0
      %1154 = vadd.xlane.f32.xlu0 %v1153
      %v1155 = vpop.xlane.xlu0 %1154
      %v1156 = vsel %vm182, %v1142, 0.0
      %1157 = vadd.xlane.f32.xlu0 %v1156
      %v1158 = vpop.xlane.xlu0 %1157
      %v1159 = vsel %vm182, %v1143, 0.0
      %1160 = vadd.xlane.f32.xlu0 %v1159
      %v1161 = vpop.xlane.xlu0 %1160
      %v1162 = vsel %vm182, %v1144, 0.0
      %1163 = vadd.xlane.f32.xlu0 %v1162
      %v1164 = vpop.xlane.xlu0 %1163
      %v1165 = vsel %vm182, %v1145, 0.0
      %1166 = vadd.xlane.f32.xlu0 %v1165
      %v1167 = vpop.xlane.xlu0 %1166
      %v1168 = vsel %vm182, %v1146, 0.0
      %1169 = vadd.xlane.f32.xlu0 %v1168
      %v1170 = vpop.xlane.xlu0 %1169
      %v1171 = vrsqrt.pop %v1149
      %v1172 = vmul.f32 %v1149, %v1171
      %vm1173 = vcmp.eq.f32.partialorder %v1149, inf
      %v1174 = vsel %vm1173, %v1149, %v1172
      %vm1175 = vcmp.eq.f32.partialorder %v1149, 0.0
      %v1176 = vand.u32 %v1149, 2147483648
      %v1177 = vsel %vm1175, %v1176, %v1174
      %v1178 = vrsqrt.pop %v1152
      %v1179 = vmul.f32 %v1152, %v1178
      %vm1180 = vcmp.eq.f32.partialorder %v1152, inf
      %v1181 = vsel %vm1180, %v1152, %v1179
      %vm1182 = vcmp.eq.f32.partialorder %v1152, 0.0
      %v1183 = vand.u32 %v1152, 2147483648
      %v1184 = vsel %vm1182, %v1183, %v1181
      %v1185 = vrsqrt.pop %v1155
      %v1186 = vmul.f32 %v1155, %v1185
      %vm1187 = vcmp.eq.f32.partialorder %v1155, inf
      %v1188 = vsel %vm1187, %v1155, %v1186
      %vm1189 = vcmp.eq.f32.partialorder %v1155, 0.0
      %v1190 = vand.u32 %v1155, 2147483648
      %v1191 = vsel %vm1189, %v1190, %v1188
      %v1192 = vrsqrt.pop %v1158
      %v1193 = vmul.f32 %v1158, %v1192
      %vm1194 = vcmp.eq.f32.partialorder %v1158, inf
      %v1195 = vsel %vm1194, %v1158, %v1193
      %vm1196 = vcmp.eq.f32.partialorder %v1158, 0.0
      %v1197 = vand.u32 %v1158, 2147483648
      %v1198 = vsel %vm1196, %v1197, %v1195
      %v1199 = vrsqrt.pop %v1161
      %v1200 = vmul.f32 %v1161, %v1199
      %vm1201 = vcmp.eq.f32.partialorder %v1161, inf
      %v1202 = vsel %vm1201, %v1161, %v1200
      %vm1203 = vcmp.eq.f32.partialorder %v1161, 0.0
      %v1204 = vand.u32 %v1161, 2147483648
      %v1205 = vsel %vm1203, %v1204, %v1202
      %v1206 = vrsqrt.pop %v1164
      %v1207 = vmul.f32 %v1164, %v1206
      %vm1208 = vcmp.eq.f32.partialorder %v1164, inf
      %v1209 = vsel %vm1208, %v1164, %v1207
      %vm1210 = vcmp.eq.f32.partialorder %v1164, 0.0
      %v1211 = vand.u32 %v1164, 2147483648
      %v1212 = vsel %vm1210, %v1211, %v1209
      %v1213 = vrsqrt.pop %v1167
      %v1214 = vmul.f32 %v1167, %v1213
      %vm1215 = vcmp.eq.f32.partialorder %v1167, inf
      %v1216 = vsel %vm1215, %v1167, %v1214
      %vm1217 = vcmp.eq.f32.partialorder %v1167, 0.0
      %v1218 = vand.u32 %v1167, 2147483648
      %v1219 = vsel %vm1217, %v1218, %v1216
      %v1220 = vrsqrt.pop %v1170
      %v1221 = vmul.f32 %v1170, %v1220
      %vm1222 = vcmp.eq.f32.partialorder %v1170, inf
      %v1223 = vsel %vm1222, %v1170, %v1221
      %vm1224 = vcmp.eq.f32.partialorder %v1170, 0.0
      %v1225 = vand.u32 %v1170, 2147483648
      %v1226 = vsel %vm1224, %v1225, %v1223
      %v1227 = vsub.f32 3.0, %v1177
      %v1228 = vsub.f32 3.0, %v1184
      %v1229 = vsub.f32 3.0, %v1191
      %v1230 = vsub.f32 3.0, %v1198
      %v1231 = vsub.f32 3.0, %v1205
      %v1232 = vsub.f32 3.0, %v1212
      %v1233 = vsub.f32 3.0, %v1219
      %v1234 = vsub.f32 3.0, %v1226
      %v1235 = vmax.f32 %v1227, 0.0
      %v1236 = vmax.f32 %v1228, 0.0
      %v1237 = vmax.f32 %v1229, 0.0
      %v1238 = vmax.f32 %v1230, 0.0
      %v1239 = vmax.f32 %v1231, 0.0
      %v1240 = vmax.f32 %v1232, 0.0
      %v1241 = vmax.f32 %v1233, 0.0
      %v1242 = vmax.f32 %v1234, 0.0
      %v1243 = vmul.f32 %v1235, %v1235
      %v1244 = vmul.f32 %v1236, %v1236
      %v1245 = vmul.f32 %v1237, %v1237
      %v1246 = vmul.f32 %v1238, %v1238
      %v1247 = vmul.f32 %v1239, %v1239
      %v1248 = vmul.f32 %v1240, %v1240
      %v1249 = vmul.f32 %v1241, %v1241
      %v1250 = vmul.f32 %v1242, %v1242
      %v1251 = vmul.f32 %v1243, %v522
      %v1252 = vmul.f32 %v1244, %v529
      %v1253 = vmul.f32 %v1245, %v536
      %v1254 = vmul.f32 %v1246, %v543
      %v1255 = vmul.f32 %v1247, %v550
      %v1256 = vmul.f32 %v1248, %v557
      %v1257 = vmul.f32 %v1249, %v564
      %v1258 = vmul.f32 %v1250, %v571
      %v1260 = vlaneseq
      %v1261 = vshrl.u32 %v1260, 7
      %v1262 = vsub.s32 0, %v1261
      %v1263 = vrot.slane %v1032, %v1262
      %1265 = vbcast.lane.b32.xlu0 %v1263, 256
      %v1266 = vpop.permute.xlu0 %1265
      %v1267 = vlaneseq
      %v1268 = vshrl.u32 %v1267, 7
      %v1269 = vsub.s32 1, %v1268
      %v1270 = vrot.slane %v1032, %v1269
      %1272 = vbcast.lane.b32.xlu0 %v1270, 256
      %v1273 = vpop.permute.xlu0 %1272
      %v1274 = vlaneseq
      %v1275 = vshrl.u32 %v1274, 7
      %v1276 = vsub.s32 2, %v1275
      %v1277 = vrot.slane %v1032, %v1276
      %1279 = vbcast.lane.b32.xlu0 %v1277, 256
      %v1280 = vpop.permute.xlu0 %1279
      %v1281 = vlaneseq
      %v1282 = vshrl.u32 %v1281, 7
      %v1283 = vsub.s32 3, %v1282
      %v1284 = vrot.slane %v1032, %v1283
      %1286 = vbcast.lane.b32.xlu0 %v1284, 256
      %v1287 = vpop.permute.xlu0 %1286
      %v1288 = vlaneseq
      %v1289 = vshrl.u32 %v1288, 7
      %v1290 = vsub.s32 4, %v1289
      %v1291 = vrot.slane %v1032, %v1290
      %1293 = vbcast.lane.b32.xlu0 %v1291, 256
      %v1294 = vpop.permute.xlu0 %1293
      %v1295 = vlaneseq
      %v1296 = vshrl.u32 %v1295, 7
      %v1297 = vsub.s32 5, %v1296
      %v1298 = vrot.slane %v1032, %v1297
      %1300 = vbcast.lane.b32.xlu0 %v1298, 256
      %v1301 = vpop.permute.xlu0 %1300
      %v1302 = vlaneseq
      %v1303 = vshrl.u32 %v1302, 7
      %v1304 = vsub.s32 6, %v1303
      %v1305 = vrot.slane %v1032, %v1304
      %1307 = vbcast.lane.b32.xlu0 %v1305, 256
      %v1308 = vpop.permute.xlu0 %1307
      %v1309 = vlaneseq
      %v1310 = vshrl.u32 %v1309, 7
      %v1311 = vsub.s32 7, %v1310
      %v1312 = vrot.slane %v1032, %v1311
      %1314 = vbcast.lane.b32.xlu0 %v1312, 256
      %v1315 = vpop.permute.xlu0 %1314
      %v1324 = vmul.f32 %v1251, %v1266
      %v1325 = vmul.f32 %v1252, %v1273
      %v1326 = vmul.f32 %v1253, %v1280
      %v1327 = vmul.f32 %v1254, %v1287
      %v1328 = vmul.f32 %v1255, %v1294
      %v1329 = vmul.f32 %v1256, %v1301
      %v1330 = vmul.f32 %v1257, %v1308
      %v1331 = vmul.f32 %v1258, %v1315
      %1340 = vset.pattern.permute.xlu0 0
      %1341 = vperm.xlu0 %1340, %v1324
      %v1342 = vpop.permute.xlu0 %1341
      %1343 = vset.pattern.permute.xlu0 0
      %1344 = vperm.xlu0 %1343, %v1325
      %v1345 = vpop.permute.xlu0 %1344
      %1346 = vset.pattern.permute.xlu0 0
      %1347 = vperm.xlu0 %1346, %v1326
      %v1348 = vpop.permute.xlu0 %1347
      %1349 = vset.pattern.permute.xlu0 0
      %1350 = vperm.xlu0 %1349, %v1327
      %v1351 = vpop.permute.xlu0 %1350
      %1352 = vset.pattern.permute.xlu0 0
      %1353 = vperm.xlu0 %1352, %v1328
      %v1354 = vpop.permute.xlu0 %1353
      %1355 = vset.pattern.permute.xlu0 0
      %1356 = vperm.xlu0 %1355, %v1329
      %v1357 = vpop.permute.xlu0 %1356
      %1358 = vset.pattern.permute.xlu0 0
      %1359 = vperm.xlu0 %1358, %v1330
      %v1360 = vpop.permute.xlu0 %1359
      %1361 = vset.pattern.permute.xlu0 0
      %1362 = vperm.xlu0 %1361, %v1331
      %v1363 = vpop.permute.xlu0 %1362
      %v1364 = vlaneseq
      %v1365 = vshrl.u32 %v1364, 7
      %v1366 = vsub.s32 %v49, %v1365
      %v1367 = vrot.slane %v1342, %v1366
      %v1368 = vlaneseq
      %v1369 = vshrl.u32 %v1368, 7
      %v1370 = vsub.s32 %v49, %v1369
      %v1371 = vrot.slane %v1345, %v1370
      %v1372 = vlaneseq
      %v1373 = vshrl.u32 %v1372, 7
      %v1374 = vsub.s32 %v49, %v1373
      %v1375 = vrot.slane %v1348, %v1374
      %v1376 = vlaneseq
      %v1377 = vshrl.u32 %v1376, 7
      %v1378 = vsub.s32 %v49, %v1377
      %v1379 = vrot.slane %v1351, %v1378
      %v1380 = vlaneseq
      %v1381 = vshrl.u32 %v1380, 7
      %v1382 = vsub.s32 %v49, %v1381
      %v1383 = vrot.slane %v1354, %v1382
      %v1384 = vlaneseq
      %v1385 = vshrl.u32 %v1384, 7
      %v1386 = vsub.s32 %v49, %v1385
      %v1387 = vrot.slane %v1357, %v1386
      %v1388 = vlaneseq
      %v1389 = vshrl.u32 %v1388, 7
      %v1390 = vsub.s32 %v49, %v1389
      %v1391 = vrot.slane %v1360, %v1390
      %v1392 = vlaneseq
      %v1393 = vshrl.u32 %v1392, 7
      %v1394 = vsub.s32 %v49, %v1393
      %v1395 = vrot.slane %v1363, %v1394
      %v1396 = vsel %vm725, %v1371, %v1367
      %v1397 = vsel %vm727, %v1375, %v1396
      %v1398 = vsel %vm729, %v1379, %v1397
      %v1399 = vsel %vm731, %v1383, %v1398
      %v1400 = vsel %vm733, %v1387, %v1399
      %v1401 = vsel %vm735, %v1391, %v1400
      %v1402 = vsel %vm737, %v1395, %v1401
      %v1404 = vsel %vm182, %v1402, 0.0
      %1405 = vadd.xlane.f32.xlu0 %v1404
      %v1406 = vpop.xlane.xlu0 %1405
      %v1407 = vrot.slane %v1406, 4
      %v1408 = vadd.f32 %v1406, %v1407
      %v1409 = vrot.slane %v1408, 2
      %v1410 = vadd.f32 %v1408, %v1409
      %v1411 = vrot.slane %v1410, 1
      %v1412 = vadd.f32 %v1410, %v1411
      %v1413 = vsub.f32 %v812, 1.0
      %v1414 = vmul.f32 %v1413, %v812
      %v1415 = vmax.f32 %v1414, 1.0
      %vm1416 = vcmp.ge.f32.partialorder %v812, 2.0
      %v1417 = vrcp.pop %v1415
      %v1418 = vmul.f32 %v1412, %v1417
      %v1419 = vsel %vm1416, %v1418, 0.0
      %v1420 = vadd.f32 %v886, 1e-08
      %v1421 = vmul.f32 %v1420, %v1420
      %v1422 = vsel %vm182, %v1421, 0.0
      %1423 = vadd.xlane.f32.xlu0 %v1422
      %v1424 = vpop.xlane.xlu0 %1423
      %v1425 = vrsqrt.pop %v1424
      %v1426 = vmul.f32 %v1424, %v1425
      %vm1427 = vcmp.eq.f32.partialorder %v1424, inf
      %v1428 = vsel %vm1427, %v1424, %v1426
      %vm1429 = vcmp.eq.f32.partialorder %v1424, 0.0
      %v1430 = vand.u32 %v1424, 2147483648
      %v1431 = vsel %vm1429, %v1430, %v1428
      %v1432 = vmul.f32 %v1431, %v806
      %v1433 = vrot.slane %v1432, 4
      %v1434 = vadd.f32 %v1432, %v1433
      %v1435 = vrot.slane %v1434, 2
      %v1436 = vadd.f32 %v1434, %v1435
      %v1437 = vrot.slane %v1436, 1
      %v1438 = vadd.f32 %v1436, %v1437
      %v1439 = vmul.f32 %v1438, %v1022
      %v1440 = vmul.f32 %v1439, 0.001
      %v1441 = vadd.f32 %v1023, %v1419
      %v1442 = vadd.f32 %v1441, %v1440
      %v1443 = vsel %vm779, %v1442, 0.0
      %v1444 = vsel %vm781, %v1023, 0.0
      %v1445 = vadd.f32 %v1443, %v1444
      %v1446 = vsel %vm784, %v1419, 0.0
      %v1447 = vadd.f32 %v1445, %v1446
      %v1448 = vsel %vm787, %v1440, 0.0
      %v1449 = vadd.f32 %v1447, %v1448
      %s1450 = scalar_lea.vmem [#allocation9], 1
      %1451 = vst [vmem:[%s1450] sm:$0x1] %v1449
      %s1452 = scalar_lea.vmem [#allocation4], 16
      %v1453 = vld [vmem:[%s1452] sm:$0xff]
      %s1454 = scalar_lea.vmem [#allocation7], 2
      %v1455 = vld [vmem:[%s1454] sm:$0x1]
      %v1456 = vlaneseq
      %v1457 = vshrl.u32 %v1456, 7
      %v1458 = vsub.s32 0, %v1457
      %v1459 = vrot.slane %v1455, %v1458
      %vm1460 = vcmp.eq.s32.totalorder %v1459, %v51
      %v1461 = vsel %vm1460, 1, 0
      %v1462 = vcvt.s32.f32 %v1461
      %1463 = vadd.xlane.f32.xlu0 %v1462
      %v1464 = vpop.xlane.xlu0 %1463
      %vm1465 = vcmp.gt.f32.partialorder %v1464, 0.5
      %v1466 = vsel %vm1465, 1, 0
      %v1467 = vcvt.s32.f32 %v1466
      %v1468 = vrot.slane %v1467, 4
      %v1469 = vadd.f32 %v1467, %v1468
      %v1470 = vrot.slane %v1469, 2
      %v1471 = vadd.f32 %v1469, %v1470
      %v1472 = vrot.slane %v1471, 1
      %v1473 = vadd.f32 %v1471, %v1472
      %v1474 = vmax.f32 %v1473, 1.0
      %1475 = vmatprep.subr.mxu0 0.0
      %1476 = vmatpush1.xpose.msra.mxu0 %v1453
      %1477 = vmatprep.subr.mxu0 0.0
      %1478 = vmatpush1.xpose.msra.mxu0 0.0
      %1479 = vmatprep.subr.mxu0 0.0
      %1480 = vmatpush1.xpose.msra.mxu0 0.0
      %1481 = vmatprep.subr.mxu0 0.0
      %1482 = vmatpush1.xpose.msra.mxu0 0.0
      %1483 = vmatprep.subr.mxu0 0.0
      %1484 = vmatpush1.xpose.msra.mxu0 0.0
      %1485 = vmatprep.subr.mxu0 0.0
      %1486 = vmatpush1.xpose.msra.mxu0 0.0
      %1487 = vmatprep.subr.mxu0 0.0
      %1488 = vmatpush1.xpose.msra.mxu0 0.0
      %1489 = vmatprep.subr.mxu0 0.0
      %1490 = vmatpush1.xpose.msra.mxu0 0.0
      %1491 = vmatprep.subr.mxu0 0.0
      %1492 = vmatpush1.xpose.msra.mxu0 0.0
      %1493 = vmatprep.subr.mxu0 0.0
      %1494 = vmatpush1.xpose.msra.mxu0 0.0
      %1495 = vmatprep.subr.mxu0 0.0
      %1496 = vmatpush1.xpose.msra.mxu0 0.0
      %1497 = vmatprep.subr.mxu0 0.0
      %1498 = vmatpush1.xpose.msra.mxu0 0.0
      %1499 = vmatprep.subr.mxu0 0.0
      %1500 = vmatpush1.xpose.msra.mxu0 0.0
      %1501 = vmatprep.subr.mxu0 0.0
      %1502 = vmatpush1.xpose.msra.mxu0 0.0
      %1503 = vmatprep.subr.mxu0 0.0
      %1504 = vmatpush1.xpose.msra.mxu0 0.0
      %1505 = vmatprep.subr.mxu0 0.0
      %1506 = vmatpush1.xpose.msra.mxu0 0.0
      %1507 = vmatprep.subr.mxu0 0.0
      %1508 = vmatpush1.xpose.msra.mxu0 0.0
      %1509 = vmatprep.subr.mxu0 0.0
      %1510 = vmatpush1.xpose.msra.mxu0 0.0
      %1511 = vmatprep.subr.mxu0 0.0
      %1512 = vmatpush1.xpose.msra.mxu0 0.0
      %1513 = vmatprep.subr.mxu0 0.0
      %1514 = vmatpush1.xpose.msra.mxu0 0.0
      %1515 = vmatprep.subr.mxu0 0.0
      %1516 = vmatpush1.xpose.msra.mxu0 0.0
      %1517 = vmatprep.subr.mxu0 0.0
      %1518 = vmatpush1.xpose.msra.mxu0 0.0
      %1519 = vmatprep.subr.mxu0 0.0
      %1520 = vmatpush1.xpose.msra.mxu0 0.0
      %1521 = vmatprep.subr.mxu0 0.0
      %1522 = vmatpush1.xpose.msra.mxu0 0.0
      %1523 = vmatprep.subr.mxu0 0.0
      %1524 = vmatpush1.xpose.msra.mxu0 0.0
      %1525 = vmatprep.subr.mxu0 0.0
      %1526 = vmatpush1.xpose.msra.mxu0 0.0
      %1527 = vmatprep.subr.mxu0 0.0
      %1528 = vmatpush1.xpose.msra.mxu0 0.0
      %1529 = vmatprep.subr.mxu0 0.0
      %1530 = vmatpush1.xpose.msra.mxu0 0.0
      %1531 = vmatprep.subr.mxu0 0.0
      %1532 = vmatpush1.xpose.msra.mxu0 0.0
      %1533 = vmatprep.subr.mxu0 0.0
      %1534 = vmatpush1.xpose.msra.mxu0 0.0
      %1535 = vmatprep.subr.mxu0 0.0
      %1536 = vmatpush1.xpose.msra.mxu0 0.0
      %1537 = vmatprep.subr.mxu0 0.0
      %1538 = vmatpush1.xpose.msra.mxu0 0.0
      %1539 = vmatprep.mubr.f32.mxu0 0.0
      %1540 = vmatmul.mubr.f32.gmra.mrb[0].mxu0 %v1462
      %v1541 = vpop.f32.mrb[0].mxu0
      %v1542 = vadd.f32 0.0, %v1541
      %v1543 = vpop.f32.mrb[0].mxu0
      %1544 = vdwg.mxu0
      %v1545 = vmax.f32 %v1464, 1.0
      %v1546 = vrcp.pop %v1545
      %v1547 = vmul.f32 %v1542, %v1546
      %1548 = vxpose.xlu0.b32.start [1/16] %v1547, 128
      %1549 = vxpose.xlu0.b32.cont [2/16] 0.0, 128
      %1550 = vxpose.xlu0.b32.cont [3/16] 0.0, 128
      %1551 = vxpose.xlu0.b32.cont [4/16] 0.0, 128
      %1552 = vxpose.xlu0.b32.cont [5/16] 0.0, 128
      %1553 = vxpose.xlu0.b32.cont [6/16] 0.0, 128
      %1554 = vxpose.xlu0.b32.cont [7/16] 0.0, 128
      %1555 = vxpose.xlu0.b32.cont [8/16] 0.0, 128
      %1556 = vxpose.xlu0.b32.cont [9/16] 0.0, 128
      %1557 = vxpose.xlu0.b32.cont [10/16] 0.0, 128
      %1558 = vxpose.xlu0.b32.cont [11/16] 0.0, 128
      %1559 = vxpose.xlu0.b32.cont [12/16] 0.0, 128
      %1560 = vxpose.xlu0.b32.cont [13/16] 0.0, 128
      %1561 = vxpose.xlu0.b32.cont [14/16] 0.0, 128
      %1562 = vxpose.xlu0.b32.cont [15/16] 0.0, 128
      %1563 = vxpose.xlu0.b32.end [16/16] 0.0, 128
      %v1564 = vpop.trf.xlu0
      %v1565 = vpop.trf.xlu0
      %v1566 = vpop.trf.xlu0
      %v1567 = vpop.trf.xlu0
      %v1568 = vpop.trf.xlu0
      %v1569 = vpop.trf.xlu0
      %v1570 = vpop.trf.xlu0
      %v1571 = vpop.trf.xlu0
      %v1572 = vpop.trf.xlu0
      %v1573 = vpop.trf.xlu0
      %v1574 = vpop.trf.xlu0
      %v1575 = vpop.trf.xlu0
      %v1576 = vpop.trf.xlu0
      %v1577 = vpop.trf.xlu0
      %v1578 = vpop.trf.xlu0
      %v1579 = vpop.trf.xlu0
      %v1581 = vsel %vm182, %v1564, 0
      %1583 = vmatprep.subr.mxu0 0.0
      %1584 = vmatpush1.msra.mxu0 %v1462
      %1585 = vmatprep.subr.mxu0 0.0
      %1586 = vmatpush1.msra.mxu0 0.0
      %1587 = vmatprep.subr.mxu0 0.0
      %1588 = vmatpush1.msra.mxu0 0.0
      %1589 = vmatprep.subr.mxu0 0.0
      %1590 = vmatpush1.msra.mxu0 0.0
      %1591 = vmatprep.subr.mxu0 0.0
      %1592 = vmatpush1.msra.mxu0 0.0
      %1593 = vmatprep.subr.mxu0 0.0
      %1594 = vmatpush1.msra.mxu0 0.0
      %1595 = vmatprep.subr.mxu0 0.0
      %1596 = vmatpush1.msra.mxu0 0.0
      %1597 = vmatprep.subr.mxu0 0.0
      %1598 = vmatpush1.msra.mxu0 0.0
      %1599 = vmatprep.subr.mxu0 0.0
      %1600 = vmatpush1.msra.mxu0 0.0
      %1601 = vmatprep.subr.mxu0 0.0
      %1602 = vmatpush1.msra.mxu0 0.0
      %1603 = vmatprep.subr.mxu0 0.0
      %1604 = vmatpush1.msra.mxu0 0.0
      %1605 = vmatprep.subr.mxu0 0.0
      %1606 = vmatpush1.msra.mxu0 0.0
      %1607 = vmatprep.subr.mxu0 0.0
      %1608 = vmatpush1.msra.mxu0 0.0
      %1609 = vmatprep.subr.mxu0 0.0
      %1610 = vmatpush1.msra.mxu0 0.0
      %1611 = vmatprep.subr.mxu0 0.0
      %1612 = vmatpush1.msra.mxu0 0.0
      %1613 = vmatprep.subr.mxu0 0.0
      %1614 = vmatpush1.msra.mxu0 0.0
      %1615 = vmatprep.subr.mxu0 0.0
      %1616 = vmatpush1.msra.mxu0 0.0
      %1617 = vmatprep.subr.mxu0 0.0
      %1618 = vmatpush1.msra.mxu0 0.0
      %1619 = vmatprep.subr.mxu0 0.0
      %1620 = vmatpush1.msra.mxu0 0.0
      %1621 = vmatprep.subr.mxu0 0.0
      %1622 = vmatpush1.msra.mxu0 0.0
      %1623 = vmatprep.subr.mxu0 0.0
      %1624 = vmatpush1.msra.mxu0 0.0
      %1625 = vmatprep.subr.mxu0 0.0
      %1626 = vmatpush1.msra.mxu0 0.0
      %1627 = vmatprep.subr.mxu0 0.0
      %1628 = vmatpush1.msra.mxu0 0.0
      %1629 = vmatprep.subr.mxu0 0.0
      %1630 = vmatpush1.msra.mxu0 0.0
      %1631 = vmatprep.subr.mxu0 0.0
      %1632 = vmatpush1.msra.mxu0 0.0
      %1633 = vmatprep.subr.mxu0 0.0
      %1634 = vmatpush1.msra.mxu0 0.0
      %1635 = vmatprep.subr.mxu0 0.0
      %1636 = vmatpush1.msra.mxu0 0.0
      %1637 = vmatprep.subr.mxu0 0.0
      %1638 = vmatpush1.msra.mxu0 0.0
      %1639 = vmatprep.subr.mxu0 0.0
      %1640 = vmatpush1.msra.mxu0 0.0
      %1641 = vmatprep.subr.mxu0 0.0
      %1642 = vmatpush1.msra.mxu0 0.0
      %1643 = vmatprep.subr.mxu0 0.0
      %1644 = vmatpush1.msra.mxu0 0.0
      %1645 = vmatprep.subr.mxu0 0.0
      %1646 = vmatpush1.msra.mxu0 0.0
      %1647 = vmatprep.mubr.f32.mxu0 0.0
      %1648 = vmatmul.mubr.f32.gmra.mrb[0].mxu0 %v1581
      %v1649 = vpop.f32.mrb[0].mxu0
      %v1650 = vadd.f32 0.0, %v1649
      %v1651 = vpop.f32.mrb[0].mxu0
      %1652 = vdwg.mxu0
      %v1653 = vsub.f32 %v1453, %v1650
      %v1654 = vadd.f32 %v1653, 1e-08
      %v1655 = vmul.f32 %v1654, %v1654
      %v1656 = vrot.slane %v1655, 4
      %v1657 = vadd.f32 %v1655, %v1656
      %v1658 = vrot.slane %v1657, 2
      %v1659 = vadd.f32 %v1657, %v1658
      %v1660 = vrot.slane %v1659, 1
      %v1661 = vadd.f32 %v1659, %v1660
      %v1662 = vrsqrt.pop %v1661
      %v1663 = vmul.f32 %v1661, %v1662
      %vm1664 = vcmp.eq.f32.partialorder %v1661, inf
      %v1665 = vsel %vm1664, %v1661, %v1663
      %vm1666 = vcmp.eq.f32.partialorder %v1661, 0.0
      %v1667 = vand.u32 %v1661, 2147483648
      %v1668 = vsel %vm1666, %v1667, %v1665
      %v1669 = vsub.f32 %v1668, 0.5
      %v1670 = vmax.f32 %v1669, 0.0
      %v1671 = vmul.f32 %v1670, %v1670
      %v1672 = vmul.f32 %v1462, %v1671
      %1673 = vadd.xlane.f32.xlu0 %v1672
      %v1674 = vpop.xlane.xlu0 %1673
      %v1675 = vmul.f32 %v1674, %v1546
      %v1676 = vmul.f32 %v1675, %v1467
      %v1677 = vrot.slane %v1676, 4
      %v1678 = vadd.f32 %v1676, %v1677
      %v1679 = vrot.slane %v1678, 2
      %v1680 = vadd.f32 %v1678, %v1679
      %v1681 = vrot.slane %v1680, 1
      %v1682 = vadd.f32 %v1680, %v1681
      %v1683 = vrcp.pop %v1474
      %v1684 = vmul.f32 %v1682, %v1683
      %v1685 = vmul.f32 %v54, %v1467
      %v1686 = vsel %vm182, %v1685, 0.0
      %v1687 = vrot.slane %v1686, 4
      %v1688 = vadd.f32 %v1686, %v1687
      %v1689 = vrot.slane %v1688, 2
      %v1690 = vadd.f32 %v1688, %v1689
      %v1691 = vrot.slane %v1690, 1
      %v1692 = vadd.f32 %v1690, %v1691
      %v1693 = vmul.f32 %v1467, %v1692
      %v1695 = vcombine.high %v1547, %v1547
      %v1697 = vunpack.c.l.s4 1966171168
      %v1698 = vunpack.c.0.s8 %v1697
      %v1699 = vlaneseq
      %v1700 = vshrl.u32 %v1699, 7
      %v1701 = vsub.s32 %v1698, %v1700
      %v1702 = vrot.slane %v1547, %v1701
      %v1704 = vunpack.c.l.s4 1966171168
      %v1705 = vunpack.c.0.s8 %v1704
      %v1706 = vlaneseq
      %v1707 = vshrl.u32 %v1706, 7
      %v1708 = vsub.s32 %v1705, %v1707
      %v1709 = vrot.slane %v1695, %v1708
      %v1710 = vcombine.high %v1702, %v1702
      %v1711 = vcombine.high %v1709, %v1709
      %v1713 = vunpack.c.l.s4 1966171168
      %v1714 = vunpack.c.0.s8 %v1713
      %v1715 = vlaneseq
      %v1716 = vshrl.u32 %v1715, 7
      %v1717 = vsub.s32 %v1714, %v1716
      %v1718 = vrot.slane %v1702, %v1717
      %v1720 = vunpack.c.l.s4 1966171168
      %v1721 = vunpack.c.0.s8 %v1720
      %v1722 = vlaneseq
      %v1723 = vshrl.u32 %v1722, 7
      %v1724 = vsub.s32 %v1721, %v1723
      %v1725 = vrot.slane %v1709, %v1724
      %v1727 = vunpack.c.l.s4 1966171168
      %v1728 = vunpack.c.0.s8 %v1727
      %v1729 = vlaneseq
      %v1730 = vshrl.u32 %v1729, 7
      %v1731 = vsub.s32 %v1728, %v1730
      %v1732 = vrot.slane %v1710, %v1731
      %v1734 = vunpack.c.l.s4 1966171168
      %v1735 = vunpack.c.0.s8 %v1734
      %v1736 = vlaneseq
      %v1737 = vshrl.u32 %v1736, 7
      %v1738 = vsub.s32 %v1735, %v1737
      %v1739 = vrot.slane %v1711, %v1738
      %v1740 = vcombine.high %v1718, %v1718
      %v1741 = vcombine.high %v1725, %v1725
      %v1742 = vcombine.high %v1732, %v1732
      %v1743 = vcombine.high %v1739, %v1739
      %v1744 = vlaneseq
      %v1745 = vshrl.u32 %v1744, 7
      %v1746 = vsub.s32 0, %v1745
      %v1747 = vrot.slane %v1718, %v1746
      %v1748 = vlaneseq
      %v1749 = vshrl.u32 %v1748, 7
      %v1750 = vsub.s32 0, %v1749
      %v1751 = vrot.slane %v1732, %v1750
      %v1752 = vlaneseq
      %v1753 = vshrl.u32 %v1752, 7
      %v1754 = vsub.s32 0, %v1753
      %v1755 = vrot.slane %v1740, %v1754
      %v1756 = vlaneseq
      %v1757 = vshrl.u32 %v1756, 7
      %v1758 = vsub.s32 0, %v1757
      %v1759 = vrot.slane %v1742, %v1758
      %v1760 = vlaneseq
      %v1761 = vshrl.u32 %v1760, 7
      %v1762 = vsub.s32 0, %v1761
      %v1763 = vrot.slane %v1725, %v1762
      %v1764 = vlaneseq
      %v1765 = vshrl.u32 %v1764, 7
      %v1766 = vsub.s32 0, %v1765
      %v1767 = vrot.slane %v1739, %v1766
      %v1768 = vlaneseq
      %v1769 = vshrl.u32 %v1768, 7
      %v1770 = vsub.s32 0, %v1769
      %v1771 = vrot.slane %v1741, %v1770
      %v1772 = vlaneseq
      %v1773 = vshrl.u32 %v1772, 7
      %v1774 = vsub.s32 0, %v1773
      %v1775 = vrot.slane %v1743, %v1774
      %v1784 = vsub.f32 %v1747, %v1547
      %v1785 = vsub.f32 %v1751, %v1547
      %v1786 = vsub.f32 %v1755, %v1547
      %v1787 = vsub.f32 %v1759, %v1547
      %v1788 = vsub.f32 %v1763, %v1547
      %v1789 = vsub.f32 %v1767, %v1547
      %v1790 = vsub.f32 %v1771, %v1547
      %v1791 = vsub.f32 %v1775, %v1547
      %v1792 = vadd.f32 %v1784, 1e-08
      %v1793 = vadd.f32 %v1785, 1e-08
      %v1794 = vadd.f32 %v1786, 1e-08
      %v1795 = vadd.f32 %v1787, 1e-08
      %v1796 = vadd.f32 %v1788, 1e-08
      %v1797 = vadd.f32 %v1789, 1e-08
      %v1798 = vadd.f32 %v1790, 1e-08
      %v1799 = vadd.f32 %v1791, 1e-08
      %v1800 = vmul.f32 %v1792, %v1792
      %v1801 = vmul.f32 %v1793, %v1793
      %v1802 = vmul.f32 %v1794, %v1794
      %v1803 = vmul.f32 %v1795, %v1795
      %v1804 = vmul.f32 %v1796, %v1796
      %v1805 = vmul.f32 %v1797, %v1797
      %v1806 = vmul.f32 %v1798, %v1798
      %v1807 = vmul.f32 %v1799, %v1799
      %v1808 = vsel %vm182, %v1800, 0.0
      %1809 = vadd.xlane.f32.xlu0 %v1808
      %v1810 = vpop.xlane.xlu0 %1809
      %v1811 = vsel %vm182, %v1801, 0.0
      %1812 = vadd.xlane.f32.xlu0 %v1811
      %v1813 = vpop.xlane.xlu0 %1812
      %v1814 = vsel %vm182, %v1802, 0.0
      %1815 = vadd.xlane.f32.xlu0 %v1814
      %v1816 = vpop.xlane.xlu0 %1815
      %v1817 = vsel %vm182, %v1803, 0.0
      %1818 = vadd.xlane.f32.xlu0 %v1817
      %v1819 = vpop.xlane.xlu0 %1818
      %v1820 = vsel %vm182, %v1804, 0.0
      %1821 = vadd.xlane.f32.xlu0 %v1820
      %v1822 = vpop.xlane.xlu0 %1821
      %v1823 = vsel %vm182, %v1805, 0.0
      %1824 = vadd.xlane.f32.xlu0 %v1823
      %v1825 = vpop.xlane.xlu0 %1824
      %v1826 = vsel %vm182, %v1806, 0.0
      %1827 = vadd.xlane.f32.xlu0 %v1826
      %v1828 = vpop.xlane.xlu0 %1827
      %v1829 = vsel %vm182, %v1807, 0.0
      %1830 = vadd.xlane.f32.xlu0 %v1829
      %v1831 = vpop.xlane.xlu0 %1830
      %v1832 = vrsqrt.pop %v1810
      %v1833 = vmul.f32 %v1810, %v1832
      %vm1834 = vcmp.eq.f32.partialorder %v1810, inf
      %v1835 = vsel %vm1834, %v1810, %v1833
      %vm1836 = vcmp.eq.f32.partialorder %v1810, 0.0
      %v1837 = vand.u32 %v1810, 2147483648
      %v1838 = vsel %vm1836, %v1837, %v1835
      %v1839 = vrsqrt.pop %v1813
      %v1840 = vmul.f32 %v1813, %v1839
      %vm1841 = vcmp.eq.f32.partialorder %v1813, inf
      %v1842 = vsel %vm1841, %v1813, %v1840
      %vm1843 = vcmp.eq.f32.partialorder %v1813, 0.0
      %v1844 = vand.u32 %v1813, 2147483648
      %v1845 = vsel %vm1843, %v1844, %v1842
      %v1846 = vrsqrt.pop %v1816
      %v1847 = vmul.f32 %v1816, %v1846
      %vm1848 = vcmp.eq.f32.partialorder %v1816, inf
      %v1849 = vsel %vm1848, %v1816, %v1847
      %vm1850 = vcmp.eq.f32.partialorder %v1816, 0.0
      %v1851 = vand.u32 %v1816, 2147483648
      %v1852 = vsel %vm1850, %v1851, %v1849
      %v1853 = vrsqrt.pop %v1819
      %v1854 = vmul.f32 %v1819, %v1853
      %vm1855 = vcmp.eq.f32.partialorder %v1819, inf
      %v1856 = vsel %vm1855, %v1819, %v1854
      %vm1857 = vcmp.eq.f32.partialorder %v1819, 0.0
      %v1858 = vand.u32 %v1819, 2147483648
      %v1859 = vsel %vm1857, %v1858, %v1856
      %v1860 = vrsqrt.pop %v1822
      %v1861 = vmul.f32 %v1822, %v1860
      %vm1862 = vcmp.eq.f32.partialorder %v1822, inf
      %v1863 = vsel %vm1862, %v1822, %v1861
      %vm1864 = vcmp.eq.f32.partialorder %v1822, 0.0
      %v1865 = vand.u32 %v1822, 2147483648
      %v1866 = vsel %vm1864, %v1865, %v1863
      %v1867 = vrsqrt.pop %v1825
      %v1868 = vmul.f32 %v1825, %v1867
      %vm1869 = vcmp.eq.f32.partialorder %v1825, inf
      %v1870 = vsel %vm1869, %v1825, %v1868
      %vm1871 = vcmp.eq.f32.partialorder %v1825, 0.0
      %v1872 = vand.u32 %v1825, 2147483648
      %v1873 = vsel %vm1871, %v1872, %v1870
      %v1874 = vrsqrt.pop %v1828
      %v1875 = vmul.f32 %v1828, %v1874
      %vm1876 = vcmp.eq.f32.partialorder %v1828, inf
      %v1877 = vsel %vm1876, %v1828, %v1875
      %vm1878 = vcmp.eq.f32.partialorder %v1828, 0.0
      %v1879 = vand.u32 %v1828, 2147483648
      %v1880 = vsel %vm1878, %v1879, %v1877
      %v1881 = vrsqrt.pop %v1831
      %v1882 = vmul.f32 %v1831, %v1881
      %vm1883 = vcmp.eq.f32.partialorder %v1831, inf
      %v1884 = vsel %vm1883, %v1831, %v1882
      %vm1885 = vcmp.eq.f32.partialorder %v1831, 0.0
      %v1886 = vand.u32 %v1831, 2147483648
      %v1887 = vsel %vm1885, %v1886, %v1884
      %v1888 = vsub.f32 3.0, %v1838
      %v1889 = vsub.f32 3.0, %v1845
      %v1890 = vsub.f32 3.0, %v1852
      %v1891 = vsub.f32 3.0, %v1859
      %v1892 = vsub.f32 3.0, %v1866
      %v1893 = vsub.f32 3.0, %v1873
      %v1894 = vsub.f32 3.0, %v1880
      %v1895 = vsub.f32 3.0, %v1887
      %v1896 = vmax.f32 %v1888, 0.0
      %v1897 = vmax.f32 %v1889, 0.0
      %v1898 = vmax.f32 %v1890, 0.0
      %v1899 = vmax.f32 %v1891, 0.0
      %v1900 = vmax.f32 %v1892, 0.0
      %v1901 = vmax.f32 %v1893, 0.0
      %v1902 = vmax.f32 %v1894, 0.0
      %v1903 = vmax.f32 %v1895, 0.0
      %v1904 = vmul.f32 %v1896, %v1896
      %v1905 = vmul.f32 %v1897, %v1897
      %v1906 = vmul.f32 %v1898, %v1898
      %v1907 = vmul.f32 %v1899, %v1899
      %v1908 = vmul.f32 %v1900, %v1900
      %v1909 = vmul.f32 %v1901, %v1901
      %v1910 = vmul.f32 %v1902, %v1902
      %v1911 = vmul.f32 %v1903, %v1903
      %v1912 = vmul.f32 %v1904, %v522
      %v1913 = vmul.f32 %v1905, %v529
      %v1914 = vmul.f32 %v1906, %v536
      %v1915 = vmul.f32 %v1907, %v543
      %v1916 = vmul.f32 %v1908, %v550
      %v1917 = vmul.f32 %v1909, %v557
      %v1918 = vmul.f32 %v1910, %v564
      %v1919 = vmul.f32 %v1911, %v571
      %v1921 = vlaneseq
      %v1922 = vshrl.u32 %v1921, 7
      %v1923 = vsub.s32 0, %v1922
      %v1924 = vrot.slane %v1693, %v1923
      %1926 = vbcast.lane.b32.xlu0 %v1924, 256
      %v1927 = vpop.permute.xlu0 %1926
      %v1928 = vlaneseq
      %v1929 = vshrl.u32 %v1928, 7
      %v1930 = vsub.s32 1, %v1929
      %v1931 = vrot.slane %v1693, %v1930
      %1933 = vbcast.lane.b32.xlu0 %v1931, 256
      %v1934 = vpop.permute.xlu0 %1933
      %v1935 = vlaneseq
      %v1936 = vshrl.u32 %v1935, 7
      %v1937 = vsub.s32 2, %v1936
      %v1938 = vrot.slane %v1693, %v1937
      %1940 = vbcast.lane.b32.xlu0 %v1938, 256
      %v1941 = vpop.permute.xlu0 %1940
      %v1942 = vlaneseq
      %v1943 = vshrl.u32 %v1942, 7
      %v1944 = vsub.s32 3, %v1943
      %v1945 = vrot.slane %v1693, %v1944
      %1947 = vbcast.lane.b32.xlu0 %v1945, 256
      %v1948 = vpop.permute.xlu0 %1947
      %v1949 = vlaneseq
      %v1950 = vshrl.u32 %v1949, 7
      %v1951 = vsub.s32 4, %v1950
      %v1952 = vrot.slane %v1693, %v1951
      %1954 = vbcast.lane.b32.xlu0 %v1952, 256
      %v1955 = vpop.permute.xlu0 %1954
      %v1956 = vlaneseq
      %v1957 = vshrl.u32 %v1956, 7
      %v1958 = vsub.s32 5, %v1957
      %v1959 = vrot.slane %v1693, %v1958
      %1961 = vbcast.lane.b32.xlu0 %v1959, 256
      %v1962 = vpop.permute.xlu0 %1961
      %v1963 = vlaneseq
      %v1964 = vshrl.u32 %v1963, 7
      %v1965 = vsub.s32 6, %v1964
      %v1966 = vrot.slane %v1693, %v1965
      %1968 = vbcast.lane.b32.xlu0 %v1966, 256
      %v1969 = vpop.permute.xlu0 %1968
      %v1970 = vlaneseq
      %v1971 = vshrl.u32 %v1970, 7
      %v1972 = vsub.s32 7, %v1971
      %v1973 = vrot.slane %v1693, %v1972
      %1975 = vbcast.lane.b32.xlu0 %v1973, 256
      %v1976 = vpop.permute.xlu0 %1975
      %v1985 = vmul.f32 %v1912, %v1927
      %v1986 = vmul.f32 %v1913, %v1934
      %v1987 = vmul.f32 %v1914, %v1941
      %v1988 = vmul.f32 %v1915, %v1948
      %v1989 = vmul.f32 %v1916, %v1955
      %v1990 = vmul.f32 %v1917, %v1962
      %v1991 = vmul.f32 %v1918, %v1969
      %v1992 = vmul.f32 %v1919, %v1976
      %2001 = vset.pattern.permute.xlu0 0
      %2002 = vperm.xlu0 %2001, %v1985
      %v2003 = vpop.permute.xlu0 %2002
      %2004 = vset.pattern.permute.xlu0 0
      %2005 = vperm.xlu0 %2004, %v1986
      %v2006 = vpop.permute.xlu0 %2005
      %2007 = vset.pattern.permute.xlu0 0
      %2008 = vperm.xlu0 %2007, %v1987
      %v2009 = vpop.permute.xlu0 %2008
      %2010 = vset.pattern.permute.xlu0 0
      %2011 = vperm.xlu0 %2010, %v1988
      %v2012 = vpop.permute.xlu0 %2011
      %2013 = vset.pattern.permute.xlu0 0
      %2014 = vperm.xlu0 %2013, %v1989
      %v2015 = vpop.permute.xlu0 %2014
      %2016 = vset.pattern.permute.xlu0 0
      %2017 = vperm.xlu0 %2016, %v1990
      %v2018 = vpop.permute.xlu0 %2017
      %2019 = vset.pattern.permute.xlu0 0
      %2020 = vperm.xlu0 %2019, %v1991
      %v2021 = vpop.permute.xlu0 %2020
      %2022 = vset.pattern.permute.xlu0 0
      %2023 = vperm.xlu0 %2022, %v1992
      %v2024 = vpop.permute.xlu0 %2023
      %v2025 = vlaneseq
      %v2026 = vshrl.u32 %v2025, 7
      %v2027 = vsub.s32 %v49, %v2026
      %v2028 = vrot.slane %v2003, %v2027
      %v2029 = vlaneseq
      %v2030 = vshrl.u32 %v2029, 7
      %v2031 = vsub.s32 %v49, %v2030
      %v2032 = vrot.slane %v2006, %v2031
      %v2033 = vlaneseq
      %v2034 = vshrl.u32 %v2033, 7
      %v2035 = vsub.s32 %v49, %v2034
      %v2036 = vrot.slane %v2009, %v2035
      %v2037 = vlaneseq
      %v2038 = vshrl.u32 %v2037, 7
      %v2039 = vsub.s32 %v49, %v2038
      %v2040 = vrot.slane %v2012, %v2039
      %v2041 = vlaneseq
      %v2042 = vshrl.u32 %v2041, 7
      %v2043 = vsub.s32 %v49, %v2042
      %v2044 = vrot.slane %v2015, %v2043
      %v2045 = vlaneseq
      %v2046 = vshrl.u32 %v2045, 7
      %v2047 = vsub.s32 %v49, %v2046
      %v2048 = vrot.slane %v2018, %v2047
      %v2049 = vlaneseq
      %v2050 = vshrl.u32 %v2049, 7
      %v2051 = vsub.s32 %v49, %v2050
      %v2052 = vrot.slane %v2021, %v2051
      %v2053 = vlaneseq
      %v2054 = vshrl.u32 %v2053, 7
      %v2055 = vsub.s32 %v49, %v2054
      %v2056 = vrot.slane %v2024, %v2055
      %v2057 = vsel %vm725, %v2032, %v2028
      %v2058 = vsel %vm727, %v2036, %v2057
      %v2059 = vsel %vm729, %v2040, %v2058
      %v2060 = vsel %vm731, %v2044, %v2059
      %v2061 = vsel %vm733, %v2048, %v2060
      %v2062 = vsel %vm735, %v2052, %v2061
      %v2063 = vsel %vm737, %v2056, %v2062
      %v2065 = vsel %vm182, %v2063, 0.0
      %2066 = vadd.xlane.f32.xlu0 %v2065
      %v2067 = vpop.xlane.xlu0 %2066
      %v2068 = vrot.slane %v2067, 4
      %v2069 = vadd.f32 %v2067, %v2068
      %v2070 = vrot.slane %v2069, 2
      %v2071 = vadd.f32 %v2069, %v2070
      %v2072 = vrot.slane %v2071, 1
      %v2073 = vadd.f32 %v2071, %v2072
      %v2074 = vsub.f32 %v1473, 1.0
      %v2075 = vmul.f32 %v2074, %v1473
      %v2076 = vmax.f32 %v2075, 1.0
      %vm2077 = vcmp.ge.f32.partialorder %v1473, 2.0
      %v2078 = vrcp.pop %v2076
      %v2079 = vmul.f32 %v2073, %v2078
      %v2080 = vsel %vm2077, %v2079, 0.0
      %v2081 = vadd.f32 %v1547, 1e-08
      %v2082 = vmul.f32 %v2081, %v2081
      %v2083 = vsel %vm182, %v2082, 0.0
      %2084 = vadd.xlane.f32.xlu0 %v2083
      %v2085 = vpop.xlane.xlu0 %2084
      %v2086 = vrsqrt.pop %v2085
      %v2087 = vmul.f32 %v2085, %v2086
      %vm2088 = vcmp.eq.f32.partialorder %v2085, inf
      %v2089 = vsel %vm2088, %v2085, %v2087
      %vm2090 = vcmp.eq.f32.partialorder %v2085, 0.0
      %v2091 = vand.u32 %v2085, 2147483648
      %v2092 = vsel %vm2090, %v2091, %v2089
      %v2093 = vmul.f32 %v2092, %v1467
      %v2094 = vrot.slane %v2093, 4
      %v2095 = vadd.f32 %v2093, %v2094
      %v2096 = vrot.slane %v2095, 2
      %v2097 = vadd.f32 %v2095, %v2096
      %v2098 = vrot.slane %v2097, 1
      %v2099 = vadd.f32 %v2097, %v2098
      %v2100 = vmul.f32 %v2099, %v1683
      %v2101 = vmul.f32 %v2100, 0.001
      %v2102 = vadd.f32 %v1684, %v2080
      %v2103 = vadd.f32 %v2102, %v2101
      %v2104 = vsel %vm779, %v2103, 0.0
      %v2105 = vsel %vm781, %v1684, 0.0
      %v2106 = vadd.f32 %v2104, %v2105
      %v2107 = vsel %vm784, %v2080, 0.0
      %v2108 = vadd.f32 %v2106, %v2107
      %v2109 = vsel %vm787, %v2101, 0.0
      %v2110 = vadd.f32 %v2108, %v2109
      %s2111 = scalar_lea.vmem [#allocation9], 2
      %2112 = vst [vmem:[%s2111] sm:$0x1] %v2110
      %s2113 = scalar_lea.vmem [#allocation4], 24
      %v2114 = vld [vmem:[%s2113] sm:$0xff]
      %s2115 = scalar_lea.vmem [#allocation7], 3
      %v2116 = vld [vmem:[%s2115] sm:$0x1]
      %v2117 = vlaneseq
      %v2118 = vshrl.u32 %v2117, 7
      %v2119 = vsub.s32 0, %v2118
      %v2120 = vrot.slane %v2116, %v2119
      %vm2121 = vcmp.eq.s32.totalorder %v2120, %v51
      %v2122 = vsel %vm2121, 1, 0
      %v2123 = vcvt.s32.f32 %v2122
      %2124 = vadd.xlane.f32.xlu0 %v2123
      %v2125 = vpop.xlane.xlu0 %2124
      %vm2126 = vcmp.gt.f32.partialorder %v2125, 0.5
      %v2127 = vsel %vm2126, 1, 0
      %v2128 = vcvt.s32.f32 %v2127
      %v2129 = vrot.slane %v2128, 4
      %v2130 = vadd.f32 %v2128, %v2129
      %v2131 = vrot.slane %v2130, 2
      %v2132 = vadd.f32 %v2130, %v2131
      %v2133 = vrot.slane %v2132, 1
      %v2134 = vadd.f32 %v2132, %v2133
      %v2135 = vmax.f32 %v2134, 1.0
      %2136 = vmatprep.subr.mxu0 0.0
      %2137 = vmatpush1.xpose.msra.mxu0 %v2114
      %2138 = vmatprep.subr.mxu0 0.0
      %2139 = vmatpush1.xpose.msra.mxu0 0.0
      %2140 = vmatprep.subr.mxu0 0.0
      %2141 = vmatpush1.xpose.msra.mxu0 0.0
      %2142 = vmatprep.subr.mxu0 0.0
      %2143 = vmatpush1.xpose.msra.mxu0 0.0
      %2144 = vmatprep.subr.mxu0 0.0
      %2145 = vmatpush1.xpose.msra.mxu0 0.0
      %2146 = vmatprep.subr.mxu0 0.0
      %2147 = vmatpush1.xpose.msra.mxu0 0.0
      %2148 = vmatprep.subr.mxu0 0.0
      %2149 = vmatpush1.xpose.msra.mxu0 0.0
      %2150 = vmatprep.subr.mxu0 0.0
      %2151 = vmatpush1.xpose.msra.mxu0 0.0
      %2152 = vmatprep.subr.mxu0 0.0
      %2153 = vmatpush1.xpose.msra.mxu0 0.0
      %2154 = vmatprep.subr.mxu0 0.0
      %2155 = vmatpush1.xpose.msra.mxu0 0.0
      %2156 = vmatprep.subr.mxu0 0.0
      %2157 = vmatpush1.xpose.msra.mxu0 0.0
      %2158 = vmatprep.subr.mxu0 0.0
      %2159 = vmatpush1.xpose.msra.mxu0 0.0
      %2160 = vmatprep.subr.mxu0 0.0
      %2161 = vmatpush1.xpose.msra.mxu0 0.0
      %2162 = vmatprep.subr.mxu0 0.0
      %2163 = vmatpush1.xpose.msra.mxu0 0.0
      %2164 = vmatprep.subr.mxu0 0.0
      %2165 = vmatpush1.xpose.msra.mxu0 0.0
      %2166 = vmatprep.subr.mxu0 0.0
      %2167 = vmatpush1.xpose.msra.mxu0 0.0
      %2168 = vmatprep.subr.mxu0 0.0
      %2169 = vmatpush1.xpose.msra.mxu0 0.0
      %2170 = vmatprep.subr.mxu0 0.0
      %2171 = vmatpush1.xpose.msra.mxu0 0.0
      %2172 = vmatprep.subr.mxu0 0.0
      %2173 = vmatpush1.xpose.msra.mxu0 0.0
      %2174 = vmatprep.subr.mxu0 0.0
      %2175 = vmatpush1.xpose.msra.mxu0 0.0
      %2176 = vmatprep.subr.mxu0 0.0
      %2177 = vmatpush1.xpose.msra.mxu0 0.0
      %2178 = vmatprep.subr.mxu0 0.0
      %2179 = vmatpush1.xpose.msra.mxu0 0.0
      %2180 = vmatprep.subr.mxu0 0.0
      %2181 = vmatpush1.xpose.msra.mxu0 0.0
      %2182 = vmatprep.subr.mxu0 0.0
      %2183 = vmatpush1.xpose.msra.mxu0 0.0
      %2184 = vmatprep.subr.mxu0 0.0
      %2185 = vmatpush1.xpose.msra.mxu0 0.0
      %2186 = vmatprep.subr.mxu0 0.0
      %2187 = vmatpush1.xpose.msra.mxu0 0.0
      %2188 = vmatprep.subr.mxu0 0.0
      %2189 = vmatpush1.xpose.msra.mxu0 0.0
      %2190 = vmatprep.subr.mxu0 0.0
      %2191 = vmatpush1.xpose.msra.mxu0 0.0
      %2192 = vmatprep.subr.mxu0 0.0
      %2193 = vmatpush1.xpose.msra.mxu0 0.0
      %2194 = vmatprep.subr.mxu0 0.0
      %2195 = vmatpush1.xpose.msra.mxu0 0.0
      %2196 = vmatprep.subr.mxu0 0.0
      %2197 = vmatpush1.xpose.msra.mxu0 0.0
      %2198 = vmatprep.subr.mxu0 0.0
      %2199 = vmatpush1.xpose.msra.mxu0 0.0
      %2200 = vmatprep.mubr.f32.mxu0 0.0
      %2201 = vmatmul.mubr.f32.gmra.mrb[0].mxu0 %v2123
      %v2202 = vpop.f32.mrb[0].mxu0
      %v2203 = vadd.f32 0.0, %v2202
      %v2204 = vpop.f32.mrb[0].mxu0
      %2205 = vdwg.mxu0
      %v2206 = vmax.f32 %v2125, 1.0
      %v2207 = vrcp.pop %v2206
      %v2208 = vmul.f32 %v2203, %v2207
      %2209 = vxpose.xlu0.b32.start [1/16] %v2208, 128
      %2210 = vxpose.xlu0.b32.cont [2/16] 0.0, 128
      %2211 = vxpose.xlu0.b32.cont [3/16] 0.0, 128
      %2212 = vxpose.xlu0.b32.cont [4/16] 0.0, 128
      %2213 = vxpose.xlu0.b32.cont [5/16] 0.0, 128
      %2214 = vxpose.xlu0.b32.cont [6/16] 0.0, 128
      %2215 = vxpose.xlu0.b32.cont [7/16] 0.0, 128
      %2216 = vxpose.xlu0.b32.cont [8/16] 0.0, 128
      %2217 = vxpose.xlu0.b32.cont [9/16] 0.0, 128
      %2218 = vxpose.xlu0.b32.cont [10/16] 0.0, 128
      %2219 = vxpose.xlu0.b32.cont [11/16] 0.0, 128
      %2220 = vxpose.xlu0.b32.cont [12/16] 0.0, 128
      %2221 = vxpose.xlu0.b32.cont [13/16] 0.0, 128
      %2222 = vxpose.xlu0.b32.cont [14/16] 0.0, 128
      %2223 = vxpose.xlu0.b32.cont [15/16] 0.0, 128
      %2224 = vxpose.xlu0.b32.end [16/16] 0.0, 128
      %v2225 = vpop.trf.xlu0
      %v2226 = vpop.trf.xlu0
      %v2227 = vpop.trf.xlu0
      %v2228 = vpop.trf.xlu0
      %v2229 = vpop.trf.xlu0
      %v2230 = vpop.trf.xlu0
      %v2231 = vpop.trf.xlu0
      %v2232 = vpop.trf.xlu0
      %v2233 = vpop.trf.xlu0
      %v2234 = vpop.trf.xlu0
      %v2235 = vpop.trf.xlu0
      %v2236 = vpop.trf.xlu0
      %v2237 = vpop.trf.xlu0
      %v2238 = vpop.trf.xlu0
      %v2239 = vpop.trf.xlu0
      %v2240 = vpop.trf.xlu0
      %v2242 = vsel %vm182, %v2225, 0
      %2244 = vmatprep.subr.mxu0 0.0
      %2245 = vmatpush1.msra.mxu0 %v2123
      %2246 = vmatprep.subr.mxu0 0.0
      %2247 = vmatpush1.msra.mxu0 0.0
      %2248 = vmatprep.subr.mxu0 0.0
      %2249 = vmatpush1.msra.mxu0 0.0
      %2250 = vmatprep.subr.mxu0 0.0
      %2251 = vmatpush1.msra.mxu0 0.0
      %2252 = vmatprep.subr.mxu0 0.0
      %2253 = vmatpush1.msra.mxu0 0.0
      %2254 = vmatprep.subr.mxu0 0.0
      %2255 = vmatpush1.msra.mxu0 0.0
      %2256 = vmatprep.subr.mxu0 0.0
      %2257 = vmatpush1.msra.mxu0 0.0
      %2258 = vmatprep.subr.mxu0 0.0
      %2259 = vmatpush1.msra.mxu0 0.0
      %2260 = vmatprep.subr.mxu0 0.0
      %2261 = vmatpush1.msra.mxu0 0.0
      %2262 = vmatprep.subr.mxu0 0.0
      %2263 = vmatpush1.msra.mxu0 0.0
      %2264 = vmatprep.subr.mxu0 0.0
      %2265 = vmatpush1.msra.mxu0 0.0
      %2266 = vmatprep.subr.mxu0 0.0
      %2267 = vmatpush1.msra.mxu0 0.0
      %2268 = vmatprep.subr.mxu0 0.0
      %2269 = vmatpush1.msra.mxu0 0.0
      %2270 = vmatprep.subr.mxu0 0.0
      %2271 = vmatpush1.msra.mxu0 0.0
      %2272 = vmatprep.subr.mxu0 0.0
      %2273 = vmatpush1.msra.mxu0 0.0
      %2274 = vmatprep.subr.mxu0 0.0
      %2275 = vmatpush1.msra.mxu0 0.0
      %2276 = vmatprep.subr.mxu0 0.0
      %2277 = vmatpush1.msra.mxu0 0.0
      %2278 = vmatprep.subr.mxu0 0.0
      %2279 = vmatpush1.msra.mxu0 0.0
      %2280 = vmatprep.subr.mxu0 0.0
      %2281 = vmatpush1.msra.mxu0 0.0
      %2282 = vmatprep.subr.mxu0 0.0
      %2283 = vmatpush1.msra.mxu0 0.0
      %2284 = vmatprep.subr.mxu0 0.0
      %2285 = vmatpush1.msra.mxu0 0.0
      %2286 = vmatprep.subr.mxu0 0.0
      %2287 = vmatpush1.msra.mxu0 0.0
      %2288 = vmatprep.subr.mxu0 0.0
      %2289 = vmatpush1.msra.mxu0 0.0
      %2290 = vmatprep.subr.mxu0 0.0
      %2291 = vmatpush1.msra.mxu0 0.0
      %2292 = vmatprep.subr.mxu0 0.0
      %2293 = vmatpush1.msra.mxu0 0.0
      %2294 = vmatprep.subr.mxu0 0.0
      %2295 = vmatpush1.msra.mxu0 0.0
      %2296 = vmatprep.subr.mxu0 0.0
      %2297 = vmatpush1.msra.mxu0 0.0
      %2298 = vmatprep.subr.mxu0 0.0
      %2299 = vmatpush1.msra.mxu0 0.0
      %2300 = vmatprep.subr.mxu0 0.0
      %2301 = vmatpush1.msra.mxu0 0.0
      %2302 = vmatprep.subr.mxu0 0.0
      %2303 = vmatpush1.msra.mxu0 0.0
      %2304 = vmatprep.subr.mxu0 0.0
      %2305 = vmatpush1.msra.mxu0 0.0
      %2306 = vmatprep.subr.mxu0 0.0
      %2307 = vmatpush1.msra.mxu0 0.0
      %2308 = vmatprep.mubr.f32.mxu0 0.0
      %2309 = vmatmul.mubr.f32.gmra.mrb[0].mxu0 %v2242
      %v2310 = vpop.f32.mrb[0].mxu0
      %v2311 = vadd.f32 0.0, %v2310
      %v2312 = vpop.f32.mrb[0].mxu0
      %2313 = vdwg.mxu0
      %v2314 = vsub.f32 %v2114, %v2311
      %v2315 = vadd.f32 %v2314, 1e-08
      %v2316 = vmul.f32 %v2315, %v2315
      %v2317 = vrot.slane %v2316, 4
      %v2318 = vadd.f32 %v2316, %v2317
      %v2319 = vrot.slane %v2318, 2
      %v2320 = vadd.f32 %v2318, %v2319
      %v2321 = vrot.slane %v2320, 1
      %v2322 = vadd.f32 %v2320, %v2321
      %v2323 = vrsqrt.pop %v2322
      %v2324 = vmul.f32 %v2322, %v2323
      %vm2325 = vcmp.eq.f32.partialorder %v2322, inf
      %v2326 = vsel %vm2325, %v2322, %v2324
      %vm2327 = vcmp.eq.f32.partialorder %v2322, 0.0
      %v2328 = vand.u32 %v2322, 2147483648
      %v2329 = vsel %vm2327, %v2328, %v2326
      %v2330 = vsub.f32 %v2329, 0.5
      %v2331 = vmax.f32 %v2330, 0.0
      %v2332 = vmul.f32 %v2331, %v2331
      %v2333 = vmul.f32 %v2123, %v2332
      %2334 = vadd.xlane.f32.xlu0 %v2333
      %v2335 = vpop.xlane.xlu0 %2334
      %v2336 = vmul.f32 %v2335, %v2207
      %v2337 = vmul.f32 %v2336, %v2128
      %v2338 = vrot.slane %v2337, 4
      %v2339 = vadd.f32 %v2337, %v2338
      %v2340 = vrot.slane %v2339, 2
      %v2341 = vadd.f32 %v2339, %v2340
      %v2342 = vrot.slane %v2341, 1
      %v2343 = vadd.f32 %v2341, %v2342
      %v2344 = vrcp.pop %v2135
      %v2345 = vmul.f32 %v2343, %v2344
      %v2346 = vmul.f32 %v54, %v2128
      %v2347 = vsel %vm182, %v2346, 0.0
      %v2348 = vrot.slane %v2347, 4
      %v2349 = vadd.f32 %v2347, %v2348
      %v2350 = vrot.slane %v2349, 2
      %v2351 = vadd.f32 %v2349, %v2350
      %v2352 = vrot.slane %v2351, 1
      %v2353 = vadd.f32 %v2351, %v2352
      %v2354 = vmul.f32 %v2128, %v2353
      %v2356 = vcombine.high %v2208, %v2208
      %v2358 = vunpack.c.l.s4 1966171168
      %v2359 = vunpack.c.0.s8 %v2358
      %v2360 = vlaneseq
      %v2361 = vshrl.u32 %v2360, 7
      %v2362 = vsub.s32 %v2359, %v2361
      %v2363 = vrot.slane %v2208, %v2362
      %v2365 = vunpack.c.l.s4 1966171168
      %v2366 = vunpack.c.0.s8 %v2365
      %v2367 = vlaneseq
      %v2368 = vshrl.u32 %v2367, 7
      %v2369 = vsub.s32 %v2366, %v2368
      %v2370 = vrot.slane %v2356, %v2369
      %v2371 = vcombine.high %v2363, %v2363
      %v2372 = vcombine.high %v2370, %v2370
      %v2374 = vunpack.c.l.s4 1966171168
      %v2375 = vunpack.c.0.s8 %v2374
      %v2376 = vlaneseq
      %v2377 = vshrl.u32 %v2376, 7
      %v2378 = vsub.s32 %v2375, %v2377
      %v2379 = vrot.slane %v2363, %v2378
      %v2381 = vunpack.c.l.s4 1966171168
      %v2382 = vunpack.c.0.s8 %v2381
      %v2383 = vlaneseq
      %v2384 = vshrl.u32 %v2383, 7
      %v2385 = vsub.s32 %v2382, %v2384
      %v2386 = vrot.slane %v2370, %v2385
      %v2388 = vunpack.c.l.s4 1966171168
      %v2389 = vunpack.c.0.s8 %v2388
      %v2390 = vlaneseq
      %v2391 = vshrl.u32 %v2390, 7
      %v2392 = vsub.s32 %v2389, %v2391
      %v2393 = vrot.slane %v2371, %v2392
      %v2395 = vunpack.c.l.s4 1966171168
      %v2396 = vunpack.c.0.s8 %v2395
      %v2397 = vlaneseq
      %v2398 = vshrl.u32 %v2397, 7
      %v2399 = vsub.s32 %v2396, %v2398
      %v2400 = vrot.slane %v2372, %v2399
      %v2401 = vcombine.high %v2379, %v2379
      %v2402 = vcombine.high %v2386, %v2386
      %v2403 = vcombine.high %v2393, %v2393
      %v2404 = vcombine.high %v2400, %v2400
      %v2405 = vlaneseq
      %v2406 = vshrl.u32 %v2405, 7
      %v2407 = vsub.s32 0, %v2406
      %v2408 = vrot.slane %v2379, %v2407
      %v2409 = vlaneseq
      %v2410 = vshrl.u32 %v2409, 7
      %v2411 = vsub.s32 0, %v2410
      %v2412 = vrot.slane %v2393, %v2411
      %v2413 = vlaneseq
      %v2414 = vshrl.u32 %v2413, 7
      %v2415 = vsub.s32 0, %v2414
      %v2416 = vrot.slane %v2401, %v2415
      %v2417 = vlaneseq
      %v2418 = vshrl.u32 %v2417, 7
      %v2419 = vsub.s32 0, %v2418
      %v2420 = vrot.slane %v2403, %v2419
      %v2421 = vlaneseq
      %v2422 = vshrl.u32 %v2421, 7
      %v2423 = vsub.s32 0, %v2422
      %v2424 = vrot.slane %v2386, %v2423
      %v2425 = vlaneseq
      %v2426 = vshrl.u32 %v2425, 7
      %v2427 = vsub.s32 0, %v2426
      %v2428 = vrot.slane %v2400, %v2427
      %v2429 = vlaneseq
      %v2430 = vshrl.u32 %v2429, 7
      %v2431 = vsub.s32 0, %v2430
      %v2432 = vrot.slane %v2402, %v2431
      %v2433 = vlaneseq
      %v2434 = vshrl.u32 %v2433, 7
      %v2435 = vsub.s32 0, %v2434
      %v2436 = vrot.slane %v2404, %v2435
      %v2445 = vsub.f32 %v2408, %v2208
      %v2446 = vsub.f32 %v2412, %v2208
      %v2447 = vsub.f32 %v2416, %v2208
      %v2448 = vsub.f32 %v2420, %v2208
      %v2449 = vsub.f32 %v2424, %v2208
      %v2450 = vsub.f32 %v2428, %v2208
      %v2451 = vsub.f32 %v2432, %v2208
      %v2452 = vsub.f32 %v2436, %v2208
      %v2453 = vadd.f32 %v2445, 1e-08
      %v2454 = vadd.f32 %v2446, 1e-08
      %v2455 = vadd.f32 %v2447, 1e-08
      %v2456 = vadd.f32 %v2448, 1e-08
      %v2457 = vadd.f32 %v2449, 1e-08
      %v2458 = vadd.f32 %v2450, 1e-08
      %v2459 = vadd.f32 %v2451, 1e-08
      %v2460 = vadd.f32 %v2452, 1e-08
      %v2461 = vmul.f32 %v2453, %v2453
      %v2462 = vmul.f32 %v2454, %v2454
      %v2463 = vmul.f32 %v2455, %v2455
      %v2464 = vmul.f32 %v2456, %v2456
      %v2465 = vmul.f32 %v2457, %v2457
      %v2466 = vmul.f32 %v2458, %v2458
      %v2467 = vmul.f32 %v2459, %v2459
      %v2468 = vmul.f32 %v2460, %v2460
      %v2469 = vsel %vm182, %v2461, 0.0
      %2470 = vadd.xlane.f32.xlu0 %v2469
      %v2471 = vpop.xlane.xlu0 %2470
      %v2472 = vsel %vm182, %v2462, 0.0
      %2473 = vadd.xlane.f32.xlu0 %v2472
      %v2474 = vpop.xlane.xlu0 %2473
      %v2475 = vsel %vm182, %v2463, 0.0
      %2476 = vadd.xlane.f32.xlu0 %v2475
      %v2477 = vpop.xlane.xlu0 %2476
      %v2478 = vsel %vm182, %v2464, 0.0
      %2479 = vadd.xlane.f32.xlu0 %v2478
      %v2480 = vpop.xlane.xlu0 %2479
      %v2481 = vsel %vm182, %v2465, 0.0
      %2482 = vadd.xlane.f32.xlu0 %v2481
      %v2483 = vpop.xlane.xlu0 %2482
      %v2484 = vsel %vm182, %v2466, 0.0
      %2485 = vadd.xlane.f32.xlu0 %v2484
      %v2486 = vpop.xlane.xlu0 %2485
      %v2487 = vsel %vm182, %v2467, 0.0
      %2488 = vadd.xlane.f32.xlu0 %v2487
      %v2489 = vpop.xlane.xlu0 %2488
      %v2490 = vsel %vm182, %v2468, 0.0
      %2491 = vadd.xlane.f32.xlu0 %v2490
      %v2492 = vpop.xlane.xlu0 %2491
      %v2493 = vrsqrt.pop %v2471
      %v2494 = vmul.f32 %v2471, %v2493
      %vm2495 = vcmp.eq.f32.partialorder %v2471, inf
      %v2496 = vsel %vm2495, %v2471, %v2494
      %vm2497 = vcmp.eq.f32.partialorder %v2471, 0.0
      %v2498 = vand.u32 %v2471, 2147483648
      %v2499 = vsel %vm2497, %v2498, %v2496
      %v2500 = vrsqrt.pop %v2474
      %v2501 = vmul.f32 %v2474, %v2500
      %vm2502 = vcmp.eq.f32.partialorder %v2474, inf
      %v2503 = vsel %vm2502, %v2474, %v2501
      %vm2504 = vcmp.eq.f32.partialorder %v2474, 0.0
      %v2505 = vand.u32 %v2474, 2147483648
      %v2506 = vsel %vm2504, %v2505, %v2503
      %v2507 = vrsqrt.pop %v2477
      %v2508 = vmul.f32 %v2477, %v2507
      %vm2509 = vcmp.eq.f32.partialorder %v2477, inf
      %v2510 = vsel %vm2509, %v2477, %v2508
      %vm2511 = vcmp.eq.f32.partialorder %v2477, 0.0
      %v2512 = vand.u32 %v2477, 2147483648
      %v2513 = vsel %vm2511, %v2512, %v2510
      %v2514 = vrsqrt.pop %v2480
      %v2515 = vmul.f32 %v2480, %v2514
      %vm2516 = vcmp.eq.f32.partialorder %v2480, inf
      %v2517 = vsel %vm2516, %v2480, %v2515
      %vm2518 = vcmp.eq.f32.partialorder %v2480, 0.0
      %v2519 = vand.u32 %v2480, 2147483648
      %v2520 = vsel %vm2518, %v2519, %v2517
      %v2521 = vrsqrt.pop %v2483
      %v2522 = vmul.f32 %v2483, %v2521
      %vm2523 = vcmp.eq.f32.partialorder %v2483, inf
      %v2524 = vsel %vm2523, %v2483, %v2522
      %vm2525 = vcmp.eq.f32.partialorder %v2483, 0.0
      %v2526 = vand.u32 %v2483, 2147483648
      %v2527 = vsel %vm2525, %v2526, %v2524
      %v2528 = vrsqrt.pop %v2486
      %v2529 = vmul.f32 %v2486, %v2528
      %vm2530 = vcmp.eq.f32.partialorder %v2486, inf
      %v2531 = vsel %vm2530, %v2486, %v2529
      %vm2532 = vcmp.eq.f32.partialorder %v2486, 0.0
      %v2533 = vand.u32 %v2486, 2147483648
      %v2534 = vsel %vm2532, %v2533, %v2531
      %v2535 = vrsqrt.pop %v2489
      %v2536 = vmul.f32 %v2489, %v2535
      %vm2537 = vcmp.eq.f32.partialorder %v2489, inf
      %v2538 = vsel %vm2537, %v2489, %v2536
      %vm2539 = vcmp.eq.f32.partialorder %v2489, 0.0
      %v2540 = vand.u32 %v2489, 2147483648
      %v2541 = vsel %vm2539, %v2540, %v2538
      %v2542 = vrsqrt.pop %v2492
      %v2543 = vmul.f32 %v2492, %v2542
      %vm2544 = vcmp.eq.f32.partialorder %v2492, inf
      %v2545 = vsel %vm2544, %v2492, %v2543
      %vm2546 = vcmp.eq.f32.partialorder %v2492, 0.0
      %v2547 = vand.u32 %v2492, 2147483648
      %v2548 = vsel %vm2546, %v2547, %v2545
      %v2549 = vsub.f32 3.0, %v2499
      %v2550 = vsub.f32 3.0, %v2506
      %v2551 = vsub.f32 3.0, %v2513
      %v2552 = vsub.f32 3.0, %v2520
      %v2553 = vsub.f32 3.0, %v2527
      %v2554 = vsub.f32 3.0, %v2534
      %v2555 = vsub.f32 3.0, %v2541
      %v2556 = vsub.f32 3.0, %v2548
      %v2557 = vmax.f32 %v2549, 0.0
      %v2558 = vmax.f32 %v2550, 0.0
      %v2559 = vmax.f32 %v2551, 0.0
      %v2560 = vmax.f32 %v2552, 0.0
      %v2561 = vmax.f32 %v2553, 0.0
      %v2562 = vmax.f32 %v2554, 0.0
      %v2563 = vmax.f32 %v2555, 0.0
      %v2564 = vmax.f32 %v2556, 0.0
      %v2565 = vmul.f32 %v2557, %v2557
      %v2566 = vmul.f32 %v2558, %v2558
      %v2567 = vmul.f32 %v2559, %v2559
      %v2568 = vmul.f32 %v2560, %v2560
      %v2569 = vmul.f32 %v2561, %v2561
      %v2570 = vmul.f32 %v2562, %v2562
      %v2571 = vmul.f32 %v2563, %v2563
      %v2572 = vmul.f32 %v2564, %v2564
      %v2573 = vmul.f32 %v2565, %v522
      %v2574 = vmul.f32 %v2566, %v529
      %v2575 = vmul.f32 %v2567, %v536
      %v2576 = vmul.f32 %v2568, %v543
      %v2577 = vmul.f32 %v2569, %v550
      %v2578 = vmul.f32 %v2570, %v557
      %v2579 = vmul.f32 %v2571, %v564
      %v2580 = vmul.f32 %v2572, %v571
      %v2582 = vlaneseq
      %v2583 = vshrl.u32 %v2582, 7
      %v2584 = vsub.s32 0, %v2583
      %v2585 = vrot.slane %v2354, %v2584
      %2587 = vbcast.lane.b32.xlu0 %v2585, 256
      %v2588 = vpop.permute.xlu0 %2587
      %v2589 = vlaneseq
      %v2590 = vshrl.u32 %v2589, 7
      %v2591 = vsub.s32 1, %v2590
      %v2592 = vrot.slane %v2354, %v2591
      %2594 = vbcast.lane.b32.xlu0 %v2592, 256
      %v2595 = vpop.permute.xlu0 %2594
      %v2596 = vlaneseq
      %v2597 = vshrl.u32 %v2596, 7
      %v2598 = vsub.s32 2, %v2597
      %v2599 = vrot.slane %v2354, %v2598
      %2601 = vbcast.lane.b32.xlu0 %v2599, 256
      %v2602 = vpop.permute.xlu0 %2601
      %v2603 = vlaneseq
      %v2604 = vshrl.u32 %v2603, 7
      %v2605 = vsub.s32 3, %v2604
      %v2606 = vrot.slane %v2354, %v2605
      %2608 = vbcast.lane.b32.xlu0 %v2606, 256
      %v2609 = vpop.permute.xlu0 %2608
      %v2610 = vlaneseq
      %v2611 = vshrl.u32 %v2610, 7
      %v2612 = vsub.s32 4, %v2611
      %v2613 = vrot.slane %v2354, %v2612
      %2615 = vbcast.lane.b32.xlu0 %v2613, 256
      %v2616 = vpop.permute.xlu0 %2615
      %v2617 = vlaneseq
      %v2618 = vshrl.u32 %v2617, 7
      %v2619 = vsub.s32 5, %v2618
      %v2620 = vrot.slane %v2354, %v2619
      %2622 = vbcast.lane.b32.xlu0 %v2620, 256
      %v2623 = vpop.permute.xlu0 %2622
      %v2624 = vlaneseq
      %v2625 = vshrl.u32 %v2624, 7
      %v2626 = vsub.s32 6, %v2625
      %v2627 = vrot.slane %v2354, %v2626
      %2629 = vbcast.lane.b32.xlu0 %v2627, 256
      %v2630 = vpop.permute.xlu0 %2629
      %v2631 = vlaneseq
      %v2632 = vshrl.u32 %v2631, 7
      %v2633 = vsub.s32 7, %v2632
      %v2634 = vrot.slane %v2354, %v2633
      %2636 = vbcast.lane.b32.xlu0 %v2634, 256
      %v2637 = vpop.permute.xlu0 %2636
      %v2646 = vmul.f32 %v2573, %v2588
      %v2647 = vmul.f32 %v2574, %v2595
      %v2648 = vmul.f32 %v2575, %v2602
      %v2649 = vmul.f32 %v2576, %v2609
      %v2650 = vmul.f32 %v2577, %v2616
      %v2651 = vmul.f32 %v2578, %v2623
      %v2652 = vmul.f32 %v2579, %v2630
      %v2653 = vmul.f32 %v2580, %v2637
      %2662 = vset.pattern.permute.xlu0 0
      %2663 = vperm.xlu0 %2662, %v2646
      %v2664 = vpop.permute.xlu0 %2663
      %2665 = vset.pattern.permute.xlu0 0
      %2666 = vperm.xlu0 %2665, %v2647
      %v2667 = vpop.permute.xlu0 %2666
      %2668 = vset.pattern.permute.xlu0 0
      %2669 = vperm.xlu0 %2668, %v2648
      %v2670 = vpop.permute.xlu0 %2669
      %2671 = vset.pattern.permute.xlu0 0
      %2672 = vperm.xlu0 %2671, %v2649
      %v2673 = vpop.permute.xlu0 %2672
      %2674 = vset.pattern.permute.xlu0 0
      %2675 = vperm.xlu0 %2674, %v2650
      %v2676 = vpop.permute.xlu0 %2675
      %2677 = vset.pattern.permute.xlu0 0
      %2678 = vperm.xlu0 %2677, %v2651
      %v2679 = vpop.permute.xlu0 %2678
      %2680 = vset.pattern.permute.xlu0 0
      %2681 = vperm.xlu0 %2680, %v2652
      %v2682 = vpop.permute.xlu0 %2681
      %2683 = vset.pattern.permute.xlu0 0
      %2684 = vperm.xlu0 %2683, %v2653
      %v2685 = vpop.permute.xlu0 %2684
      %v2686 = vlaneseq
      %v2687 = vshrl.u32 %v2686, 7
      %v2688 = vsub.s32 %v49, %v2687
      %v2689 = vrot.slane %v2664, %v2688
      %v2690 = vlaneseq
      %v2691 = vshrl.u32 %v2690, 7
      %v2692 = vsub.s32 %v49, %v2691
      %v2693 = vrot.slane %v2667, %v2692
      %v2694 = vlaneseq
      %v2695 = vshrl.u32 %v2694, 7
      %v2696 = vsub.s32 %v49, %v2695
      %v2697 = vrot.slane %v2670, %v2696
      %v2698 = vlaneseq
      %v2699 = vshrl.u32 %v2698, 7
      %v2700 = vsub.s32 %v49, %v2699
      %v2701 = vrot.slane %v2673, %v2700
      %v2702 = vlaneseq
      %v2703 = vshrl.u32 %v2702, 7
      %v2704 = vsub.s32 %v49, %v2703
      %v2705 = vrot.slane %v2676, %v2704
      %v2706 = vlaneseq
      %v2707 = vshrl.u32 %v2706, 7
      %v2708 = vsub.s32 %v49, %v2707
      %v2709 = vrot.slane %v2679, %v2708
      %v2710 = vlaneseq
      %v2711 = vshrl.u32 %v2710, 7
      %v2712 = vsub.s32 %v49, %v2711
      %v2713 = vrot.slane %v2682, %v2712
      %v2714 = vlaneseq
      %v2715 = vshrl.u32 %v2714, 7
      %v2716 = vsub.s32 %v49, %v2715
      %v2717 = vrot.slane %v2685, %v2716
      %v2718 = vsel %vm725, %v2693, %v2689
      %v2719 = vsel %vm727, %v2697, %v2718
      %v2720 = vsel %vm729, %v2701, %v2719
      %v2721 = vsel %vm731, %v2705, %v2720
      %v2722 = vsel %vm733, %v2709, %v2721
      %v2723 = vsel %vm735, %v2713, %v2722
      %v2724 = vsel %vm737, %v2717, %v2723
      %v2726 = vsel %vm182, %v2724, 0.0
      %2727 = vadd.xlane.f32.xlu0 %v2726
      %v2728 = vpop.xlane.xlu0 %2727
      %v2729 = vrot.slane %v2728, 4
      %v2730 = vadd.f32 %v2728, %v2729
      %v2731 = vrot.slane %v2730, 2
      %v2732 = vadd.f32 %v2730, %v2731
      %v2733 = vrot.slane %v2732, 1
      %v2734 = vadd.f32 %v2732, %v2733
      %v2735 = vsub.f32 %v2134, 1.0
      %v2736 = vmul.f32 %v2735, %v2134
      %v2737 = vmax.f32 %v2736, 1.0
      %vm2738 = vcmp.ge.f32.partialorder %v2134, 2.0
      %v2739 = vrcp.pop %v2737
      %v2740 = vmul.f32 %v2734, %v2739
      %v2741 = vsel %vm2738, %v2740, 0.0
      %v2742 = vadd.f32 %v2208, 1e-08
      %v2743 = vmul.f32 %v2742, %v2742
      %v2744 = vsel %vm182, %v2743, 0.0
      %2745 = vadd.xlane.f32.xlu0 %v2744
      %v2746 = vpop.xlane.xlu0 %2745
      %v2747 = vrsqrt.pop %v2746
      %v2748 = vmul.f32 %v2746, %v2747
      %vm2749 = vcmp.eq.f32.partialorder %v2746, inf
      %v2750 = vsel %vm2749, %v2746, %v2748
      %vm2751 = vcmp.eq.f32.partialorder %v2746, 0.0
      %v2752 = vand.u32 %v2746, 2147483648
      %v2753 = vsel %vm2751, %v2752, %v2750
      %v2754 = vmul.f32 %v2753, %v2128
      %v2755 = vrot.slane %v2754, 4
      %v2756 = vadd.f32 %v2754, %v2755
      %v2757 = vrot.slane %v2756, 2
      %v2758 = vadd.f32 %v2756, %v2757
      %v2759 = vrot.slane %v2758, 1
      %v2760 = vadd.f32 %v2758, %v2759
      %v2761 = vmul.f32 %v2760, %v2344
      %v2762 = vmul.f32 %v2761, 0.001
      %v2763 = vadd.f32 %v2345, %v2741
      %v2764 = vadd.f32 %v2763, %v2762
      %v2765 = vsel %vm779, %v2764, 0.0
      %v2766 = vsel %vm781, %v2345, 0.0
      %v2767 = vadd.f32 %v2765, %v2766
      %v2768 = vsel %vm784, %v2741, 0.0
      %v2769 = vadd.f32 %v2767, %v2768
      %v2770 = vsel %vm787, %v2762, 0.0
      %v2771 = vadd.f32 %v2769, %v2770
      %s2772 = scalar_lea.vmem [#allocation9], 3
      %2773 = vst [vmem:[%s2772] sm:$0x1] %v2771
      %s2774 = scalar_lea.vmem [#allocation4], 32
      %v2775 = vld [vmem:[%s2774] sm:$0xff]
      %s2776 = scalar_lea.vmem [#allocation7], 4
      %v2777 = vld [vmem:[%s2776] sm:$0x1]
      %v2778 = vlaneseq
      %v2779 = vshrl.u32 %v2778, 7
      %v2780 = vsub.s32 0, %v2779
      %v2781 = vrot.slane %v2777, %v2780
      %vm2782 = vcmp.eq.s32.totalorder %v2781, %v51
      %v2783 = vsel %vm2782, 1, 0
      %v2784 = vcvt.s32.f32 %v2783
      %2785 = vadd.xlane.f32.xlu0 %v2784
      %v2786 = vpop.xlane.xlu0 %2785
      %vm2787 = vcmp.gt.f32.partialorder %v2786, 0.5
      %v2788 = vsel %vm2787, 1, 0
      %v2789 = vcvt.s32.f32 %v2788
      %v2790 = vrot.slane %v2789, 4
      %v2791 = vadd.f32 %v2789, %v2790
      %v2792 = vrot.slane %v2791, 2
      %v2793 = vadd.f32 %v2791, %v2792
      %v2794 = vrot.slane %v2793, 1
      %v2795 = vadd.f32 %v2793, %v2794
      %v2796 = vmax.f32 %v2795, 1.0
      %2797 = vmatprep.subr.mxu0 0.0
      %2798 = vmatpush1.xpose.msra.mxu0 %v2775
      %2799 = vmatprep.subr.mxu0 0.0
      %2800 = vmatpush1.xpose.msra.mxu0 0.0
      %2801 = vmatprep.subr.mxu0 0.0
      %2802 = vmatpush1.xpose.msra.mxu0 0.0
      %2803 = vmatprep.subr.mxu0 0.0
      %2804 = vmatpush1.xpose.msra.mxu0 0.0
      %2805 = vmatprep.subr.mxu0 0.0
      %2806 = vmatpush1.xpose.msra.mxu0 0.0
      %2807 = vmatprep.subr.mxu0 0.0
      %2808 = vmatpush1.xpose.msra.mxu0 0.0
      %2809 = vmatprep.subr.mxu0 0.0
      %2810 = vmatpush1.xpose.msra.mxu0 0.0
      %2811 = vmatprep.subr.mxu0 0.0
      %2812 = vmatpush1.xpose.msra.mxu0 0.0
      %2813 = vmatprep.subr.mxu0 0.0
      %2814 = vmatpush1.xpose.msra.mxu0 0.0
      %2815 = vmatprep.subr.mxu0 0.0
      %2816 = vmatpush1.xpose.msra.mxu0 0.0
      %2817 = vmatprep.subr.mxu0 0.0
      %2818 = vmatpush1.xpose.msra.mxu0 0.0
      %2819 = vmatprep.subr.mxu0 0.0
      %2820 = vmatpush1.xpose.msra.mxu0 0.0
      %2821 = vmatprep.subr.mxu0 0.0
      %2822 = vmatpush1.xpose.msra.mxu0 0.0
      %2823 = vmatprep.subr.mxu0 0.0
      %2824 = vmatpush1.xpose.msra.mxu0 0.0
      %2825 = vmatprep.subr.mxu0 0.0
      %2826 = vmatpush1.xpose.msra.mxu0 0.0
      %2827 = vmatprep.subr.mxu0 0.0
      %2828 = vmatpush1.xpose.msra.mxu0 0.0
      %2829 = vmatprep.subr.mxu0 0.0
      %2830 = vmatpush1.xpose.msra.mxu0 0.0
      %2831 = vmatprep.subr.mxu0 0.0
      %2832 = vmatpush1.xpose.msra.mxu0 0.0
      %2833 = vmatprep.subr.mxu0 0.0
      %2834 = vmatpush1.xpose.msra.mxu0 0.0
      %2835 = vmatprep.subr.mxu0 0.0
      %2836 = vmatpush1.xpose.msra.mxu0 0.0
      %2837 = vmatprep.subr.mxu0 0.0
      %2838 = vmatpush1.xpose.msra.mxu0 0.0
      %2839 = vmatprep.subr.mxu0 0.0
      %2840 = vmatpush1.xpose.msra.mxu0 0.0
      %2841 = vmatprep.subr.mxu0 0.0
      %2842 = vmatpush1.xpose.msra.mxu0 0.0
      %2843 = vmatprep.subr.mxu0 0.0
      %2844 = vmatpush1.xpose.msra.mxu0 0.0
      %2845 = vmatprep.subr.mxu0 0.0
      %2846 = vmatpush1.xpose.msra.mxu0 0.0
      %2847 = vmatprep.subr.mxu0 0.0
      %2848 = vmatpush1.xpose.msra.mxu0 0.0
      %2849 = vmatprep.subr.mxu0 0.0
      %2850 = vmatpush1.xpose.msra.mxu0 0.0
      %2851 = vmatprep.subr.mxu0 0.0
      %2852 = vmatpush1.xpose.msra.mxu0 0.0
      %2853 = vmatprep.subr.mxu0 0.0
      %2854 = vmatpush1.xpose.msra.mxu0 0.0
      %2855 = vmatprep.subr.mxu0 0.0
      %2856 = vmatpush1.xpose.msra.mxu0 0.0
      %2857 = vmatprep.subr.mxu0 0.0
      %2858 = vmatpush1.xpose.msra.mxu0 0.0
      %2859 = vmatprep.subr.mxu0 0.0
      %2860 = vmatpush1.xpose.msra.mxu0 0.0
      %2861 = vmatprep.mubr.f32.mxu0 0.0
      %2862 = vmatmul.mubr.f32.gmra.mrb[0].mxu0 %v2784
      %v2863 = vpop.f32.mrb[0].mxu0
      %v2864 = vadd.f32 0.0, %v2863
      %v2865 = vpop.f32.mrb[0].mxu0
      %2866 = vdwg.mxu0
      %v2867 = vmax.f32 %v2786, 1.0
      %v2868 = vrcp.pop %v2867
      %v2869 = vmul.f32 %v2864, %v2868
      %2870 = vxpose.xlu0.b32.start [1/16] %v2869, 128
      %2871 = vxpose.xlu0.b32.cont [2/16] 0.0, 128
      %2872 = vxpose.xlu0.b32.cont [3/16] 0.0, 128
      %2873 = vxpose.xlu0.b32.cont [4/16] 0.0, 128
      %2874 = vxpose.xlu0.b32.cont [5/16] 0.0, 128
      %2875 = vxpose.xlu0.b32.cont [6/16] 0.0, 128
      %2876 = vxpose.xlu0.b32.cont [7/16] 0.0, 128
      %2877 = vxpose.xlu0.b32.cont [8/16] 0.0, 128
      %2878 = vxpose.xlu0.b32.cont [9/16] 0.0, 128
      %2879 = vxpose.xlu0.b32.cont [10/16] 0.0, 128
      %2880 = vxpose.xlu0.b32.cont [11/16] 0.0, 128
      %2881 = vxpose.xlu0.b32.cont [12/16] 0.0, 128
      %2882 = vxpose.xlu0.b32.cont [13/16] 0.0, 128
      %2883 = vxpose.xlu0.b32.cont [14/16] 0.0, 128
      %2884 = vxpose.xlu0.b32.cont [15/16] 0.0, 128
      %2885 = vxpose.xlu0.b32.end [16/16] 0.0, 128
      %v2886 = vpop.trf.xlu0
      %v2887 = vpop.trf.xlu0
      %v2888 = vpop.trf.xlu0
      %v2889 = vpop.trf.xlu0
      %v2890 = vpop.trf.xlu0
      %v2891 = vpop.trf.xlu0
      %v2892 = vpop.trf.xlu0
      %v2893 = vpop.trf.xlu0
      %v2894 = vpop.trf.xlu0
      %v2895 = vpop.trf.xlu0
      %v2896 = vpop.trf.xlu0
      %v2897 = vpop.trf.xlu0
      %v2898 = vpop.trf.xlu0
      %v2899 = vpop.trf.xlu0
      %v2900 = vpop.trf.xlu0
      %v2901 = vpop.trf.xlu0
      %v2903 = vsel %vm182, %v2886, 0
      %2905 = vmatprep.subr.mxu0 0.0
      %2906 = vmatpush1.msra.mxu0 %v2784
      %2907 = vmatprep.subr.mxu0 0.0
      %2908 = vmatpush1.msra.mxu0 0.0
      %2909 = vmatprep.subr.mxu0 0.0
      %2910 = vmatpush1.msra.mxu0 0.0
      %2911 = vmatprep.subr.mxu0 0.0
      %2912 = vmatpush1.msra.mxu0 0.0
      %2913 = vmatprep.subr.mxu0 0.0
      %2914 = vmatpush1.msra.mxu0 0.0
      %2915 = vmatprep.subr.mxu0 0.0
      %2916 = vmatpush1.msra.mxu0 0.0
      %2917 = vmatprep.subr.mxu0 0.0
      %2918 = vmatpush1.msra.mxu0 0.0
      %2919 = vmatprep.subr.mxu0 0.0
      %2920 = vmatpush1.msra.mxu0 0.0
      %2921 = vmatprep.subr.mxu0 0.0
      %2922 = vmatpush1.msra.mxu0 0.0
      %2923 = vmatprep.subr.mxu0 0.0
      %2924 = vmatpush1.msra.mxu0 0.0
      %2925 = vmatprep.subr.mxu0 0.0
      %2926 = vmatpush1.msra.mxu0 0.0
      %2927 = vmatprep.subr.mxu0 0.0
      %2928 = vmatpush1.msra.mxu0 0.0
      %2929 = vmatprep.subr.mxu0 0.0
      %2930 = vmatpush1.msra.mxu0 0.0
      %2931 = vmatprep.subr.mxu0 0.0
      %2932 = vmatpush1.msra.mxu0 0.0
      %2933 = vmatprep.subr.mxu0 0.0
      %2934 = vmatpush1.msra.mxu0 0.0
      %2935 = vmatprep.subr.mxu0 0.0
      %2936 = vmatpush1.msra.mxu0 0.0
      %2937 = vmatprep.subr.mxu0 0.0
      %2938 = vmatpush1.msra.mxu0 0.0
      %2939 = vmatprep.subr.mxu0 0.0
      %2940 = vmatpush1.msra.mxu0 0.0
      %2941 = vmatprep.subr.mxu0 0.0
      %2942 = vmatpush1.msra.mxu0 0.0
      %2943 = vmatprep.subr.mxu0 0.0
      %2944 = vmatpush1.msra.mxu0 0.0
      %2945 = vmatprep.subr.mxu0 0.0
      %2946 = vmatpush1.msra.mxu0 0.0
      %2947 = vmatprep.subr.mxu0 0.0
      %2948 = vmatpush1.msra.mxu0 0.0
      %2949 = vmatprep.subr.mxu0 0.0
      %2950 = vmatpush1.msra.mxu0 0.0
      %2951 = vmatprep.subr.mxu0 0.0
      %2952 = vmatpush1.msra.mxu0 0.0
      %2953 = vmatprep.subr.mxu0 0.0
      %2954 = vmatpush1.msra.mxu0 0.0
      %2955 = vmatprep.subr.mxu0 0.0
      %2956 = vmatpush1.msra.mxu0 0.0
      %2957 = vmatprep.subr.mxu0 0.0
      %2958 = vmatpush1.msra.mxu0 0.0
      %2959 = vmatprep.subr.mxu0 0.0
      %2960 = vmatpush1.msra.mxu0 0.0
      %2961 = vmatprep.subr.mxu0 0.0
      %2962 = vmatpush1.msra.mxu0 0.0
      %2963 = vmatprep.subr.mxu0 0.0
      %2964 = vmatpush1.msra.mxu0 0.0
      %2965 = vmatprep.subr.mxu0 0.0
      %2966 = vmatpush1.msra.mxu0 0.0
      %2967 = vmatprep.subr.mxu0 0.0
      %2968 = vmatpush1.msra.mxu0 0.0
      %2969 = vmatprep.mubr.f32.mxu0 0.0
      %2970 = vmatmul.mubr.f32.gmra.mrb[0].mxu0 %v2903
      %v2971 = vpop.f32.mrb[0].mxu0
      %v2972 = vadd.f32 0.0, %v2971
      %v2973 = vpop.f32.mrb[0].mxu0
      %2974 = vdwg.mxu0
      %v2975 = vsub.f32 %v2775, %v2972
      %v2976 = vadd.f32 %v2975, 1e-08
      %v2977 = vmul.f32 %v2976, %v2976
      %v2978 = vrot.slane %v2977, 4
      %v2979 = vadd.f32 %v2977, %v2978
      %v2980 = vrot.slane %v2979, 2
      %v2981 = vadd.f32 %v2979, %v2980
      %v2982 = vrot.slane %v2981, 1
      %v2983 = vadd.f32 %v2981, %v2982
      %v2984 = vrsqrt.pop %v2983
      %v2985 = vmul.f32 %v2983, %v2984
      %vm2986 = vcmp.eq.f32.partialorder %v2983, inf
      %v2987 = vsel %vm2986, %v2983, %v2985
      %vm2988 = vcmp.eq.f32.partialorder %v2983, 0.0
      %v2989 = vand.u32 %v2983, 2147483648
      %v2990 = vsel %vm2988, %v2989, %v2987
      %v2991 = vsub.f32 %v2990, 0.5
      %v2992 = vmax.f32 %v2991, 0.0
      %v2993 = vmul.f32 %v2992, %v2992
      %v2994 = vmul.f32 %v2784, %v2993
      %2995 = vadd.xlane.f32.xlu0 %v2994
      %v2996 = vpop.xlane.xlu0 %2995
      %v2997 = vmul.f32 %v2996, %v2868
      %v2998 = vmul.f32 %v2997, %v2789
      %v2999 = vrot.slane %v2998, 4
      %v3000 = vadd.f32 %v2998, %v2999
      %v3001 = vrot.slane %v3000, 2
      %v3002 = vadd.f32 %v3000, %v3001
      %v3003 = vrot.slane %v3002, 1
      %v3004 = vadd.f32 %v3002, %v3003
      %v3005 = vrcp.pop %v2796
      %v3006 = vmul.f32 %v3004, %v3005
      %v3007 = vmul.f32 %v54, %v2789
      %v3008 = vsel %vm182, %v3007, 0.0
      %v3009 = vrot.slane %v3008, 4
      %v3010 = vadd.f32 %v3008, %v3009
      %v3011 = vrot.slane %v3010, 2
      %v3012 = vadd.f32 %v3010, %v3011
      %v3013 = vrot.slane %v3012, 1
      %v3014 = vadd.f32 %v3012, %v3013
      %v3015 = vmul.f32 %v2789, %v3014
      %v3017 = vcombine.high %v2869, %v2869
      %v3019 = vunpack.c.l.s4 1966171168
      %v3020 = vunpack.c.0.s8 %v3019
      %v3021 = vlaneseq
      %v3022 = vshrl.u32 %v3021, 7
      %v3023 = vsub.s32 %v3020, %v3022
      %v3024 = vrot.slane %v2869, %v3023
      %v3026 = vunpack.c.l.s4 1966171168
      %v3027 = vunpack.c.0.s8 %v3026
      %v3028 = vlaneseq
      %v3029 = vshrl.u32 %v3028, 7
      %v3030 = vsub.s32 %v3027, %v3029
      %v3031 = vrot.slane %v3017, %v3030
      %v3032 = vcombine.high %v3024, %v3024
      %v3033 = vcombine.high %v3031, %v3031
      %v3035 = vunpack.c.l.s4 1966171168
      %v3036 = vunpack.c.0.s8 %v3035
      %v3037 = vlaneseq
      %v3038 = vshrl.u32 %v3037, 7
      %v3039 = vsub.s32 %v3036, %v3038
      %v3040 = vrot.slane %v3024, %v3039
      %v3042 = vunpack.c.l.s4 1966171168
      %v3043 = vunpack.c.0.s8 %v3042
      %v3044 = vlaneseq
      %v3045 = vshrl.u32 %v3044, 7
      %v3046 = vsub.s32 %v3043, %v3045
      %v3047 = vrot.slane %v3031, %v3046
      %v3049 = vunpack.c.l.s4 1966171168
      %v3050 = vunpack.c.0.s8 %v3049
      %v3051 = vlaneseq
      %v3052 = vshrl.u32 %v3051, 7
      %v3053 = vsub.s32 %v3050, %v3052
      %v3054 = vrot.slane %v3032, %v3053
      %v3056 = vunpack.c.l.s4 1966171168
      %v3057 = vunpack.c.0.s8 %v3056
      %v3058 = vlaneseq
      %v3059 = vshrl.u32 %v3058, 7
      %v3060 = vsub.s32 %v3057, %v3059
      %v3061 = vrot.slane %v3033, %v3060
      %v3062 = vcombine.high %v3040, %v3040
      %v3063 = vcombine.high %v3047, %v3047
      %v3064 = vcombine.high %v3054, %v3054
      %v3065 = vcombine.high %v3061, %v3061
      %v3066 = vlaneseq
      %v3067 = vshrl.u32 %v3066, 7
      %v3068 = vsub.s32 0, %v3067
      %v3069 = vrot.slane %v3040, %v3068
      %v3070 = vlaneseq
      %v3071 = vshrl.u32 %v3070, 7
      %v3072 = vsub.s32 0, %v3071
      %v3073 = vrot.slane %v3054, %v3072
      %v3074 = vlaneseq
      %v3075 = vshrl.u32 %v3074, 7
      %v3076 = vsub.s32 0, %v3075
      %v3077 = vrot.slane %v3062, %v3076
      %v3078 = vlaneseq
      %v3079 = vshrl.u32 %v3078, 7
      %v3080 = vsub.s32 0, %v3079
      %v3081 = vrot.slane %v3064, %v3080
      %v3082 = vlaneseq
      %v3083 = vshrl.u32 %v3082, 7
      %v3084 = vsub.s32 0, %v3083
      %v3085 = vrot.slane %v3047, %v3084
      %v3086 = vlaneseq
      %v3087 = vshrl.u32 %v3086, 7
      %v3088 = vsub.s32 0, %v3087
      %v3089 = vrot.slane %v3061, %v3088
      %v3090 = vlaneseq
      %v3091 = vshrl.u32 %v3090, 7
      %v3092 = vsub.s32 0, %v3091
      %v3093 = vrot.slane %v3063, %v3092
      %v3094 = vlaneseq
      %v3095 = vshrl.u32 %v3094, 7
      %v3096 = vsub.s32 0, %v3095
      %v3097 = vrot.slane %v3065, %v3096
      %v3106 = vsub.f32 %v3069, %v2869
      %v3107 = vsub.f32 %v3073, %v2869
      %v3108 = vsub.f32 %v3077, %v2869
      %v3109 = vsub.f32 %v3081, %v2869
      %v3110 = vsub.f32 %v3085, %v2869
      %v3111 = vsub.f32 %v3089, %v2869
      %v3112 = vsub.f32 %v3093, %v2869
      %v3113 = vsub.f32 %v3097, %v2869
      %v3114 = vadd.f32 %v3106, 1e-08
      %v3115 = vadd.f32 %v3107, 1e-08
      %v3116 = vadd.f32 %v3108, 1e-08
      %v3117 = vadd.f32 %v3109, 1e-08
      %v3118 = vadd.f32 %v3110, 1e-08
      %v3119 = vadd.f32 %v3111, 1e-08
      %v3120 = vadd.f32 %v3112, 1e-08
      %v3121 = vadd.f32 %v3113, 1e-08
      %v3122 = vmul.f32 %v3114, %v3114
      %v3123 = vmul.f32 %v3115, %v3115
      %v3124 = vmul.f32 %v3116, %v3116
      %v3125 = vmul.f32 %v3117, %v3117
      %v3126 = vmul.f32 %v3118, %v3118
      %v3127 = vmul.f32 %v3119, %v3119
      %v3128 = vmul.f32 %v3120, %v3120
      %v3129 = vmul.f32 %v3121, %v3121
      %v3130 = vsel %vm182, %v3122, 0.0
      %3131 = vadd.xlane.f32.xlu0 %v3130
      %v3132 = vpop.xlane.xlu0 %3131
      %v3133 = vsel %vm182, %v3123, 0.0
      %3134 = vadd.xlane.f32.xlu0 %v3133
      %v3135 = vpop.xlane.xlu0 %3134
      %v3136 = vsel %vm182, %v3124, 0.0
      %3137 = vadd.xlane.f32.xlu0 %v3136
      %v3138 = vpop.xlane.xlu0 %3137
      %v3139 = vsel %vm182, %v3125, 0.0
      %3140 = vadd.xlane.f32.xlu0 %v3139
      %v3141 = vpop.xlane.xlu0 %3140
      %v3142 = vsel %vm182, %v3126, 0.0
      %3143 = vadd.xlane.f32.xlu0 %v3142
      %v3144 = vpop.xlane.xlu0 %3143
      %v3145 = vsel %vm182, %v3127, 0.0
      %3146 = vadd.xlane.f32.xlu0 %v3145
      %v3147 = vpop.xlane.xlu0 %3146
      %v3148 = vsel %vm182, %v3128, 0.0
      %3149 = vadd.xlane.f32.xlu0 %v3148
      %v3150 = vpop.xlane.xlu0 %3149
      %v3151 = vsel %vm182, %v3129, 0.0
      %3152 = vadd.xlane.f32.xlu0 %v3151
      %v3153 = vpop.xlane.xlu0 %3152
      %v3154 = vrsqrt.pop %v3132
      %v3155 = vmul.f32 %v3132, %v3154
      %vm3156 = vcmp.eq.f32.partialorder %v3132, inf
      %v3157 = vsel %vm3156, %v3132, %v3155
      %vm3158 = vcmp.eq.f32.partialorder %v3132, 0.0
      %v3159 = vand.u32 %v3132, 2147483648
      %v3160 = vsel %vm3158, %v3159, %v3157
      %v3161 = vrsqrt.pop %v3135
      %v3162 = vmul.f32 %v3135, %v3161
      %vm3163 = vcmp.eq.f32.partialorder %v3135, inf
      %v3164 = vsel %vm3163, %v3135, %v3162
      %vm3165 = vcmp.eq.f32.partialorder %v3135, 0.0
      %v3166 = vand.u32 %v3135, 2147483648
      %v3167 = vsel %vm3165, %v3166, %v3164
      %v3168 = vrsqrt.pop %v3138
      %v3169 = vmul.f32 %v3138, %v3168
      %vm3170 = vcmp.eq.f32.partialorder %v3138, inf
      %v3171 = vsel %vm3170, %v3138, %v3169
      %vm3172 = vcmp.eq.f32.partialorder %v3138, 0.0
      %v3173 = vand.u32 %v3138, 2147483648
      %v3174 = vsel %vm3172, %v3173, %v3171
      %v3175 = vrsqrt.pop %v3141
      %v3176 = vmul.f32 %v3141, %v3175
      %vm3177 = vcmp.eq.f32.partialorder %v3141, inf
      %v3178 = vsel %vm3177, %v3141, %v3176
      %vm3179 = vcmp.eq.f32.partialorder %v3141, 0.0
      %v3180 = vand.u32 %v3141, 2147483648
      %v3181 = vsel %vm3179, %v3180, %v3178
      %v3182 = vrsqrt.pop %v3144
      %v3183 = vmul.f32 %v3144, %v3182
      %vm3184 = vcmp.eq.f32.partialorder %v3144, inf
      %v3185 = vsel %vm3184, %v3144, %v3183
      %vm3186 = vcmp.eq.f32.partialorder %v3144, 0.0
      %v3187 = vand.u32 %v3144, 2147483648
      %v3188 = vsel %vm3186, %v3187, %v3185
      %v3189 = vrsqrt.pop %v3147
      %v3190 = vmul.f32 %v3147, %v3189
      %vm3191 = vcmp.eq.f32.partialorder %v3147, inf
      %v3192 = vsel %vm3191, %v3147, %v3190
      %vm3193 = vcmp.eq.f32.partialorder %v3147, 0.0
      %v3194 = vand.u32 %v3147, 2147483648
      %v3195 = vsel %vm3193, %v3194, %v3192
      %v3196 = vrsqrt.pop %v3150
      %v3197 = vmul.f32 %v3150, %v3196
      %vm3198 = vcmp.eq.f32.partialorder %v3150, inf
      %v3199 = vsel %vm3198, %v3150, %v3197
      %vm3200 = vcmp.eq.f32.partialorder %v3150, 0.0
      %v3201 = vand.u32 %v3150, 2147483648
      %v3202 = vsel %vm3200, %v3201, %v3199
      %v3203 = vrsqrt.pop %v3153
      %v3204 = vmul.f32 %v3153, %v3203
      %vm3205 = vcmp.eq.f32.partialorder %v3153, inf
      %v3206 = vsel %vm3205, %v3153, %v3204
      %vm3207 = vcmp.eq.f32.partialorder %v3153, 0.0
      %v3208 = vand.u32 %v3153, 2147483648
      %v3209 = vsel %vm3207, %v3208, %v3206
      %v3210 = vsub.f32 3.0, %v3160
      %v3211 = vsub.f32 3.0, %v3167
      %v3212 = vsub.f32 3.0, %v3174
      %v3213 = vsub.f32 3.0, %v3181
      %v3214 = vsub.f32 3.0, %v3188
      %v3215 = vsub.f32 3.0, %v3195
      %v3216 = vsub.f32 3.0, %v3202
      %v3217 = vsub.f32 3.0, %v3209
      %v3218 = vmax.f32 %v3210, 0.0
      %v3219 = vmax.f32 %v3211, 0.0
      %v3220 = vmax.f32 %v3212, 0.0
      %v3221 = vmax.f32 %v3213, 0.0
      %v3222 = vmax.f32 %v3214, 0.0
      %v3223 = vmax.f32 %v3215, 0.0
      %v3224 = vmax.f32 %v3216, 0.0
      %v3225 = vmax.f32 %v3217, 0.0
      %v3226 = vmul.f32 %v3218, %v3218
      %v3227 = vmul.f32 %v3219, %v3219
      %v3228 = vmul.f32 %v3220, %v3220
      %v3229 = vmul.f32 %v3221, %v3221
      %v3230 = vmul.f32 %v3222, %v3222
      %v3231 = vmul.f32 %v3223, %v3223
      %v3232 = vmul.f32 %v3224, %v3224
      %v3233 = vmul.f32 %v3225, %v3225
      %v3234 = vmul.f32 %v3226, %v522
      %v3235 = vmul.f32 %v3227, %v529
      %v3236 = vmul.f32 %v3228, %v536
      %v3237 = vmul.f32 %v3229, %v543
      %v3238 = vmul.f32 %v3230, %v550
      %v3239 = vmul.f32 %v3231, %v557
      %v3240 = vmul.f32 %v3232, %v564
      %v3241 = vmul.f32 %v3233, %v571
      %v3243 = vlaneseq
      %v3244 = vshrl.u32 %v3243, 7
      %v3245 = vsub.s32 0, %v3244
      %v3246 = vrot.slane %v3015, %v3245
      %3248 = vbcast.lane.b32.xlu0 %v3246, 256
      %v3249 = vpop.permute.xlu0 %3248
      %v3250 = vlaneseq
      %v3251 = vshrl.u32 %v3250, 7
      %v3252 = vsub.s32 1, %v3251
      %v3253 = vrot.slane %v3015, %v3252
      %3255 = vbcast.lane.b32.xlu0 %v3253, 256
      %v3256 = vpop.permute.xlu0 %3255
      %v3257 = vlaneseq
      %v3258 = vshrl.u32 %v3257, 7
      %v3259 = vsub.s32 2, %v3258
      %v3260 = vrot.slane %v3015, %v3259
      %3262 = vbcast.lane.b32.xlu0 %v3260, 256
      %v3263 = vpop.permute.xlu0 %3262
      %v3264 = vlaneseq
      %v3265 = vshrl.u32 %v3264, 7
      %v3266 = vsub.s32 3, %v3265
      %v3267 = vrot.slane %v3015, %v3266
      %3269 = vbcast.lane.b32.xlu0 %v3267, 256
      %v3270 = vpop.permute.xlu0 %3269
      %v3271 = vlaneseq
      %v3272 = vshrl.u32 %v3271, 7
      %v3273 = vsub.s32 4, %v3272
      %v3274 = vrot.slane %v3015, %v3273
      %3276 = vbcast.lane.b32.xlu0 %v3274, 256
      %v3277 = vpop.permute.xlu0 %3276
      %v3278 = vlaneseq
      %v3279 = vshrl.u32 %v3278, 7
      %v3280 = vsub.s32 5, %v3279
      %v3281 = vrot.slane %v3015, %v3280
      %3283 = vbcast.lane.b32.xlu0 %v3281, 256
      %v3284 = vpop.permute.xlu0 %3283
      %v3285 = vlaneseq
      %v3286 = vshrl.u32 %v3285, 7
      %v3287 = vsub.s32 6, %v3286
      %v3288 = vrot.slane %v3015, %v3287
      %3290 = vbcast.lane.b32.xlu0 %v3288, 256
      %v3291 = vpop.permute.xlu0 %3290
      %v3292 = vlaneseq
      %v3293 = vshrl.u32 %v3292, 7
      %v3294 = vsub.s32 7, %v3293
      %v3295 = vrot.slane %v3015, %v3294
      %3297 = vbcast.lane.b32.xlu0 %v3295, 256
      %v3298 = vpop.permute.xlu0 %3297
      %v3307 = vmul.f32 %v3234, %v3249
      %v3308 = vmul.f32 %v3235, %v3256
      %v3309 = vmul.f32 %v3236, %v3263
      %v3310 = vmul.f32 %v3237, %v3270
      %v3311 = vmul.f32 %v3238, %v3277
      %v3312 = vmul.f32 %v3239, %v3284
      %v3313 = vmul.f32 %v3240, %v3291
      %v3314 = vmul.f32 %v3241, %v3298
      %3323 = vset.pattern.permute.xlu0 0
      %3324 = vperm.xlu0 %3323, %v3307
      %v3325 = vpop.permute.xlu0 %3324
      %3326 = vset.pattern.permute.xlu0 0
      %3327 = vperm.xlu0 %3326, %v3308
      %v3328 = vpop.permute.xlu0 %3327
      %3329 = vset.pattern.permute.xlu0 0
      %3330 = vperm.xlu0 %3329, %v3309
      %v3331 = vpop.permute.xlu0 %3330
      %3332 = vset.pattern.permute.xlu0 0
      %3333 = vperm.xlu0 %3332, %v3310
      %v3334 = vpop.permute.xlu0 %3333
      %3335 = vset.pattern.permute.xlu0 0
      %3336 = vperm.xlu0 %3335, %v3311
      %v3337 = vpop.permute.xlu0 %3336
      %3338 = vset.pattern.permute.xlu0 0
      %3339 = vperm.xlu0 %3338, %v3312
      %v3340 = vpop.permute.xlu0 %3339
      %3341 = vset.pattern.permute.xlu0 0
      %3342 = vperm.xlu0 %3341, %v3313
      %v3343 = vpop.permute.xlu0 %3342
      %3344 = vset.pattern.permute.xlu0 0
      %3345 = vperm.xlu0 %3344, %v3314
      %v3346 = vpop.permute.xlu0 %3345
      %v3347 = vlaneseq
      %v3348 = vshrl.u32 %v3347, 7
      %v3349 = vsub.s32 %v49, %v3348
      %v3350 = vrot.slane %v3325, %v3349
      %v3351 = vlaneseq
      %v3352 = vshrl.u32 %v3351, 7
      %v3353 = vsub.s32 %v49, %v3352
      %v3354 = vrot.slane %v3328, %v3353
      %v3355 = vlaneseq
      %v3356 = vshrl.u32 %v3355, 7
      %v3357 = vsub.s32 %v49, %v3356
      %v3358 = vrot.slane %v3331, %v3357
      %v3359 = vlaneseq
      %v3360 = vshrl.u32 %v3359, 7
      %v3361 = vsub.s32 %v49, %v3360
      %v3362 = vrot.slane %v3334, %v3361
      %v3363 = vlaneseq
      %v3364 = vshrl.u32 %v3363, 7
      %v3365 = vsub.s32 %v49, %v3364
      %v3366 = vrot.slane %v3337, %v3365
      %v3367 = vlaneseq
      %v3368 = vshrl.u32 %v3367, 7
      %v3369 = vsub.s32 %v49, %v3368
      %v3370 = vrot.slane %v3340, %v3369
      %v3371 = vlaneseq
      %v3372 = vshrl.u32 %v3371, 7
      %v3373 = vsub.s32 %v49, %v3372
      %v3374 = vrot.slane %v3343, %v3373
      %v3375 = vlaneseq
      %v3376 = vshrl.u32 %v3375, 7
      %v3377 = vsub.s32 %v49, %v3376
      %v3378 = vrot.slane %v3346, %v3377
      %v3379 = vsel %vm725, %v3354, %v3350
      %v3380 = vsel %vm727, %v3358, %v3379
      %v3381 = vsel %vm729, %v3362, %v3380
      %v3382 = vsel %vm731, %v3366, %v3381
      %v3383 = vsel %vm733, %v3370, %v3382
      %v3384 = vsel %vm735, %v3374, %v3383
      %v3385 = vsel %vm737, %v3378, %v3384
      %v3387 = vsel %vm182, %v3385, 0.0
      %3388 = vadd.xlane.f32.xlu0 %v3387
      %v3389 = vpop.xlane.xlu0 %3388
      %v3390 = vrot.slane %v3389, 4
      %v3391 = vadd.f32 %v3389, %v3390
      %v3392 = vrot.slane %v3391, 2
      %v3393 = vadd.f32 %v3391, %v3392
      %v3394 = vrot.slane %v3393, 1
      %v3395 = vadd.f32 %v3393, %v3394
      %v3396 = vsub.f32 %v2795, 1.0
      %v3397 = vmul.f32 %v3396, %v2795
      %v3398 = vmax.f32 %v3397, 1.0
      %vm3399 = vcmp.ge.f32.partialorder %v2795, 2.0
      %v3400 = vrcp.pop %v3398
      %v3401 = vmul.f32 %v3395, %v3400
      %v3402 = vsel %vm3399, %v3401, 0.0
      %v3403 = vadd.f32 %v2869, 1e-08
      %v3404 = vmul.f32 %v3403, %v3403
      %v3405 = vsel %vm182, %v3404, 0.0
      %3406 = vadd.xlane.f32.xlu0 %v3405
      %v3407 = vpop.xlane.xlu0 %3406
      %v3408 = vrsqrt.pop %v3407
      %v3409 = vmul.f32 %v3407, %v3408
      %vm3410 = vcmp.eq.f32.partialorder %v3407, inf
      %v3411 = vsel %vm3410, %v3407, %v3409
      %vm3412 = vcmp.eq.f32.partialorder %v3407, 0.0
      %v3413 = vand.u32 %v3407, 2147483648
      %v3414 = vsel %vm3412, %v3413, %v3411
      %v3415 = vmul.f32 %v3414, %v2789
      %v3416 = vrot.slane %v3415, 4
      %v3417 = vadd.f32 %v3415, %v3416
      %v3418 = vrot.slane %v3417, 2
      %v3419 = vadd.f32 %v3417, %v3418
      %v3420 = vrot.slane %v3419, 1
      %v3421 = vadd.f32 %v3419, %v3420
      %v3422 = vmul.f32 %v3421, %v3005
      %v3423 = vmul.f32 %v3422, 0.001
      %v3424 = vadd.f32 %v3006, %v3402
      %v3425 = vadd.f32 %v3424, %v3423
      %v3426 = vsel %vm779, %v3425, 0.0
      %v3427 = vsel %vm781, %v3006, 0.0
      %v3428 = vadd.f32 %v3426, %v3427
      %v3429 = vsel %vm784, %v3402, 0.0
      %v3430 = vadd.f32 %v3428, %v3429
      %v3431 = vsel %vm787, %v3423, 0.0
      %v3432 = vadd.f32 %v3430, %v3431
      %s3433 = scalar_lea.vmem [#allocation9], 4
      %3434 = vst [vmem:[%s3433] sm:$0x1] %v3432
      %s3435 = scalar_lea.vmem [#allocation4], 40
      %v3436 = vld [vmem:[%s3435] sm:$0xff]
      %s3437 = scalar_lea.vmem [#allocation7], 5
      %v3438 = vld [vmem:[%s3437] sm:$0x1]
      %v3439 = vlaneseq
      %v3440 = vshrl.u32 %v3439, 7
      %v3441 = vsub.s32 0, %v3440
      %v3442 = vrot.slane %v3438, %v3441
      %vm3443 = vcmp.eq.s32.totalorder %v3442, %v51
      %v3444 = vsel %vm3443, 1, 0
      %v3445 = vcvt.s32.f32 %v3444
      %3446 = vadd.xlane.f32.xlu0 %v3445
      %v3447 = vpop.xlane.xlu0 %3446
      %vm3448 = vcmp.gt.f32.partialorder %v3447, 0.5
      %v3449 = vsel %vm3448, 1, 0
      %v3450 = vcvt.s32.f32 %v3449
      %v3451 = vrot.slane %v3450, 4
      %v3452 = vadd.f32 %v3450, %v3451
      %v3453 = vrot.slane %v3452, 2
      %v3454 = vadd.f32 %v3452, %v3453
      %v3455 = vrot.slane %v3454, 1
      %v3456 = vadd.f32 %v3454, %v3455
      %v3457 = vmax.f32 %v3456, 1.0
      %3458 = vmatprep.subr.mxu0 0.0
      %3459 = vmatpush1.xpose.msra.mxu0 %v3436
      %3460 = vmatprep.subr.mxu0 0.0
      %3461 = vmatpush1.xpose.msra.mxu0 0.0
      %3462 = vmatprep.subr.mxu0 0.0
      %3463 = vmatpush1.xpose.msra.mxu0 0.0
      %3464 = vmatprep.subr.mxu0 0.0
      %3465 = vmatpush1.xpose.msra.mxu0 0.0
      %3466 = vmatprep.subr.mxu0 0.0
      %3467 = vmatpush1.xpose.msra.mxu0 0.0
      %3468 = vmatprep.subr.mxu0 0.0
      %3469 = vmatpush1.xpose.msra.mxu0 0.0
      %3470 = vmatprep.subr.mxu0 0.0
      %3471 = vmatpush1.xpose.msra.mxu0 0.0
      %3472 = vmatprep.subr.mxu0 0.0
      %3473 = vmatpush1.xpose.msra.mxu0 0.0
      %3474 = vmatprep.subr.mxu0 0.0
      %3475 = vmatpush1.xpose.msra.mxu0 0.0
      %3476 = vmatprep.subr.mxu0 0.0
      %3477 = vmatpush1.xpose.msra.mxu0 0.0
      %3478 = vmatprep.subr.mxu0 0.0
      %3479 = vmatpush1.xpose.msra.mxu0 0.0
      %3480 = vmatprep.subr.mxu0 0.0
      %3481 = vmatpush1.xpose.msra.mxu0 0.0
      %3482 = vmatprep.subr.mxu0 0.0
      %3483 = vmatpush1.xpose.msra.mxu0 0.0
      %3484 = vmatprep.subr.mxu0 0.0
      %3485 = vmatpush1.xpose.msra.mxu0 0.0
      %3486 = vmatprep.subr.mxu0 0.0
      %3487 = vmatpush1.xpose.msra.mxu0 0.0
      %3488 = vmatprep.subr.mxu0 0.0
      %3489 = vmatpush1.xpose.msra.mxu0 0.0
      %3490 = vmatprep.subr.mxu0 0.0
      %3491 = vmatpush1.xpose.msra.mxu0 0.0
      %3492 = vmatprep.subr.mxu0 0.0
      %3493 = vmatpush1.xpose.msra.mxu0 0.0
      %3494 = vmatprep.subr.mxu0 0.0
      %3495 = vmatpush1.xpose.msra.mxu0 0.0
      %3496 = vmatprep.subr.mxu0 0.0
      %3497 = vmatpush1.xpose.msra.mxu0 0.0
      %3498 = vmatprep.subr.mxu0 0.0
      %3499 = vmatpush1.xpose.msra.mxu0 0.0
      %3500 = vmatprep.subr.mxu0 0.0
      %3501 = vmatpush1.xpose.msra.mxu0 0.0
      %3502 = vmatprep.subr.mxu0 0.0
      %3503 = vmatpush1.xpose.msra.mxu0 0.0
      %3504 = vmatprep.subr.mxu0 0.0
      %3505 = vmatpush1.xpose.msra.mxu0 0.0
      %3506 = vmatprep.subr.mxu0 0.0
      %3507 = vmatpush1.xpose.msra.mxu0 0.0
      %3508 = vmatprep.subr.mxu0 0.0
      %3509 = vmatpush1.xpose.msra.mxu0 0.0
      %3510 = vmatprep.subr.mxu0 0.0
      %3511 = vmatpush1.xpose.msra.mxu0 0.0
      %3512 = vmatprep.subr.mxu0 0.0
      %3513 = vmatpush1.xpose.msra.mxu0 0.0
      %3514 = vmatprep.subr.mxu0 0.0
      %3515 = vmatpush1.xpose.msra.mxu0 0.0
      %3516 = vmatprep.subr.mxu0 0.0
      %3517 = vmatpush1.xpose.msra.mxu0 0.0
      %3518 = vmatprep.subr.mxu0 0.0
      %3519 = vmatpush1.xpose.msra.mxu0 0.0
      %3520 = vmatprep.subr.mxu0 0.0
      %3521 = vmatpush1.xpose.msra.mxu0 0.0
      %3522 = vmatprep.mubr.f32.mxu0 0.0
      %3523 = vmatmul.mubr.f32.gmra.mrb[0].mxu0 %v3445
      %v3524 = vpop.f32.mrb[0].mxu0
      %v3525 = vadd.f32 0.0, %v3524
      %v3526 = vpop.f32.mrb[0].mxu0
      %3527 = vdwg.mxu0
      %v3528 = vmax.f32 %v3447, 1.0
      %v3529 = vrcp.pop %v3528
      %v3530 = vmul.f32 %v3525, %v3529
      %3531 = vxpose.xlu0.b32.start [1/16] %v3530, 128
      %3532 = vxpose.xlu0.b32.cont [2/16] 0.0, 128
      %3533 = vxpose.xlu0.b32.cont [3/16] 0.0, 128
      %3534 = vxpose.xlu0.b32.cont [4/16] 0.0, 128
      %3535 = vxpose.xlu0.b32.cont [5/16] 0.0, 128
      %3536 = vxpose.xlu0.b32.cont [6/16] 0.0, 128
      %3537 = vxpose.xlu0.b32.cont [7/16] 0.0, 128
      %3538 = vxpose.xlu0.b32.cont [8/16] 0.0, 128
      %3539 = vxpose.xlu0.b32.cont [9/16] 0.0, 128
      %3540 = vxpose.xlu0.b32.cont [10/16] 0.0, 128
      %3541 = vxpose.xlu0.b32.cont [11/16] 0.0, 128
      %3542 = vxpose.xlu0.b32.cont [12/16] 0.0, 128
      %3543 = vxpose.xlu0.b32.cont [13/16] 0.0, 128
      %3544 = vxpose.xlu0.b32.cont [14/16] 0.0, 128
      %3545 = vxpose.xlu0.b32.cont [15/16] 0.0, 128
      %3546 = vxpose.xlu0.b32.end [16/16] 0.0, 128
      %v3547 = vpop.trf.xlu0
      %v3548 = vpop.trf.xlu0
      %v3549 = vpop.trf.xlu0
      %v3550 = vpop.trf.xlu0
      %v3551 = vpop.trf.xlu0
      %v3552 = vpop.trf.xlu0
      %v3553 = vpop.trf.xlu0
      %v3554 = vpop.trf.xlu0
      %v3555 = vpop.trf.xlu0
      %v3556 = vpop.trf.xlu0
      %v3557 = vpop.trf.xlu0
      %v3558 = vpop.trf.xlu0
      %v3559 = vpop.trf.xlu0
      %v3560 = vpop.trf.xlu0
      %v3561 = vpop.trf.xlu0
      %v3562 = vpop.trf.xlu0
      %v3564 = vsel %vm182, %v3547, 0
      %3566 = vmatprep.subr.mxu0 0.0
      %3567 = vmatpush1.msra.mxu0 %v3445
      %3568 = vmatprep.subr.mxu0 0.0
      %3569 = vmatpush1.msra.mxu0 0.0
      %3570 = vmatprep.subr.mxu0 0.0
      %3571 = vmatpush1.msra.mxu0 0.0
      %3572 = vmatprep.subr.mxu0 0.0
      %3573 = vmatpush1.msra.mxu0 0.0
      %3574 = vmatprep.subr.mxu0 0.0
      %3575 = vmatpush1.msra.mxu0 0.0
      %3576 = vmatprep.subr.mxu0 0.0
      %3577 = vmatpush1.msra.mxu0 0.0
      %3578 = vmatprep.subr.mxu0 0.0
      %3579 = vmatpush1.msra.mxu0 0.0
      %3580 = vmatprep.subr.mxu0 0.0
      %3581 = vmatpush1.msra.mxu0 0.0
      %3582 = vmatprep.subr.mxu0 0.0
      %3583 = vmatpush1.msra.mxu0 0.0
      %3584 = vmatprep.subr.mxu0 0.0
      %3585 = vmatpush1.msra.mxu0 0.0
      %3586 = vmatprep.subr.mxu0 0.0
      %3587 = vmatpush1.msra.mxu0 0.0
      %3588 = vmatprep.subr.mxu0 0.0
      %3589 = vmatpush1.msra.mxu0 0.0
      %3590 = vmatprep.subr.mxu0 0.0
      %3591 = vmatpush1.msra.mxu0 0.0
      %3592 = vmatprep.subr.mxu0 0.0
      %3593 = vmatpush1.msra.mxu0 0.0
      %3594 = vmatprep.subr.mxu0 0.0
      %3595 = vmatpush1.msra.mxu0 0.0
      %3596 = vmatprep.subr.mxu0 0.0
      %3597 = vmatpush1.msra.mxu0 0.0
      %3598 = vmatprep.subr.mxu0 0.0
      %3599 = vmatpush1.msra.mxu0 0.0
      %3600 = vmatprep.subr.mxu0 0.0
      %3601 = vmatpush1.msra.mxu0 0.0
      %3602 = vmatprep.subr.mxu0 0.0
      %3603 = vmatpush1.msra.mxu0 0.0
      %3604 = vmatprep.subr.mxu0 0.0
      %3605 = vmatpush1.msra.mxu0 0.0
      %3606 = vmatprep.subr.mxu0 0.0
      %3607 = vmatpush1.msra.mxu0 0.0
      %3608 = vmatprep.subr.mxu0 0.0
      %3609 = vmatpush1.msra.mxu0 0.0
      %3610 = vmatprep.subr.mxu0 0.0
      %3611 = vmatpush1.msra.mxu0 0.0
      %3612 = vmatprep.subr.mxu0 0.0
      %3613 = vmatpush1.msra.mxu0 0.0
      %3614 = vmatprep.subr.mxu0 0.0
      %3615 = vmatpush1.msra.mxu0 0.0
      %3616 = vmatprep.subr.mxu0 0.0
      %3617 = vmatpush1.msra.mxu0 0.0
      %3618 = vmatprep.subr.mxu0 0.0
      %3619 = vmatpush1.msra.mxu0 0.0
      %3620 = vmatprep.subr.mxu0 0.0
      %3621 = vmatpush1.msra.mxu0 0.0
      %3622 = vmatprep.subr.mxu0 0.0
      %3623 = vmatpush1.msra.mxu0 0.0
      %3624 = vmatprep.subr.mxu0 0.0
      %3625 = vmatpush1.msra.mxu0 0.0
      %3626 = vmatprep.subr.mxu0 0.0
      %3627 = vmatpush1.msra.mxu0 0.0
      %3628 = vmatprep.subr.mxu0 0.0
      %3629 = vmatpush1.msra.mxu0 0.0
      %3630 = vmatprep.mubr.f32.mxu0 0.0
      %3631 = vmatmul.mubr.f32.gmra.mrb[0].mxu0 %v3564
      %v3632 = vpop.f32.mrb[0].mxu0
      %v3633 = vadd.f32 0.0, %v3632
      %v3634 = vpop.f32.mrb[0].mxu0
      %3635 = vdwg.mxu0
      %v3636 = vsub.f32 %v3436, %v3633
      %v3637 = vadd.f32 %v3636, 1e-08
      %v3638 = vmul.f32 %v3637, %v3637
      %v3639 = vrot.slane %v3638, 4
      %v3640 = vadd.f32 %v3638, %v3639
      %v3641 = vrot.slane %v3640, 2
      %v3642 = vadd.f32 %v3640, %v3641
      %v3643 = vrot.slane %v3642, 1
      %v3644 = vadd.f32 %v3642, %v3643
      %v3645 = vrsqrt.pop %v3644
      %v3646 = vmul.f32 %v3644, %v3645
      %vm3647 = vcmp.eq.f32.partialorder %v3644, inf
      %v3648 = vsel %vm3647, %v3644, %v3646
      %vm3649 = vcmp.eq.f32.partialorder %v3644, 0.0
      %v3650 = vand.u32 %v3644, 2147483648
      %v3651 = vsel %vm3649, %v3650, %v3648
      %v3652 = vsub.f32 %v3651, 0.5
      %v3653 = vmax.f32 %v3652, 0.0
      %v3654 = vmul.f32 %v3653, %v3653
      %v3655 = vmul.f32 %v3445, %v3654
      %3656 = vadd.xlane.f32.xlu0 %v3655
      %v3657 = vpop.xlane.xlu0 %3656
      %v3658 = vmul.f32 %v3657, %v3529
      %v3659 = vmul.f32 %v3658, %v3450
      %v3660 = vrot.slane %v3659, 4
      %v3661 = vadd.f32 %v3659, %v3660
      %v3662 = vrot.slane %v3661, 2
      %v3663 = vadd.f32 %v3661, %v3662
      %v3664 = vrot.slane %v3663, 1
      %v3665 = vadd.f32 %v3663, %v3664
      %v3666 = vrcp.pop %v3457
      %v3667 = vmul.f32 %v3665, %v3666
      %v3668 = vmul.f32 %v54, %v3450
      %v3669 = vsel %vm182, %v3668, 0.0
      %v3670 = vrot.slane %v3669, 4
      %v3671 = vadd.f32 %v3669, %v3670
      %v3672 = vrot.slane %v3671, 2
      %v3673 = vadd.f32 %v3671, %v3672
      %v3674 = vrot.slane %v3673, 1
      %v3675 = vadd.f32 %v3673, %v3674
      %v3676 = vmul.f32 %v3450, %v3675
      %v3678 = vcombine.high %v3530, %v3530
      %v3680 = vunpack.c.l.s4 1966171168
      %v3681 = vunpack.c.0.s8 %v3680
      %v3682 = vlaneseq
      %v3683 = vshrl.u32 %v3682, 7
      %v3684 = vsub.s32 %v3681, %v3683
      %v3685 = vrot.slane %v3530, %v3684
      %v3687 = vunpack.c.l.s4 1966171168
      %v3688 = vunpack.c.0.s8 %v3687
      %v3689 = vlaneseq
      %v3690 = vshrl.u32 %v3689, 7
      %v3691 = vsub.s32 %v3688, %v3690
      %v3692 = vrot.slane %v3678, %v3691
      %v3693 = vcombine.high %v3685, %v3685
      %v3694 = vcombine.high %v3692, %v3692
      %v3696 = vunpack.c.l.s4 1966171168
      %v3697 = vunpack.c.0.s8 %v3696
      %v3698 = vlaneseq
      %v3699 = vshrl.u32 %v3698, 7
      %v3700 = vsub.s32 %v3697, %v3699
      %v3701 = vrot.slane %v3685, %v3700
      %v3703 = vunpack.c.l.s4 1966171168
      %v3704 = vunpack.c.0.s8 %v3703
      %v3705 = vlaneseq
      %v3706 = vshrl.u32 %v3705, 7
      %v3707 = vsub.s32 %v3704, %v3706
      %v3708 = vrot.slane %v3692, %v3707
      %v3710 = vunpack.c.l.s4 1966171168
      %v3711 = vunpack.c.0.s8 %v3710
      %v3712 = vlaneseq
      %v3713 = vshrl.u32 %v3712, 7
      %v3714 = vsub.s32 %v3711, %v3713
      %v3715 = vrot.slane %v3693, %v3714
      %v3717 = vunpack.c.l.s4 1966171168
      %v3718 = vunpack.c.0.s8 %v3717
      %v3719 = vlaneseq
      %v3720 = vshrl.u32 %v3719, 7
      %v3721 = vsub.s32 %v3718, %v3720
      %v3722 = vrot.slane %v3694, %v3721
      %v3723 = vcombine.high %v3701, %v3701
      %v3724 = vcombine.high %v3708, %v3708
      %v3725 = vcombine.high %v3715, %v3715
      %v3726 = vcombine.high %v3722, %v3722
      %v3727 = vlaneseq
      %v3728 = vshrl.u32 %v3727, 7
      %v3729 = vsub.s32 0, %v3728
      %v3730 = vrot.slane %v3701, %v3729
      %v3731 = vlaneseq
      %v3732 = vshrl.u32 %v3731, 7
      %v3733 = vsub.s32 0, %v3732
      %v3734 = vrot.slane %v3715, %v3733
      %v3735 = vlaneseq
      %v3736 = vshrl.u32 %v3735, 7
      %v3737 = vsub.s32 0, %v3736
      %v3738 = vrot.slane %v3723, %v3737
      %v3739 = vlaneseq
      %v3740 = vshrl.u32 %v3739, 7
      %v3741 = vsub.s32 0, %v3740
      %v3742 = vrot.slane %v3725, %v3741
      %v3743 = vlaneseq
      %v3744 = vshrl.u32 %v3743, 7
      %v3745 = vsub.s32 0, %v3744
      %v3746 = vrot.slane %v3708, %v3745
      %v3747 = vlaneseq
      %v3748 = vshrl.u32 %v3747, 7
      %v3749 = vsub.s32 0, %v3748
      %v3750 = vrot.slane %v3722, %v3749
      %v3751 = vlaneseq
      %v3752 = vshrl.u32 %v3751, 7
      %v3753 = vsub.s32 0, %v3752
      %v3754 = vrot.slane %v3724, %v3753
      %v3755 = vlaneseq
      %v3756 = vshrl.u32 %v3755, 7
      %v3757 = vsub.s32 0, %v3756
      %v3758 = vrot.slane %v3726, %v3757
      %v3767 = vsub.f32 %v3730, %v3530
      %v3768 = vsub.f32 %v3734, %v3530
      %v3769 = vsub.f32 %v3738, %v3530
      %v3770 = vsub.f32 %v3742, %v3530
      %v3771 = vsub.f32 %v3746, %v3530
      %v3772 = vsub.f32 %v3750, %v3530
      %v3773 = vsub.f32 %v3754, %v3530
      %v3774 = vsub.f32 %v3758, %v3530
      %v3775 = vadd.f32 %v3767, 1e-08
      %v3776 = vadd.f32 %v3768, 1e-08
      %v3777 = vadd.f32 %v3769, 1e-08
      %v3778 = vadd.f32 %v3770, 1e-08
      %v3779 = vadd.f32 %v3771, 1e-08
      %v3780 = vadd.f32 %v3772, 1e-08
      %v3781 = vadd.f32 %v3773, 1e-08
      %v3782 = vadd.f32 %v3774, 1e-08
      %v3783 = vmul.f32 %v3775, %v3775
      %v3784 = vmul.f32 %v3776, %v3776
      %v3785 = vmul.f32 %v3777, %v3777
      %v3786 = vmul.f32 %v3778, %v3778
      %v3787 = vmul.f32 %v3779, %v3779
      %v3788 = vmul.f32 %v3780, %v3780
      %v3789 = vmul.f32 %v3781, %v3781
      %v3790 = vmul.f32 %v3782, %v3782
      %v3791 = vsel %vm182, %v3783, 0.0
      %3792 = vadd.xlane.f32.xlu0 %v3791
      %v3793 = vpop.xlane.xlu0 %3792
      %v3794 = vsel %vm182, %v3784, 0.0
      %3795 = vadd.xlane.f32.xlu0 %v3794
      %v3796 = vpop.xlane.xlu0 %3795
      %v3797 = vsel %vm182, %v3785, 0.0
      %3798 = vadd.xlane.f32.xlu0 %v3797
      %v3799 = vpop.xlane.xlu0 %3798
      %v3800 = vsel %vm182, %v3786, 0.0
      %3801 = vadd.xlane.f32.xlu0 %v3800
      %v3802 = vpop.xlane.xlu0 %3801
      %v3803 = vsel %vm182, %v3787, 0.0
      %3804 = vadd.xlane.f32.xlu0 %v3803
      %v3805 = vpop.xlane.xlu0 %3804
      %v3806 = vsel %vm182, %v3788, 0.0
      %3807 = vadd.xlane.f32.xlu0 %v3806
      %v3808 = vpop.xlane.xlu0 %3807
      %v3809 = vsel %vm182, %v3789, 0.0
      %3810 = vadd.xlane.f32.xlu0 %v3809
      %v3811 = vpop.xlane.xlu0 %3810
      %v3812 = vsel %vm182, %v3790, 0.0
      %3813 = vadd.xlane.f32.xlu0 %v3812
      %v3814 = vpop.xlane.xlu0 %3813
      %v3815 = vrsqrt.pop %v3793
      %v3816 = vmul.f32 %v3793, %v3815
      %vm3817 = vcmp.eq.f32.partialorder %v3793, inf
      %v3818 = vsel %vm3817, %v3793, %v3816
      %vm3819 = vcmp.eq.f32.partialorder %v3793, 0.0
      %v3820 = vand.u32 %v3793, 2147483648
      %v3821 = vsel %vm3819, %v3820, %v3818
      %v3822 = vrsqrt.pop %v3796
      %v3823 = vmul.f32 %v3796, %v3822
      %vm3824 = vcmp.eq.f32.partialorder %v3796, inf
      %v3825 = vsel %vm3824, %v3796, %v3823
      %vm3826 = vcmp.eq.f32.partialorder %v3796, 0.0
      %v3827 = vand.u32 %v3796, 2147483648
      %v3828 = vsel %vm3826, %v3827, %v3825
      %v3829 = vrsqrt.pop %v3799
      %v3830 = vmul.f32 %v3799, %v3829
      %vm3831 = vcmp.eq.f32.partialorder %v3799, inf
      %v3832 = vsel %vm3831, %v3799, %v3830
      %vm3833 = vcmp.eq.f32.partialorder %v3799, 0.0
      %v3834 = vand.u32 %v3799, 2147483648
      %v3835 = vsel %vm3833, %v3834, %v3832
      %v3836 = vrsqrt.pop %v3802
      %v3837 = vmul.f32 %v3802, %v3836
      %vm3838 = vcmp.eq.f32.partialorder %v3802, inf
      %v3839 = vsel %vm3838, %v3802, %v3837
      %vm3840 = vcmp.eq.f32.partialorder %v3802, 0.0
      %v3841 = vand.u32 %v3802, 2147483648
      %v3842 = vsel %vm3840, %v3841, %v3839
      %v3843 = vrsqrt.pop %v3805
      %v3844 = vmul.f32 %v3805, %v3843
      %vm3845 = vcmp.eq.f32.partialorder %v3805, inf
      %v3846 = vsel %vm3845, %v3805, %v3844
      %vm3847 = vcmp.eq.f32.partialorder %v3805, 0.0
      %v3848 = vand.u32 %v3805, 2147483648
      %v3849 = vsel %vm3847, %v3848, %v3846
      %v3850 = vrsqrt.pop %v3808
      %v3851 = vmul.f32 %v3808, %v3850
      %vm3852 = vcmp.eq.f32.partialorder %v3808, inf
      %v3853 = vsel %vm3852, %v3808, %v3851
      %vm3854 = vcmp.eq.f32.partialorder %v3808, 0.0
      %v3855 = vand.u32 %v3808, 2147483648
      %v3856 = vsel %vm3854, %v3855, %v3853
      %v3857 = vrsqrt.pop %v3811
      %v3858 = vmul.f32 %v3811, %v3857
      %vm3859 = vcmp.eq.f32.partialorder %v3811, inf
      %v3860 = vsel %vm3859, %v3811, %v3858
      %vm3861 = vcmp.eq.f32.partialorder %v3811, 0.0
      %v3862 = vand.u32 %v3811, 2147483648
      %v3863 = vsel %vm3861, %v3862, %v3860
      %v3864 = vrsqrt.pop %v3814
      %v3865 = vmul.f32 %v3814, %v3864
      %vm3866 = vcmp.eq.f32.partialorder %v3814, inf
      %v3867 = vsel %vm3866, %v3814, %v3865
      %vm3868 = vcmp.eq.f32.partialorder %v3814, 0.0
      %v3869 = vand.u32 %v3814, 2147483648
      %v3870 = vsel %vm3868, %v3869, %v3867
      %v3871 = vsub.f32 3.0, %v3821
      %v3872 = vsub.f32 3.0, %v3828
      %v3873 = vsub.f32 3.0, %v3835
      %v3874 = vsub.f32 3.0, %v3842
      %v3875 = vsub.f32 3.0, %v3849
      %v3876 = vsub.f32 3.0, %v3856
      %v3877 = vsub.f32 3.0, %v3863
      %v3878 = vsub.f32 3.0, %v3870
      %v3879 = vmax.f32 %v3871, 0.0
      %v3880 = vmax.f32 %v3872, 0.0
      %v3881 = vmax.f32 %v3873, 0.0
      %v3882 = vmax.f32 %v3874, 0.0
      %v3883 = vmax.f32 %v3875, 0.0
      %v3884 = vmax.f32 %v3876, 0.0
      %v3885 = vmax.f32 %v3877, 0.0
      %v3886 = vmax.f32 %v3878, 0.0
      %v3887 = vmul.f32 %v3879, %v3879
      %v3888 = vmul.f32 %v3880, %v3880
      %v3889 = vmul.f32 %v3881, %v3881
      %v3890 = vmul.f32 %v3882, %v3882
      %v3891 = vmul.f32 %v3883, %v3883
      %v3892 = vmul.f32 %v3884, %v3884
      %v3893 = vmul.f32 %v3885, %v3885
      %v3894 = vmul.f32 %v3886, %v3886
      %v3895 = vmul.f32 %v3887, %v522
      %v3896 = vmul.f32 %v3888, %v529
      %v3897 = vmul.f32 %v3889, %v536
      %v3898 = vmul.f32 %v3890, %v543
      %v3899 = vmul.f32 %v3891, %v550
      %v3900 = vmul.f32 %v3892, %v557
      %v3901 = vmul.f32 %v3893, %v564
      %v3902 = vmul.f32 %v3894, %v571
      %v3904 = vlaneseq
      %v3905 = vshrl.u32 %v3904, 7
      %v3906 = vsub.s32 0, %v3905
      %v3907 = vrot.slane %v3676, %v3906
      %3909 = vbcast.lane.b32.xlu0 %v3907, 256
      %v3910 = vpop.permute.xlu0 %3909
      %v3911 = vlaneseq
      %v3912 = vshrl.u32 %v3911, 7
      %v3913 = vsub.s32 1, %v3912
      %v3914 = vrot.slane %v3676, %v3913
      %3916 = vbcast.lane.b32.xlu0 %v3914, 256
      %v3917 = vpop.permute.xlu0 %3916
      %v3918 = vlaneseq
      %v3919 = vshrl.u32 %v3918, 7
      %v3920 = vsub.s32 2, %v3919
      %v3921 = vrot.slane %v3676, %v3920
      %3923 = vbcast.lane.b32.xlu0 %v3921, 256
      %v3924 = vpop.permute.xlu0 %3923
      %v3925 = vlaneseq
      %v3926 = vshrl.u32 %v3925, 7
      %v3927 = vsub.s32 3, %v3926
      %v3928 = vrot.slane %v3676, %v3927
      %3930 = vbcast.lane.b32.xlu0 %v3928, 256
      %v3931 = vpop.permute.xlu0 %3930
      %v3932 = vlaneseq
      %v3933 = vshrl.u32 %v3932, 7
      %v3934 = vsub.s32 4, %v3933
      %v3935 = vrot.slane %v3676, %v3934
      %3937 = vbcast.lane.b32.xlu0 %v3935, 256
      %v3938 = vpop.permute.xlu0 %3937
      %v3939 = vlaneseq
      %v3940 = vshrl.u32 %v3939, 7
      %v3941 = vsub.s32 5, %v3940
      %v3942 = vrot.slane %v3676, %v3941
      %3944 = vbcast.lane.b32.xlu0 %v3942, 256
      %v3945 = vpop.permute.xlu0 %3944
      %v3946 = vlaneseq
      %v3947 = vshrl.u32 %v3946, 7
      %v3948 = vsub.s32 6, %v3947
      %v3949 = vrot.slane %v3676, %v3948
      %3951 = vbcast.lane.b32.xlu0 %v3949, 256
      %v3952 = vpop.permute.xlu0 %3951
      %v3953 = vlaneseq
      %v3954 = vshrl.u32 %v3953, 7
      %v3955 = vsub.s32 7, %v3954
      %v3956 = vrot.slane %v3676, %v3955
      %3958 = vbcast.lane.b32.xlu0 %v3956, 256
      %v3959 = vpop.permute.xlu0 %3958
      %v3968 = vmul.f32 %v3895, %v3910
      %v3969 = vmul.f32 %v3896, %v3917
      %v3970 = vmul.f32 %v3897, %v3924
      %v3971 = vmul.f32 %v3898, %v3931
      %v3972 = vmul.f32 %v3899, %v3938
      %v3973 = vmul.f32 %v3900, %v3945
      %v3974 = vmul.f32 %v3901, %v3952
      %v3975 = vmul.f32 %v3902, %v3959
      %3984 = vset.pattern.permute.xlu0 0
      %3985 = vperm.xlu0 %3984, %v3968
      %v3986 = vpop.permute.xlu0 %3985
      %3987 = vset.pattern.permute.xlu0 0
      %3988 = vperm.xlu0 %3987, %v3969
      %v3989 = vpop.permute.xlu0 %3988
      %3990 = vset.pattern.permute.xlu0 0
      %3991 = vperm.xlu0 %3990, %v3970
      %v3992 = vpop.permute.xlu0 %3991
      %3993 = vset.pattern.permute.xlu0 0
      %3994 = vperm.xlu0 %3993, %v3971
      %v3995 = vpop.permute.xlu0 %3994
      %3996 = vset.pattern.permute.xlu0 0
      %3997 = vperm.xlu0 %3996, %v3972
      %v3998 = vpop.permute.xlu0 %3997
      %3999 = vset.pattern.permute.xlu0 0
      %4000 = vperm.xlu0 %3999, %v3973
      %v4001 = vpop.permute.xlu0 %4000
      %4002 = vset.pattern.permute.xlu0 0
      %4003 = vperm.xlu0 %4002, %v3974
      %v4004 = vpop.permute.xlu0 %4003
      %4005 = vset.pattern.permute.xlu0 0
      %4006 = vperm.xlu0 %4005, %v3975
      %v4007 = vpop.permute.xlu0 %4006
      %v4008 = vlaneseq
      %v4009 = vshrl.u32 %v4008, 7
      %v4010 = vsub.s32 %v49, %v4009
      %v4011 = vrot.slane %v3986, %v4010
      %v4012 = vlaneseq
      %v4013 = vshrl.u32 %v4012, 7
      %v4014 = vsub.s32 %v49, %v4013
      %v4015 = vrot.slane %v3989, %v4014
      %v4016 = vlaneseq
      %v4017 = vshrl.u32 %v4016, 7
      %v4018 = vsub.s32 %v49, %v4017
      %v4019 = vrot.slane %v3992, %v4018
      %v4020 = vlaneseq
      %v4021 = vshrl.u32 %v4020, 7
      %v4022 = vsub.s32 %v49, %v4021
      %v4023 = vrot.slane %v3995, %v4022
      %v4024 = vlaneseq
      %v4025 = vshrl.u32 %v4024, 7
      %v4026 = vsub.s32 %v49, %v4025
      %v4027 = vrot.slane %v3998, %v4026
      %v4028 = vlaneseq
      %v4029 = vshrl.u32 %v4028, 7
      %v4030 = vsub.s32 %v49, %v4029
      %v4031 = vrot.slane %v4001, %v4030
      %v4032 = vlaneseq
      %v4033 = vshrl.u32 %v4032, 7
      %v4034 = vsub.s32 %v49, %v4033
      %v4035 = vrot.slane %v4004, %v4034
      %v4036 = vlaneseq
      %v4037 = vshrl.u32 %v4036, 7
      %v4038 = vsub.s32 %v49, %v4037
      %v4039 = vrot.slane %v4007, %v4038
      %v4040 = vsel %vm725, %v4015, %v4011
      %v4041 = vsel %vm727, %v4019, %v4040
      %v4042 = vsel %vm729, %v4023, %v4041
      %v4043 = vsel %vm731, %v4027, %v4042
      %v4044 = vsel %vm733, %v4031, %v4043
      %v4045 = vsel %vm735, %v4035, %v4044
      %v4046 = vsel %vm737, %v4039, %v4045
      %v4048 = vsel %vm182, %v4046, 0.0
      %4049 = vadd.xlane.f32.xlu0 %v4048
      %v4050 = vpop.xlane.xlu0 %4049
      %v4051 = vrot.slane %v4050, 4
      %v4052 = vadd.f32 %v4050, %v4051
      %v4053 = vrot.slane %v4052, 2
      %v4054 = vadd.f32 %v4052, %v4053
      %v4055 = vrot.slane %v4054, 1
      %v4056 = vadd.f32 %v4054, %v4055
      %v4057 = vsub.f32 %v3456, 1.0
      %v4058 = vmul.f32 %v4057, %v3456
      %v4059 = vmax.f32 %v4058, 1.0
      %vm4060 = vcmp.ge.f32.partialorder %v3456, 2.0
      %v4061 = vrcp.pop %v4059
      %v4062 = vmul.f32 %v4056, %v4061
      %v4063 = vsel %vm4060, %v4062, 0.0
      %v4064 = vadd.f32 %v3530, 1e-08
      %v4065 = vmul.f32 %v4064, %v4064
      %v4066 = vsel %vm182, %v4065, 0.0
      %4067 = vadd.xlane.f32.xlu0 %v4066
      %v4068 = vpop.xlane.xlu0 %4067
      %v4069 = vrsqrt.pop %v4068
      %v4070 = vmul.f32 %v4068, %v4069
      %vm4071 = vcmp.eq.f32.partialorder %v4068, inf
      %v4072 = vsel %vm4071, %v4068, %v4070
      %vm4073 = vcmp.eq.f32.partialorder %v4068, 0.0
      %v4074 = vand.u32 %v4068, 2147483648
      %v4075 = vsel %vm4073, %v4074, %v4072
      %v4076 = vmul.f32 %v4075, %v3450
      %v4077 = vrot.slane %v4076, 4
      %v4078 = vadd.f32 %v4076, %v4077
      %v4079 = vrot.slane %v4078, 2
      %v4080 = vadd.f32 %v4078, %v4079
      %v4081 = vrot.slane %v4080, 1
      %v4082 = vadd.f32 %v4080, %v4081
      %v4083 = vmul.f32 %v4082, %v3666
      %v4084 = vmul.f32 %v4083, 0.001
      %v4085 = vadd.f32 %v3667, %v4063
      %v4086 = vadd.f32 %v4085, %v4084
      %v4087 = vsel %vm779, %v4086, 0.0
      %v4088 = vsel %vm781, %v3667, 0.0
      %v4089 = vadd.f32 %v4087, %v4088
      %v4090 = vsel %vm784, %v4063, 0.0
      %v4091 = vadd.f32 %v4089, %v4090
      %v4092 = vsel %vm787, %v4084, 0.0
      %v4093 = vadd.f32 %v4091, %v4092
      %s4094 = scalar_lea.vmem [#allocation9], 5
      %4095 = vst [vmem:[%s4094] sm:$0x1] %v4093
      %s4096 = scalar_lea.vmem [#allocation4], 48
      %v4097 = vld [vmem:[%s4096] sm:$0xff]
      %s4098 = scalar_lea.vmem [#allocation7], 6
      %v4099 = vld [vmem:[%s4098] sm:$0x1]
      %v4100 = vlaneseq
      %v4101 = vshrl.u32 %v4100, 7
      %v4102 = vsub.s32 0, %v4101
      %v4103 = vrot.slane %v4099, %v4102
      %vm4104 = vcmp.eq.s32.totalorder %v4103, %v51
      %v4105 = vsel %vm4104, 1, 0
      %v4106 = vcvt.s32.f32 %v4105
      %4107 = vadd.xlane.f32.xlu0 %v4106
      %v4108 = vpop.xlane.xlu0 %4107
      %vm4109 = vcmp.gt.f32.partialorder %v4108, 0.5
      %v4110 = vsel %vm4109, 1, 0
      %v4111 = vcvt.s32.f32 %v4110
      %v4112 = vrot.slane %v4111, 4
      %v4113 = vadd.f32 %v4111, %v4112
      %v4114 = vrot.slane %v4113, 2
      %v4115 = vadd.f32 %v4113, %v4114
      %v4116 = vrot.slane %v4115, 1
      %v4117 = vadd.f32 %v4115, %v4116
      %v4118 = vmax.f32 %v4117, 1.0
      %4119 = vmatprep.subr.mxu0 0.0
      %4120 = vmatpush1.xpose.msra.mxu0 %v4097
      %4121 = vmatprep.subr.mxu0 0.0
      %4122 = vmatpush1.xpose.msra.mxu0 0.0
      %4123 = vmatprep.subr.mxu0 0.0
      %4124 = vmatpush1.xpose.msra.mxu0 0.0
      %4125 = vmatprep.subr.mxu0 0.0
      %4126 = vmatpush1.xpose.msra.mxu0 0.0
      %4127 = vmatprep.subr.mxu0 0.0
      %4128 = vmatpush1.xpose.msra.mxu0 0.0
      %4129 = vmatprep.subr.mxu0 0.0
      %4130 = vmatpush1.xpose.msra.mxu0 0.0
      %4131 = vmatprep.subr.mxu0 0.0
      %4132 = vmatpush1.xpose.msra.mxu0 0.0
      %4133 = vmatprep.subr.mxu0 0.0
      %4134 = vmatpush1.xpose.msra.mxu0 0.0
      %4135 = vmatprep.subr.mxu0 0.0
      %4136 = vmatpush1.xpose.msra.mxu0 0.0
      %4137 = vmatprep.subr.mxu0 0.0
      %4138 = vmatpush1.xpose.msra.mxu0 0.0
      %4139 = vmatprep.subr.mxu0 0.0
      %4140 = vmatpush1.xpose.msra.mxu0 0.0
      %4141 = vmatprep.subr.mxu0 0.0
      %4142 = vmatpush1.xpose.msra.mxu0 0.0
      %4143 = vmatprep.subr.mxu0 0.0
      %4144 = vmatpush1.xpose.msra.mxu0 0.0
      %4145 = vmatprep.subr.mxu0 0.0
      %4146 = vmatpush1.xpose.msra.mxu0 0.0
      %4147 = vmatprep.subr.mxu0 0.0
      %4148 = vmatpush1.xpose.msra.mxu0 0.0
      %4149 = vmatprep.subr.mxu0 0.0
      %4150 = vmatpush1.xpose.msra.mxu0 0.0
      %4151 = vmatprep.subr.mxu0 0.0
      %4152 = vmatpush1.xpose.msra.mxu0 0.0
      %4153 = vmatprep.subr.mxu0 0.0
      %4154 = vmatpush1.xpose.msra.mxu0 0.0
      %4155 = vmatprep.subr.mxu0 0.0
      %4156 = vmatpush1.xpose.msra.mxu0 0.0
      %4157 = vmatprep.subr.mxu0 0.0
      %4158 = vmatpush1.xpose.msra.mxu0 0.0
      %4159 = vmatprep.subr.mxu0 0.0
      %4160 = vmatpush1.xpose.msra.mxu0 0.0
      %4161 = vmatprep.subr.mxu0 0.0
      %4162 = vmatpush1.xpose.msra.mxu0 0.0
      %4163 = vmatprep.subr.mxu0 0.0
      %4164 = vmatpush1.xpose.msra.mxu0 0.0
      %4165 = vmatprep.subr.mxu0 0.0
      %4166 = vmatpush1.xpose.msra.mxu0 0.0
      %4167 = vmatprep.subr.mxu0 0.0
      %4168 = vmatpush1.xpose.msra.mxu0 0.0
      %4169 = vmatprep.subr.mxu0 0.0
      %4170 = vmatpush1.xpose.msra.mxu0 0.0
      %4171 = vmatprep.subr.mxu0 0.0
      %4172 = vmatpush1.xpose.msra.mxu0 0.0
      %4173 = vmatprep.subr.mxu0 0.0
      %4174 = vmatpush1.xpose.msra.mxu0 0.0
      %4175 = vmatprep.subr.mxu0 0.0
      %4176 = vmatpush1.xpose.msra.mxu0 0.0
      %4177 = vmatprep.subr.mxu0 0.0
      %4178 = vmatpush1.xpose.msra.mxu0 0.0
      %4179 = vmatprep.subr.mxu0 0.0
      %4180 = vmatpush1.xpose.msra.mxu0 0.0
      %4181 = vmatprep.subr.mxu0 0.0
      %4182 = vmatpush1.xpose.msra.mxu0 0.0
      %4183 = vmatprep.mubr.f32.mxu0 0.0
      %4184 = vmatmul.mubr.f32.gmra.mrb[0].mxu0 %v4106
      %v4185 = vpop.f32.mrb[0].mxu0
      %v4186 = vadd.f32 0.0, %v4185
      %v4187 = vpop.f32.mrb[0].mxu0
      %4188 = vdwg.mxu0
      %v4189 = vmax.f32 %v4108, 1.0
      %v4190 = vrcp.pop %v4189
      %v4191 = vmul.f32 %v4186, %v4190
      %4192 = vxpose.xlu0.b32.start [1/16] %v4191, 128
      %4193 = vxpose.xlu0.b32.cont [2/16] 0.0, 128
      %4194 = vxpose.xlu0.b32.cont [3/16] 0.0, 128
      %4195 = vxpose.xlu0.b32.cont [4/16] 0.0, 128
      %4196 = vxpose.xlu0.b32.cont [5/16] 0.0, 128
      %4197 = vxpose.xlu0.b32.cont [6/16] 0.0, 128
      %4198 = vxpose.xlu0.b32.cont [7/16] 0.0, 128
      %4199 = vxpose.xlu0.b32.cont [8/16] 0.0, 128
      %4200 = vxpose.xlu0.b32.cont [9/16] 0.0, 128
      %4201 = vxpose.xlu0.b32.cont [10/16] 0.0, 128
      %4202 = vxpose.xlu0.b32.cont [11/16] 0.0, 128
      %4203 = vxpose.xlu0.b32.cont [12/16] 0.0, 128
      %4204 = vxpose.xlu0.b32.cont [13/16] 0.0, 128
      %4205 = vxpose.xlu0.b32.cont [14/16] 0.0, 128
      %4206 = vxpose.xlu0.b32.cont [15/16] 0.0, 128
      %4207 = vxpose.xlu0.b32.end [16/16] 0.0, 128
      %v4208 = vpop.trf.xlu0
      %v4209 = vpop.trf.xlu0
      %v4210 = vpop.trf.xlu0
      %v4211 = vpop.trf.xlu0
      %v4212 = vpop.trf.xlu0
      %v4213 = vpop.trf.xlu0
      %v4214 = vpop.trf.xlu0
      %v4215 = vpop.trf.xlu0
      %v4216 = vpop.trf.xlu0
      %v4217 = vpop.trf.xlu0
      %v4218 = vpop.trf.xlu0
      %v4219 = vpop.trf.xlu0
      %v4220 = vpop.trf.xlu0
      %v4221 = vpop.trf.xlu0
      %v4222 = vpop.trf.xlu0
      %v4223 = vpop.trf.xlu0
      %v4225 = vsel %vm182, %v4208, 0
      %4227 = vmatprep.subr.mxu0 0.0
      %4228 = vmatpush1.msra.mxu0 %v4106
      %4229 = vmatprep.subr.mxu0 0.0
      %4230 = vmatpush1.msra.mxu0 0.0
      %4231 = vmatprep.subr.mxu0 0.0
      %4232 = vmatpush1.msra.mxu0 0.0
      %4233 = vmatprep.subr.mxu0 0.0
      %4234 = vmatpush1.msra.mxu0 0.0
      %4235 = vmatprep.subr.mxu0 0.0
      %4236 = vmatpush1.msra.mxu0 0.0
      %4237 = vmatprep.subr.mxu0 0.0
      %4238 = vmatpush1.msra.mxu0 0.0
      %4239 = vmatprep.subr.mxu0 0.0
      %4240 = vmatpush1.msra.mxu0 0.0
      %4241 = vmatprep.subr.mxu0 0.0
      %4242 = vmatpush1.msra.mxu0 0.0
      %4243 = vmatprep.subr.mxu0 0.0
      %4244 = vmatpush1.msra.mxu0 0.0
      %4245 = vmatprep.subr.mxu0 0.0
      %4246 = vmatpush1.msra.mxu0 0.0
      %4247 = vmatprep.subr.mxu0 0.0
      %4248 = vmatpush1.msra.mxu0 0.0
      %4249 = vmatprep.subr.mxu0 0.0
      %4250 = vmatpush1.msra.mxu0 0.0
      %4251 = vmatprep.subr.mxu0 0.0
      %4252 = vmatpush1.msra.mxu0 0.0
      %4253 = vmatprep.subr.mxu0 0.0
      %4254 = vmatpush1.msra.mxu0 0.0
      %4255 = vmatprep.subr.mxu0 0.0
      %4256 = vmatpush1.msra.mxu0 0.0
      %4257 = vmatprep.subr.mxu0 0.0
      %4258 = vmatpush1.msra.mxu0 0.0
      %4259 = vmatprep.subr.mxu0 0.0
      %4260 = vmatpush1.msra.mxu0 0.0
      %4261 = vmatprep.subr.mxu0 0.0
      %4262 = vmatpush1.msra.mxu0 0.0
      %4263 = vmatprep.subr.mxu0 0.0
      %4264 = vmatpush1.msra.mxu0 0.0
      %4265 = vmatprep.subr.mxu0 0.0
      %4266 = vmatpush1.msra.mxu0 0.0
      %4267 = vmatprep.subr.mxu0 0.0
      %4268 = vmatpush1.msra.mxu0 0.0
      %4269 = vmatprep.subr.mxu0 0.0
      %4270 = vmatpush1.msra.mxu0 0.0
      %4271 = vmatprep.subr.mxu0 0.0
      %4272 = vmatpush1.msra.mxu0 0.0
      %4273 = vmatprep.subr.mxu0 0.0
      %4274 = vmatpush1.msra.mxu0 0.0
      %4275 = vmatprep.subr.mxu0 0.0
      %4276 = vmatpush1.msra.mxu0 0.0
      %4277 = vmatprep.subr.mxu0 0.0
      %4278 = vmatpush1.msra.mxu0 0.0
      %4279 = vmatprep.subr.mxu0 0.0
      %4280 = vmatpush1.msra.mxu0 0.0
      %4281 = vmatprep.subr.mxu0 0.0
      %4282 = vmatpush1.msra.mxu0 0.0
      %4283 = vmatprep.subr.mxu0 0.0
      %4284 = vmatpush1.msra.mxu0 0.0
      %4285 = vmatprep.subr.mxu0 0.0
      %4286 = vmatpush1.msra.mxu0 0.0
      %4287 = vmatprep.subr.mxu0 0.0
      %4288 = vmatpush1.msra.mxu0 0.0
      %4289 = vmatprep.subr.mxu0 0.0
      %4290 = vmatpush1.msra.mxu0 0.0
      %4291 = vmatprep.mubr.f32.mxu0 0.0
      %4292 = vmatmul.mubr.f32.gmra.mrb[0].mxu0 %v4225
      %v4293 = vpop.f32.mrb[0].mxu0
      %v4294 = vadd.f32 0.0, %v4293
      %v4295 = vpop.f32.mrb[0].mxu0
      %4296 = vdwg.mxu0
      %v4297 = vsub.f32 %v4097, %v4294
      %v4298 = vadd.f32 %v4297, 1e-08
      %v4299 = vmul.f32 %v4298, %v4298
      %v4300 = vrot.slane %v4299, 4
      %v4301 = vadd.f32 %v4299, %v4300
      %v4302 = vrot.slane %v4301, 2
      %v4303 = vadd.f32 %v4301, %v4302
      %v4304 = vrot.slane %v4303, 1
      %v4305 = vadd.f32 %v4303, %v4304
      %v4306 = vrsqrt.pop %v4305
      %v4307 = vmul.f32 %v4305, %v4306
      %vm4308 = vcmp.eq.f32.partialorder %v4305, inf
      %v4309 = vsel %vm4308, %v4305, %v4307
      %vm4310 = vcmp.eq.f32.partialorder %v4305, 0.0
      %v4311 = vand.u32 %v4305, 2147483648
      %v4312 = vsel %vm4310, %v4311, %v4309
      %v4313 = vsub.f32 %v4312, 0.5
      %v4314 = vmax.f32 %v4313, 0.0
      %v4315 = vmul.f32 %v4314, %v4314
      %v4316 = vmul.f32 %v4106, %v4315
      %4317 = vadd.xlane.f32.xlu0 %v4316
      %v4318 = vpop.xlane.xlu0 %4317
      %v4319 = vmul.f32 %v4318, %v4190
      %v4320 = vmul.f32 %v4319, %v4111
      %v4321 = vrot.slane %v4320, 4
      %v4322 = vadd.f32 %v4320, %v4321
      %v4323 = vrot.slane %v4322, 2
      %v4324 = vadd.f32 %v4322, %v4323
      %v4325 = vrot.slane %v4324, 1
      %v4326 = vadd.f32 %v4324, %v4325
      %v4327 = vrcp.pop %v4118
      %v4328 = vmul.f32 %v4326, %v4327
      %v4329 = vmul.f32 %v54, %v4111
      %v4330 = vsel %vm182, %v4329, 0.0
      %v4331 = vrot.slane %v4330, 4
      %v4332 = vadd.f32 %v4330, %v4331
      %v4333 = vrot.slane %v4332, 2
      %v4334 = vadd.f32 %v4332, %v4333
      %v4335 = vrot.slane %v4334, 1
      %v4336 = vadd.f32 %v4334, %v4335
      %v4337 = vmul.f32 %v4111, %v4336
      %v4339 = vcombine.high %v4191, %v4191
      %v4341 = vunpack.c.l.s4 1966171168
      %v4342 = vunpack.c.0.s8 %v4341
      %v4343 = vlaneseq
      %v4344 = vshrl.u32 %v4343, 7
      %v4345 = vsub.s32 %v4342, %v4344
      %v4346 = vrot.slane %v4191, %v4345
      %v4348 = vunpack.c.l.s4 1966171168
      %v4349 = vunpack.c.0.s8 %v4348
      %v4350 = vlaneseq
      %v4351 = vshrl.u32 %v4350, 7
      %v4352 = vsub.s32 %v4349, %v4351
      %v4353 = vrot.slane %v4339, %v4352
      %v4354 = vcombine.high %v4346, %v4346
      %v4355 = vcombine.high %v4353, %v4353
      %v4357 = vunpack.c.l.s4 1966171168
      %v4358 = vunpack.c.0.s8 %v4357
      %v4359 = vlaneseq
      %v4360 = vshrl.u32 %v4359, 7
      %v4361 = vsub.s32 %v4358, %v4360
      %v4362 = vrot.slane %v4346, %v4361
      %v4364 = vunpack.c.l.s4 1966171168
      %v4365 = vunpack.c.0.s8 %v4364
      %v4366 = vlaneseq
      %v4367 = vshrl.u32 %v4366, 7
      %v4368 = vsub.s32 %v4365, %v4367
      %v4369 = vrot.slane %v4353, %v4368
      %v4371 = vunpack.c.l.s4 1966171168
      %v4372 = vunpack.c.0.s8 %v4371
      %v4373 = vlaneseq
      %v4374 = vshrl.u32 %v4373, 7
      %v4375 = vsub.s32 %v4372, %v4374
      %v4376 = vrot.slane %v4354, %v4375
      %v4378 = vunpack.c.l.s4 1966171168
      %v4379 = vunpack.c.0.s8 %v4378
      %v4380 = vlaneseq
      %v4381 = vshrl.u32 %v4380, 7
      %v4382 = vsub.s32 %v4379, %v4381
      %v4383 = vrot.slane %v4355, %v4382
      %v4384 = vcombine.high %v4362, %v4362
      %v4385 = vcombine.high %v4369, %v4369
      %v4386 = vcombine.high %v4376, %v4376
      %v4387 = vcombine.high %v4383, %v4383
      %v4388 = vlaneseq
      %v4389 = vshrl.u32 %v4388, 7
      %v4390 = vsub.s32 0, %v4389
      %v4391 = vrot.slane %v4362, %v4390
      %v4392 = vlaneseq
      %v4393 = vshrl.u32 %v4392, 7
      %v4394 = vsub.s32 0, %v4393
      %v4395 = vrot.slane %v4376, %v4394
      %v4396 = vlaneseq
      %v4397 = vshrl.u32 %v4396, 7
      %v4398 = vsub.s32 0, %v4397
      %v4399 = vrot.slane %v4384, %v4398
      %v4400 = vlaneseq
      %v4401 = vshrl.u32 %v4400, 7
      %v4402 = vsub.s32 0, %v4401
      %v4403 = vrot.slane %v4386, %v4402
      %v4404 = vlaneseq
      %v4405 = vshrl.u32 %v4404, 7
      %v4406 = vsub.s32 0, %v4405
      %v4407 = vrot.slane %v4369, %v4406
      %v4408 = vlaneseq
      %v4409 = vshrl.u32 %v4408, 7
      %v4410 = vsub.s32 0, %v4409
      %v4411 = vrot.slane %v4383, %v4410
      %v4412 = vlaneseq
      %v4413 = vshrl.u32 %v4412, 7
      %v4414 = vsub.s32 0, %v4413
      %v4415 = vrot.slane %v4385, %v4414
      %v4416 = vlaneseq
      %v4417 = vshrl.u32 %v4416, 7
      %v4418 = vsub.s32 0, %v4417
      %v4419 = vrot.slane %v4387, %v4418
      %v4428 = vsub.f32 %v4391, %v4191
      %v4429 = vsub.f32 %v4395, %v4191
      %v4430 = vsub.f32 %v4399, %v4191
      %v4431 = vsub.f32 %v4403, %v4191
      %v4432 = vsub.f32 %v4407, %v4191
      %v4433 = vsub.f32 %v4411, %v4191
      %v4434 = vsub.f32 %v4415, %v4191
      %v4435 = vsub.f32 %v4419, %v4191
      %v4436 = vadd.f32 %v4428, 1e-08
      %v4437 = vadd.f32 %v4429, 1e-08
      %v4438 = vadd.f32 %v4430, 1e-08
      %v4439 = vadd.f32 %v4431, 1e-08
      %v4440 = vadd.f32 %v4432, 1e-08
      %v4441 = vadd.f32 %v4433, 1e-08
      %v4442 = vadd.f32 %v4434, 1e-08
      %v4443 = vadd.f32 %v4435, 1e-08
      %v4444 = vmul.f32 %v4436, %v4436
      %v4445 = vmul.f32 %v4437, %v4437
      %v4446 = vmul.f32 %v4438, %v4438
      %v4447 = vmul.f32 %v4439, %v4439
      %v4448 = vmul.f32 %v4440, %v4440
      %v4449 = vmul.f32 %v4441, %v4441
      %v4450 = vmul.f32 %v4442, %v4442
      %v4451 = vmul.f32 %v4443, %v4443
      %v4452 = vsel %vm182, %v4444, 0.0
      %4453 = vadd.xlane.f32.xlu0 %v4452
      %v4454 = vpop.xlane.xlu0 %4453
      %v4455 = vsel %vm182, %v4445, 0.0
      %4456 = vadd.xlane.f32.xlu0 %v4455
      %v4457 = vpop.xlane.xlu0 %4456
      %v4458 = vsel %vm182, %v4446, 0.0
      %4459 = vadd.xlane.f32.xlu0 %v4458
      %v4460 = vpop.xlane.xlu0 %4459
      %v4461 = vsel %vm182, %v4447, 0.0
      %4462 = vadd.xlane.f32.xlu0 %v4461
      %v4463 = vpop.xlane.xlu0 %4462
      %v4464 = vsel %vm182, %v4448, 0.0
      %4465 = vadd.xlane.f32.xlu0 %v4464
      %v4466 = vpop.xlane.xlu0 %4465
      %v4467 = vsel %vm182, %v4449, 0.0
      %4468 = vadd.xlane.f32.xlu0 %v4467
      %v4469 = vpop.xlane.xlu0 %4468
      %v4470 = vsel %vm182, %v4450, 0.0
      %4471 = vadd.xlane.f32.xlu0 %v4470
      %v4472 = vpop.xlane.xlu0 %4471
      %v4473 = vsel %vm182, %v4451, 0.0
      %4474 = vadd.xlane.f32.xlu0 %v4473
      %v4475 = vpop.xlane.xlu0 %4474
      %v4476 = vrsqrt.pop %v4454
      %v4477 = vmul.f32 %v4454, %v4476
      %vm4478 = vcmp.eq.f32.partialorder %v4454, inf
      %v4479 = vsel %vm4478, %v4454, %v4477
      %vm4480 = vcmp.eq.f32.partialorder %v4454, 0.0
      %v4481 = vand.u32 %v4454, 2147483648
      %v4482 = vsel %vm4480, %v4481, %v4479
      %v4483 = vrsqrt.pop %v4457
      %v4484 = vmul.f32 %v4457, %v4483
      %vm4485 = vcmp.eq.f32.partialorder %v4457, inf
      %v4486 = vsel %vm4485, %v4457, %v4484
      %vm4487 = vcmp.eq.f32.partialorder %v4457, 0.0
      %v4488 = vand.u32 %v4457, 2147483648
      %v4489 = vsel %vm4487, %v4488, %v4486
      %v4490 = vrsqrt.pop %v4460
      %v4491 = vmul.f32 %v4460, %v4490
      %vm4492 = vcmp.eq.f32.partialorder %v4460, inf
      %v4493 = vsel %vm4492, %v4460, %v4491
      %vm4494 = vcmp.eq.f32.partialorder %v4460, 0.0
      %v4495 = vand.u32 %v4460, 2147483648
      %v4496 = vsel %vm4494, %v4495, %v4493
      %v4497 = vrsqrt.pop %v4463
      %v4498 = vmul.f32 %v4463, %v4497
      %vm4499 = vcmp.eq.f32.partialorder %v4463, inf
      %v4500 = vsel %vm4499, %v4463, %v4498
      %vm4501 = vcmp.eq.f32.partialorder %v4463, 0.0
      %v4502 = vand.u32 %v4463, 2147483648
      %v4503 = vsel %vm4501, %v4502, %v4500
      %v4504 = vrsqrt.pop %v4466
      %v4505 = vmul.f32 %v4466, %v4504
      %vm4506 = vcmp.eq.f32.partialorder %v4466, inf
      %v4507 = vsel %vm4506, %v4466, %v4505
      %vm4508 = vcmp.eq.f32.partialorder %v4466, 0.0
      %v4509 = vand.u32 %v4466, 2147483648
      %v4510 = vsel %vm4508, %v4509, %v4507
      %v4511 = vrsqrt.pop %v4469
      %v4512 = vmul.f32 %v4469, %v4511
      %vm4513 = vcmp.eq.f32.partialorder %v4469, inf
      %v4514 = vsel %vm4513, %v4469, %v4512
      %vm4515 = vcmp.eq.f32.partialorder %v4469, 0.0
      %v4516 = vand.u32 %v4469, 2147483648
      %v4517 = vsel %vm4515, %v4516, %v4514
      %v4518 = vrsqrt.pop %v4472
      %v4519 = vmul.f32 %v4472, %v4518
      %vm4520 = vcmp.eq.f32.partialorder %v4472, inf
      %v4521 = vsel %vm4520, %v4472, %v4519
      %vm4522 = vcmp.eq.f32.partialorder %v4472, 0.0
      %v4523 = vand.u32 %v4472, 2147483648
      %v4524 = vsel %vm4522, %v4523, %v4521
      %v4525 = vrsqrt.pop %v4475
      %v4526 = vmul.f32 %v4475, %v4525
      %vm4527 = vcmp.eq.f32.partialorder %v4475, inf
      %v4528 = vsel %vm4527, %v4475, %v4526
      %vm4529 = vcmp.eq.f32.partialorder %v4475, 0.0
      %v4530 = vand.u32 %v4475, 2147483648
      %v4531 = vsel %vm4529, %v4530, %v4528
      %v4532 = vsub.f32 3.0, %v4482
      %v4533 = vsub.f32 3.0, %v4489
      %v4534 = vsub.f32 3.0, %v4496
      %v4535 = vsub.f32 3.0, %v4503
      %v4536 = vsub.f32 3.0, %v4510
      %v4537 = vsub.f32 3.0, %v4517
      %v4538 = vsub.f32 3.0, %v4524
      %v4539 = vsub.f32 3.0, %v4531
      %v4540 = vmax.f32 %v4532, 0.0
      %v4541 = vmax.f32 %v4533, 0.0
      %v4542 = vmax.f32 %v4534, 0.0
      %v4543 = vmax.f32 %v4535, 0.0
      %v4544 = vmax.f32 %v4536, 0.0
      %v4545 = vmax.f32 %v4537, 0.0
      %v4546 = vmax.f32 %v4538, 0.0
      %v4547 = vmax.f32 %v4539, 0.0
      %v4548 = vmul.f32 %v4540, %v4540
      %v4549 = vmul.f32 %v4541, %v4541
      %v4550 = vmul.f32 %v4542, %v4542
      %v4551 = vmul.f32 %v4543, %v4543
      %v4552 = vmul.f32 %v4544, %v4544
      %v4553 = vmul.f32 %v4545, %v4545
      %v4554 = vmul.f32 %v4546, %v4546
      %v4555 = vmul.f32 %v4547, %v4547
      %v4556 = vmul.f32 %v4548, %v522
      %v4557 = vmul.f32 %v4549, %v529
      %v4558 = vmul.f32 %v4550, %v536
      %v4559 = vmul.f32 %v4551, %v543
      %v4560 = vmul.f32 %v4552, %v550
      %v4561 = vmul.f32 %v4553, %v557
      %v4562 = vmul.f32 %v4554, %v564
      %v4563 = vmul.f32 %v4555, %v571
      %v4565 = vlaneseq
      %v4566 = vshrl.u32 %v4565, 7
      %v4567 = vsub.s32 0, %v4566
      %v4568 = vrot.slane %v4337, %v4567
      %4570 = vbcast.lane.b32.xlu0 %v4568, 256
      %v4571 = vpop.permute.xlu0 %4570
      %v4572 = vlaneseq
      %v4573 = vshrl.u32 %v4572, 7
      %v4574 = vsub.s32 1, %v4573
      %v4575 = vrot.slane %v4337, %v4574
      %4577 = vbcast.lane.b32.xlu0 %v4575, 256
      %v4578 = vpop.permute.xlu0 %4577
      %v4579 = vlaneseq
      %v4580 = vshrl.u32 %v4579, 7
      %v4581 = vsub.s32 2, %v4580
      %v4582 = vrot.slane %v4337, %v4581
      %4584 = vbcast.lane.b32.xlu0 %v4582, 256
      %v4585 = vpop.permute.xlu0 %4584
      %v4586 = vlaneseq
      %v4587 = vshrl.u32 %v4586, 7
      %v4588 = vsub.s32 3, %v4587
      %v4589 = vrot.slane %v4337, %v4588
      %4591 = vbcast.lane.b32.xlu0 %v4589, 256
      %v4592 = vpop.permute.xlu0 %4591
      %v4593 = vlaneseq
      %v4594 = vshrl.u32 %v4593, 7
      %v4595 = vsub.s32 4, %v4594
      %v4596 = vrot.slane %v4337, %v4595
      %4598 = vbcast.lane.b32.xlu0 %v4596, 256
      %v4599 = vpop.permute.xlu0 %4598
      %v4600 = vlaneseq
      %v4601 = vshrl.u32 %v4600, 7
      %v4602 = vsub.s32 5, %v4601
      %v4603 = vrot.slane %v4337, %v4602
      %4605 = vbcast.lane.b32.xlu0 %v4603, 256
      %v4606 = vpop.permute.xlu0 %4605
      %v4607 = vlaneseq
      %v4608 = vshrl.u32 %v4607, 7
      %v4609 = vsub.s32 6, %v4608
      %v4610 = vrot.slane %v4337, %v4609
      %4612 = vbcast.lane.b32.xlu0 %v4610, 256
      %v4613 = vpop.permute.xlu0 %4612
      %v4614 = vlaneseq
      %v4615 = vshrl.u32 %v4614, 7
      %v4616 = vsub.s32 7, %v4615
      %v4617 = vrot.slane %v4337, %v4616
      %4619 = vbcast.lane.b32.xlu0 %v4617, 256
      %v4620 = vpop.permute.xlu0 %4619
      %v4629 = vmul.f32 %v4556, %v4571
      %v4630 = vmul.f32 %v4557, %v4578
      %v4631 = vmul.f32 %v4558, %v4585
      %v4632 = vmul.f32 %v4559, %v4592
      %v4633 = vmul.f32 %v4560, %v4599
      %v4634 = vmul.f32 %v4561, %v4606
      %v4635 = vmul.f32 %v4562, %v4613
      %v4636 = vmul.f32 %v4563, %v4620
      %4645 = vset.pattern.permute.xlu0 0
      %4646 = vperm.xlu0 %4645, %v4629
      %v4647 = vpop.permute.xlu0 %4646
      %4648 = vset.pattern.permute.xlu0 0
      %4649 = vperm.xlu0 %4648, %v4630
      %v4650 = vpop.permute.xlu0 %4649
      %4651 = vset.pattern.permute.xlu0 0
      %4652 = vperm.xlu0 %4651, %v4631
      %v4653 = vpop.permute.xlu0 %4652
      %4654 = vset.pattern.permute.xlu0 0
      %4655 = vperm.xlu0 %4654, %v4632
      %v4656 = vpop.permute.xlu0 %4655
      %4657 = vset.pattern.permute.xlu0 0
      %4658 = vperm.xlu0 %4657, %v4633
      %v4659 = vpop.permute.xlu0 %4658
      %4660 = vset.pattern.permute.xlu0 0
      %4661 = vperm.xlu0 %4660, %v4634
      %v4662 = vpop.permute.xlu0 %4661
      %4663 = vset.pattern.permute.xlu0 0
      %4664 = vperm.xlu0 %4663, %v4635
      %v4665 = vpop.permute.xlu0 %4664
      %4666 = vset.pattern.permute.xlu0 0
      %4667 = vperm.xlu0 %4666, %v4636
      %v4668 = vpop.permute.xlu0 %4667
      %v4669 = vlaneseq
      %v4670 = vshrl.u32 %v4669, 7
      %v4671 = vsub.s32 %v49, %v4670
      %v4672 = vrot.slane %v4647, %v4671
      %v4673 = vlaneseq
      %v4674 = vshrl.u32 %v4673, 7
      %v4675 = vsub.s32 %v49, %v4674
      %v4676 = vrot.slane %v4650, %v4675
      %v4677 = vlaneseq
      %v4678 = vshrl.u32 %v4677, 7
      %v4679 = vsub.s32 %v49, %v4678
      %v4680 = vrot.slane %v4653, %v4679
      %v4681 = vlaneseq
      %v4682 = vshrl.u32 %v4681, 7
      %v4683 = vsub.s32 %v49, %v4682
      %v4684 = vrot.slane %v4656, %v4683
      %v4685 = vlaneseq
      %v4686 = vshrl.u32 %v4685, 7
      %v4687 = vsub.s32 %v49, %v4686
      %v4688 = vrot.slane %v4659, %v4687
      %v4689 = vlaneseq
      %v4690 = vshrl.u32 %v4689, 7
      %v4691 = vsub.s32 %v49, %v4690
      %v4692 = vrot.slane %v4662, %v4691
      %v4693 = vlaneseq
      %v4694 = vshrl.u32 %v4693, 7
      %v4695 = vsub.s32 %v49, %v4694
      %v4696 = vrot.slane %v4665, %v4695
      %v4697 = vlaneseq
      %v4698 = vshrl.u32 %v4697, 7
      %v4699 = vsub.s32 %v49, %v4698
      %v4700 = vrot.slane %v4668, %v4699
      %v4701 = vsel %vm725, %v4676, %v4672
      %v4702 = vsel %vm727, %v4680, %v4701
      %v4703 = vsel %vm729, %v4684, %v4702
      %v4704 = vsel %vm731, %v4688, %v4703
      %v4705 = vsel %vm733, %v4692, %v4704
      %v4706 = vsel %vm735, %v4696, %v4705
      %v4707 = vsel %vm737, %v4700, %v4706
      %v4709 = vsel %vm182, %v4707, 0.0
      %4710 = vadd.xlane.f32.xlu0 %v4709
      %v4711 = vpop.xlane.xlu0 %4710
      %v4712 = vrot.slane %v4711, 4
      %v4713 = vadd.f32 %v4711, %v4712
      %v4714 = vrot.slane %v4713, 2
      %v4715 = vadd.f32 %v4713, %v4714
      %v4716 = vrot.slane %v4715, 1
      %v4717 = vadd.f32 %v4715, %v4716
      %v4718 = vsub.f32 %v4117, 1.0
      %v4719 = vmul.f32 %v4718, %v4117
      %v4720 = vmax.f32 %v4719, 1.0
      %vm4721 = vcmp.ge.f32.partialorder %v4117, 2.0
      %v4722 = vrcp.pop %v4720
      %v4723 = vmul.f32 %v4717, %v4722
      %v4724 = vsel %vm4721, %v4723, 0.0
      %v4725 = vadd.f32 %v4191, 1e-08
      %v4726 = vmul.f32 %v4725, %v4725
      %v4727 = vsel %vm182, %v4726, 0.0
      %4728 = vadd.xlane.f32.xlu0 %v4727
      %v4729 = vpop.xlane.xlu0 %4728
      %v4730 = vrsqrt.pop %v4729
      %v4731 = vmul.f32 %v4729, %v4730
      %vm4732 = vcmp.eq.f32.partialorder %v4729, inf
      %v4733 = vsel %vm4732, %v4729, %v4731
      %vm4734 = vcmp.eq.f32.partialorder %v4729, 0.0
      %v4735 = vand.u32 %v4729, 2147483648
      %v4736 = vsel %vm4734, %v4735, %v4733
      %v4737 = vmul.f32 %v4736, %v4111
      %v4738 = vrot.slane %v4737, 4
      %v4739 = vadd.f32 %v4737, %v4738
      %v4740 = vrot.slane %v4739, 2
      %v4741 = vadd.f32 %v4739, %v4740
      %v4742 = vrot.slane %v4741, 1
      %v4743 = vadd.f32 %v4741, %v4742
      %v4744 = vmul.f32 %v4743, %v4327
      %v4745 = vmul.f32 %v4744, 0.001
      %v4746 = vadd.f32 %v4328, %v4724
      %v4747 = vadd.f32 %v4746, %v4745
      %v4748 = vsel %vm779, %v4747, 0.0
      %v4749 = vsel %vm781, %v4328, 0.0
      %v4750 = vadd.f32 %v4748, %v4749
      %v4751 = vsel %vm784, %v4724, 0.0
      %v4752 = vadd.f32 %v4750, %v4751
      %v4753 = vsel %vm787, %v4745, 0.0
      %v4754 = vadd.f32 %v4752, %v4753
      %s4755 = scalar_lea.vmem [#allocation9], 6
      %4756 = vst [vmem:[%s4755] sm:$0x1] %v4754
      %s4757 = scalar_lea.vmem [#allocation4], 56
      %v4758 = vld [vmem:[%s4757] sm:$0xff]
      %s4759 = scalar_lea.vmem [#allocation7], 7
      %v4760 = vld [vmem:[%s4759] sm:$0x1]
      %v4761 = vlaneseq
      %v4762 = vshrl.u32 %v4761, 7
      %v4763 = vsub.s32 0, %v4762
      %v4764 = vrot.slane %v4760, %v4763
      %vm4765 = vcmp.eq.s32.totalorder %v4764, %v51
      %v4766 = vsel %vm4765, 1, 0
      %v4767 = vcvt.s32.f32 %v4766
      %4768 = vadd.xlane.f32.xlu0 %v4767
      %v4769 = vpop.xlane.xlu0 %4768
      %vm4770 = vcmp.gt.f32.partialorder %v4769, 0.5
      %v4771 = vsel %vm4770, 1, 0
      %v4772 = vcvt.s32.f32 %v4771
      %v4773 = vrot.slane %v4772, 4
      %v4774 = vadd.f32 %v4772, %v4773
      %v4775 = vrot.slane %v4774, 2
      %v4776 = vadd.f32 %v4774, %v4775
      %v4777 = vrot.slane %v4776, 1
      %v4778 = vadd.f32 %v4776, %v4777
      %v4779 = vmax.f32 %v4778, 1.0
      %4780 = vmatprep.subr.mxu0 0.0
      %4781 = vmatpush1.xpose.msra.mxu0 %v4758
      %4782 = vmatprep.subr.mxu0 0.0
      %4783 = vmatpush1.xpose.msra.mxu0 0.0
      %4784 = vmatprep.subr.mxu0 0.0
      %4785 = vmatpush1.xpose.msra.mxu0 0.0
      %4786 = vmatprep.subr.mxu0 0.0
      %4787 = vmatpush1.xpose.msra.mxu0 0.0
      %4788 = vmatprep.subr.mxu0 0.0
      %4789 = vmatpush1.xpose.msra.mxu0 0.0
      %4790 = vmatprep.subr.mxu0 0.0
      %4791 = vmatpush1.xpose.msra.mxu0 0.0
      %4792 = vmatprep.subr.mxu0 0.0
      %4793 = vmatpush1.xpose.msra.mxu0 0.0
      %4794 = vmatprep.subr.mxu0 0.0
      %4795 = vmatpush1.xpose.msra.mxu0 0.0
      %4796 = vmatprep.subr.mxu0 0.0
      %4797 = vmatpush1.xpose.msra.mxu0 0.0
      %4798 = vmatprep.subr.mxu0 0.0
      %4799 = vmatpush1.xpose.msra.mxu0 0.0
      %4800 = vmatprep.subr.mxu0 0.0
      %4801 = vmatpush1.xpose.msra.mxu0 0.0
      %4802 = vmatprep.subr.mxu0 0.0
      %4803 = vmatpush1.xpose.msra.mxu0 0.0
      %4804 = vmatprep.subr.mxu0 0.0
      %4805 = vmatpush1.xpose.msra.mxu0 0.0
      %4806 = vmatprep.subr.mxu0 0.0
      %4807 = vmatpush1.xpose.msra.mxu0 0.0
      %4808 = vmatprep.subr.mxu0 0.0
      %4809 = vmatpush1.xpose.msra.mxu0 0.0
      %4810 = vmatprep.subr.mxu0 0.0
      %4811 = vmatpush1.xpose.msra.mxu0 0.0
      %4812 = vmatprep.subr.mxu0 0.0
      %4813 = vmatpush1.xpose.msra.mxu0 0.0
      %4814 = vmatprep.subr.mxu0 0.0
      %4815 = vmatpush1.xpose.msra.mxu0 0.0
      %4816 = vmatprep.subr.mxu0 0.0
      %4817 = vmatpush1.xpose.msra.mxu0 0.0
      %4818 = vmatprep.subr.mxu0 0.0
      %4819 = vmatpush1.xpose.msra.mxu0 0.0
      %4820 = vmatprep.subr.mxu0 0.0
      %4821 = vmatpush1.xpose.msra.mxu0 0.0
      %4822 = vmatprep.subr.mxu0 0.0
      %4823 = vmatpush1.xpose.msra.mxu0 0.0
      %4824 = vmatprep.subr.mxu0 0.0
      %4825 = vmatpush1.xpose.msra.mxu0 0.0
      %4826 = vmatprep.subr.mxu0 0.0
      %4827 = vmatpush1.xpose.msra.mxu0 0.0
      %4828 = vmatprep.subr.mxu0 0.0
      %4829 = vmatpush1.xpose.msra.mxu0 0.0
      %4830 = vmatprep.subr.mxu0 0.0
      %4831 = vmatpush1.xpose.msra.mxu0 0.0
      %4832 = vmatprep.subr.mxu0 0.0
      %4833 = vmatpush1.xpose.msra.mxu0 0.0
      %4834 = vmatprep.subr.mxu0 0.0
      %4835 = vmatpush1.xpose.msra.mxu0 0.0
      %4836 = vmatprep.subr.mxu0 0.0
      %4837 = vmatpush1.xpose.msra.mxu0 0.0
      %4838 = vmatprep.subr.mxu0 0.0
      %4839 = vmatpush1.xpose.msra.mxu0 0.0
      %4840 = vmatprep.subr.mxu0 0.0
      %4841 = vmatpush1.xpose.msra.mxu0 0.0
      %4842 = vmatprep.subr.mxu0 0.0
      %4843 = vmatpush1.xpose.msra.mxu0 0.0
      %4844 = vmatprep.mubr.f32.mxu0 0.0
      %4845 = vmatmul.mubr.f32.gmra.mrb[0].mxu0 %v4767
      %v4846 = vpop.f32.mrb[0].mxu0
      %v4847 = vadd.f32 0.0, %v4846
      %v4848 = vpop.f32.mrb[0].mxu0
      %4849 = vdwg.mxu0
      %v4850 = vmax.f32 %v4769, 1.0
      %v4851 = vrcp.pop %v4850
      %v4852 = vmul.f32 %v4847, %v4851
      %4853 = vxpose.xlu0.b32.start [1/16] %v4852, 128
      %4854 = vxpose.xlu0.b32.cont [2/16] 0.0, 128
      %4855 = vxpose.xlu0.b32.cont [3/16] 0.0, 128
      %4856 = vxpose.xlu0.b32.cont [4/16] 0.0, 128
      %4857 = vxpose.xlu0.b32.cont [5/16] 0.0, 128
      %4858 = vxpose.xlu0.b32.cont [6/16] 0.0, 128
      %4859 = vxpose.xlu0.b32.cont [7/16] 0.0, 128
      %4860 = vxpose.xlu0.b32.cont [8/16] 0.0, 128
      %4861 = vxpose.xlu0.b32.cont [9/16] 0.0, 128
      %4862 = vxpose.xlu0.b32.cont [10/16] 0.0, 128
      %4863 = vxpose.xlu0.b32.cont [11/16] 0.0, 128
      %4864 = vxpose.xlu0.b32.cont [12/16] 0.0, 128
      %4865 = vxpose.xlu0.b32.cont [13/16] 0.0, 128
      %4866 = vxpose.xlu0.b32.cont [14/16] 0.0, 128
      %4867 = vxpose.xlu0.b32.cont [15/16] 0.0, 128
      %4868 = vxpose.xlu0.b32.end [16/16] 0.0, 128
      %v4869 = vpop.trf.xlu0
      %v4870 = vpop.trf.xlu0
      %v4871 = vpop.trf.xlu0
      %v4872 = vpop.trf.xlu0
      %v4873 = vpop.trf.xlu0
      %v4874 = vpop.trf.xlu0
      %v4875 = vpop.trf.xlu0
      %v4876 = vpop.trf.xlu0
      %v4877 = vpop.trf.xlu0
      %v4878 = vpop.trf.xlu0
      %v4879 = vpop.trf.xlu0
      %v4880 = vpop.trf.xlu0
      %v4881 = vpop.trf.xlu0
      %v4882 = vpop.trf.xlu0
      %v4883 = vpop.trf.xlu0
      %v4884 = vpop.trf.xlu0
      %v4886 = vsel %vm182, %v4869, 0
      %4888 = vmatprep.subr.mxu0 0.0
      %4889 = vmatpush1.msra.mxu0 %v4767
      %4890 = vmatprep.subr.mxu0 0.0
      %4891 = vmatpush1.msra.mxu0 0.0
      %4892 = vmatprep.subr.mxu0 0.0
      %4893 = vmatpush1.msra.mxu0 0.0
      %4894 = vmatprep.subr.mxu0 0.0
      %4895 = vmatpush1.msra.mxu0 0.0
      %4896 = vmatprep.subr.mxu0 0.0
      %4897 = vmatpush1.msra.mxu0 0.0
      %4898 = vmatprep.subr.mxu0 0.0
      %4899 = vmatpush1.msra.mxu0 0.0
      %4900 = vmatprep.subr.mxu0 0.0
      %4901 = vmatpush1.msra.mxu0 0.0
      %4902 = vmatprep.subr.mxu0 0.0
      %4903 = vmatpush1.msra.mxu0 0.0
      %4904 = vmatprep.subr.mxu0 0.0
      %4905 = vmatpush1.msra.mxu0 0.0
      %4906 = vmatprep.subr.mxu0 0.0
      %4907 = vmatpush1.msra.mxu0 0.0
      %4908 = vmatprep.subr.mxu0 0.0
      %4909 = vmatpush1.msra.mxu0 0.0
      %4910 = vmatprep.subr.mxu0 0.0
      %4911 = vmatpush1.msra.mxu0 0.0
      %4912 = vmatprep.subr.mxu0 0.0
      %4913 = vmatpush1.msra.mxu0 0.0
      %4914 = vmatprep.subr.mxu0 0.0
      %4915 = vmatpush1.msra.mxu0 0.0
      %4916 = vmatprep.subr.mxu0 0.0
      %4917 = vmatpush1.msra.mxu0 0.0
      %4918 = vmatprep.subr.mxu0 0.0
      %4919 = vmatpush1.msra.mxu0 0.0
      %4920 = vmatprep.subr.mxu0 0.0
      %4921 = vmatpush1.msra.mxu0 0.0
      %4922 = vmatprep.subr.mxu0 0.0
      %4923 = vmatpush1.msra.mxu0 0.0
      %4924 = vmatprep.subr.mxu0 0.0
      %4925 = vmatpush1.msra.mxu0 0.0
      %4926 = vmatprep.subr.mxu0 0.0
      %4927 = vmatpush1.msra.mxu0 0.0
      %4928 = vmatprep.subr.mxu0 0.0
      %4929 = vmatpush1.msra.mxu0 0.0
      %4930 = vmatprep.subr.mxu0 0.0
      %4931 = vmatpush1.msra.mxu0 0.0
      %4932 = vmatprep.subr.mxu0 0.0
      %4933 = vmatpush1.msra.mxu0 0.0
      %4934 = vmatprep.subr.mxu0 0.0
      %4935 = vmatpush1.msra.mxu0 0.0
      %4936 = vmatprep.subr.mxu0 0.0
      %4937 = vmatpush1.msra.mxu0 0.0
      %4938 = vmatprep.subr.mxu0 0.0
      %4939 = vmatpush1.msra.mxu0 0.0
      %4940 = vmatprep.subr.mxu0 0.0
      %4941 = vmatpush1.msra.mxu0 0.0
      %4942 = vmatprep.subr.mxu0 0.0
      %4943 = vmatpush1.msra.mxu0 0.0
      %4944 = vmatprep.subr.mxu0 0.0
      %4945 = vmatpush1.msra.mxu0 0.0
      %4946 = vmatprep.subr.mxu0 0.0
      %4947 = vmatpush1.msra.mxu0 0.0
      %4948 = vmatprep.subr.mxu0 0.0
      %4949 = vmatpush1.msra.mxu0 0.0
      %4950 = vmatprep.subr.mxu0 0.0
      %4951 = vmatpush1.msra.mxu0 0.0
      %4952 = vmatprep.mubr.f32.mxu0 0.0
      %4953 = vmatmul.mubr.f32.gmra.mrb[0].mxu0 %v4886
      %v4954 = vpop.f32.mrb[0].mxu0
      %v4955 = vadd.f32 0.0, %v4954
      %v4956 = vpop.f32.mrb[0].mxu0
      %4957 = vdwg.mxu0
      %v4958 = vsub.f32 %v4758, %v4955
      %v4959 = vadd.f32 %v4958, 1e-08
      %v4960 = vmul.f32 %v4959, %v4959
      %v4961 = vrot.slane %v4960, 4
      %v4962 = vadd.f32 %v4960, %v4961
      %v4963 = vrot.slane %v4962, 2
      %v4964 = vadd.f32 %v4962, %v4963
      %v4965 = vrot.slane %v4964, 1
      %v4966 = vadd.f32 %v4964, %v4965
      %v4967 = vrsqrt.pop %v4966
      %v4968 = vmul.f32 %v4966, %v4967
      %vm4969 = vcmp.eq.f32.partialorder %v4966, inf
      %v4970 = vsel %vm4969, %v4966, %v4968
      %vm4971 = vcmp.eq.f32.partialorder %v4966, 0.0
      %v4972 = vand.u32 %v4966, 2147483648
      %v4973 = vsel %vm4971, %v4972, %v4970
      %v4974 = vsub.f32 %v4973, 0.5
      %v4975 = vmax.f32 %v4974, 0.0
      %v4976 = vmul.f32 %v4975, %v4975
      %v4977 = vmul.f32 %v4767, %v4976
      %4978 = vadd.xlane.f32.xlu0 %v4977
      %v4979 = vpop.xlane.xlu0 %4978
      %v4980 = vmul.f32 %v4979, %v4851
      %v4981 = vmul.f32 %v4980, %v4772
      %v4982 = vrot.slane %v4981, 4
      %v4983 = vadd.f32 %v4981, %v4982
      %v4984 = vrot.slane %v4983, 2
      %v4985 = vadd.f32 %v4983, %v4984
      %v4986 = vrot.slane %v4985, 1
      %v4987 = vadd.f32 %v4985, %v4986
      %v4988 = vrcp.pop %v4779
      %v4989 = vmul.f32 %v4987, %v4988
      %v4990 = vmul.f32 %v54, %v4772
      %v4991 = vsel %vm182, %v4990, 0.0
      %v4992 = vrot.slane %v4991, 4
      %v4993 = vadd.f32 %v4991, %v4992
      %v4994 = vrot.slane %v4993, 2
      %v4995 = vadd.f32 %v4993, %v4994
      %v4996 = vrot.slane %v4995, 1
      %v4997 = vadd.f32 %v4995, %v4996
      %v4998 = vmul.f32 %v4772, %v4997
      %v5000 = vcombine.high %v4852, %v4852
      %v5002 = vunpack.c.l.s4 1966171168
      %v5003 = vunpack.c.0.s8 %v5002
      %v5004 = vlaneseq
      %v5005 = vshrl.u32 %v5004, 7
      %v5006 = vsub.s32 %v5003, %v5005
      %v5007 = vrot.slane %v4852, %v5006
      %v5009 = vunpack.c.l.s4 1966171168
      %v5010 = vunpack.c.0.s8 %v5009
      %v5011 = vlaneseq
      %v5012 = vshrl.u32 %v5011, 7
      %v5013 = vsub.s32 %v5010, %v5012
      %v5014 = vrot.slane %v5000, %v5013
      %v5015 = vcombine.high %v5007, %v5007
      %v5016 = vcombine.high %v5014, %v5014
      %v5018 = vunpack.c.l.s4 1966171168
      %v5019 = vunpack.c.0.s8 %v5018
      %v5020 = vlaneseq
      %v5021 = vshrl.u32 %v5020, 7
      %v5022 = vsub.s32 %v5019, %v5021
      %v5023 = vrot.slane %v5007, %v5022
      %v5025 = vunpack.c.l.s4 1966171168
      %v5026 = vunpack.c.0.s8 %v5025
      %v5027 = vlaneseq
      %v5028 = vshrl.u32 %v5027, 7
      %v5029 = vsub.s32 %v5026, %v5028
      %v5030 = vrot.slane %v5014, %v5029
      %v5032 = vunpack.c.l.s4 1966171168
      %v5033 = vunpack.c.0.s8 %v5032
      %v5034 = vlaneseq
      %v5035 = vshrl.u32 %v5034, 7
      %v5036 = vsub.s32 %v5033, %v5035
      %v5037 = vrot.slane %v5015, %v5036
      %v5039 = vunpack.c.l.s4 1966171168
      %v5040 = vunpack.c.0.s8 %v5039
      %v5041 = vlaneseq
      %v5042 = vshrl.u32 %v5041, 7
      %v5043 = vsub.s32 %v5040, %v5042
      %v5044 = vrot.slane %v5016, %v5043
      %v5045 = vcombine.high %v5023, %v5023
      %v5046 = vcombine.high %v5030, %v5030
      %v5047 = vcombine.high %v5037, %v5037
      %v5048 = vcombine.high %v5044, %v5044
      %v5049 = vlaneseq
      %v5050 = vshrl.u32 %v5049, 7
      %v5051 = vsub.s32 0, %v5050
      %v5052 = vrot.slane %v5023, %v5051
      %v5053 = vlaneseq
      %v5054 = vshrl.u32 %v5053, 7
      %v5055 = vsub.s32 0, %v5054
      %v5056 = vrot.slane %v5037, %v5055
      %v5057 = vlaneseq
      %v5058 = vshrl.u32 %v5057, 7
      %v5059 = vsub.s32 0, %v5058
      %v5060 = vrot.slane %v5045, %v5059
      %v5061 = vlaneseq
      %v5062 = vshrl.u32 %v5061, 7
      %v5063 = vsub.s32 0, %v5062
      %v5064 = vrot.slane %v5047, %v5063
      %v5065 = vlaneseq
      %v5066 = vshrl.u32 %v5065, 7
      %v5067 = vsub.s32 0, %v5066
      %v5068 = vrot.slane %v5030, %v5067
      %v5069 = vlaneseq
      %v5070 = vshrl.u32 %v5069, 7
      %v5071 = vsub.s32 0, %v5070
      %v5072 = vrot.slane %v5044, %v5071
      %v5073 = vlaneseq
      %v5074 = vshrl.u32 %v5073, 7
      %v5075 = vsub.s32 0, %v5074
      %v5076 = vrot.slane %v5046, %v5075
      %v5077 = vlaneseq
      %v5078 = vshrl.u32 %v5077, 7
      %v5079 = vsub.s32 0, %v5078
      %v5080 = vrot.slane %v5048, %v5079
      %v5089 = vsub.f32 %v5052, %v4852
      %v5090 = vsub.f32 %v5056, %v4852
      %v5091 = vsub.f32 %v5060, %v4852
      %v5092 = vsub.f32 %v5064, %v4852
      %v5093 = vsub.f32 %v5068, %v4852
      %v5094 = vsub.f32 %v5072, %v4852
      %v5095 = vsub.f32 %v5076, %v4852
      %v5096 = vsub.f32 %v5080, %v4852
      %v5097 = vadd.f32 %v5089, 1e-08
      %v5098 = vadd.f32 %v5090, 1e-08
      %v5099 = vadd.f32 %v5091, 1e-08
      %v5100 = vadd.f32 %v5092, 1e-08
      %v5101 = vadd.f32 %v5093, 1e-08
      %v5102 = vadd.f32 %v5094, 1e-08
      %v5103 = vadd.f32 %v5095, 1e-08
      %v5104 = vadd.f32 %v5096, 1e-08
      %v5105 = vmul.f32 %v5097, %v5097
      %v5106 = vmul.f32 %v5098, %v5098
      %v5107 = vmul.f32 %v5099, %v5099
      %v5108 = vmul.f32 %v5100, %v5100
      %v5109 = vmul.f32 %v5101, %v5101
      %v5110 = vmul.f32 %v5102, %v5102
      %v5111 = vmul.f32 %v5103, %v5103
      %v5112 = vmul.f32 %v5104, %v5104
      %v5113 = vsel %vm182, %v5105, 0.0
      %5114 = vadd.xlane.f32.xlu0 %v5113
      %v5115 = vpop.xlane.xlu0 %5114
      %v5116 = vsel %vm182, %v5106, 0.0
      %5117 = vadd.xlane.f32.xlu0 %v5116
      %v5118 = vpop.xlane.xlu0 %5117
      %v5119 = vsel %vm182, %v5107, 0.0
      %5120 = vadd.xlane.f32.xlu0 %v5119
      %v5121 = vpop.xlane.xlu0 %5120
      %v5122 = vsel %vm182, %v5108, 0.0
      %5123 = vadd.xlane.f32.xlu0 %v5122
      %v5124 = vpop.xlane.xlu0 %5123
      %v5125 = vsel %vm182, %v5109, 0.0
      %5126 = vadd.xlane.f32.xlu0 %v5125
      %v5127 = vpop.xlane.xlu0 %5126
      %v5128 = vsel %vm182, %v5110, 0.0
      %5129 = vadd.xlane.f32.xlu0 %v5128
      %v5130 = vpop.xlane.xlu0 %5129
      %v5131 = vsel %vm182, %v5111, 0.0
      %5132 = vadd.xlane.f32.xlu0 %v5131
      %v5133 = vpop.xlane.xlu0 %5132
      %v5134 = vsel %vm182, %v5112, 0.0
      %5135 = vadd.xlane.f32.xlu0 %v5134
      %v5136 = vpop.xlane.xlu0 %5135
      %v5137 = vrsqrt.pop %v5115
      %v5138 = vmul.f32 %v5115, %v5137
      %vm5139 = vcmp.eq.f32.partialorder %v5115, inf
      %v5140 = vsel %vm5139, %v5115, %v5138
      %vm5141 = vcmp.eq.f32.partialorder %v5115, 0.0
      %v5142 = vand.u32 %v5115, 2147483648
      %v5143 = vsel %vm5141, %v5142, %v5140
      %v5144 = vrsqrt.pop %v5118
      %v5145 = vmul.f32 %v5118, %v5144
      %vm5146 = vcmp.eq.f32.partialorder %v5118, inf
      %v5147 = vsel %vm5146, %v5118, %v5145
      %vm5148 = vcmp.eq.f32.partialorder %v5118, 0.0
      %v5149 = vand.u32 %v5118, 2147483648
      %v5150 = vsel %vm5148, %v5149, %v5147
      %v5151 = vrsqrt.pop %v5121
      %v5152 = vmul.f32 %v5121, %v5151
      %vm5153 = vcmp.eq.f32.partialorder %v5121, inf
      %v5154 = vsel %vm5153, %v5121, %v5152
      %vm5155 = vcmp.eq.f32.partialorder %v5121, 0.0
      %v5156 = vand.u32 %v5121, 2147483648
      %v5157 = vsel %vm5155, %v5156, %v5154
      %v5158 = vrsqrt.pop %v5124
      %v5159 = vmul.f32 %v5124, %v5158
      %vm5160 = vcmp.eq.f32.partialorder %v5124, inf
      %v5161 = vsel %vm5160, %v5124, %v5159
      %vm5162 = vcmp.eq.f32.partialorder %v5124, 0.0
      %v5163 = vand.u32 %v5124, 2147483648
      %v5164 = vsel %vm5162, %v5163, %v5161
      %v5165 = vrsqrt.pop %v5127
      %v5166 = vmul.f32 %v5127, %v5165
      %vm5167 = vcmp.eq.f32.partialorder %v5127, inf
      %v5168 = vsel %vm5167, %v5127, %v5166
      %vm5169 = vcmp.eq.f32.partialorder %v5127, 0.0
      %v5170 = vand.u32 %v5127, 2147483648
      %v5171 = vsel %vm5169, %v5170, %v5168
      %v5172 = vrsqrt.pop %v5130
      %v5173 = vmul.f32 %v5130, %v5172
      %vm5174 = vcmp.eq.f32.partialorder %v5130, inf
      %v5175 = vsel %vm5174, %v5130, %v5173
      %vm5176 = vcmp.eq.f32.partialorder %v5130, 0.0
      %v5177 = vand.u32 %v5130, 2147483648
      %v5178 = vsel %vm5176, %v5177, %v5175
      %v5179 = vrsqrt.pop %v5133
      %v5180 = vmul.f32 %v5133, %v5179
      %vm5181 = vcmp.eq.f32.partialorder %v5133, inf
      %v5182 = vsel %vm5181, %v5133, %v5180
      %vm5183 = vcmp.eq.f32.partialorder %v5133, 0.0
      %v5184 = vand.u32 %v5133, 2147483648
      %v5185 = vsel %vm5183, %v5184, %v5182
      %v5186 = vrsqrt.pop %v5136
      %v5187 = vmul.f32 %v5136, %v5186
      %vm5188 = vcmp.eq.f32.partialorder %v5136, inf
      %v5189 = vsel %vm5188, %v5136, %v5187
      %vm5190 = vcmp.eq.f32.partialorder %v5136, 0.0
      %v5191 = vand.u32 %v5136, 2147483648
      %v5192 = vsel %vm5190, %v5191, %v5189
      %v5193 = vsub.f32 3.0, %v5143
      %v5194 = vsub.f32 3.0, %v5150
      %v5195 = vsub.f32 3.0, %v5157
      %v5196 = vsub.f32 3.0, %v5164
      %v5197 = vsub.f32 3.0, %v5171
      %v5198 = vsub.f32 3.0, %v5178
      %v5199 = vsub.f32 3.0, %v5185
      %v5200 = vsub.f32 3.0, %v5192
      %v5201 = vmax.f32 %v5193, 0.0
      %v5202 = vmax.f32 %v5194, 0.0
      %v5203 = vmax.f32 %v5195, 0.0
      %v5204 = vmax.f32 %v5196, 0.0
      %v5205 = vmax.f32 %v5197, 0.0
      %v5206 = vmax.f32 %v5198, 0.0
      %v5207 = vmax.f32 %v5199, 0.0
      %v5208 = vmax.f32 %v5200, 0.0
      %v5209 = vmul.f32 %v5201, %v5201
      %v5210 = vmul.f32 %v5202, %v5202
      %v5211 = vmul.f32 %v5203, %v5203
      %v5212 = vmul.f32 %v5204, %v5204
      %v5213 = vmul.f32 %v5205, %v5205
      %v5214 = vmul.f32 %v5206, %v5206
      %v5215 = vmul.f32 %v5207, %v5207
      %v5216 = vmul.f32 %v5208, %v5208
      %v5217 = vmul.f32 %v5209, %v522
      %v5218 = vmul.f32 %v5210, %v529
      %v5219 = vmul.f32 %v5211, %v536
      %v5220 = vmul.f32 %v5212, %v543
      %v5221 = vmul.f32 %v5213, %v550
      %v5222 = vmul.f32 %v5214, %v557
      %v5223 = vmul.f32 %v5215, %v564
      %v5224 = vmul.f32 %v5216, %v571
      %v5226 = vlaneseq
      %v5227 = vshrl.u32 %v5226, 7
      %v5228 = vsub.s32 0, %v5227
      %v5229 = vrot.slane %v4998, %v5228
      %5231 = vbcast.lane.b32.xlu0 %v5229, 256
      %v5232 = vpop.permute.xlu0 %5231
      %v5233 = vlaneseq
      %v5234 = vshrl.u32 %v5233, 7
      %v5235 = vsub.s32 1, %v5234
      %v5236 = vrot.slane %v4998, %v5235
      %5238 = vbcast.lane.b32.xlu0 %v5236, 256
      %v5239 = vpop.permute.xlu0 %5238
      %v5240 = vlaneseq
      %v5241 = vshrl.u32 %v5240, 7
      %v5242 = vsub.s32 2, %v5241
      %v5243 = vrot.slane %v4998, %v5242
      %5245 = vbcast.lane.b32.xlu0 %v5243, 256
      %v5246 = vpop.permute.xlu0 %5245
      %v5247 = vlaneseq
      %v5248 = vshrl.u32 %v5247, 7
      %v5249 = vsub.s32 3, %v5248
      %v5250 = vrot.slane %v4998, %v5249
      %5252 = vbcast.lane.b32.xlu0 %v5250, 256
      %v5253 = vpop.permute.xlu0 %5252
      %v5254 = vlaneseq
      %v5255 = vshrl.u32 %v5254, 7
      %v5256 = vsub.s32 4, %v5255
      %v5257 = vrot.slane %v4998, %v5256
      %5259 = vbcast.lane.b32.xlu0 %v5257, 256
      %v5260 = vpop.permute.xlu0 %5259
      %v5261 = vlaneseq
      %v5262 = vshrl.u32 %v5261, 7
      %v5263 = vsub.s32 5, %v5262
      %v5264 = vrot.slane %v4998, %v5263
      %5266 = vbcast.lane.b32.xlu0 %v5264, 256
      %v5267 = vpop.permute.xlu0 %5266
      %v5268 = vlaneseq
      %v5269 = vshrl.u32 %v5268, 7
      %v5270 = vsub.s32 6, %v5269
      %v5271 = vrot.slane %v4998, %v5270
      %5273 = vbcast.lane.b32.xlu0 %v5271, 256
      %v5274 = vpop.permute.xlu0 %5273
      %v5275 = vlaneseq
      %v5276 = vshrl.u32 %v5275, 7
      %v5277 = vsub.s32 7, %v5276
      %v5278 = vrot.slane %v4998, %v5277
      %5280 = vbcast.lane.b32.xlu0 %v5278, 256
      %v5281 = vpop.permute.xlu0 %5280
      %v5290 = vmul.f32 %v5217, %v5232
      %v5291 = vmul.f32 %v5218, %v5239
      %v5292 = vmul.f32 %v5219, %v5246
      %v5293 = vmul.f32 %v5220, %v5253
      %v5294 = vmul.f32 %v5221, %v5260
      %v5295 = vmul.f32 %v5222, %v5267
      %v5296 = vmul.f32 %v5223, %v5274
      %v5297 = vmul.f32 %v5224, %v5281
      %5306 = vset.pattern.permute.xlu0 0
      %5307 = vperm.xlu0 %5306, %v5290
      %v5308 = vpop.permute.xlu0 %5307
      %5309 = vset.pattern.permute.xlu0 0
      %5310 = vperm.xlu0 %5309, %v5291
      %v5311 = vpop.permute.xlu0 %5310
      %5312 = vset.pattern.permute.xlu0 0
      %5313 = vperm.xlu0 %5312, %v5292
      %v5314 = vpop.permute.xlu0 %5313
      %5315 = vset.pattern.permute.xlu0 0
      %5316 = vperm.xlu0 %5315, %v5293
      %v5317 = vpop.permute.xlu0 %5316
      %5318 = vset.pattern.permute.xlu0 0
      %5319 = vperm.xlu0 %5318, %v5294
      %v5320 = vpop.permute.xlu0 %5319
      %5321 = vset.pattern.permute.xlu0 0
      %5322 = vperm.xlu0 %5321, %v5295
      %v5323 = vpop.permute.xlu0 %5322
      %5324 = vset.pattern.permute.xlu0 0
      %5325 = vperm.xlu0 %5324, %v5296
      %v5326 = vpop.permute.xlu0 %5325
      %5327 = vset.pattern.permute.xlu0 0
      %5328 = vperm.xlu0 %5327, %v5297
      %v5329 = vpop.permute.xlu0 %5328
      %v5330 = vlaneseq
      %v5331 = vshrl.u32 %v5330, 7
      %v5332 = vsub.s32 %v49, %v5331
      %v5333 = vrot.slane %v5308, %v5332
      %v5334 = vlaneseq
      %v5335 = vshrl.u32 %v5334, 7
      %v5336 = vsub.s32 %v49, %v5335
      %v5337 = vrot.slane %v5311, %v5336
      %v5338 = vlaneseq
      %v5339 = vshrl.u32 %v5338, 7
      %v5340 = vsub.s32 %v49, %v5339
      %v5341 = vrot.slane %v5314, %v5340
      %v5342 = vlaneseq
      %v5343 = vshrl.u32 %v5342, 7
      %v5344 = vsub.s32 %v49, %v5343
      %v5345 = vrot.slane %v5317, %v5344
      %v5346 = vlaneseq
      %v5347 = vshrl.u32 %v5346, 7
      %v5348 = vsub.s32 %v49, %v5347
      %v5349 = vrot.slane %v5320, %v5348
      %v5350 = vlaneseq
      %v5351 = vshrl.u32 %v5350, 7
      %v5352 = vsub.s32 %v49, %v5351
      %v5353 = vrot.slane %v5323, %v5352
      %v5354 = vlaneseq
      %v5355 = vshrl.u32 %v5354, 7
      %v5356 = vsub.s32 %v49, %v5355
      %v5357 = vrot.slane %v5326, %v5356
      %v5358 = vlaneseq
      %v5359 = vshrl.u32 %v5358, 7
      %v5360 = vsub.s32 %v49, %v5359
      %v5361 = vrot.slane %v5329, %v5360
      %v5362 = vsel %vm725, %v5337, %v5333
      %v5363 = vsel %vm727, %v5341, %v5362
      %v5364 = vsel %vm729, %v5345, %v5363
      %v5365 = vsel %vm731, %v5349, %v5364
      %v5366 = vsel %vm733, %v5353, %v5365
      %v5367 = vsel %vm735, %v5357, %v5366
      %v5368 = vsel %vm737, %v5361, %v5367
      %v5370 = vsel %vm182, %v5368, 0.0
      %5371 = vadd.xlane.f32.xlu0 %v5370
      %v5372 = vpop.xlane.xlu0 %5371
      %v5373 = vrot.slane %v5372, 4
      %v5374 = vadd.f32 %v5372, %v5373
      %v5375 = vrot.slane %v5374, 2
      %v5376 = vadd.f32 %v5374, %v5375
      %v5377 = vrot.slane %v5376, 1
      %v5378 = vadd.f32 %v5376, %v5377
      %v5379 = vsub.f32 %v4778, 1.0
      %v5380 = vmul.f32 %v5379, %v4778
      %v5381 = vmax.f32 %v5380, 1.0
      %vm5382 = vcmp.ge.f32.partialorder %v4778, 2.0
      %v5383 = vrcp.pop %v5381
      %v5384 = vmul.f32 %v5378, %v5383
      %v5385 = vsel %vm5382, %v5384, 0.0
      %v5386 = vadd.f32 %v4852, 1e-08
      %v5387 = vmul.f32 %v5386, %v5386
      %v5388 = vsel %vm182, %v5387, 0.0
      %5389 = vadd.xlane.f32.xlu0 %v5388
      %v5390 = vpop.xlane.xlu0 %5389
      %v5391 = vrsqrt.pop %v5390
      %v5392 = vmul.f32 %v5390, %v5391
      %vm5393 = vcmp.eq.f32.partialorder %v5390, inf
      %v5394 = vsel %vm5393, %v5390, %v5392
      %vm5395 = vcmp.eq.f32.partialorder %v5390, 0.0
      %v5396 = vand.u32 %v5390, 2147483648
      %v5397 = vsel %vm5395, %v5396, %v5394
      %v5398 = vmul.f32 %v5397, %v4772
      %v5399 = vrot.slane %v5398, 4
      %v5400 = vadd.f32 %v5398, %v5399
      %v5401 = vrot.slane %v5400, 2
      %v5402 = vadd.f32 %v5400, %v5401
      %v5403 = vrot.slane %v5402, 1
      %v5404 = vadd.f32 %v5402, %v5403
      %v5405 = vmul.f32 %v5404, %v4988
      %v5406 = vmul.f32 %v5405, 0.001
      %v5407 = vadd.f32 %v4989, %v5385
      %v5408 = vadd.f32 %v5407, %v5406
      %v5409 = vsel %vm779, %v5408, 0.0
      %v5410 = vsel %vm781, %v4989, 0.0
      %v5411 = vadd.f32 %v5409, %v5410
      %v5412 = vsel %vm784, %v5385, 0.0
      %v5413 = vadd.f32 %v5411, %v5412
      %v5414 = vsel %vm787, %v5406, 0.0
      %v5415 = vadd.f32 %v5413, %v5414
      %s5416 = scalar_lea.vmem [#allocation9], 7
      %5417 = vst [vmem:[%s5416] sm:$0x1] %v5415
    $region21: #{tpu_custom_call.1} parent=1 // pred_fallthru
      _
    // Predicated region
    $region22: #{tpu_custom_call.1} parent=1 // pred_check
      _
    $region23: #{tpu_custom_call.1} parent=1 // pred_check_branch
      %5419 = sbr.rel (0) target = $region25
    $region24: #{tpu_custom_call.1} parent=1 // pred_region
      %s5421 = ssub.s32 128, 128
      %5422 = vsyncadd [#allocation6], %s5421
      %s5423 = sshll.u32 [#allocation9], 4
      %s5424 = int_to_ptr.vmem [resolvable:$true] %s5423
      %5429 = dma.vmem_to_hbm [thread:$0]  %s5424, 128, %s3, [#allocation6], 16, 16, 1
    $region25: #{tpu_custom_call.1} parent=1 // pred_fallthru
      _
    // Predicated region
    $region26: #{tpu_custom_call.1} parent=1 // pred_check
      _
    $region27: #{tpu_custom_call.1} parent=1 // pred_check_branch
      %5431 = sbr.rel (0) target = $region29
    $region28: #{tpu_custom_call.1} parent=1 // pred_region
      %5432 = dma.done [#allocation6], 128
    $region29: #{tpu_custom_call.1} parent=1 // pred_fallthru
      _
    %5433 = vsyncpa [#allocation5], 1
    %5434 = vsyncpa [#allocation8], 1
    %5435 = vsyncpa [#allocation6], 1

</llo_original>
